<compile_context>
chip_gen: v5e
topology: v5e:2x2
jax: 0.10.0
libtpu: 0.0.40
codegen_flags: <defaults>
</compile_context>

<pallas_src>
from functools import partial

import numpy as np

import jax
import jax.numpy as jnp
from jax.experimental import pallas as pl
from jax.experimental.pallas import tpu as pltpu


# ----------------------------------------------------------------------------
# Kernel
# ----------------------------------------------------------------------------
def _geostat_kernel(
    grid_w,                               # static: conv1 output grid width (10)
    p1_ref, s_ref,                        # conv1 im2col patches, static features
    w1_ref, b1_ref,                       # conv1 (as one matmul)
    w2_ref, b2_ref,                       # conv2: 9 tap weights (tap, Cin, Cout), bias
    w3_ref, b3_ref,                       # conv3
    w4_ref, b4_ref,                       # conv4
    pool_ref,                             # avg-pool averaging matrices (4, B, rows)
    wf1_ref, bf1_ref,                     # fc1
    w2a_ref, w2b_ref, bf2_ref,            # fc2 (image half per pooled pixel / static half)
    wf3_ref, bf3_ref,                     # fc3
    wo_ref, bo_ref,                       # out
    o_ref,
):
    def mm(a, b):
        return jnp.dot(a, b, preferred_element_type=jnp.float32)

    def relu(v):
        return jnp.maximum(v, 0.0)

    rows = p1_ref.shape[0]                # B * 10 * 10 (sublane aligned)

    # conv1: stride == kernel -> non-overlapping patches -> one dense matmul.
    act = relu(mm(p1_ref[...], w1_ref[...]) + b1_ref[...])          # (rows, 128)

    # conv2..conv4 (3x3, stride 1, VALID) on the fixed conv1 grid.  Tap
    # (ky, kx) needs the activation shifted "up" by ky*grid_w + kx rows; that
    # shift is an XLU sublane roll which overlaps with the MXU matmuls.
    # Wrapped / cross-image rows are garbage but are never read by any valid
    # row of a later layer (VALID conv shrinkage guarantees it).
    def conv3x3(a, w_ref, b_ref):
        acc = mm(a, w_ref[0]) + b_ref[...]                          # tap (0, 0), shift 0
        for tap in range(1, 9):                                     # static unroll
            off = (tap // 3) * grid_w + (tap % 3)
            a_sh = pltpu.roll(a, rows - off, axis=0)                # == jnp.roll(a, -off, 0)
            acc = acc + mm(a_sh, w_ref[tap])
        return relu(acc)

    act = conv3x3(act, w2_ref, b2_ref)                              # valid on 8x8
    act = conv3x3(act, w3_ref, b3_ref)                              # valid on 6x6
    act = conv3x3(act, w4_ref, b4_ref)                              # valid on 4x4

    # fc1 branch on the static features.
    s1 = relu(mm(s_ref[...], wf1_ref[...]) + bf1_ref[...])          # (B, 512)

    # avg_pool(3,1) + NCHW flatten + fc2: the flatten permutation is folded
    # into per-pooled-pixel fc2 weight slices w2a_ref[p]; the pooling is a
    # tiny precomputed averaging matrix per pooled pixel.
    h = mm(s1, w2b_ref[...]) + bf2_ref[...]                         # (B, 256)
    for p in range(4):                                              # static unroll
        h = h + mm(mm(pool_ref[p], act), w2a_ref[p])
    h = relu(h)

    h = relu(mm(h, wf3_ref[...]) + bf3_ref[...])                    # (B, 128)
    o_ref[...] = (mm(h, wo_ref[...]) + bo_ref[...]).astype(o_ref.dtype)


# ----------------------------------------------------------------------------
# Host-side constant builder (tiny averaging matrices, built once per shape)
# ----------------------------------------------------------------------------
def _pool_select(batch, grid_h, grid_w, rows_padded):
    """(4, B, rows_padded) averaging matrices for avg_pool2d(3, 1) over the
    conv4-valid 4x4 top-left region of the (grid_h x grid_w) grid; one matrix
    per pooled output pixel p = py*2 + px."""
    sel = np.zeros((4, batch, rows_padded), np.float32)
    inv = 1.0 / 9.0
    for py in range(2):
        for px in range(2):
            p = py * 2 + px
            for b in range(batch):
                for ky in range(3):
                    for kx in range(3):
                        r = b * grid_h * grid_w + (py + ky) * grid_w + (px + kx)
                        sel[p, b, r] = inv
    return sel


# ----------------------------------------------------------------------------
# Wrapper
# ----------------------------------------------------------------------------
@jax.jit
def geostat_cnn_forward(t, s, params):
    """t: (B, C_in, 30, 30) NCHW, s: (B, in_features). Returns (B, out_features)."""
    (w1, b1, w2, b2, w3, b3, w4, b4,
     wf1, bf1, wf2, bf2, wf3, bf3, wo, bo) = params

    B, C, H, W = t.shape
    F_out = wo.shape[0]
    gh, gw = H // 3, W // 3                                           # 10, 10
    rows = B * gh * gw
    rows_pad = ((rows + 7) // 8) * 8                                  # sublane align

    # ---- plain-JAX layout plumbing (no compute) --------------------------
    # conv1: stride(3) == kernel(3) -> non-overlapping patches, pure reshape im2col.
    p1 = (t.reshape(B, C, gh, 3, gw, 3)
            .transpose(0, 2, 4, 1, 3, 5)                              # (B, y, x, c, ky, kx)
            .reshape(rows, C * 9)).astype(jnp.float32)
    if rows_pad != rows:
        p1 = jnp.pad(p1, ((0, rows_pad - rows), (0, 0)))
    w1m = w1.reshape(128, C * 9).T.astype(jnp.float32)                # (C*9, 128)

    # tap-major conv weights: (tap = ky*3+kx, C_in, C_out)
    def tap_major(w):
        return w.transpose(2, 3, 1, 0).reshape(9, 128, 128).astype(jnp.float32)
    w2t, w3t, w4t = tap_major(w2), tap_major(w3), tap_major(w4)

    # averaging matrices for avg_pool2d(3,1) on the conv4-valid region (~6 KiB)
    pool = jnp.asarray(_pool_select(B, gh, gw, rows_pad))             # (4, B, rows_pad)

    # fc weights, transposed; fold the NCHW flatten (feature index = c*4 + p)
    # into fc2's first 512 columns, split per pooled pixel p.
    wf1t = wf1.T.astype(jnp.float32)                                  # (in_features, 512)
    w2a = jnp.transpose(wf2[:, :512].reshape(256, 128, 4), (2, 1, 0)).astype(jnp.float32)
    w2b = wf2[:, 512:].T.astype(jnp.float32)                          # (512, 256)
    wf3t = wf3.T.astype(jnp.float32)                                  # (256, 128)
    wot = wo.T.astype(jnp.float32)                                    # (128, F_out)

    args = (p1, s.astype(jnp.float32),
            w1m, b1.reshape(1, 128).astype(jnp.float32),
            w2t, b2.reshape(1, 128).astype(jnp.float32),
            w3t, b3.reshape(1, 128).astype(jnp.float32),
            w4t, b4.reshape(1, 128).astype(jnp.float32),
            pool,
            wf1t, bf1.reshape(1, 512).astype(jnp.float32),
            w2a, w2b, bf2.reshape(1, 256).astype(jnp.float32),
            wf3t, bf3.reshape(1, 128).astype(jnp.float32),
            wot, bo.reshape(1, F_out).astype(jnp.float32))

    vmem = pl.BlockSpec(memory_space=pltpu.MemorySpace.VMEM)          # whole array in VMEM
    return pl.pallas_call(
        partial(_geostat_kernel, gw),
        out_shape=jax.ShapeDtypeStruct((B, F_out), jnp.float32),
        in_specs=[vmem] * len(args),
        out_specs=vmem,
    )(*args)


# ----------------------------------------------------------------------------
# Pure-JAX reference (mirrors the PyTorch module)
# ----------------------------------------------------------------------------
def _reference(t, s, params):
    (w1, b1, w2, b2, w3, b3, w4, b4,
     wf1, bf1, wf2, bf2, wf3, bf3, wo, bo) = params
    hp = jax.lax.Precision.HIGHEST
    dn = ("NCHW", "OIHW", "NCHW")

    def conv(x, w, b, stride):
        y = jax.lax.conv_general_dilated(x, w, (stride, stride), "VALID",
                                         dimension_numbers=dn, precision=hp)
        return jax.nn.relu(y + b[None, :, None, None])

    x = conv(t, w1, b1, 3)
    x = conv(x, w2, b2, 1)
    x = conv(x, w3, b3, 1)
    x = conv(x, w4, b4, 1)
    x = jax.lax.reduce_window(x, 0.0, jax.lax.add,
                              (1, 1, 3, 3), (1, 1, 1, 1), "VALID") / 9.0
    t_flat = x.reshape(x.shape[0], -1)                                # (B, 128*2*2), NCHW order
    s1 = jax.nn.relu(jnp.dot(s, wf1.T, precision=hp) + bf1)
    h = jnp.concatenate([t_flat, s1], axis=1)
    h = jax.nn.relu(jnp.dot(h, wf2.T, precision=hp) + bf2)
    h = jax.nn.relu(jnp.dot(h, wf3.T, precision=hp) + bf3)
    return jnp.dot(h, wo.T, precision=hp) + bo


# ----------------------------------------------------------------------------
# Main
# ----------------------------------------------------------------------------
if __name__ == "__main__":
    # Spatial must be 30x30 so that conv1(stride 3) -> 10, conv2..4 -> 8,6,4,
    # avg_pool(3,1) -> 2x2 giving the 128*2*2 flatten the module hard-codes.
    B, C_IN, HW = 2, 4, 30
    F_IN, F_OUT = 16, 2

    key = jax.random.PRNGKey(0)
    ks = jax.random.split(key, 18)

    def u(k, shape, fan_in):  # PyTorch-style U(-1/sqrt(fan_in), 1/sqrt(fan_in))
        bnd = 1.0 / (fan_in ** 0.5)
        return jax.random.uniform(k, shape, jnp.float32, -bnd, bnd)

    t = jax.random.normal(ks[0], (B, C_IN, HW, HW), jnp.float32)
    s = jax.random.normal(ks[1], (B, F_IN), jnp.float32)

    w1 = u(ks[2], (128, C_IN, 3, 3), C_IN * 9); b1 = u(ks[3], (128,), C_IN * 9)
    w2 = u(ks[4], (128, 128, 3, 3), 128 * 9);   b2 = u(ks[5], (128,), 128 * 9)
    w3 = u(ks[6], (128, 128, 3, 3), 128 * 9);   b3 = u(ks[7], (128,), 128 * 9)
    w4 = u(ks[8], (128, 128, 3, 3), 128 * 9);   b4 = u(ks[9], (128,), 128 * 9)
    wf1 = u(ks[10], (512, F_IN), F_IN);         bf1 = u(ks[11], (512,), F_IN)
    wf2 = u(ks[12], (256, 1024), 1024);         bf2 = u(ks[13], (256,), 1024)
    wf3 = u(ks[14], (128, 256), 256);           bf3 = u(ks[15], (128,), 256)
    wo = u(ks[16], (F_OUT, 128), 128);          bo = u(ks[17], (F_OUT,), 128)

    params = (w1, b1, w2, b2, w3, b3, w4, b4,
              wf1, bf1, wf2, bf2, wf3, bf3, wo, bo)

    out = jax.block_until_ready(geostat_cnn_forward(t, s, params))
    ref = jax.block_until_ready(_reference(t, s, params))

    assert out.shape == (B, F_OUT), out.shape
    max_err = float(jnp.max(jnp.abs(out - ref)))
    assert jnp.allclose(out, ref, atol=2e-2, rtol=2e-2), max_err

    print("KERNEL_OK")
</pallas_src>

<mosaic_0001>
module attributes {stable_mosaic.version = 11 : i64} {
  func.func @_geostat_kernel(%arg0: memref<200x36xf32, #tpu.memory_space<vmem>>, %arg1: memref<2x16xf32, #tpu.memory_space<vmem>>, %arg2: memref<36x128xf32, #tpu.memory_space<vmem>>, %arg3: memref<1x128xf32, #tpu.memory_space<vmem>>, %arg4: memref<9x128x128xf32, #tpu.memory_space<vmem>>, %arg5: memref<1x128xf32, #tpu.memory_space<vmem>>, %arg6: memref<9x128x128xf32, #tpu.memory_space<vmem>>, %arg7: memref<1x128xf32, #tpu.memory_space<vmem>>, %arg8: memref<9x128x128xf32, #tpu.memory_space<vmem>>, %arg9: memref<1x128xf32, #tpu.memory_space<vmem>>, %arg10: memref<4x2x200xf32, #tpu.memory_space<vmem>>, %arg11: memref<16x512xf32, #tpu.memory_space<vmem>>, %arg12: memref<1x512xf32, #tpu.memory_space<vmem>>, %arg13: memref<4x128x256xf32, #tpu.memory_space<vmem>>, %arg14: memref<512x256xf32, #tpu.memory_space<vmem>>, %arg15: memref<1x256xf32, #tpu.memory_space<vmem>>, %arg16: memref<256x128xf32, #tpu.memory_space<vmem>>, %arg17: memref<1x128xf32, #tpu.memory_space<vmem>>, %arg18: memref<128x2xf32, #tpu.memory_space<vmem>>, %arg19: memref<1x2xf32, #tpu.memory_space<vmem>>, %arg20: memref<2x2xf32, #tpu.memory_space<vmem>>) attributes {dimension_semantics = [], scalar_prefetch = 0 : i64, scratch_operands = 0 : i64, tpu.core_type = #tpu.core_type<tc>} {
    %c0 = arith.constant 0 : index
    %c0_0 = arith.constant 0 : index
    %0 = vector.load %arg0[%c0, %c0_0] : memref<200x36xf32, #tpu.memory_space<vmem>>, vector<200x36xf32>
    %c0_1 = arith.constant 0 : index
    %c0_2 = arith.constant 0 : index
    %1 = vector.load %arg2[%c0_1, %c0_2] : memref<36x128xf32, #tpu.memory_space<vmem>>, vector<36x128xf32>
    %cst = arith.constant dense<0.000000e+00> : vector<200x128xf32>
    %2 = tpu.matmul %0, %1, %cst {dimension_numbers = #tpu.dot_dimension_numbers<[1], [0], [0], [1], [0, 0, 1, 1], [], []>} : vector<200x36xf32>, vector<36x128xf32>, vector<200x128xf32> -> vector<200x128xf32>
    %c0_3 = arith.constant 0 : index
    %c0_4 = arith.constant 0 : index
    %3 = vector.load %arg3[%c0_3, %c0_4] : memref<1x128xf32, #tpu.memory_space<vmem>>, vector<1x128xf32>
    %4 = vector.broadcast %3 : vector<1x128xf32> to vector<200x128xf32>
    %5 = arith.addf %2, %4 : vector<200x128xf32>
    %cst_5 = arith.constant 0.000000e+00 : f32
    %6 = vector.broadcast %cst_5 : f32 to vector<200x128xf32>
    %7 = arith.maximumf %5, %6 : vector<200x128xf32>
    %c0_6 = arith.constant 0 : index
    %c0_7 = arith.constant 0 : index
    %c0_8 = arith.constant 0 : index
    %8 = vector.load %arg4[%c0_6, %c0_7, %c0_8] : memref<9x128x128xf32, #tpu.memory_space<vmem>>, vector<1x128x128xf32>
    %9 = vector.shape_cast %8 : vector<1x128x128xf32> to vector<128x128xf32>
    %cst_9 = arith.constant dense<0.000000e+00> : vector<200x128xf32>
    %10 = tpu.matmul %7, %9, %cst_9 {dimension_numbers = #tpu.dot_dimension_numbers<[1], [0], [0], [1], [0, 0, 1, 1], [], []>} : vector<200x128xf32>, vector<128x128xf32>, vector<200x128xf32> -> vector<200x128xf32>
    %c0_10 = arith.constant 0 : index
    %c0_11 = arith.constant 0 : index
    %11 = vector.load %arg5[%c0_10, %c0_11] : memref<1x128xf32, #tpu.memory_space<vmem>>, vector<1x128xf32>
    %12 = vector.broadcast %11 : vector<1x128xf32> to vector<200x128xf32>
    %13 = arith.addf %10, %12 : vector<200x128xf32>
    %c199_i32 = arith.constant 199 : i32
    %14 = tpu.dynamic_rotate %7 by %c199_i32 dim 0 : vector<200x128xf32>, i32 -> vector<200x128xf32>
    %c1 = arith.constant 1 : index
    %c0_12 = arith.constant 0 : index
    %c0_13 = arith.constant 0 : index
    %15 = vector.load %arg4[%c1, %c0_12, %c0_13] : memref<9x128x128xf32, #tpu.memory_space<vmem>>, vector<1x128x128xf32>
    %16 = vector.shape_cast %15 : vector<1x128x128xf32> to vector<128x128xf32>
    %cst_14 = arith.constant dense<0.000000e+00> : vector<200x128xf32>
    %17 = tpu.matmul %14, %16, %cst_14 {dimension_numbers = #tpu.dot_dimension_numbers<[1], [0], [0], [1], [0, 0, 1, 1], [], []>} : vector<200x128xf32>, vector<128x128xf32>, vector<200x128xf32> -> vector<200x128xf32>
    %18 = arith.addf %13, %17 : vector<200x128xf32>
    %c198_i32 = arith.constant 198 : i32
    %19 = tpu.dynamic_rotate %7 by %c198_i32 dim 0 : vector<200x128xf32>, i32 -> vector<200x128xf32>
    %c2 = arith.constant 2 : index
    %c0_15 = arith.constant 0 : index
    %c0_16 = arith.constant 0 : index
    %20 = vector.load %arg4[%c2, %c0_15, %c0_16] : memref<9x128x128xf32, #tpu.memory_space<vmem>>, vector<1x128x128xf32>
    %21 = vector.shape_cast %20 : vector<1x128x128xf32> to vector<128x128xf32>
    %cst_17 = arith.constant dense<0.000000e+00> : vector<200x128xf32>
    %22 = tpu.matmul %19, %21, %cst_17 {dimension_numbers = #tpu.dot_dimension_numbers<[1], [0], [0], [1], [0, 0, 1, 1], [], []>} : vector<200x128xf32>, vector<128x128xf32>, vector<200x128xf32> -> vector<200x128xf32>
    %23 = arith.addf %18, %22 : vector<200x128xf32>
    %c190_i32 = arith.constant 190 : i32
    %24 = tpu.dynamic_rotate %7 by %c190_i32 dim 0 : vector<200x128xf32>, i32 -> vector<200x128xf32>
    %c3 = arith.constant 3 : index
    %c0_18 = arith.constant 0 : index
    %c0_19 = arith.constant 0 : index
    %25 = vector.load %arg4[%c3, %c0_18, %c0_19] : memref<9x128x128xf32, #tpu.memory_space<vmem>>, vector<1x128x128xf32>
    %26 = vector.shape_cast %25 : vector<1x128x128xf32> to vector<128x128xf32>
    %cst_20 = arith.constant dense<0.000000e+00> : vector<200x128xf32>
    %27 = tpu.matmul %24, %26, %cst_20 {dimension_numbers = #tpu.dot_dimension_numbers<[1], [0], [0], [1], [0, 0, 1, 1], [], []>} : vector<200x128xf32>, vector<128x128xf32>, vector<200x128xf32> -> vector<200x128xf32>
    %28 = arith.addf %23, %27 : vector<200x128xf32>
    %c189_i32 = arith.constant 189 : i32
    %29 = tpu.dynamic_rotate %7 by %c189_i32 dim 0 : vector<200x128xf32>, i32 -> vector<200x128xf32>
    %c4 = arith.constant 4 : index
    %c0_21 = arith.constant 0 : index
    %c0_22 = arith.constant 0 : index
    %30 = vector.load %arg4[%c4, %c0_21, %c0_22] : memref<9x128x128xf32, #tpu.memory_space<vmem>>, vector<1x128x128xf32>
    %31 = vector.shape_cast %30 : vector<1x128x128xf32> to vector<128x128xf32>
    %cst_23 = arith.constant dense<0.000000e+00> : vector<200x128xf32>
    %32 = tpu.matmul %29, %31, %cst_23 {dimension_numbers = #tpu.dot_dimension_numbers<[1], [0], [0], [1], [0, 0, 1, 1], [], []>} : vector<200x128xf32>, vector<128x128xf32>, vector<200x128xf32> -> vector<200x128xf32>
    %33 = arith.addf %28, %32 : vector<200x128xf32>
    %c188_i32 = arith.constant 188 : i32
    %34 = tpu.dynamic_rotate %7 by %c188_i32 dim 0 : vector<200x128xf32>, i32 -> vector<200x128xf32>
    %c5 = arith.constant 5 : index
    %c0_24 = arith.constant 0 : index
    %c0_25 = arith.constant 0 : index
    %35 = vector.load %arg4[%c5, %c0_24, %c0_25] : memref<9x128x128xf32, #tpu.memory_space<vmem>>, vector<1x128x128xf32>
    %36 = vector.shape_cast %35 : vector<1x128x128xf32> to vector<128x128xf32>
    %cst_26 = arith.constant dense<0.000000e+00> : vector<200x128xf32>
    %37 = tpu.matmul %34, %36, %cst_26 {dimension_numbers = #tpu.dot_dimension_numbers<[1], [0], [0], [1], [0, 0, 1, 1], [], []>} : vector<200x128xf32>, vector<128x128xf32>, vector<200x128xf32> -> vector<200x128xf32>
    %38 = arith.addf %33, %37 : vector<200x128xf32>
    %c180_i32 = arith.constant 180 : i32
    %39 = tpu.dynamic_rotate %7 by %c180_i32 dim 0 : vector<200x128xf32>, i32 -> vector<200x128xf32>
    %c6 = arith.constant 6 : index
    %c0_27 = arith.constant 0 : index
    %c0_28 = arith.constant 0 : index
    %40 = vector.load %arg4[%c6, %c0_27, %c0_28] : memref<9x128x128xf32, #tpu.memory_space<vmem>>, vector<1x128x128xf32>
    %41 = vector.shape_cast %40 : vector<1x128x128xf32> to vector<128x128xf32>
    %cst_29 = arith.constant dense<0.000000e+00> : vector<200x128xf32>
    %42 = tpu.matmul %39, %41, %cst_29 {dimension_numbers = #tpu.dot_dimension_numbers<[1], [0], [0], [1], [0, 0, 1, 1], [], []>} : vector<200x128xf32>, vector<128x128xf32>, vector<200x128xf32> -> vector<200x128xf32>
    %43 = arith.addf %38, %42 : vector<200x128xf32>
    %c179_i32 = arith.constant 179 : i32
    %44 = tpu.dynamic_rotate %7 by %c179_i32 dim 0 : vector<200x128xf32>, i32 -> vector<200x128xf32>
    %c7 = arith.constant 7 : index
    %c0_30 = arith.constant 0 : index
    %c0_31 = arith.constant 0 : index
    %45 = vector.load %arg4[%c7, %c0_30, %c0_31] : memref<9x128x128xf32, #tpu.memory_space<vmem>>, vector<1x128x128xf32>
    %46 = vector.shape_cast %45 : vector<1x128x128xf32> to vector<128x128xf32>
    %cst_32 = arith.constant dense<0.000000e+00> : vector<200x128xf32>
    %47 = tpu.matmul %44, %46, %cst_32 {dimension_numbers = #tpu.dot_dimension_numbers<[1], [0], [0], [1], [0, 0, 1, 1], [], []>} : vector<200x128xf32>, vector<128x128xf32>, vector<200x128xf32> -> vector<200x128xf32>
    %48 = arith.addf %43, %47 : vector<200x128xf32>
    %c178_i32 = arith.constant 178 : i32
    %49 = tpu.dynamic_rotate %7 by %c178_i32 dim 0 : vector<200x128xf32>, i32 -> vector<200x128xf32>
    %c8 = arith.constant 8 : index
    %c0_33 = arith.constant 0 : index
    %c0_34 = arith.constant 0 : index
    %50 = vector.load %arg4[%c8, %c0_33, %c0_34] : memref<9x128x128xf32, #tpu.memory_space<vmem>>, vector<1x128x128xf32>
    %51 = vector.shape_cast %50 : vector<1x128x128xf32> to vector<128x128xf32>
    %cst_35 = arith.constant dense<0.000000e+00> : vector<200x128xf32>
    %52 = tpu.matmul %49, %51, %cst_35 {dimension_numbers = #tpu.dot_dimension_numbers<[1], [0], [0], [1], [0, 0, 1, 1], [], []>} : vector<200x128xf32>, vector<128x128xf32>, vector<200x128xf32> -> vector<200x128xf32>
    %53 = arith.addf %48, %52 : vector<200x128xf32>
    %cst_36 = arith.constant 0.000000e+00 : f32
    %54 = vector.broadcast %cst_36 : f32 to vector<200x128xf32>
    %55 = arith.maximumf %53, %54 : vector<200x128xf32>
    %c0_37 = arith.constant 0 : index
    %c0_38 = arith.constant 0 : index
    %c0_39 = arith.constant 0 : index
    %56 = vector.load %arg6[%c0_37, %c0_38, %c0_39] : memref<9x128x128xf32, #tpu.memory_space<vmem>>, vector<1x128x128xf32>
    %57 = vector.shape_cast %56 : vector<1x128x128xf32> to vector<128x128xf32>
    %cst_40 = arith.constant dense<0.000000e+00> : vector<200x128xf32>
    %58 = tpu.matmul %55, %57, %cst_40 {dimension_numbers = #tpu.dot_dimension_numbers<[1], [0], [0], [1], [0, 0, 1, 1], [], []>} : vector<200x128xf32>, vector<128x128xf32>, vector<200x128xf32> -> vector<200x128xf32>
    %c0_41 = arith.constant 0 : index
    %c0_42 = arith.constant 0 : index
    %59 = vector.load %arg7[%c0_41, %c0_42] : memref<1x128xf32, #tpu.memory_space<vmem>>, vector<1x128xf32>
    %60 = vector.broadcast %59 : vector<1x128xf32> to vector<200x128xf32>
    %61 = arith.addf %58, %60 : vector<200x128xf32>
    %c199_i32_43 = arith.constant 199 : i32
    %62 = tpu.dynamic_rotate %55 by %c199_i32_43 dim 0 : vector<200x128xf32>, i32 -> vector<200x128xf32>
    %c1_44 = arith.constant 1 : index
    %c0_45 = arith.constant 0 : index
    %c0_46 = arith.constant 0 : index
    %63 = vector.load %arg6[%c1_44, %c0_45, %c0_46] : memref<9x128x128xf32, #tpu.memory_space<vmem>>, vector<1x128x128xf32>
    %64 = vector.shape_cast %63 : vector<1x128x128xf32> to vector<128x128xf32>
    %cst_47 = arith.constant dense<0.000000e+00> : vector<200x128xf32>
    %65 = tpu.matmul %62, %64, %cst_47 {dimension_numbers = #tpu.dot_dimension_numbers<[1], [0], [0], [1], [0, 0, 1, 1], [], []>} : vector<200x128xf32>, vector<128x128xf32>, vector<200x128xf32> -> vector<200x128xf32>
    %66 = arith.addf %61, %65 : vector<200x128xf32>
    %c198_i32_48 = arith.constant 198 : i32
    %67 = tpu.dynamic_rotate %55 by %c198_i32_48 dim 0 : vector<200x128xf32>, i32 -> vector<200x128xf32>
    %c2_49 = arith.constant 2 : index
    %c0_50 = arith.constant 0 : index
    %c0_51 = arith.constant 0 : index
    %68 = vector.load %arg6[%c2_49, %c0_50, %c0_51] : memref<9x128x128xf32, #tpu.memory_space<vmem>>, vector<1x128x128xf32>
    %69 = vector.shape_cast %68 : vector<1x128x128xf32> to vector<128x128xf32>
    %cst_52 = arith.constant dense<0.000000e+00> : vector<200x128xf32>
    %70 = tpu.matmul %67, %69, %cst_52 {dimension_numbers = #tpu.dot_dimension_numbers<[1], [0], [0], [1], [0, 0, 1, 1], [], []>} : vector<200x128xf32>, vector<128x128xf32>, vector<200x128xf32> -> vector<200x128xf32>
    %71 = arith.addf %66, %70 : vector<200x128xf32>
    %c190_i32_53 = arith.constant 190 : i32
    %72 = tpu.dynamic_rotate %55 by %c190_i32_53 dim 0 : vector<200x128xf32>, i32 -> vector<200x128xf32>
    %c3_54 = arith.constant 3 : index
    %c0_55 = arith.constant 0 : index
    %c0_56 = arith.constant 0 : index
    %73 = vector.load %arg6[%c3_54, %c0_55, %c0_56] : memref<9x128x128xf32, #tpu.memory_space<vmem>>, vector<1x128x128xf32>
    %74 = vector.shape_cast %73 : vector<1x128x128xf32> to vector<128x128xf32>
    %cst_57 = arith.constant dense<0.000000e+00> : vector<200x128xf32>
    %75 = tpu.matmul %72, %74, %cst_57 {dimension_numbers = #tpu.dot_dimension_numbers<[1], [0], [0], [1], [0, 0, 1, 1], [], []>} : vector<200x128xf32>, vector<128x128xf32>, vector<200x128xf32> -> vector<200x128xf32>
    %76 = arith.addf %71, %75 : vector<200x128xf32>
    %c189_i32_58 = arith.constant 189 : i32
    %77 = tpu.dynamic_rotate %55 by %c189_i32_58 dim 0 : vector<200x128xf32>, i32 -> vector<200x128xf32>
    %c4_59 = arith.constant 4 : index
    %c0_60 = arith.constant 0 : index
    %c0_61 = arith.constant 0 : index
    %78 = vector.load %arg6[%c4_59, %c0_60, %c0_61] : memref<9x128x128xf32, #tpu.memory_space<vmem>>, vector<1x128x128xf32>
    %79 = vector.shape_cast %78 : vector<1x128x128xf32> to vector<128x128xf32>
    %cst_62 = arith.constant dense<0.000000e+00> : vector<200x128xf32>
    %80 = tpu.matmul %77, %79, %cst_62 {dimension_numbers = #tpu.dot_dimension_numbers<[1], [0], [0], [1], [0, 0, 1, 1], [], []>} : vector<200x128xf32>, vector<128x128xf32>, vector<200x128xf32> -> vector<200x128xf32>
    %81 = arith.addf %76, %80 : vector<200x128xf32>
    %c188_i32_63 = arith.constant 188 : i32
    %82 = tpu.dynamic_rotate %55 by %c188_i32_63 dim 0 : vector<200x128xf32>, i32 -> vector<200x128xf32>
    %c5_64 = arith.constant 5 : index
    %c0_65 = arith.constant 0 : index
    %c0_66 = arith.constant 0 : index
    %83 = vector.load %arg6[%c5_64, %c0_65, %c0_66] : memref<9x128x128xf32, #tpu.memory_space<vmem>>, vector<1x128x128xf32>
    %84 = vector.shape_cast %83 : vector<1x128x128xf32> to vector<128x128xf32>
    %cst_67 = arith.constant dense<0.000000e+00> : vector<200x128xf32>
    %85 = tpu.matmul %82, %84, %cst_67 {dimension_numbers = #tpu.dot_dimension_numbers<[1], [0], [0], [1], [0, 0, 1, 1], [], []>} : vector<200x128xf32>, vector<128x128xf32>, vector<200x128xf32> -> vector<200x128xf32>
    %86 = arith.addf %81, %85 : vector<200x128xf32>
    %c180_i32_68 = arith.constant 180 : i32
    %87 = tpu.dynamic_rotate %55 by %c180_i32_68 dim 0 : vector<200x128xf32>, i32 -> vector<200x128xf32>
    %c6_69 = arith.constant 6 : index
    %c0_70 = arith.constant 0 : index
    %c0_71 = arith.constant 0 : index
    %88 = vector.load %arg6[%c6_69, %c0_70, %c0_71] : memref<9x128x128xf32, #tpu.memory_space<vmem>>, vector<1x128x128xf32>
    %89 = vector.shape_cast %88 : vector<1x128x128xf32> to vector<128x128xf32>
    %cst_72 = arith.constant dense<0.000000e+00> : vector<200x128xf32>
    %90 = tpu.matmul %87, %89, %cst_72 {dimension_numbers = #tpu.dot_dimension_numbers<[1], [0], [0], [1], [0, 0, 1, 1], [], []>} : vector<200x128xf32>, vector<128x128xf32>, vector<200x128xf32> -> vector<200x128xf32>
    %91 = arith.addf %86, %90 : vector<200x128xf32>
    %c179_i32_73 = arith.constant 179 : i32
    %92 = tpu.dynamic_rotate %55 by %c179_i32_73 dim 0 : vector<200x128xf32>, i32 -> vector<200x128xf32>
    %c7_74 = arith.constant 7 : index
    %c0_75 = arith.constant 0 : index
    %c0_76 = arith.constant 0 : index
    %93 = vector.load %arg6[%c7_74, %c0_75, %c0_76] : memref<9x128x128xf32, #tpu.memory_space<vmem>>, vector<1x128x128xf32>
    %94 = vector.shape_cast %93 : vector<1x128x128xf32> to vector<128x128xf32>
    %cst_77 = arith.constant dense<0.000000e+00> : vector<200x128xf32>
    %95 = tpu.matmul %92, %94, %cst_77 {dimension_numbers = #tpu.dot_dimension_numbers<[1], [0], [0], [1], [0, 0, 1, 1], [], []>} : vector<200x128xf32>, vector<128x128xf32>, vector<200x128xf32> -> vector<200x128xf32>
    %96 = arith.addf %91, %95 : vector<200x128xf32>
    %c178_i32_78 = arith.constant 178 : i32
    %97 = tpu.dynamic_rotate %55 by %c178_i32_78 dim 0 : vector<200x128xf32>, i32 -> vector<200x128xf32>
    %c8_79 = arith.constant 8 : index
    %c0_80 = arith.constant 0 : index
    %c0_81 = arith.constant 0 : index
    %98 = vector.load %arg6[%c8_79, %c0_80, %c0_81] : memref<9x128x128xf32, #tpu.memory_space<vmem>>, vector<1x128x128xf32>
    %99 = vector.shape_cast %98 : vector<1x128x128xf32> to vector<128x128xf32>
    %cst_82 = arith.constant dense<0.000000e+00> : vector<200x128xf32>
    %100 = tpu.matmul %97, %99, %cst_82 {dimension_numbers = #tpu.dot_dimension_numbers<[1], [0], [0], [1], [0, 0, 1, 1], [], []>} : vector<200x128xf32>, vector<128x128xf32>, vector<200x128xf32> -> vector<200x128xf32>
    %101 = arith.addf %96, %100 : vector<200x128xf32>
    %cst_83 = arith.constant 0.000000e+00 : f32
    %102 = vector.broadcast %cst_83 : f32 to vector<200x128xf32>
    %103 = arith.maximumf %101, %102 : vector<200x128xf32>
    %c0_84 = arith.constant 0 : index
    %c0_85 = arith.constant 0 : index
    %c0_86 = arith.constant 0 : index
    %104 = vector.load %arg8[%c0_84, %c0_85, %c0_86] : memref<9x128x128xf32, #tpu.memory_space<vmem>>, vector<1x128x128xf32>
    %105 = vector.shape_cast %104 : vector<1x128x128xf32> to vector<128x128xf32>
    %cst_87 = arith.constant dense<0.000000e+00> : vector<200x128xf32>
    %106 = tpu.matmul %103, %105, %cst_87 {dimension_numbers = #tpu.dot_dimension_numbers<[1], [0], [0], [1], [0, 0, 1, 1], [], []>} : vector<200x128xf32>, vector<128x128xf32>, vector<200x128xf32> -> vector<200x128xf32>
    %c0_88 = arith.constant 0 : index
    %c0_89 = arith.constant 0 : index
    %107 = vector.load %arg9[%c0_88, %c0_89] : memref<1x128xf32, #tpu.memory_space<vmem>>, vector<1x128xf32>
    %108 = vector.broadcast %107 : vector<1x128xf32> to vector<200x128xf32>
    %109 = arith.addf %106, %108 : vector<200x128xf32>
    %c199_i32_90 = arith.constant 199 : i32
    %110 = tpu.dynamic_rotate %103 by %c199_i32_90 dim 0 : vector<200x128xf32>, i32 -> vector<200x128xf32>
    %c1_91 = arith.constant 1 : index
    %c0_92 = arith.constant 0 : index
    %c0_93 = arith.constant 0 : index
    %111 = vector.load %arg8[%c1_91, %c0_92, %c0_93] : memref<9x128x128xf32, #tpu.memory_space<vmem>>, vector<1x128x128xf32>
    %112 = vector.shape_cast %111 : vector<1x128x128xf32> to vector<128x128xf32>
    %cst_94 = arith.constant dense<0.000000e+00> : vector<200x128xf32>
    %113 = tpu.matmul %110, %112, %cst_94 {dimension_numbers = #tpu.dot_dimension_numbers<[1], [0], [0], [1], [0, 0, 1, 1], [], []>} : vector<200x128xf32>, vector<128x128xf32>, vector<200x128xf32> -> vector<200x128xf32>
    %114 = arith.addf %109, %113 : vector<200x128xf32>
    %c198_i32_95 = arith.constant 198 : i32
    %115 = tpu.dynamic_rotate %103 by %c198_i32_95 dim 0 : vector<200x128xf32>, i32 -> vector<200x128xf32>
    %c2_96 = arith.constant 2 : index
    %c0_97 = arith.constant 0 : index
    %c0_98 = arith.constant 0 : index
    %116 = vector.load %arg8[%c2_96, %c0_97, %c0_98] : memref<9x128x128xf32, #tpu.memory_space<vmem>>, vector<1x128x128xf32>
    %117 = vector.shape_cast %116 : vector<1x128x128xf32> to vector<128x128xf32>
    %cst_99 = arith.constant dense<0.000000e+00> : vector<200x128xf32>
    %118 = tpu.matmul %115, %117, %cst_99 {dimension_numbers = #tpu.dot_dimension_numbers<[1], [0], [0], [1], [0, 0, 1, 1], [], []>} : vector<200x128xf32>, vector<128x128xf32>, vector<200x128xf32> -> vector<200x128xf32>
    %119 = arith.addf %114, %118 : vector<200x128xf32>
    %c190_i32_100 = arith.constant 190 : i32
    %120 = tpu.dynamic_rotate %103 by %c190_i32_100 dim 0 : vector<200x128xf32>, i32 -> vector<200x128xf32>
    %c3_101 = arith.constant 3 : index
    %c0_102 = arith.constant 0 : index
    %c0_103 = arith.constant 0 : index
    %121 = vector.load %arg8[%c3_101, %c0_102, %c0_103] : memref<9x128x128xf32, #tpu.memory_space<vmem>>, vector<1x128x128xf32>
    %122 = vector.shape_cast %121 : vector<1x128x128xf32> to vector<128x128xf32>
    %cst_104 = arith.constant dense<0.000000e+00> : vector<200x128xf32>
    %123 = tpu.matmul %120, %122, %cst_104 {dimension_numbers = #tpu.dot_dimension_numbers<[1], [0], [0], [1], [0, 0, 1, 1], [], []>} : vector<200x128xf32>, vector<128x128xf32>, vector<200x128xf32> -> vector<200x128xf32>
    %124 = arith.addf %119, %123 : vector<200x128xf32>
    %c189_i32_105 = arith.constant 189 : i32
    %125 = tpu.dynamic_rotate %103 by %c189_i32_105 dim 0 : vector<200x128xf32>, i32 -> vector<200x128xf32>
    %c4_106 = arith.constant 4 : index
    %c0_107 = arith.constant 0 : index
    %c0_108 = arith.constant 0 : index
    %126 = vector.load %arg8[%c4_106, %c0_107, %c0_108] : memref<9x128x128xf32, #tpu.memory_space<vmem>>, vector<1x128x128xf32>
    %127 = vector.shape_cast %126 : vector<1x128x128xf32> to vector<128x128xf32>
    %cst_109 = arith.constant dense<0.000000e+00> : vector<200x128xf32>
    %128 = tpu.matmul %125, %127, %cst_109 {dimension_numbers = #tpu.dot_dimension_numbers<[1], [0], [0], [1], [0, 0, 1, 1], [], []>} : vector<200x128xf32>, vector<128x128xf32>, vector<200x128xf32> -> vector<200x128xf32>
    %129 = arith.addf %124, %128 : vector<200x128xf32>
    %c188_i32_110 = arith.constant 188 : i32
    %130 = tpu.dynamic_rotate %103 by %c188_i32_110 dim 0 : vector<200x128xf32>, i32 -> vector<200x128xf32>
    %c5_111 = arith.constant 5 : index
    %c0_112 = arith.constant 0 : index
    %c0_113 = arith.constant 0 : index
    %131 = vector.load %arg8[%c5_111, %c0_112, %c0_113] : memref<9x128x128xf32, #tpu.memory_space<vmem>>, vector<1x128x128xf32>
    %132 = vector.shape_cast %131 : vector<1x128x128xf32> to vector<128x128xf32>
    %cst_114 = arith.constant dense<0.000000e+00> : vector<200x128xf32>
    %133 = tpu.matmul %130, %132, %cst_114 {dimension_numbers = #tpu.dot_dimension_numbers<[1], [0], [0], [1], [0, 0, 1, 1], [], []>} : vector<200x128xf32>, vector<128x128xf32>, vector<200x128xf32> -> vector<200x128xf32>
    %134 = arith.addf %129, %133 : vector<200x128xf32>
    %c180_i32_115 = arith.constant 180 : i32
    %135 = tpu.dynamic_rotate %103 by %c180_i32_115 dim 0 : vector<200x128xf32>, i32 -> vector<200x128xf32>
    %c6_116 = arith.constant 6 : index
    %c0_117 = arith.constant 0 : index
    %c0_118 = arith.constant 0 : index
    %136 = vector.load %arg8[%c6_116, %c0_117, %c0_118] : memref<9x128x128xf32, #tpu.memory_space<vmem>>, vector<1x128x128xf32>
    %137 = vector.shape_cast %136 : vector<1x128x128xf32> to vector<128x128xf32>
    %cst_119 = arith.constant dense<0.000000e+00> : vector<200x128xf32>
    %138 = tpu.matmul %135, %137, %cst_119 {dimension_numbers = #tpu.dot_dimension_numbers<[1], [0], [0], [1], [0, 0, 1, 1], [], []>} : vector<200x128xf32>, vector<128x128xf32>, vector<200x128xf32> -> vector<200x128xf32>
    %139 = arith.addf %134, %138 : vector<200x128xf32>
    %c179_i32_120 = arith.constant 179 : i32
    %140 = tpu.dynamic_rotate %103 by %c179_i32_120 dim 0 : vector<200x128xf32>, i32 -> vector<200x128xf32>
    %c7_121 = arith.constant 7 : index
    %c0_122 = arith.constant 0 : index
    %c0_123 = arith.constant 0 : index
    %141 = vector.load %arg8[%c7_121, %c0_122, %c0_123] : memref<9x128x128xf32, #tpu.memory_space<vmem>>, vector<1x128x128xf32>
    %142 = vector.shape_cast %141 : vector<1x128x128xf32> to vector<128x128xf32>
    %cst_124 = arith.constant dense<0.000000e+00> : vector<200x128xf32>
    %143 = tpu.matmul %140, %142, %cst_124 {dimension_numbers = #tpu.dot_dimension_numbers<[1], [0], [0], [1], [0, 0, 1, 1], [], []>} : vector<200x128xf32>, vector<128x128xf32>, vector<200x128xf32> -> vector<200x128xf32>
    %144 = arith.addf %139, %143 : vector<200x128xf32>
    %c178_i32_125 = arith.constant 178 : i32
    %145 = tpu.dynamic_rotate %103 by %c178_i32_125 dim 0 : vector<200x128xf32>, i32 -> vector<200x128xf32>
    %c8_126 = arith.constant 8 : index
    %c0_127 = arith.constant 0 : index
    %c0_128 = arith.constant 0 : index
    %146 = vector.load %arg8[%c8_126, %c0_127, %c0_128] : memref<9x128x128xf32, #tpu.memory_space<vmem>>, vector<1x128x128xf32>
    %147 = vector.shape_cast %146 : vector<1x128x128xf32> to vector<128x128xf32>
    %cst_129 = arith.constant dense<0.000000e+00> : vector<200x128xf32>
    %148 = tpu.matmul %145, %147, %cst_129 {dimension_numbers = #tpu.dot_dimension_numbers<[1], [0], [0], [1], [0, 0, 1, 1], [], []>} : vector<200x128xf32>, vector<128x128xf32>, vector<200x128xf32> -> vector<200x128xf32>
    %149 = arith.addf %144, %148 : vector<200x128xf32>
    %cst_130 = arith.constant 0.000000e+00 : f32
    %150 = vector.broadcast %cst_130 : f32 to vector<200x128xf32>
    %151 = arith.maximumf %149, %150 : vector<200x128xf32>
    %c0_131 = arith.constant 0 : index
    %c0_132 = arith.constant 0 : index
    %152 = vector.load %arg1[%c0_131, %c0_132] : memref<2x16xf32, #tpu.memory_space<vmem>>, vector<2x16xf32>
    %c0_133 = arith.constant 0 : index
    %c0_134 = arith.constant 0 : index
    %153 = vector.load %arg11[%c0_133, %c0_134] : memref<16x512xf32, #tpu.memory_space<vmem>>, vector<16x512xf32>
    %cst_135 = arith.constant dense<0.000000e+00> : vector<2x512xf32>
    %154 = tpu.matmul %152, %153, %cst_135 {dimension_numbers = #tpu.dot_dimension_numbers<[1], [0], [0], [1], [0, 0, 1, 1], [], []>} : vector<2x16xf32>, vector<16x512xf32>, vector<2x512xf32> -> vector<2x512xf32>
    %c0_136 = arith.constant 0 : index
    %c0_137 = arith.constant 0 : index
    %155 = vector.load %arg12[%c0_136, %c0_137] : memref<1x512xf32, #tpu.memory_space<vmem>>, vector<1x512xf32>
    %156 = vector.broadcast %155 : vector<1x512xf32> to vector<2x512xf32>
    %157 = arith.addf %154, %156 : vector<2x512xf32>
    %cst_138 = arith.constant 0.000000e+00 : f32
    %158 = vector.broadcast %cst_138 : f32 to vector<2x512xf32>
    %159 = arith.maximumf %157, %158 : vector<2x512xf32>
    %c0_139 = arith.constant 0 : index
    %c0_140 = arith.constant 0 : index
    %160 = vector.load %arg14[%c0_139, %c0_140] : memref<512x256xf32, #tpu.memory_space<vmem>>, vector<512x256xf32>
    %cst_141 = arith.constant dense<0.000000e+00> : vector<2x256xf32>
    %161 = tpu.matmul %159, %160, %cst_141 {dimension_numbers = #tpu.dot_dimension_numbers<[1], [0], [0], [1], [0, 0, 1, 1], [], []>} : vector<2x512xf32>, vector<512x256xf32>, vector<2x256xf32> -> vector<2x256xf32>
    %c0_142 = arith.constant 0 : index
    %c0_143 = arith.constant 0 : index
    %162 = vector.load %arg15[%c0_142, %c0_143] : memref<1x256xf32, #tpu.memory_space<vmem>>, vector<1x256xf32>
    %163 = vector.broadcast %162 : vector<1x256xf32> to vector<2x256xf32>
    %164 = arith.addf %161, %163 : vector<2x256xf32>
    %c0_144 = arith.constant 0 : index
    %c0_145 = arith.constant 0 : index
    %c0_146 = arith.constant 0 : index
    %165 = vector.load %arg10[%c0_144, %c0_145, %c0_146] : memref<4x2x200xf32, #tpu.memory_space<vmem>>, vector<1x2x200xf32>
    %166 = vector.shape_cast %165 : vector<1x2x200xf32> to vector<2x200xf32>
    %cst_147 = arith.constant dense<0.000000e+00> : vector<2x128xf32>
    %167 = tpu.matmul %166, %151, %cst_147 {dimension_numbers = #tpu.dot_dimension_numbers<[1], [0], [0], [1], [0, 0, 1, 1], [], []>} : vector<2x200xf32>, vector<200x128xf32>, vector<2x128xf32> -> vector<2x128xf32>
    %c0_148 = arith.constant 0 : index
    %c0_149 = arith.constant 0 : index
    %c0_150 = arith.constant 0 : index
    %168 = vector.load %arg13[%c0_148, %c0_149, %c0_150] : memref<4x128x256xf32, #tpu.memory_space<vmem>>, vector<1x128x256xf32>
    %169 = vector.shape_cast %168 : vector<1x128x256xf32> to vector<128x256xf32>
    %cst_151 = arith.constant dense<0.000000e+00> : vector<2x256xf32>
    %170 = tpu.matmul %167, %169, %cst_151 {dimension_numbers = #tpu.dot_dimension_numbers<[1], [0], [0], [1], [0, 0, 1, 1], [], []>} : vector<2x128xf32>, vector<128x256xf32>, vector<2x256xf32> -> vector<2x256xf32>
    %171 = arith.addf %164, %170 : vector<2x256xf32>
    %c1_152 = arith.constant 1 : index
    %c0_153 = arith.constant 0 : index
    %c0_154 = arith.constant 0 : index
    %172 = vector.load %arg10[%c1_152, %c0_153, %c0_154] : memref<4x2x200xf32, #tpu.memory_space<vmem>>, vector<1x2x200xf32>
    %173 = vector.shape_cast %172 : vector<1x2x200xf32> to vector<2x200xf32>
    %cst_155 = arith.constant dense<0.000000e+00> : vector<2x128xf32>
    %174 = tpu.matmul %173, %151, %cst_155 {dimension_numbers = #tpu.dot_dimension_numbers<[1], [0], [0], [1], [0, 0, 1, 1], [], []>} : vector<2x200xf32>, vector<200x128xf32>, vector<2x128xf32> -> vector<2x128xf32>
    %c1_156 = arith.constant 1 : index
    %c0_157 = arith.constant 0 : index
    %c0_158 = arith.constant 0 : index
    %175 = vector.load %arg13[%c1_156, %c0_157, %c0_158] : memref<4x128x256xf32, #tpu.memory_space<vmem>>, vector<1x128x256xf32>
    %176 = vector.shape_cast %175 : vector<1x128x256xf32> to vector<128x256xf32>
    %cst_159 = arith.constant dense<0.000000e+00> : vector<2x256xf32>
    %177 = tpu.matmul %174, %176, %cst_159 {dimension_numbers = #tpu.dot_dimension_numbers<[1], [0], [0], [1], [0, 0, 1, 1], [], []>} : vector<2x128xf32>, vector<128x256xf32>, vector<2x256xf32> -> vector<2x256xf32>
    %178 = arith.addf %171, %177 : vector<2x256xf32>
    %c2_160 = arith.constant 2 : index
    %c0_161 = arith.constant 0 : index
    %c0_162 = arith.constant 0 : index
    %179 = vector.load %arg10[%c2_160, %c0_161, %c0_162] : memref<4x2x200xf32, #tpu.memory_space<vmem>>, vector<1x2x200xf32>
    %180 = vector.shape_cast %179 : vector<1x2x200xf32> to vector<2x200xf32>
    %cst_163 = arith.constant dense<0.000000e+00> : vector<2x128xf32>
    %181 = tpu.matmul %180, %151, %cst_163 {dimension_numbers = #tpu.dot_dimension_numbers<[1], [0], [0], [1], [0, 0, 1, 1], [], []>} : vector<2x200xf32>, vector<200x128xf32>, vector<2x128xf32> -> vector<2x128xf32>
    %c2_164 = arith.constant 2 : index
    %c0_165 = arith.constant 0 : index
    %c0_166 = arith.constant 0 : index
    %182 = vector.load %arg13[%c2_164, %c0_165, %c0_166] : memref<4x128x256xf32, #tpu.memory_space<vmem>>, vector<1x128x256xf32>
    %183 = vector.shape_cast %182 : vector<1x128x256xf32> to vector<128x256xf32>
    %cst_167 = arith.constant dense<0.000000e+00> : vector<2x256xf32>
    %184 = tpu.matmul %181, %183, %cst_167 {dimension_numbers = #tpu.dot_dimension_numbers<[1], [0], [0], [1], [0, 0, 1, 1], [], []>} : vector<2x128xf32>, vector<128x256xf32>, vector<2x256xf32> -> vector<2x256xf32>
    %185 = arith.addf %178, %184 : vector<2x256xf32>
    %c3_168 = arith.constant 3 : index
    %c0_169 = arith.constant 0 : index
    %c0_170 = arith.constant 0 : index
    %186 = vector.load %arg10[%c3_168, %c0_169, %c0_170] : memref<4x2x200xf32, #tpu.memory_space<vmem>>, vector<1x2x200xf32>
    %187 = vector.shape_cast %186 : vector<1x2x200xf32> to vector<2x200xf32>
    %cst_171 = arith.constant dense<0.000000e+00> : vector<2x128xf32>
    %188 = tpu.matmul %187, %151, %cst_171 {dimension_numbers = #tpu.dot_dimension_numbers<[1], [0], [0], [1], [0, 0, 1, 1], [], []>} : vector<2x200xf32>, vector<200x128xf32>, vector<2x128xf32> -> vector<2x128xf32>
    %c3_172 = arith.constant 3 : index
    %c0_173 = arith.constant 0 : index
    %c0_174 = arith.constant 0 : index
    %189 = vector.load %arg13[%c3_172, %c0_173, %c0_174] : memref<4x128x256xf32, #tpu.memory_space<vmem>>, vector<1x128x256xf32>
    %190 = vector.shape_cast %189 : vector<1x128x256xf32> to vector<128x256xf32>
    %cst_175 = arith.constant dense<0.000000e+00> : vector<2x256xf32>
    %191 = tpu.matmul %188, %190, %cst_175 {dimension_numbers = #tpu.dot_dimension_numbers<[1], [0], [0], [1], [0, 0, 1, 1], [], []>} : vector<2x128xf32>, vector<128x256xf32>, vector<2x256xf32> -> vector<2x256xf32>
    %192 = arith.addf %185, %191 : vector<2x256xf32>
    %cst_176 = arith.constant 0.000000e+00 : f32
    %193 = vector.broadcast %cst_176 : f32 to vector<2x256xf32>
    %194 = arith.maximumf %192, %193 : vector<2x256xf32>
    %c0_177 = arith.constant 0 : index
    %c0_178 = arith.constant 0 : index
    %195 = vector.load %arg16[%c0_177, %c0_178] : memref<256x128xf32, #tpu.memory_space<vmem>>, vector<256x128xf32>
    %cst_179 = arith.constant dense<0.000000e+00> : vector<2x128xf32>
    %196 = tpu.matmul %194, %195, %cst_179 {dimension_numbers = #tpu.dot_dimension_numbers<[1], [0], [0], [1], [0, 0, 1, 1], [], []>} : vector<2x256xf32>, vector<256x128xf32>, vector<2x128xf32> -> vector<2x128xf32>
    %c0_180 = arith.constant 0 : index
    %c0_181 = arith.constant 0 : index
    %197 = vector.load %arg17[%c0_180, %c0_181] : memref<1x128xf32, #tpu.memory_space<vmem>>, vector<1x128xf32>
    %198 = vector.broadcast %197 : vector<1x128xf32> to vector<2x128xf32>
    %199 = arith.addf %196, %198 : vector<2x128xf32>
    %cst_182 = arith.constant 0.000000e+00 : f32
    %200 = vector.broadcast %cst_182 : f32 to vector<2x128xf32>
    %201 = arith.maximumf %199, %200 : vector<2x128xf32>
    %c0_183 = arith.constant 0 : index
    %c0_184 = arith.constant 0 : index
    %202 = vector.load %arg18[%c0_183, %c0_184] : memref<128x2xf32, #tpu.memory_space<vmem>>, vector<128x2xf32>
    %cst_185 = arith.constant dense<0.000000e+00> : vector<2x2xf32>
    %203 = tpu.matmul %201, %202, %cst_185 {dimension_numbers = #tpu.dot_dimension_numbers<[1], [0], [0], [1], [0, 0, 1, 1], [], []>} : vector<2x128xf32>, vector<128x2xf32>, vector<2x2xf32> -> vector<2x2xf32>
    %c0_186 = arith.constant 0 : index
    %c0_187 = arith.constant 0 : index
    %204 = vector.load %arg19[%c0_186, %c0_187] : memref<1x2xf32, #tpu.memory_space<vmem>>, vector<1x2xf32>
    %205 = vector.broadcast %204 : vector<1x2xf32> to vector<2x2xf32>
    %206 = arith.addf %203, %205 : vector<2x2xf32>
    %c0_188 = arith.constant 0 : index
    %c0_189 = arith.constant 0 : index
    %207 = vector.load %arg20[%c0_188, %c0_189] : memref<2x2xf32, #tpu.memory_space<vmem>>, vector<2x2xf32>
    tpu.vector_store %arg20[%c0_188, %c0_189], %206 {strides = array<i32>} : memref<2x2xf32, #tpu.memory_space<vmem>>, vector<2x2xf32>,
    return
  }
}

</mosaic_0001>

<llo_original>
// kernel: geostat_cnn_forward.1
$region0: #{geostat_cnn_forward.1}
  #allocation0 [shape = 'u32[]', space=smem, size = 0x4, offset = 0x4, fixed_abs, tag = 'smem constant byte address 0x4 - core index']
  #allocation1 [shape = 'u32[72,128]{1,0:T(1,128)}', space=vmem, size = 0x9000, scoped, tag = 'internal scratch']
  %s0 = inlined_call_operand.vmem [shape: f32[200,36], index: 0, kind: input, shape index: {}]
  %s1 = inlined_call_operand.vmem [shape: f32[2,16], index: 1, kind: input, shape index: {}]
  %s2 = inlined_call_operand.vmem [shape: f32[36,128], index: 2, kind: input, shape index: {}]
  %s3 = inlined_call_operand.vmem [shape: f32[1,128], index: 3, kind: input, shape index: {}]
  %s4 = inlined_call_operand.vmem [shape: f32[9,128,128], index: 4, kind: input, shape index: {}]
  %s5 = inlined_call_operand.vmem [shape: f32[1,128], index: 5, kind: input, shape index: {}]
  %s6 = inlined_call_operand.vmem [shape: f32[9,128,128], index: 6, kind: input, shape index: {}]
  %s7 = inlined_call_operand.vmem [shape: f32[1,128], index: 7, kind: input, shape index: {}]
  %s8 = inlined_call_operand.vmem [shape: f32[9,128,128], index: 8, kind: input, shape index: {}]
  %s9 = inlined_call_operand.vmem [shape: f32[1,128], index: 9, kind: input, shape index: {}]
  %s10 = inlined_call_operand.vmem [shape: f32[4,2,200], index: 10, kind: input, shape index: {}]
  %s11 = inlined_call_operand.vmem [shape: f32[16,512], index: 11, kind: input, shape index: {}]
  %s12 = inlined_call_operand.vmem [shape: f32[1,512], index: 12, kind: input, shape index: {}]
  %s13 = inlined_call_operand.vmem [shape: f32[4,128,256], index: 13, kind: input, shape index: {}]
  %s14 = inlined_call_operand.vmem [shape: f32[512,256], index: 14, kind: input, shape index: {}]
  %s15 = inlined_call_operand.vmem [shape: f32[1,256], index: 15, kind: input, shape index: {}]
  %s16 = inlined_call_operand.vmem [shape: f32[256,128], index: 16, kind: input, shape index: {}]
  %s17 = inlined_call_operand.vmem [shape: f32[1,128], index: 17, kind: input, shape index: {}]
  %s18 = inlined_call_operand.vmem [shape: f32[128,2], index: 18, kind: input, shape index: {}]
  %s19 = inlined_call_operand.vmem [shape: f32[1,2], index: 19, kind: input, shape index: {}]
  %s20 = inlined_call_operand.hbm [shape: f32[2,2], index: 20, kind: output, shape index: {}]
  %s21 = sld [smem:[#allocation0]]
  $region90: #{geostat_cnn_forward.1} parent=0
    _
  %s23 = ssub.s32 1, %s21
  %s24 = scalar_select 0, %s23, %s21
  $region1: #{geostat_cnn_forward.1} parent=0
    #allocation2 [shape = 'u8[1024]{0}', space=vmem, size = 0x400, scoped, tag = 'output window, operand 0, single buffered']
    #allocation3 [shape = 's32[1]{0}', space=sflag, size = 0x4, scoped, tag = 'scoped memory for geostat_cnn_forward.1']
    %25 = vsyncpa [#allocation3], 0
    // Predicated region
    $region2: #{geostat_cnn_forward.1} parent=1 // pred_check
      _
    $region3: #{geostat_cnn_forward.1} parent=1 // pred_check_branch
      %27 = sbr.rel (0) target = $region5
    $region4: #{geostat_cnn_forward.1} parent=1 // pred_region
      _
    $region5: #{geostat_cnn_forward.1} parent=1 // pred_fallthru
      _
    // Predicated region
    $region6: #{geostat_cnn_forward.1} parent=1 // pred_check
      _
    $region7: #{geostat_cnn_forward.1} parent=1 // pred_check_branch
      %29 = sbr.rel (0) target = $region9
    $region8: #{geostat_cnn_forward.1} parent=1 // pred_region
      _
    $region9: #{geostat_cnn_forward.1} parent=1 // pred_fallthru
      _
    // Predicated region
    $region10: #{geostat_cnn_forward.1} parent=1 // pred_check
      _
    $region11: #{geostat_cnn_forward.1} parent=1 // pred_check_branch
      %31 = sbr.rel (0) target = $region13
    $region12: #{geostat_cnn_forward.1} parent=1 // pred_region
      _
    $region13: #{geostat_cnn_forward.1} parent=1 // pred_fallthru
      _
    // Predicated region
    $region14: #{geostat_cnn_forward.1} parent=1 // pred_check
      _
    $region15: #{geostat_cnn_forward.1} parent=1 // pred_check_branch
      %33 = sbr.rel (0) target = $region17
    $region16: #{geostat_cnn_forward.1} parent=1 // pred_region
      _
    $region17: #{geostat_cnn_forward.1} parent=1 // pred_fallthru
      _
    // Predicated region
    $region18: #{geostat_cnn_forward.1} parent=1 // pred_check
      _
    $region19: #{geostat_cnn_forward.1} parent=1 // pred_check_branch
      %35 = sbr.rel (0) target = $region21
    $region20: #{geostat_cnn_forward.1} parent=1 // pred_region
      _
    $region21: #{geostat_cnn_forward.1} parent=1 // pred_fallthru
      _
    // Predicated region
    $region22: #{geostat_cnn_forward.1} parent=1 // pred_check
      _
    $region23: #{geostat_cnn_forward.1} parent=1 // pred_check_branch
      %37 = sbr.rel (0) target = $region25
    $region24: #{geostat_cnn_forward.1} parent=1 // pred_region
      _
    $region25: #{geostat_cnn_forward.1} parent=1 // pred_fallthru
      _
    // Predicated region
    $region26: #{geostat_cnn_forward.1} parent=1 // pred_check
      _
    $region27: #{geostat_cnn_forward.1} parent=1 // pred_check_branch
      %39 = sbr.rel (0) target = $region29
    $region28: #{geostat_cnn_forward.1} parent=1 // pred_region
      _
    $region29: #{geostat_cnn_forward.1} parent=1 // pred_fallthru
      _
    // Predicated region
    $region30: #{geostat_cnn_forward.1} parent=1 // pred_check
      _
    $region31: #{geostat_cnn_forward.1} parent=1 // pred_check_branch
      %41 = sbr.rel (0) target = $region33
    $region32: #{geostat_cnn_forward.1} parent=1 // pred_region
      _
    $region33: #{geostat_cnn_forward.1} parent=1 // pred_fallthru
      _
    // Predicated region
    $region34: #{geostat_cnn_forward.1} parent=1 // pred_check
      _
    $region35: #{geostat_cnn_forward.1} parent=1 // pred_check_branch
      %43 = sbr.rel (0) target = $region37
    $region36: #{geostat_cnn_forward.1} parent=1 // pred_region
      _
    $region37: #{geostat_cnn_forward.1} parent=1 // pred_fallthru
      _
    // Predicated region
    $region38: #{geostat_cnn_forward.1} parent=1 // pred_check
      _
    $region39: #{geostat_cnn_forward.1} parent=1 // pred_check_branch
      %45 = sbr.rel (0) target = $region41
    $region40: #{geostat_cnn_forward.1} parent=1 // pred_region
      _
    $region41: #{geostat_cnn_forward.1} parent=1 // pred_fallthru
      _
    // Predicated region
    $region42: #{geostat_cnn_forward.1} parent=1 // pred_check
      _
    $region43: #{geostat_cnn_forward.1} parent=1 // pred_check_branch
      %47 = sbr.rel (0) target = $region45
    $region44: #{geostat_cnn_forward.1} parent=1 // pred_region
      _
    $region45: #{geostat_cnn_forward.1} parent=1 // pred_fallthru
      _
    // Predicated region
    $region46: #{geostat_cnn_forward.1} parent=1 // pred_check
      _
    $region47: #{geostat_cnn_forward.1} parent=1 // pred_check_branch
      %49 = sbr.rel (0) target = $region49
    $region48: #{geostat_cnn_forward.1} parent=1 // pred_region
      _
    $region49: #{geostat_cnn_forward.1} parent=1 // pred_fallthru
      _
    // Predicated region
    $region50: #{geostat_cnn_forward.1} parent=1 // pred_check
      _
    $region51: #{geostat_cnn_forward.1} parent=1 // pred_check_branch
      %51 = sbr.rel (0) target = $region53
    $region52: #{geostat_cnn_forward.1} parent=1 // pred_region
      _
    $region53: #{geostat_cnn_forward.1} parent=1 // pred_fallthru
      _
    // Predicated region
    $region54: #{geostat_cnn_forward.1} parent=1 // pred_check
      _
    $region55: #{geostat_cnn_forward.1} parent=1 // pred_check_branch
      %53 = sbr.rel (0) target = $region57
    $region56: #{geostat_cnn_forward.1} parent=1 // pred_region
      _
    $region57: #{geostat_cnn_forward.1} parent=1 // pred_fallthru
      _
    // Predicated region
    $region58: #{geostat_cnn_forward.1} parent=1 // pred_check
      _
    $region59: #{geostat_cnn_forward.1} parent=1 // pred_check_branch
      %55 = sbr.rel (0) target = $region61
    $region60: #{geostat_cnn_forward.1} parent=1 // pred_region
      _
    $region61: #{geostat_cnn_forward.1} parent=1 // pred_fallthru
      _
    // Predicated region
    $region62: #{geostat_cnn_forward.1} parent=1 // pred_check
      _
    $region63: #{geostat_cnn_forward.1} parent=1 // pred_check_branch
      %57 = sbr.rel (0) target = $region65
    $region64: #{geostat_cnn_forward.1} parent=1 // pred_region
      _
    $region65: #{geostat_cnn_forward.1} parent=1 // pred_fallthru
      _
    // Predicated region
    $region66: #{geostat_cnn_forward.1} parent=1 // pred_check
      _
    $region67: #{geostat_cnn_forward.1} parent=1 // pred_check_branch
      %59 = sbr.rel (0) target = $region69
    $region68: #{geostat_cnn_forward.1} parent=1 // pred_region
      _
    $region69: #{geostat_cnn_forward.1} parent=1 // pred_fallthru
      _
    // Predicated region
    $region70: #{geostat_cnn_forward.1} parent=1 // pred_check
      _
    $region71: #{geostat_cnn_forward.1} parent=1 // pred_check_branch
      %61 = sbr.rel (0) target = $region73
    $region72: #{geostat_cnn_forward.1} parent=1 // pred_region
      _
    $region73: #{geostat_cnn_forward.1} parent=1 // pred_fallthru
      _
    // Predicated region
    $region74: #{geostat_cnn_forward.1} parent=1 // pred_check
      _
    $region75: #{geostat_cnn_forward.1} parent=1 // pred_check_branch
      %63 = sbr.rel (0) target = $region77
    $region76: #{geostat_cnn_forward.1} parent=1 // pred_region
      _
    $region77: #{geostat_cnn_forward.1} parent=1 // pred_fallthru
      _
    // Predicated region
    $region78: #{geostat_cnn_forward.1} parent=1 // pred_check
      _
    $region79: #{geostat_cnn_forward.1} parent=1 // pred_check_branch
      %65 = sbr.rel (0) target = $region81
    $region80: #{geostat_cnn_forward.1} parent=1 // pred_region
      _
    $region81: #{geostat_cnn_forward.1} parent=1 // pred_fallthru
      _
    %v66 = vld [vmem:[%s0] sm:$0xff]
    %v67 = vld [vmem:[%s0 + $0x8] sm:$0xff]
    %v68 = vld [vmem:[%s0 + $0x10] sm:$0xff]
    %v69 = vld [vmem:[%s0 + $0x18] sm:$0xff]
    %v70 = vld [vmem:[%s0 + $0x20] sm:$0xff]
    %v71 = vld [vmem:[%s0 + $0x28] sm:$0xff]
    %v72 = vld [vmem:[%s0 + $0x30] sm:$0xff]
    %v73 = vld [vmem:[%s0 + $0x38] sm:$0xff]
    %v74 = vld [vmem:[%s0 + $0x40] sm:$0xff]
    %v75 = vld [vmem:[%s0 + $0x48] sm:$0xff]
    %v76 = vld [vmem:[%s0 + $0x50] sm:$0xff]
    %v77 = vld [vmem:[%s0 + $0x58] sm:$0xff]
    %v78 = vld [vmem:[%s0 + $0x60] sm:$0xff]
    %v79 = vld [vmem:[%s0 + $0x68] sm:$0xff]
    %v80 = vld [vmem:[%s0 + $0x70] sm:$0xff]
    %v81 = vld [vmem:[%s0 + $0x78] sm:$0xff]
    %v82 = vld [vmem:[%s0 + $0x80] sm:$0xff]
    %v83 = vld [vmem:[%s0 + $0x88] sm:$0xff]
    %v84 = vld [vmem:[%s0 + $0x90] sm:$0xff]
    %v85 = vld [vmem:[%s0 + $0x98] sm:$0xff]
    %v86 = vld [vmem:[%s0 + $0xa0] sm:$0xff]
    %v87 = vld [vmem:[%s0 + $0xa8] sm:$0xff]
    %v88 = vld [vmem:[%s0 + $0xb0] sm:$0xff]
    %v89 = vld [vmem:[%s0 + $0xb8] sm:$0xff]
    %v90 = vld [vmem:[%s0 + $0xc0] sm:$0xff]
    %v91 = vld [vmem:[%s2] sm:$0xff]
    %v92 = vld [vmem:[%s2 + $0x8] sm:$0xff]
    %v93 = vld [vmem:[%s2 + $0x10] sm:$0xff]
    %v94 = vld [vmem:[%s2 + $0x18] sm:$0xff]
    %v95 = vld [vmem:[%s2 + $0x20] sm:$0xf]
    %v96 = vld [vmem:[%s3] sm:$0x1]
    %v98 = vperm.slane %v96, 0
    %vm100 = vcmask 293888
    %v102 = vsel %vm100, %v66, 0
    %v105 = vsel %vm100, %v67, 0
    %v108 = vsel %vm100, %v68, 0
    %v111 = vsel %vm100, %v69, 0
    %v114 = vsel %vm100, %v70, 0
    %v117 = vsel %vm100, %v71, 0
    %v120 = vsel %vm100, %v72, 0
    %v123 = vsel %vm100, %v73, 0
    %v126 = vsel %vm100, %v74, 0
    %v129 = vsel %vm100, %v75, 0
    %v132 = vsel %vm100, %v76, 0
    %v135 = vsel %vm100, %v77, 0
    %v138 = vsel %vm100, %v78, 0
    %v141 = vsel %vm100, %v79, 0
    %v144 = vsel %vm100, %v80, 0
    %v147 = vsel %vm100, %v81, 0
    %v150 = vsel %vm100, %v82, 0
    %v153 = vsel %vm100, %v83, 0
    %v156 = vsel %vm100, %v84, 0
    %v159 = vsel %vm100, %v85, 0
    %v162 = vsel %vm100, %v86, 0
    %v165 = vsel %vm100, %v87, 0
    %v168 = vsel %vm100, %v88, 0
    %v171 = vsel %vm100, %v89, 0
    %v174 = vsel %vm100, %v90, 0
    %vm176 = vcmask 1043456
    %v178 = vsel %vm176, %v95, 0
    %180 = vmatpush.msra.mxu0 0.0
    %181 = vmatpush.msra.mxu0 0.0
    %182 = vmatpush.msra.mxu0 0.0
    %183 = vmatpush.msra.mxu0 0.0
    %184 = vmatpush.msra.mxu0 0.0
    %185 = vmatpush.msra.mxu0 0.0
    %186 = vmatpush.msra.mxu0 0.0
    %187 = vmatpush.msra.mxu0 0.0
    %188 = vmatpush.msra.mxu0 0.0
    %189 = vmatpush.msra.mxu0 0.0
    %190 = vmatpush.msra.mxu0 0.0
    %191 = vmatpush.msra.mxu0 %v178
    %192 = vmatpush.msra.mxu0 %v94
    %193 = vmatpush.msra.mxu0 %v93
    %194 = vmatpush.msra.mxu0 %v92
    %195 = vmatpush.msra.mxu0 %v91
    %196 = vmatmul.f32.gmra.mxu0 %v102
    %v197 = vpop.f32.mrf.mxu0
    %v198 = vadd.f32 %v98, %v197
    %199 = vmatmul.f32.gmra.mxu0 %v105
    %v200 = vpop.f32.mrf.mxu0
    %v201 = vadd.f32 %v98, %v200
    %202 = vmatmul.f32.gmra.mxu0 %v108
    %v203 = vpop.f32.mrf.mxu0
    %v204 = vadd.f32 %v98, %v203
    %205 = vmatmul.f32.gmra.mxu0 %v111
    %v206 = vpop.f32.mrf.mxu0
    %v207 = vadd.f32 %v98, %v206
    %208 = vmatmul.f32.gmra.mxu0 %v114
    %v209 = vpop.f32.mrf.mxu0
    %v210 = vadd.f32 %v98, %v209
    %211 = vmatmul.f32.gmra.mxu0 %v117
    %v212 = vpop.f32.mrf.mxu0
    %v213 = vadd.f32 %v98, %v212
    %214 = vmatmul.f32.gmra.mxu0 %v120
    %v215 = vpop.f32.mrf.mxu0
    %v216 = vadd.f32 %v98, %v215
    %217 = vmatmul.f32.gmra.mxu0 %v123
    %v218 = vpop.f32.mrf.mxu0
    %v219 = vadd.f32 %v98, %v218
    %220 = vmatmul.f32.gmra.mxu0 %v126
    %v221 = vpop.f32.mrf.mxu0
    %v222 = vadd.f32 %v98, %v221
    %223 = vmatmul.f32.gmra.mxu0 %v129
    %v224 = vpop.f32.mrf.mxu0
    %v225 = vadd.f32 %v98, %v224
    %226 = vmatmul.f32.gmra.mxu0 %v132
    %v227 = vpop.f32.mrf.mxu0
    %v228 = vadd.f32 %v98, %v227
    %229 = vmatmul.f32.gmra.mxu0 %v135
    %v230 = vpop.f32.mrf.mxu0
    %v231 = vadd.f32 %v98, %v230
    %232 = vmatmul.f32.gmra.mxu0 %v138
    %v233 = vpop.f32.mrf.mxu0
    %v234 = vadd.f32 %v98, %v233
    %235 = vmatmul.f32.gmra.mxu0 %v141
    %v236 = vpop.f32.mrf.mxu0
    %v237 = vadd.f32 %v98, %v236
    %238 = vmatmul.f32.gmra.mxu0 %v144
    %v239 = vpop.f32.mrf.mxu0
    %v240 = vadd.f32 %v98, %v239
    %241 = vmatmul.f32.gmra.mxu0 %v147
    %v242 = vpop.f32.mrf.mxu0
    %v243 = vadd.f32 %v98, %v242
    %244 = vmatmul.f32.gmra.mxu0 %v150
    %v245 = vpop.f32.mrf.mxu0
    %v246 = vadd.f32 %v98, %v245
    %247 = vmatmul.f32.gmra.mxu0 %v153
    %v248 = vpop.f32.mrf.mxu0
    %v249 = vadd.f32 %v98, %v248
    %250 = vmatmul.f32.gmra.mxu0 %v156
    %v251 = vpop.f32.mrf.mxu0
    %v252 = vadd.f32 %v98, %v251
    %253 = vmatmul.f32.gmra.mxu0 %v159
    %v254 = vpop.f32.mrf.mxu0
    %v255 = vadd.f32 %v98, %v254
    %256 = vmatmul.f32.gmra.mxu0 %v162
    %v257 = vpop.f32.mrf.mxu0
    %v258 = vadd.f32 %v98, %v257
    %259 = vmatmul.f32.gmra.mxu0 %v165
    %v260 = vpop.f32.mrf.mxu0
    %v261 = vadd.f32 %v98, %v260
    %262 = vmatmul.f32.gmra.mxu0 %v168
    %v263 = vpop.f32.mrf.mxu0
    %v264 = vadd.f32 %v98, %v263
    %265 = vmatmul.f32.gmra.mxu0 %v171
    %v266 = vpop.f32.mrf.mxu0
    %v267 = vadd.f32 %v98, %v266
    %268 = vmatmul.f32.gmra.mxu0 %v174
    %v269 = vpop.f32.mrf.mxu0
    %v270 = vadd.f32 %v98, %v269
    %271 = vdwg.mxu0
    %v272 = vmax.f32 %v198, 0.0
    %v273 = vmax.f32 %v201, 0.0
    %v274 = vmax.f32 %v204, 0.0
    %v275 = vmax.f32 %v207, 0.0
    %v276 = vmax.f32 %v210, 0.0
    %v277 = vmax.f32 %v213, 0.0
    %v278 = vmax.f32 %v216, 0.0
    %v279 = vmax.f32 %v219, 0.0
    %v280 = vmax.f32 %v222, 0.0
    %v281 = vmax.f32 %v225, 0.0
    %v282 = vmax.f32 %v228, 0.0
    %v283 = vmax.f32 %v231, 0.0
    %v284 = vmax.f32 %v234, 0.0
    %v285 = vmax.f32 %v237, 0.0
    %v286 = vmax.f32 %v240, 0.0
    %v287 = vmax.f32 %v243, 0.0
    %v288 = vmax.f32 %v246, 0.0
    %v289 = vmax.f32 %v249, 0.0
    %v290 = vmax.f32 %v252, 0.0
    %v291 = vmax.f32 %v255, 0.0
    %v292 = vmax.f32 %v258, 0.0
    %v293 = vmax.f32 %v261, 0.0
    %v294 = vmax.f32 %v264, 0.0
    %v295 = vmax.f32 %v267, 0.0
    %v296 = vmax.f32 %v270, 0.0
    %v297 = vld [vmem:[%s4] sm:$0xff]
    %v298 = vld [vmem:[%s4 + $0x8] sm:$0xff]
    %v299 = vld [vmem:[%s4 + $0x10] sm:$0xff]
    %v300 = vld [vmem:[%s4 + $0x18] sm:$0xff]
    %v301 = vld [vmem:[%s4 + $0x20] sm:$0xff]
    %v302 = vld [vmem:[%s4 + $0x28] sm:$0xff]
    %v303 = vld [vmem:[%s4 + $0x30] sm:$0xff]
    %v304 = vld [vmem:[%s4 + $0x38] sm:$0xff]
    %v305 = vld [vmem:[%s4 + $0x40] sm:$0xff]
    %v306 = vld [vmem:[%s4 + $0x48] sm:$0xff]
    %v307 = vld [vmem:[%s4 + $0x50] sm:$0xff]
    %v308 = vld [vmem:[%s4 + $0x58] sm:$0xff]
    %v309 = vld [vmem:[%s4 + $0x60] sm:$0xff]
    %v310 = vld [vmem:[%s4 + $0x68] sm:$0xff]
    %v311 = vld [vmem:[%s4 + $0x70] sm:$0xff]
    %v312 = vld [vmem:[%s4 + $0x78] sm:$0xff]
    %v313 = vld [vmem:[%s5] sm:$0x1]
    %v315 = vperm.slane %v313, 0
    %317 = vmatpush.msra.mxu0 %v312
    %318 = vmatpush.msra.mxu0 %v311
    %319 = vmatpush.msra.mxu0 %v310
    %320 = vmatpush.msra.mxu0 %v309
    %321 = vmatpush.msra.mxu0 %v308
    %322 = vmatpush.msra.mxu0 %v307
    %323 = vmatpush.msra.mxu0 %v306
    %324 = vmatpush.msra.mxu0 %v305
    %325 = vmatpush.msra.mxu0 %v304
    %326 = vmatpush.msra.mxu0 %v303
    %327 = vmatpush.msra.mxu0 %v302
    %328 = vmatpush.msra.mxu0 %v301
    %329 = vmatpush.msra.mxu0 %v300
    %330 = vmatpush.msra.mxu0 %v299
    %331 = vmatpush.msra.mxu0 %v298
    %332 = vmatpush.msra.mxu0 %v297
    %333 = vmatmul.f32.gmra.mxu0 %v272
    %v334 = vpop.f32.mrf.mxu0
    %v335 = vadd.f32 %v315, %v334
    %336 = vmatmul.f32.gmra.mxu0 %v273
    %v337 = vpop.f32.mrf.mxu0
    %v338 = vadd.f32 %v315, %v337
    %339 = vmatmul.f32.gmra.mxu0 %v274
    %v340 = vpop.f32.mrf.mxu0
    %v341 = vadd.f32 %v315, %v340
    %342 = vmatmul.f32.gmra.mxu0 %v275
    %v343 = vpop.f32.mrf.mxu0
    %v344 = vadd.f32 %v315, %v343
    %345 = vmatmul.f32.gmra.mxu0 %v276
    %v346 = vpop.f32.mrf.mxu0
    %v347 = vadd.f32 %v315, %v346
    %348 = vmatmul.f32.gmra.mxu0 %v277
    %v349 = vpop.f32.mrf.mxu0
    %v350 = vadd.f32 %v315, %v349
    %351 = vmatmul.f32.gmra.mxu0 %v278
    %v352 = vpop.f32.mrf.mxu0
    %v353 = vadd.f32 %v315, %v352
    %354 = vmatmul.f32.gmra.mxu0 %v279
    %v355 = vpop.f32.mrf.mxu0
    %v356 = vadd.f32 %v315, %v355
    %357 = vmatmul.f32.gmra.mxu0 %v280
    %v358 = vpop.f32.mrf.mxu0
    %v359 = vadd.f32 %v315, %v358
    %360 = vmatmul.f32.gmra.mxu0 %v281
    %v361 = vpop.f32.mrf.mxu0
    %v362 = vadd.f32 %v315, %v361
    %363 = vmatmul.f32.gmra.mxu0 %v282
    %v364 = vpop.f32.mrf.mxu0
    %v365 = vadd.f32 %v315, %v364
    %366 = vmatmul.f32.gmra.mxu0 %v283
    %v367 = vpop.f32.mrf.mxu0
    %v368 = vadd.f32 %v315, %v367
    %369 = vmatmul.f32.gmra.mxu0 %v284
    %v370 = vpop.f32.mrf.mxu0
    %v371 = vadd.f32 %v315, %v370
    %372 = vmatmul.f32.gmra.mxu0 %v285
    %v373 = vpop.f32.mrf.mxu0
    %v374 = vadd.f32 %v315, %v373
    %375 = vmatmul.f32.gmra.mxu0 %v286
    %v376 = vpop.f32.mrf.mxu0
    %v377 = vadd.f32 %v315, %v376
    %378 = vmatmul.f32.gmra.mxu0 %v287
    %v379 = vpop.f32.mrf.mxu0
    %v380 = vadd.f32 %v315, %v379
    %381 = vmatmul.f32.gmra.mxu0 %v288
    %v382 = vpop.f32.mrf.mxu0
    %v383 = vadd.f32 %v315, %v382
    %384 = vmatmul.f32.gmra.mxu0 %v289
    %v385 = vpop.f32.mrf.mxu0
    %v386 = vadd.f32 %v315, %v385
    %387 = vmatmul.f32.gmra.mxu0 %v290
    %v388 = vpop.f32.mrf.mxu0
    %v389 = vadd.f32 %v315, %v388
    %390 = vmatmul.f32.gmra.mxu0 %v291
    %v391 = vpop.f32.mrf.mxu0
    %v392 = vadd.f32 %v315, %v391
    %393 = vmatmul.f32.gmra.mxu0 %v292
    %v394 = vpop.f32.mrf.mxu0
    %v395 = vadd.f32 %v315, %v394
    %396 = vmatmul.f32.gmra.mxu0 %v293
    %v397 = vpop.f32.mrf.mxu0
    %v398 = vadd.f32 %v315, %v397
    %399 = vmatmul.f32.gmra.mxu0 %v294
    %v400 = vpop.f32.mrf.mxu0
    %v401 = vadd.f32 %v315, %v400
    %402 = vmatmul.f32.gmra.mxu0 %v295
    %v403 = vpop.f32.mrf.mxu0
    %v404 = vadd.f32 %v315, %v403
    %405 = vmatmul.f32.gmra.mxu0 %v296
    %v406 = vpop.f32.mrf.mxu0
    %v407 = vadd.f32 %v315, %v406
    %408 = vdwg.mxu0
    %v409 = vrot.slane %v272, 1
    %v410 = vrot.slane %v273, 1
    %v411 = vrot.slane %v274, 1
    %v412 = vrot.slane %v275, 1
    %v413 = vrot.slane %v276, 1
    %v414 = vrot.slane %v277, 1
    %v415 = vrot.slane %v278, 1
    %v416 = vrot.slane %v279, 1
    %v417 = vrot.slane %v280, 1
    %v418 = vrot.slane %v281, 1
    %v419 = vrot.slane %v282, 1
    %v420 = vrot.slane %v283, 1
    %v421 = vrot.slane %v284, 1
    %v422 = vrot.slane %v285, 1
    %v423 = vrot.slane %v286, 1
    %v424 = vrot.slane %v287, 1
    %v425 = vrot.slane %v288, 1
    %v426 = vrot.slane %v289, 1
    %v427 = vrot.slane %v290, 1
    %v428 = vrot.slane %v291, 1
    %v429 = vrot.slane %v292, 1
    %v430 = vrot.slane %v293, 1
    %v431 = vrot.slane %v294, 1
    %v432 = vrot.slane %v295, 1
    %v433 = vrot.slane %v296, 1
    %v434 = vlaneseq
    %v435 = vshrl.u32 %v434, 7
    %vm436 = vcmp.lt.s32.totalorder %v435, 7
    %v437 = vsel %vm436, %v432, %v433
    %v438 = vsel %vm436, %v431, %v432
    %v439 = vsel %vm436, %v430, %v431
    %v440 = vsel %vm436, %v429, %v430
    %v441 = vsel %vm436, %v428, %v429
    %v442 = vsel %vm436, %v427, %v428
    %v443 = vsel %vm436, %v426, %v427
    %v444 = vsel %vm436, %v425, %v426
    %v445 = vsel %vm436, %v424, %v425
    %v446 = vsel %vm436, %v423, %v424
    %v447 = vsel %vm436, %v422, %v423
    %v448 = vsel %vm436, %v421, %v422
    %v449 = vsel %vm436, %v420, %v421
    %v450 = vsel %vm436, %v419, %v420
    %v451 = vsel %vm436, %v418, %v419
    %v452 = vsel %vm436, %v417, %v418
    %v453 = vsel %vm436, %v416, %v417
    %v454 = vsel %vm436, %v415, %v416
    %v455 = vsel %vm436, %v414, %v415
    %v456 = vsel %vm436, %v413, %v414
    %v457 = vsel %vm436, %v412, %v413
    %v458 = vsel %vm436, %v411, %v412
    %v459 = vsel %vm436, %v410, %v411
    %v460 = vsel %vm436, %v409, %v410
    %v461 = vsel %vm436, %v433, %v409
    %s462 = scalar_lea.vmem %s4, 128
    %v463 = vld [vmem:[%s462] sm:$0xff]
    %v464 = vld [vmem:[%s462 + $0x8] sm:$0xff]
    %v465 = vld [vmem:[%s462 + $0x10] sm:$0xff]
    %v466 = vld [vmem:[%s462 + $0x18] sm:$0xff]
    %v467 = vld [vmem:[%s462 + $0x20] sm:$0xff]
    %v468 = vld [vmem:[%s462 + $0x28] sm:$0xff]
    %v469 = vld [vmem:[%s462 + $0x30] sm:$0xff]
    %v470 = vld [vmem:[%s462 + $0x38] sm:$0xff]
    %v471 = vld [vmem:[%s462 + $0x40] sm:$0xff]
    %v472 = vld [vmem:[%s462 + $0x48] sm:$0xff]
    %v473 = vld [vmem:[%s462 + $0x50] sm:$0xff]
    %v474 = vld [vmem:[%s462 + $0x58] sm:$0xff]
    %v475 = vld [vmem:[%s462 + $0x60] sm:$0xff]
    %v476 = vld [vmem:[%s462 + $0x68] sm:$0xff]
    %v477 = vld [vmem:[%s462 + $0x70] sm:$0xff]
    %v478 = vld [vmem:[%s462 + $0x78] sm:$0xff]
    %479 = vmatpush.msra.mxu0 %v478
    %480 = vmatpush.msra.mxu0 %v477
    %481 = vmatpush.msra.mxu0 %v476
    %482 = vmatpush.msra.mxu0 %v475
    %483 = vmatpush.msra.mxu0 %v474
    %484 = vmatpush.msra.mxu0 %v473
    %485 = vmatpush.msra.mxu0 %v472
    %486 = vmatpush.msra.mxu0 %v471
    %487 = vmatpush.msra.mxu0 %v470
    %488 = vmatpush.msra.mxu0 %v469
    %489 = vmatpush.msra.mxu0 %v468
    %490 = vmatpush.msra.mxu0 %v467
    %491 = vmatpush.msra.mxu0 %v466
    %492 = vmatpush.msra.mxu0 %v465
    %493 = vmatpush.msra.mxu0 %v464
    %494 = vmatpush.msra.mxu0 %v463
    %495 = vmatmul.f32.gmra.mxu0 %v460
    %v496 = vpop.f32.mrf.mxu0
    %v497 = vadd.f32 0.0, %v496
    %498 = vmatmul.f32.gmra.mxu0 %v459
    %v499 = vpop.f32.mrf.mxu0
    %v500 = vadd.f32 0.0, %v499
    %501 = vmatmul.f32.gmra.mxu0 %v458
    %v502 = vpop.f32.mrf.mxu0
    %v503 = vadd.f32 0.0, %v502
    %504 = vmatmul.f32.gmra.mxu0 %v457
    %v505 = vpop.f32.mrf.mxu0
    %v506 = vadd.f32 0.0, %v505
    %507 = vmatmul.f32.gmra.mxu0 %v456
    %v508 = vpop.f32.mrf.mxu0
    %v509 = vadd.f32 0.0, %v508
    %510 = vmatmul.f32.gmra.mxu0 %v455
    %v511 = vpop.f32.mrf.mxu0
    %v512 = vadd.f32 0.0, %v511
    %513 = vmatmul.f32.gmra.mxu0 %v454
    %v514 = vpop.f32.mrf.mxu0
    %v515 = vadd.f32 0.0, %v514
    %516 = vmatmul.f32.gmra.mxu0 %v453
    %v517 = vpop.f32.mrf.mxu0
    %v518 = vadd.f32 0.0, %v517
    %519 = vmatmul.f32.gmra.mxu0 %v452
    %v520 = vpop.f32.mrf.mxu0
    %v521 = vadd.f32 0.0, %v520
    %522 = vmatmul.f32.gmra.mxu0 %v451
    %v523 = vpop.f32.mrf.mxu0
    %v524 = vadd.f32 0.0, %v523
    %525 = vmatmul.f32.gmra.mxu0 %v450
    %v526 = vpop.f32.mrf.mxu0
    %v527 = vadd.f32 0.0, %v526
    %528 = vmatmul.f32.gmra.mxu0 %v449
    %v529 = vpop.f32.mrf.mxu0
    %v530 = vadd.f32 0.0, %v529
    %531 = vmatmul.f32.gmra.mxu0 %v448
    %v532 = vpop.f32.mrf.mxu0
    %v533 = vadd.f32 0.0, %v532
    %534 = vmatmul.f32.gmra.mxu0 %v447
    %v535 = vpop.f32.mrf.mxu0
    %v536 = vadd.f32 0.0, %v535
    %537 = vmatmul.f32.gmra.mxu0 %v446
    %v538 = vpop.f32.mrf.mxu0
    %v539 = vadd.f32 0.0, %v538
    %540 = vmatmul.f32.gmra.mxu0 %v445
    %v541 = vpop.f32.mrf.mxu0
    %v542 = vadd.f32 0.0, %v541
    %543 = vmatmul.f32.gmra.mxu0 %v444
    %v544 = vpop.f32.mrf.mxu0
    %v545 = vadd.f32 0.0, %v544
    %546 = vmatmul.f32.gmra.mxu0 %v443
    %v547 = vpop.f32.mrf.mxu0
    %v548 = vadd.f32 0.0, %v547
    %549 = vmatmul.f32.gmra.mxu0 %v442
    %v550 = vpop.f32.mrf.mxu0
    %v551 = vadd.f32 0.0, %v550
    %552 = vmatmul.f32.gmra.mxu0 %v441
    %v553 = vpop.f32.mrf.mxu0
    %v554 = vadd.f32 0.0, %v553
    %555 = vmatmul.f32.gmra.mxu0 %v440
    %v556 = vpop.f32.mrf.mxu0
    %v557 = vadd.f32 0.0, %v556
    %558 = vmatmul.f32.gmra.mxu0 %v439
    %v559 = vpop.f32.mrf.mxu0
    %v560 = vadd.f32 0.0, %v559
    %561 = vmatmul.f32.gmra.mxu0 %v438
    %v562 = vpop.f32.mrf.mxu0
    %v563 = vadd.f32 0.0, %v562
    %564 = vmatmul.f32.gmra.mxu0 %v437
    %v565 = vpop.f32.mrf.mxu0
    %v566 = vadd.f32 0.0, %v565
    %567 = vmatmul.f32.gmra.mxu0 %v461
    %v568 = vpop.f32.mrf.mxu0
    %v569 = vadd.f32 0.0, %v568
    %570 = vdwg.mxu0
    %v571 = vadd.f32 %v335, %v497
    %v572 = vadd.f32 %v338, %v500
    %v573 = vadd.f32 %v341, %v503
    %v574 = vadd.f32 %v344, %v506
    %v575 = vadd.f32 %v347, %v509
    %v576 = vadd.f32 %v350, %v512
    %v577 = vadd.f32 %v353, %v515
    %v578 = vadd.f32 %v356, %v518
    %v579 = vadd.f32 %v359, %v521
    %v580 = vadd.f32 %v362, %v524
    %v581 = vadd.f32 %v365, %v527
    %v582 = vadd.f32 %v368, %v530
    %v583 = vadd.f32 %v371, %v533
    %v584 = vadd.f32 %v374, %v536
    %v585 = vadd.f32 %v377, %v539
    %v586 = vadd.f32 %v380, %v542
    %v587 = vadd.f32 %v383, %v545
    %v588 = vadd.f32 %v386, %v548
    %v589 = vadd.f32 %v389, %v551
    %v590 = vadd.f32 %v392, %v554
    %v591 = vadd.f32 %v395, %v557
    %v592 = vadd.f32 %v398, %v560
    %v593 = vadd.f32 %v401, %v563
    %v594 = vadd.f32 %v404, %v566
    %v595 = vadd.f32 %v407, %v569
    %v596 = vrot.slane %v272, 2
    %v597 = vrot.slane %v273, 2
    %v598 = vrot.slane %v274, 2
    %v599 = vrot.slane %v275, 2
    %v600 = vrot.slane %v276, 2
    %v601 = vrot.slane %v277, 2
    %v602 = vrot.slane %v278, 2
    %v603 = vrot.slane %v279, 2
    %v604 = vrot.slane %v280, 2
    %v605 = vrot.slane %v281, 2
    %v606 = vrot.slane %v282, 2
    %v607 = vrot.slane %v283, 2
    %v608 = vrot.slane %v284, 2
    %v609 = vrot.slane %v285, 2
    %v610 = vrot.slane %v286, 2
    %v611 = vrot.slane %v287, 2
    %v612 = vrot.slane %v288, 2
    %v613 = vrot.slane %v289, 2
    %v614 = vrot.slane %v290, 2
    %v615 = vrot.slane %v291, 2
    %v616 = vrot.slane %v292, 2
    %v617 = vrot.slane %v293, 2
    %v618 = vrot.slane %v294, 2
    %v619 = vrot.slane %v295, 2
    %v620 = vrot.slane %v296, 2
    %vm621 = vcmp.lt.s32.totalorder %v435, 6
    %v622 = vsel %vm621, %v619, %v620
    %v623 = vsel %vm621, %v618, %v619
    %v624 = vsel %vm621, %v617, %v618
    %v625 = vsel %vm621, %v616, %v617
    %v626 = vsel %vm621, %v615, %v616
    %v627 = vsel %vm621, %v614, %v615
    %v628 = vsel %vm621, %v613, %v614
    %v629 = vsel %vm621, %v612, %v613
    %v630 = vsel %vm621, %v611, %v612
    %v631 = vsel %vm621, %v610, %v611
    %v632 = vsel %vm621, %v609, %v610
    %v633 = vsel %vm621, %v608, %v609
    %v634 = vsel %vm621, %v607, %v608
    %v635 = vsel %vm621, %v606, %v607
    %v636 = vsel %vm621, %v605, %v606
    %v637 = vsel %vm621, %v604, %v605
    %v638 = vsel %vm621, %v603, %v604
    %v639 = vsel %vm621, %v602, %v603
    %v640 = vsel %vm621, %v601, %v602
    %v641 = vsel %vm621, %v600, %v601
    %v642 = vsel %vm621, %v599, %v600
    %v643 = vsel %vm621, %v598, %v599
    %v644 = vsel %vm621, %v597, %v598
    %v645 = vsel %vm621, %v596, %v597
    %v646 = vsel %vm621, %v620, %v596
    %s647 = scalar_lea.vmem %s4, 256
    %v648 = vld [vmem:[%s647] sm:$0xff]
    %v649 = vld [vmem:[%s647 + $0x8] sm:$0xff]
    %v650 = vld [vmem:[%s647 + $0x10] sm:$0xff]
    %v651 = vld [vmem:[%s647 + $0x18] sm:$0xff]
    %v652 = vld [vmem:[%s647 + $0x20] sm:$0xff]
    %v653 = vld [vmem:[%s647 + $0x28] sm:$0xff]
    %v654 = vld [vmem:[%s647 + $0x30] sm:$0xff]
    %v655 = vld [vmem:[%s647 + $0x38] sm:$0xff]
    %v656 = vld [vmem:[%s647 + $0x40] sm:$0xff]
    %v657 = vld [vmem:[%s647 + $0x48] sm:$0xff]
    %v658 = vld [vmem:[%s647 + $0x50] sm:$0xff]
    %v659 = vld [vmem:[%s647 + $0x58] sm:$0xff]
    %v660 = vld [vmem:[%s647 + $0x60] sm:$0xff]
    %v661 = vld [vmem:[%s647 + $0x68] sm:$0xff]
    %v662 = vld [vmem:[%s647 + $0x70] sm:$0xff]
    %v663 = vld [vmem:[%s647 + $0x78] sm:$0xff]
    %664 = vmatpush.msra.mxu0 %v663
    %665 = vmatpush.msra.mxu0 %v662
    %666 = vmatpush.msra.mxu0 %v661
    %667 = vmatpush.msra.mxu0 %v660
    %668 = vmatpush.msra.mxu0 %v659
    %669 = vmatpush.msra.mxu0 %v658
    %670 = vmatpush.msra.mxu0 %v657
    %671 = vmatpush.msra.mxu0 %v656
    %672 = vmatpush.msra.mxu0 %v655
    %673 = vmatpush.msra.mxu0 %v654
    %674 = vmatpush.msra.mxu0 %v653
    %675 = vmatpush.msra.mxu0 %v652
    %676 = vmatpush.msra.mxu0 %v651
    %677 = vmatpush.msra.mxu0 %v650
    %678 = vmatpush.msra.mxu0 %v649
    %679 = vmatpush.msra.mxu0 %v648
    %680 = vmatmul.f32.gmra.mxu0 %v645
    %v681 = vpop.f32.mrf.mxu0
    %v682 = vadd.f32 0.0, %v681
    %683 = vmatmul.f32.gmra.mxu0 %v644
    %v684 = vpop.f32.mrf.mxu0
    %v685 = vadd.f32 0.0, %v684
    %686 = vmatmul.f32.gmra.mxu0 %v643
    %v687 = vpop.f32.mrf.mxu0
    %v688 = vadd.f32 0.0, %v687
    %689 = vmatmul.f32.gmra.mxu0 %v642
    %v690 = vpop.f32.mrf.mxu0
    %v691 = vadd.f32 0.0, %v690
    %692 = vmatmul.f32.gmra.mxu0 %v641
    %v693 = vpop.f32.mrf.mxu0
    %v694 = vadd.f32 0.0, %v693
    %695 = vmatmul.f32.gmra.mxu0 %v640
    %v696 = vpop.f32.mrf.mxu0
    %v697 = vadd.f32 0.0, %v696
    %698 = vmatmul.f32.gmra.mxu0 %v639
    %v699 = vpop.f32.mrf.mxu0
    %v700 = vadd.f32 0.0, %v699
    %701 = vmatmul.f32.gmra.mxu0 %v638
    %v702 = vpop.f32.mrf.mxu0
    %v703 = vadd.f32 0.0, %v702
    %704 = vmatmul.f32.gmra.mxu0 %v637
    %v705 = vpop.f32.mrf.mxu0
    %v706 = vadd.f32 0.0, %v705
    %707 = vmatmul.f32.gmra.mxu0 %v636
    %v708 = vpop.f32.mrf.mxu0
    %v709 = vadd.f32 0.0, %v708
    %710 = vmatmul.f32.gmra.mxu0 %v635
    %v711 = vpop.f32.mrf.mxu0
    %v712 = vadd.f32 0.0, %v711
    %713 = vmatmul.f32.gmra.mxu0 %v634
    %v714 = vpop.f32.mrf.mxu0
    %v715 = vadd.f32 0.0, %v714
    %716 = vmatmul.f32.gmra.mxu0 %v633
    %v717 = vpop.f32.mrf.mxu0
    %v718 = vadd.f32 0.0, %v717
    %719 = vmatmul.f32.gmra.mxu0 %v632
    %v720 = vpop.f32.mrf.mxu0
    %v721 = vadd.f32 0.0, %v720
    %722 = vmatmul.f32.gmra.mxu0 %v631
    %v723 = vpop.f32.mrf.mxu0
    %v724 = vadd.f32 0.0, %v723
    %725 = vmatmul.f32.gmra.mxu0 %v630
    %v726 = vpop.f32.mrf.mxu0
    %v727 = vadd.f32 0.0, %v726
    %728 = vmatmul.f32.gmra.mxu0 %v629
    %v729 = vpop.f32.mrf.mxu0
    %v730 = vadd.f32 0.0, %v729
    %731 = vmatmul.f32.gmra.mxu0 %v628
    %v732 = vpop.f32.mrf.mxu0
    %v733 = vadd.f32 0.0, %v732
    %734 = vmatmul.f32.gmra.mxu0 %v627
    %v735 = vpop.f32.mrf.mxu0
    %v736 = vadd.f32 0.0, %v735
    %737 = vmatmul.f32.gmra.mxu0 %v626
    %v738 = vpop.f32.mrf.mxu0
    %v739 = vadd.f32 0.0, %v738
    %740 = vmatmul.f32.gmra.mxu0 %v625
    %v741 = vpop.f32.mrf.mxu0
    %v742 = vadd.f32 0.0, %v741
    %743 = vmatmul.f32.gmra.mxu0 %v624
    %v744 = vpop.f32.mrf.mxu0
    %v745 = vadd.f32 0.0, %v744
    %746 = vmatmul.f32.gmra.mxu0 %v623
    %v747 = vpop.f32.mrf.mxu0
    %v748 = vadd.f32 0.0, %v747
    %749 = vmatmul.f32.gmra.mxu0 %v622
    %v750 = vpop.f32.mrf.mxu0
    %v751 = vadd.f32 0.0, %v750
    %752 = vmatmul.f32.gmra.mxu0 %v646
    %v753 = vpop.f32.mrf.mxu0
    %v754 = vadd.f32 0.0, %v753
    %755 = vdwg.mxu0
    %v756 = vadd.f32 %v571, %v682
    %v757 = vadd.f32 %v572, %v685
    %v758 = vadd.f32 %v573, %v688
    %v759 = vadd.f32 %v574, %v691
    %v760 = vadd.f32 %v575, %v694
    %v761 = vadd.f32 %v576, %v697
    %v762 = vadd.f32 %v577, %v700
    %v763 = vadd.f32 %v578, %v703
    %v764 = vadd.f32 %v579, %v706
    %v765 = vadd.f32 %v580, %v709
    %v766 = vadd.f32 %v581, %v712
    %v767 = vadd.f32 %v582, %v715
    %v768 = vadd.f32 %v583, %v718
    %v769 = vadd.f32 %v584, %v721
    %v770 = vadd.f32 %v585, %v724
    %v771 = vadd.f32 %v586, %v727
    %v772 = vadd.f32 %v587, %v730
    %v773 = vadd.f32 %v588, %v733
    %v774 = vadd.f32 %v589, %v736
    %v775 = vadd.f32 %v590, %v739
    %v776 = vadd.f32 %v591, %v742
    %v777 = vadd.f32 %v592, %v745
    %v778 = vadd.f32 %v593, %v748
    %v779 = vadd.f32 %v594, %v751
    %v780 = vadd.f32 %v595, %v754
    %s781 = scalar_lea.vmem %s4, 384
    %v782 = vld [vmem:[%s781] sm:$0xff]
    %v783 = vld [vmem:[%s781 + $0x8] sm:$0xff]
    %v784 = vld [vmem:[%s781 + $0x10] sm:$0xff]
    %v785 = vld [vmem:[%s781 + $0x18] sm:$0xff]
    %v786 = vld [vmem:[%s781 + $0x20] sm:$0xff]
    %v787 = vld [vmem:[%s781 + $0x28] sm:$0xff]
    %v788 = vld [vmem:[%s781 + $0x30] sm:$0xff]
    %v789 = vld [vmem:[%s781 + $0x38] sm:$0xff]
    %v790 = vld [vmem:[%s781 + $0x40] sm:$0xff]
    %v791 = vld [vmem:[%s781 + $0x48] sm:$0xff]
    %v792 = vld [vmem:[%s781 + $0x50] sm:$0xff]
    %v793 = vld [vmem:[%s781 + $0x58] sm:$0xff]
    %v794 = vld [vmem:[%s781 + $0x60] sm:$0xff]
    %v795 = vld [vmem:[%s781 + $0x68] sm:$0xff]
    %v796 = vld [vmem:[%s781 + $0x70] sm:$0xff]
    %v797 = vld [vmem:[%s781 + $0x78] sm:$0xff]
    %798 = vmatpush.msra.mxu0 %v797
    %799 = vmatpush.msra.mxu0 %v796
    %800 = vmatpush.msra.mxu0 %v795
    %801 = vmatpush.msra.mxu0 %v794
    %802 = vmatpush.msra.mxu0 %v793
    %803 = vmatpush.msra.mxu0 %v792
    %804 = vmatpush.msra.mxu0 %v791
    %805 = vmatpush.msra.mxu0 %v790
    %806 = vmatpush.msra.mxu0 %v789
    %807 = vmatpush.msra.mxu0 %v788
    %808 = vmatpush.msra.mxu0 %v787
    %809 = vmatpush.msra.mxu0 %v786
    %810 = vmatpush.msra.mxu0 %v785
    %811 = vmatpush.msra.mxu0 %v784
    %812 = vmatpush.msra.mxu0 %v783
    %813 = vmatpush.msra.mxu0 %v782
    %814 = vmatmul.f32.gmra.mxu0 %v644
    %v815 = vpop.f32.mrf.mxu0
    %v816 = vadd.f32 0.0, %v815
    %817 = vmatmul.f32.gmra.mxu0 %v643
    %v818 = vpop.f32.mrf.mxu0
    %v819 = vadd.f32 0.0, %v818
    %820 = vmatmul.f32.gmra.mxu0 %v642
    %v821 = vpop.f32.mrf.mxu0
    %v822 = vadd.f32 0.0, %v821
    %823 = vmatmul.f32.gmra.mxu0 %v641
    %v824 = vpop.f32.mrf.mxu0
    %v825 = vadd.f32 0.0, %v824
    %826 = vmatmul.f32.gmra.mxu0 %v640
    %v827 = vpop.f32.mrf.mxu0
    %v828 = vadd.f32 0.0, %v827
    %829 = vmatmul.f32.gmra.mxu0 %v639
    %v830 = vpop.f32.mrf.mxu0
    %v831 = vadd.f32 0.0, %v830
    %832 = vmatmul.f32.gmra.mxu0 %v638
    %v833 = vpop.f32.mrf.mxu0
    %v834 = vadd.f32 0.0, %v833
    %835 = vmatmul.f32.gmra.mxu0 %v637
    %v836 = vpop.f32.mrf.mxu0
    %v837 = vadd.f32 0.0, %v836
    %838 = vmatmul.f32.gmra.mxu0 %v636
    %v839 = vpop.f32.mrf.mxu0
    %v840 = vadd.f32 0.0, %v839
    %841 = vmatmul.f32.gmra.mxu0 %v635
    %v842 = vpop.f32.mrf.mxu0
    %v843 = vadd.f32 0.0, %v842
    %844 = vmatmul.f32.gmra.mxu0 %v634
    %v845 = vpop.f32.mrf.mxu0
    %v846 = vadd.f32 0.0, %v845
    %847 = vmatmul.f32.gmra.mxu0 %v633
    %v848 = vpop.f32.mrf.mxu0
    %v849 = vadd.f32 0.0, %v848
    %850 = vmatmul.f32.gmra.mxu0 %v632
    %v851 = vpop.f32.mrf.mxu0
    %v852 = vadd.f32 0.0, %v851
    %853 = vmatmul.f32.gmra.mxu0 %v631
    %v854 = vpop.f32.mrf.mxu0
    %v855 = vadd.f32 0.0, %v854
    %856 = vmatmul.f32.gmra.mxu0 %v630
    %v857 = vpop.f32.mrf.mxu0
    %v858 = vadd.f32 0.0, %v857
    %859 = vmatmul.f32.gmra.mxu0 %v629
    %v860 = vpop.f32.mrf.mxu0
    %v861 = vadd.f32 0.0, %v860
    %862 = vmatmul.f32.gmra.mxu0 %v628
    %v863 = vpop.f32.mrf.mxu0
    %v864 = vadd.f32 0.0, %v863
    %865 = vmatmul.f32.gmra.mxu0 %v627
    %v866 = vpop.f32.mrf.mxu0
    %v867 = vadd.f32 0.0, %v866
    %868 = vmatmul.f32.gmra.mxu0 %v626
    %v869 = vpop.f32.mrf.mxu0
    %v870 = vadd.f32 0.0, %v869
    %871 = vmatmul.f32.gmra.mxu0 %v625
    %v872 = vpop.f32.mrf.mxu0
    %v873 = vadd.f32 0.0, %v872
    %874 = vmatmul.f32.gmra.mxu0 %v624
    %v875 = vpop.f32.mrf.mxu0
    %v876 = vadd.f32 0.0, %v875
    %877 = vmatmul.f32.gmra.mxu0 %v623
    %v878 = vpop.f32.mrf.mxu0
    %v879 = vadd.f32 0.0, %v878
    %880 = vmatmul.f32.gmra.mxu0 %v622
    %v881 = vpop.f32.mrf.mxu0
    %v882 = vadd.f32 0.0, %v881
    %883 = vmatmul.f32.gmra.mxu0 %v646
    %v884 = vpop.f32.mrf.mxu0
    %v885 = vadd.f32 0.0, %v884
    %886 = vmatmul.f32.gmra.mxu0 %v645
    %v887 = vpop.f32.mrf.mxu0
    %v888 = vadd.f32 0.0, %v887
    %889 = vdwg.mxu0
    %v890 = vadd.f32 %v756, %v816
    %v891 = vadd.f32 %v757, %v819
    %v892 = vadd.f32 %v758, %v822
    %v893 = vadd.f32 %v759, %v825
    %v894 = vadd.f32 %v760, %v828
    %v895 = vadd.f32 %v761, %v831
    %v896 = vadd.f32 %v762, %v834
    %v897 = vadd.f32 %v763, %v837
    %v898 = vadd.f32 %v764, %v840
    %v899 = vadd.f32 %v765, %v843
    %v900 = vadd.f32 %v766, %v846
    %v901 = vadd.f32 %v767, %v849
    %v902 = vadd.f32 %v768, %v852
    %v903 = vadd.f32 %v769, %v855
    %v904 = vadd.f32 %v770, %v858
    %v905 = vadd.f32 %v771, %v861
    %v906 = vadd.f32 %v772, %v864
    %v907 = vadd.f32 %v773, %v867
    %v908 = vadd.f32 %v774, %v870
    %v909 = vadd.f32 %v775, %v873
    %v910 = vadd.f32 %v776, %v876
    %v911 = vadd.f32 %v777, %v879
    %v912 = vadd.f32 %v778, %v882
    %v913 = vadd.f32 %v779, %v885
    %v914 = vadd.f32 %v780, %v888
    %v915 = vrot.slane %v272, 3
    %v916 = vrot.slane %v273, 3
    %v917 = vrot.slane %v274, 3
    %v918 = vrot.slane %v275, 3
    %v919 = vrot.slane %v276, 3
    %v920 = vrot.slane %v277, 3
    %v921 = vrot.slane %v278, 3
    %v922 = vrot.slane %v279, 3
    %v923 = vrot.slane %v280, 3
    %v924 = vrot.slane %v281, 3
    %v925 = vrot.slane %v282, 3
    %v926 = vrot.slane %v283, 3
    %v927 = vrot.slane %v284, 3
    %v928 = vrot.slane %v285, 3
    %v929 = vrot.slane %v286, 3
    %v930 = vrot.slane %v287, 3
    %v931 = vrot.slane %v288, 3
    %v932 = vrot.slane %v289, 3
    %v933 = vrot.slane %v290, 3
    %v934 = vrot.slane %v291, 3
    %v935 = vrot.slane %v292, 3
    %v936 = vrot.slane %v293, 3
    %v937 = vrot.slane %v294, 3
    %v938 = vrot.slane %v295, 3
    %v939 = vrot.slane %v296, 3
    %vm940 = vcmp.lt.s32.totalorder %v435, 5
    %v941 = vsel %vm940, %v938, %v939
    %v942 = vsel %vm940, %v937, %v938
    %v943 = vsel %vm940, %v936, %v937
    %v944 = vsel %vm940, %v935, %v936
    %v945 = vsel %vm940, %v934, %v935
    %v946 = vsel %vm940, %v933, %v934
    %v947 = vsel %vm940, %v932, %v933
    %v948 = vsel %vm940, %v931, %v932
    %v949 = vsel %vm940, %v930, %v931
    %v950 = vsel %vm940, %v929, %v930
    %v951 = vsel %vm940, %v928, %v929
    %v952 = vsel %vm940, %v927, %v928
    %v953 = vsel %vm940, %v926, %v927
    %v954 = vsel %vm940, %v925, %v926
    %v955 = vsel %vm940, %v924, %v925
    %v956 = vsel %vm940, %v923, %v924
    %v957 = vsel %vm940, %v922, %v923
    %v958 = vsel %vm940, %v921, %v922
    %v959 = vsel %vm940, %v920, %v921
    %v960 = vsel %vm940, %v919, %v920
    %v961 = vsel %vm940, %v918, %v919
    %v962 = vsel %vm940, %v917, %v918
    %v963 = vsel %vm940, %v916, %v917
    %v964 = vsel %vm940, %v915, %v916
    %v965 = vsel %vm940, %v939, %v915
    %s966 = scalar_lea.vmem %s4, 512
    %v967 = vld [vmem:[%s966] sm:$0xff]
    %v968 = vld [vmem:[%s966 + $0x8] sm:$0xff]
    %v969 = vld [vmem:[%s966 + $0x10] sm:$0xff]
    %v970 = vld [vmem:[%s966 + $0x18] sm:$0xff]
    %v971 = vld [vmem:[%s966 + $0x20] sm:$0xff]
    %v972 = vld [vmem:[%s966 + $0x28] sm:$0xff]
    %v973 = vld [vmem:[%s966 + $0x30] sm:$0xff]
    %v974 = vld [vmem:[%s966 + $0x38] sm:$0xff]
    %v975 = vld [vmem:[%s966 + $0x40] sm:$0xff]
    %v976 = vld [vmem:[%s966 + $0x48] sm:$0xff]
    %v977 = vld [vmem:[%s966 + $0x50] sm:$0xff]
    %v978 = vld [vmem:[%s966 + $0x58] sm:$0xff]
    %v979 = vld [vmem:[%s966 + $0x60] sm:$0xff]
    %v980 = vld [vmem:[%s966 + $0x68] sm:$0xff]
    %v981 = vld [vmem:[%s966 + $0x70] sm:$0xff]
    %v982 = vld [vmem:[%s966 + $0x78] sm:$0xff]
    %983 = vmatpush.msra.mxu0 %v982
    %984 = vmatpush.msra.mxu0 %v981
    %985 = vmatpush.msra.mxu0 %v980
    %986 = vmatpush.msra.mxu0 %v979
    %987 = vmatpush.msra.mxu0 %v978
    %988 = vmatpush.msra.mxu0 %v977
    %989 = vmatpush.msra.mxu0 %v976
    %990 = vmatpush.msra.mxu0 %v975
    %991 = vmatpush.msra.mxu0 %v974
    %992 = vmatpush.msra.mxu0 %v973
    %993 = vmatpush.msra.mxu0 %v972
    %994 = vmatpush.msra.mxu0 %v971
    %995 = vmatpush.msra.mxu0 %v970
    %996 = vmatpush.msra.mxu0 %v969
    %997 = vmatpush.msra.mxu0 %v968
    %998 = vmatpush.msra.mxu0 %v967
    %999 = vmatmul.f32.gmra.mxu0 %v963
    %v1000 = vpop.f32.mrf.mxu0
    %v1001 = vadd.f32 0.0, %v1000
    %1002 = vmatmul.f32.gmra.mxu0 %v962
    %v1003 = vpop.f32.mrf.mxu0
    %v1004 = vadd.f32 0.0, %v1003
    %1005 = vmatmul.f32.gmra.mxu0 %v961
    %v1006 = vpop.f32.mrf.mxu0
    %v1007 = vadd.f32 0.0, %v1006
    %1008 = vmatmul.f32.gmra.mxu0 %v960
    %v1009 = vpop.f32.mrf.mxu0
    %v1010 = vadd.f32 0.0, %v1009
    %1011 = vmatmul.f32.gmra.mxu0 %v959
    %v1012 = vpop.f32.mrf.mxu0
    %v1013 = vadd.f32 0.0, %v1012
    %1014 = vmatmul.f32.gmra.mxu0 %v958
    %v1015 = vpop.f32.mrf.mxu0
    %v1016 = vadd.f32 0.0, %v1015
    %1017 = vmatmul.f32.gmra.mxu0 %v957
    %v1018 = vpop.f32.mrf.mxu0
    %v1019 = vadd.f32 0.0, %v1018
    %1020 = vmatmul.f32.gmra.mxu0 %v956
    %v1021 = vpop.f32.mrf.mxu0
    %v1022 = vadd.f32 0.0, %v1021
    %1023 = vmatmul.f32.gmra.mxu0 %v955
    %v1024 = vpop.f32.mrf.mxu0
    %v1025 = vadd.f32 0.0, %v1024
    %1026 = vmatmul.f32.gmra.mxu0 %v954
    %v1027 = vpop.f32.mrf.mxu0
    %v1028 = vadd.f32 0.0, %v1027
    %1029 = vmatmul.f32.gmra.mxu0 %v953
    %v1030 = vpop.f32.mrf.mxu0
    %v1031 = vadd.f32 0.0, %v1030
    %1032 = vmatmul.f32.gmra.mxu0 %v952
    %v1033 = vpop.f32.mrf.mxu0
    %v1034 = vadd.f32 0.0, %v1033
    %1035 = vmatmul.f32.gmra.mxu0 %v951
    %v1036 = vpop.f32.mrf.mxu0
    %v1037 = vadd.f32 0.0, %v1036
    %1038 = vmatmul.f32.gmra.mxu0 %v950
    %v1039 = vpop.f32.mrf.mxu0
    %v1040 = vadd.f32 0.0, %v1039
    %1041 = vmatmul.f32.gmra.mxu0 %v949
    %v1042 = vpop.f32.mrf.mxu0
    %v1043 = vadd.f32 0.0, %v1042
    %1044 = vmatmul.f32.gmra.mxu0 %v948
    %v1045 = vpop.f32.mrf.mxu0
    %v1046 = vadd.f32 0.0, %v1045
    %1047 = vmatmul.f32.gmra.mxu0 %v947
    %v1048 = vpop.f32.mrf.mxu0
    %v1049 = vadd.f32 0.0, %v1048
    %1050 = vmatmul.f32.gmra.mxu0 %v946
    %v1051 = vpop.f32.mrf.mxu0
    %v1052 = vadd.f32 0.0, %v1051
    %1053 = vmatmul.f32.gmra.mxu0 %v945
    %v1054 = vpop.f32.mrf.mxu0
    %v1055 = vadd.f32 0.0, %v1054
    %1056 = vmatmul.f32.gmra.mxu0 %v944
    %v1057 = vpop.f32.mrf.mxu0
    %v1058 = vadd.f32 0.0, %v1057
    %1059 = vmatmul.f32.gmra.mxu0 %v943
    %v1060 = vpop.f32.mrf.mxu0
    %v1061 = vadd.f32 0.0, %v1060
    %1062 = vmatmul.f32.gmra.mxu0 %v942
    %v1063 = vpop.f32.mrf.mxu0
    %v1064 = vadd.f32 0.0, %v1063
    %1065 = vmatmul.f32.gmra.mxu0 %v941
    %v1066 = vpop.f32.mrf.mxu0
    %v1067 = vadd.f32 0.0, %v1066
    %1068 = vmatmul.f32.gmra.mxu0 %v965
    %v1069 = vpop.f32.mrf.mxu0
    %v1070 = vadd.f32 0.0, %v1069
    %1071 = vmatmul.f32.gmra.mxu0 %v964
    %v1072 = vpop.f32.mrf.mxu0
    %v1073 = vadd.f32 0.0, %v1072
    %1074 = vdwg.mxu0
    %v1075 = vadd.f32 %v890, %v1001
    %v1076 = vadd.f32 %v891, %v1004
    %v1077 = vadd.f32 %v892, %v1007
    %v1078 = vadd.f32 %v893, %v1010
    %v1079 = vadd.f32 %v894, %v1013
    %v1080 = vadd.f32 %v895, %v1016
    %v1081 = vadd.f32 %v896, %v1019
    %v1082 = vadd.f32 %v897, %v1022
    %v1083 = vadd.f32 %v898, %v1025
    %v1084 = vadd.f32 %v899, %v1028
    %v1085 = vadd.f32 %v900, %v1031
    %v1086 = vadd.f32 %v901, %v1034
    %v1087 = vadd.f32 %v902, %v1037
    %v1088 = vadd.f32 %v903, %v1040
    %v1089 = vadd.f32 %v904, %v1043
    %v1090 = vadd.f32 %v905, %v1046
    %v1091 = vadd.f32 %v906, %v1049
    %v1092 = vadd.f32 %v907, %v1052
    %v1093 = vadd.f32 %v908, %v1055
    %v1094 = vadd.f32 %v909, %v1058
    %v1095 = vadd.f32 %v910, %v1061
    %v1096 = vadd.f32 %v911, %v1064
    %v1097 = vadd.f32 %v912, %v1067
    %v1098 = vadd.f32 %v913, %v1070
    %v1099 = vadd.f32 %v914, %v1073
    %v1100 = vrot.slane %v272, 4
    %v1101 = vrot.slane %v273, 4
    %v1102 = vrot.slane %v274, 4
    %v1103 = vrot.slane %v275, 4
    %v1104 = vrot.slane %v276, 4
    %v1105 = vrot.slane %v277, 4
    %v1106 = vrot.slane %v278, 4
    %v1107 = vrot.slane %v279, 4
    %v1108 = vrot.slane %v280, 4
    %v1109 = vrot.slane %v281, 4
    %v1110 = vrot.slane %v282, 4
    %v1111 = vrot.slane %v283, 4
    %v1112 = vrot.slane %v284, 4
    %v1113 = vrot.slane %v285, 4
    %v1114 = vrot.slane %v286, 4
    %v1115 = vrot.slane %v287, 4
    %v1116 = vrot.slane %v288, 4
    %v1117 = vrot.slane %v289, 4
    %v1118 = vrot.slane %v290, 4
    %v1119 = vrot.slane %v291, 4
    %v1120 = vrot.slane %v292, 4
    %v1121 = vrot.slane %v293, 4
    %v1122 = vrot.slane %v294, 4
    %v1123 = vrot.slane %v295, 4
    %v1124 = vrot.slane %v296, 4
    %vm1125 = vcmp.lt.s32.totalorder %v435, 4
    %v1126 = vsel %vm1125, %v1123, %v1124
    %v1127 = vsel %vm1125, %v1122, %v1123
    %v1128 = vsel %vm1125, %v1121, %v1122
    %v1129 = vsel %vm1125, %v1120, %v1121
    %v1130 = vsel %vm1125, %v1119, %v1120
    %v1131 = vsel %vm1125, %v1118, %v1119
    %v1132 = vsel %vm1125, %v1117, %v1118
    %v1133 = vsel %vm1125, %v1116, %v1117
    %v1134 = vsel %vm1125, %v1115, %v1116
    %v1135 = vsel %vm1125, %v1114, %v1115
    %v1136 = vsel %vm1125, %v1113, %v1114
    %v1137 = vsel %vm1125, %v1112, %v1113
    %v1138 = vsel %vm1125, %v1111, %v1112
    %v1139 = vsel %vm1125, %v1110, %v1111
    %v1140 = vsel %vm1125, %v1109, %v1110
    %v1141 = vsel %vm1125, %v1108, %v1109
    %v1142 = vsel %vm1125, %v1107, %v1108
    %v1143 = vsel %vm1125, %v1106, %v1107
    %v1144 = vsel %vm1125, %v1105, %v1106
    %v1145 = vsel %vm1125, %v1104, %v1105
    %v1146 = vsel %vm1125, %v1103, %v1104
    %v1147 = vsel %vm1125, %v1102, %v1103
    %v1148 = vsel %vm1125, %v1101, %v1102
    %v1149 = vsel %vm1125, %v1100, %v1101
    %v1150 = vsel %vm1125, %v1124, %v1100
    %s1151 = scalar_lea.vmem %s4, 640
    %v1152 = vld [vmem:[%s1151] sm:$0xff]
    %v1153 = vld [vmem:[%s1151 + $0x8] sm:$0xff]
    %v1154 = vld [vmem:[%s1151 + $0x10] sm:$0xff]
    %v1155 = vld [vmem:[%s1151 + $0x18] sm:$0xff]
    %v1156 = vld [vmem:[%s1151 + $0x20] sm:$0xff]
    %v1157 = vld [vmem:[%s1151 + $0x28] sm:$0xff]
    %v1158 = vld [vmem:[%s1151 + $0x30] sm:$0xff]
    %v1159 = vld [vmem:[%s1151 + $0x38] sm:$0xff]
    %v1160 = vld [vmem:[%s1151 + $0x40] sm:$0xff]
    %v1161 = vld [vmem:[%s1151 + $0x48] sm:$0xff]
    %v1162 = vld [vmem:[%s1151 + $0x50] sm:$0xff]
    %v1163 = vld [vmem:[%s1151 + $0x58] sm:$0xff]
    %v1164 = vld [vmem:[%s1151 + $0x60] sm:$0xff]
    %v1165 = vld [vmem:[%s1151 + $0x68] sm:$0xff]
    %v1166 = vld [vmem:[%s1151 + $0x70] sm:$0xff]
    %v1167 = vld [vmem:[%s1151 + $0x78] sm:$0xff]
    %1168 = vmatpush.msra.mxu0 %v1167
    %1169 = vmatpush.msra.mxu0 %v1166
    %1170 = vmatpush.msra.mxu0 %v1165
    %1171 = vmatpush.msra.mxu0 %v1164
    %1172 = vmatpush.msra.mxu0 %v1163
    %1173 = vmatpush.msra.mxu0 %v1162
    %1174 = vmatpush.msra.mxu0 %v1161
    %1175 = vmatpush.msra.mxu0 %v1160
    %1176 = vmatpush.msra.mxu0 %v1159
    %1177 = vmatpush.msra.mxu0 %v1158
    %1178 = vmatpush.msra.mxu0 %v1157
    %1179 = vmatpush.msra.mxu0 %v1156
    %1180 = vmatpush.msra.mxu0 %v1155
    %1181 = vmatpush.msra.mxu0 %v1154
    %1182 = vmatpush.msra.mxu0 %v1153
    %1183 = vmatpush.msra.mxu0 %v1152
    %1184 = vmatmul.f32.gmra.mxu0 %v1148
    %v1185 = vpop.f32.mrf.mxu0
    %v1186 = vadd.f32 0.0, %v1185
    %1187 = vmatmul.f32.gmra.mxu0 %v1147
    %v1188 = vpop.f32.mrf.mxu0
    %v1189 = vadd.f32 0.0, %v1188
    %1190 = vmatmul.f32.gmra.mxu0 %v1146
    %v1191 = vpop.f32.mrf.mxu0
    %v1192 = vadd.f32 0.0, %v1191
    %1193 = vmatmul.f32.gmra.mxu0 %v1145
    %v1194 = vpop.f32.mrf.mxu0
    %v1195 = vadd.f32 0.0, %v1194
    %1196 = vmatmul.f32.gmra.mxu0 %v1144
    %v1197 = vpop.f32.mrf.mxu0
    %v1198 = vadd.f32 0.0, %v1197
    %1199 = vmatmul.f32.gmra.mxu0 %v1143
    %v1200 = vpop.f32.mrf.mxu0
    %v1201 = vadd.f32 0.0, %v1200
    %1202 = vmatmul.f32.gmra.mxu0 %v1142
    %v1203 = vpop.f32.mrf.mxu0
    %v1204 = vadd.f32 0.0, %v1203
    %1205 = vmatmul.f32.gmra.mxu0 %v1141
    %v1206 = vpop.f32.mrf.mxu0
    %v1207 = vadd.f32 0.0, %v1206
    %1208 = vmatmul.f32.gmra.mxu0 %v1140
    %v1209 = vpop.f32.mrf.mxu0
    %v1210 = vadd.f32 0.0, %v1209
    %1211 = vmatmul.f32.gmra.mxu0 %v1139
    %v1212 = vpop.f32.mrf.mxu0
    %v1213 = vadd.f32 0.0, %v1212
    %1214 = vmatmul.f32.gmra.mxu0 %v1138
    %v1215 = vpop.f32.mrf.mxu0
    %v1216 = vadd.f32 0.0, %v1215
    %1217 = vmatmul.f32.gmra.mxu0 %v1137
    %v1218 = vpop.f32.mrf.mxu0
    %v1219 = vadd.f32 0.0, %v1218
    %1220 = vmatmul.f32.gmra.mxu0 %v1136
    %v1221 = vpop.f32.mrf.mxu0
    %v1222 = vadd.f32 0.0, %v1221
    %1223 = vmatmul.f32.gmra.mxu0 %v1135
    %v1224 = vpop.f32.mrf.mxu0
    %v1225 = vadd.f32 0.0, %v1224
    %1226 = vmatmul.f32.gmra.mxu0 %v1134
    %v1227 = vpop.f32.mrf.mxu0
    %v1228 = vadd.f32 0.0, %v1227
    %1229 = vmatmul.f32.gmra.mxu0 %v1133
    %v1230 = vpop.f32.mrf.mxu0
    %v1231 = vadd.f32 0.0, %v1230
    %1232 = vmatmul.f32.gmra.mxu0 %v1132
    %v1233 = vpop.f32.mrf.mxu0
    %v1234 = vadd.f32 0.0, %v1233
    %1235 = vmatmul.f32.gmra.mxu0 %v1131
    %v1236 = vpop.f32.mrf.mxu0
    %v1237 = vadd.f32 0.0, %v1236
    %1238 = vmatmul.f32.gmra.mxu0 %v1130
    %v1239 = vpop.f32.mrf.mxu0
    %v1240 = vadd.f32 0.0, %v1239
    %1241 = vmatmul.f32.gmra.mxu0 %v1129
    %v1242 = vpop.f32.mrf.mxu0
    %v1243 = vadd.f32 0.0, %v1242
    %1244 = vmatmul.f32.gmra.mxu0 %v1128
    %v1245 = vpop.f32.mrf.mxu0
    %v1246 = vadd.f32 0.0, %v1245
    %1247 = vmatmul.f32.gmra.mxu0 %v1127
    %v1248 = vpop.f32.mrf.mxu0
    %v1249 = vadd.f32 0.0, %v1248
    %1250 = vmatmul.f32.gmra.mxu0 %v1126
    %v1251 = vpop.f32.mrf.mxu0
    %v1252 = vadd.f32 0.0, %v1251
    %1253 = vmatmul.f32.gmra.mxu0 %v1150
    %v1254 = vpop.f32.mrf.mxu0
    %v1255 = vadd.f32 0.0, %v1254
    %1256 = vmatmul.f32.gmra.mxu0 %v1149
    %v1257 = vpop.f32.mrf.mxu0
    %v1258 = vadd.f32 0.0, %v1257
    %1259 = vdwg.mxu0
    %v1260 = vadd.f32 %v1075, %v1186
    %v1261 = vadd.f32 %v1076, %v1189
    %v1262 = vadd.f32 %v1077, %v1192
    %v1263 = vadd.f32 %v1078, %v1195
    %v1264 = vadd.f32 %v1079, %v1198
    %v1265 = vadd.f32 %v1080, %v1201
    %v1266 = vadd.f32 %v1081, %v1204
    %v1267 = vadd.f32 %v1082, %v1207
    %v1268 = vadd.f32 %v1083, %v1210
    %v1269 = vadd.f32 %v1084, %v1213
    %v1270 = vadd.f32 %v1085, %v1216
    %v1271 = vadd.f32 %v1086, %v1219
    %v1272 = vadd.f32 %v1087, %v1222
    %v1273 = vadd.f32 %v1088, %v1225
    %v1274 = vadd.f32 %v1089, %v1228
    %v1275 = vadd.f32 %v1090, %v1231
    %v1276 = vadd.f32 %v1091, %v1234
    %v1277 = vadd.f32 %v1092, %v1237
    %v1278 = vadd.f32 %v1093, %v1240
    %v1279 = vadd.f32 %v1094, %v1243
    %v1280 = vadd.f32 %v1095, %v1246
    %v1281 = vadd.f32 %v1096, %v1249
    %v1282 = vadd.f32 %v1097, %v1252
    %v1283 = vadd.f32 %v1098, %v1255
    %v1284 = vadd.f32 %v1099, %v1258
    %s1285 = scalar_lea.vmem %s4, 768
    %v1286 = vld [vmem:[%s1285] sm:$0xff]
    %v1287 = vld [vmem:[%s1285 + $0x8] sm:$0xff]
    %v1288 = vld [vmem:[%s1285 + $0x10] sm:$0xff]
    %v1289 = vld [vmem:[%s1285 + $0x18] sm:$0xff]
    %v1290 = vld [vmem:[%s1285 + $0x20] sm:$0xff]
    %v1291 = vld [vmem:[%s1285 + $0x28] sm:$0xff]
    %v1292 = vld [vmem:[%s1285 + $0x30] sm:$0xff]
    %v1293 = vld [vmem:[%s1285 + $0x38] sm:$0xff]
    %v1294 = vld [vmem:[%s1285 + $0x40] sm:$0xff]
    %v1295 = vld [vmem:[%s1285 + $0x48] sm:$0xff]
    %v1296 = vld [vmem:[%s1285 + $0x50] sm:$0xff]
    %v1297 = vld [vmem:[%s1285 + $0x58] sm:$0xff]
    %v1298 = vld [vmem:[%s1285 + $0x60] sm:$0xff]
    %v1299 = vld [vmem:[%s1285 + $0x68] sm:$0xff]
    %v1300 = vld [vmem:[%s1285 + $0x70] sm:$0xff]
    %v1301 = vld [vmem:[%s1285 + $0x78] sm:$0xff]
    %1302 = vmatpush.msra.mxu0 %v1301
    %1303 = vmatpush.msra.mxu0 %v1300
    %1304 = vmatpush.msra.mxu0 %v1299
    %1305 = vmatpush.msra.mxu0 %v1298
    %1306 = vmatpush.msra.mxu0 %v1297
    %1307 = vmatpush.msra.mxu0 %v1296
    %1308 = vmatpush.msra.mxu0 %v1295
    %1309 = vmatpush.msra.mxu0 %v1294
    %1310 = vmatpush.msra.mxu0 %v1293
    %1311 = vmatpush.msra.mxu0 %v1292
    %1312 = vmatpush.msra.mxu0 %v1291
    %1313 = vmatpush.msra.mxu0 %v1290
    %1314 = vmatpush.msra.mxu0 %v1289
    %1315 = vmatpush.msra.mxu0 %v1288
    %1316 = vmatpush.msra.mxu0 %v1287
    %1317 = vmatpush.msra.mxu0 %v1286
    %1318 = vmatmul.f32.gmra.mxu0 %v1147
    %v1319 = vpop.f32.mrf.mxu0
    %v1320 = vadd.f32 0.0, %v1319
    %1321 = vmatmul.f32.gmra.mxu0 %v1146
    %v1322 = vpop.f32.mrf.mxu0
    %v1323 = vadd.f32 0.0, %v1322
    %1324 = vmatmul.f32.gmra.mxu0 %v1145
    %v1325 = vpop.f32.mrf.mxu0
    %v1326 = vadd.f32 0.0, %v1325
    %1327 = vmatmul.f32.gmra.mxu0 %v1144
    %v1328 = vpop.f32.mrf.mxu0
    %v1329 = vadd.f32 0.0, %v1328
    %1330 = vmatmul.f32.gmra.mxu0 %v1143
    %v1331 = vpop.f32.mrf.mxu0
    %v1332 = vadd.f32 0.0, %v1331
    %1333 = vmatmul.f32.gmra.mxu0 %v1142
    %v1334 = vpop.f32.mrf.mxu0
    %v1335 = vadd.f32 0.0, %v1334
    %1336 = vmatmul.f32.gmra.mxu0 %v1141
    %v1337 = vpop.f32.mrf.mxu0
    %v1338 = vadd.f32 0.0, %v1337
    %1339 = vmatmul.f32.gmra.mxu0 %v1140
    %v1340 = vpop.f32.mrf.mxu0
    %v1341 = vadd.f32 0.0, %v1340
    %1342 = vmatmul.f32.gmra.mxu0 %v1139
    %v1343 = vpop.f32.mrf.mxu0
    %v1344 = vadd.f32 0.0, %v1343
    %1345 = vmatmul.f32.gmra.mxu0 %v1138
    %v1346 = vpop.f32.mrf.mxu0
    %v1347 = vadd.f32 0.0, %v1346
    %1348 = vmatmul.f32.gmra.mxu0 %v1137
    %v1349 = vpop.f32.mrf.mxu0
    %v1350 = vadd.f32 0.0, %v1349
    %1351 = vmatmul.f32.gmra.mxu0 %v1136
    %v1352 = vpop.f32.mrf.mxu0
    %v1353 = vadd.f32 0.0, %v1352
    %1354 = vmatmul.f32.gmra.mxu0 %v1135
    %v1355 = vpop.f32.mrf.mxu0
    %v1356 = vadd.f32 0.0, %v1355
    %1357 = vmatmul.f32.gmra.mxu0 %v1134
    %v1358 = vpop.f32.mrf.mxu0
    %v1359 = vadd.f32 0.0, %v1358
    %1360 = vmatmul.f32.gmra.mxu0 %v1133
    %v1361 = vpop.f32.mrf.mxu0
    %v1362 = vadd.f32 0.0, %v1361
    %1363 = vmatmul.f32.gmra.mxu0 %v1132
    %v1364 = vpop.f32.mrf.mxu0
    %v1365 = vadd.f32 0.0, %v1364
    %1366 = vmatmul.f32.gmra.mxu0 %v1131
    %v1367 = vpop.f32.mrf.mxu0
    %v1368 = vadd.f32 0.0, %v1367
    %1369 = vmatmul.f32.gmra.mxu0 %v1130
    %v1370 = vpop.f32.mrf.mxu0
    %v1371 = vadd.f32 0.0, %v1370
    %1372 = vmatmul.f32.gmra.mxu0 %v1129
    %v1373 = vpop.f32.mrf.mxu0
    %v1374 = vadd.f32 0.0, %v1373
    %1375 = vmatmul.f32.gmra.mxu0 %v1128
    %v1376 = vpop.f32.mrf.mxu0
    %v1377 = vadd.f32 0.0, %v1376
    %1378 = vmatmul.f32.gmra.mxu0 %v1127
    %v1379 = vpop.f32.mrf.mxu0
    %v1380 = vadd.f32 0.0, %v1379
    %1381 = vmatmul.f32.gmra.mxu0 %v1126
    %v1382 = vpop.f32.mrf.mxu0
    %v1383 = vadd.f32 0.0, %v1382
    %1384 = vmatmul.f32.gmra.mxu0 %v1150
    %v1385 = vpop.f32.mrf.mxu0
    %v1386 = vadd.f32 0.0, %v1385
    %1387 = vmatmul.f32.gmra.mxu0 %v1149
    %v1388 = vpop.f32.mrf.mxu0
    %v1389 = vadd.f32 0.0, %v1388
    %1390 = vmatmul.f32.gmra.mxu0 %v1148
    %v1391 = vpop.f32.mrf.mxu0
    %v1392 = vadd.f32 0.0, %v1391
    %1393 = vdwg.mxu0
    %v1394 = vadd.f32 %v1260, %v1320
    %v1395 = vadd.f32 %v1261, %v1323
    %v1396 = vadd.f32 %v1262, %v1326
    %v1397 = vadd.f32 %v1263, %v1329
    %v1398 = vadd.f32 %v1264, %v1332
    %v1399 = vadd.f32 %v1265, %v1335
    %v1400 = vadd.f32 %v1266, %v1338
    %v1401 = vadd.f32 %v1267, %v1341
    %v1402 = vadd.f32 %v1268, %v1344
    %v1403 = vadd.f32 %v1269, %v1347
    %v1404 = vadd.f32 %v1270, %v1350
    %v1405 = vadd.f32 %v1271, %v1353
    %v1406 = vadd.f32 %v1272, %v1356
    %v1407 = vadd.f32 %v1273, %v1359
    %v1408 = vadd.f32 %v1274, %v1362
    %v1409 = vadd.f32 %v1275, %v1365
    %v1410 = vadd.f32 %v1276, %v1368
    %v1411 = vadd.f32 %v1277, %v1371
    %v1412 = vadd.f32 %v1278, %v1374
    %v1413 = vadd.f32 %v1279, %v1377
    %v1414 = vadd.f32 %v1280, %v1380
    %v1415 = vadd.f32 %v1281, %v1383
    %v1416 = vadd.f32 %v1282, %v1386
    %v1417 = vadd.f32 %v1283, %v1389
    %v1418 = vadd.f32 %v1284, %v1392
    %v1419 = vrot.slane %v272, 5
    %v1420 = vrot.slane %v273, 5
    %v1421 = vrot.slane %v274, 5
    %v1422 = vrot.slane %v275, 5
    %v1423 = vrot.slane %v276, 5
    %v1424 = vrot.slane %v277, 5
    %v1425 = vrot.slane %v278, 5
    %v1426 = vrot.slane %v279, 5
    %v1427 = vrot.slane %v280, 5
    %v1428 = vrot.slane %v281, 5
    %v1429 = vrot.slane %v282, 5
    %v1430 = vrot.slane %v283, 5
    %v1431 = vrot.slane %v284, 5
    %v1432 = vrot.slane %v285, 5
    %v1433 = vrot.slane %v286, 5
    %v1434 = vrot.slane %v287, 5
    %v1435 = vrot.slane %v288, 5
    %v1436 = vrot.slane %v289, 5
    %v1437 = vrot.slane %v290, 5
    %v1438 = vrot.slane %v291, 5
    %v1439 = vrot.slane %v292, 5
    %v1440 = vrot.slane %v293, 5
    %v1441 = vrot.slane %v294, 5
    %v1442 = vrot.slane %v295, 5
    %v1443 = vrot.slane %v296, 5
    %vm1444 = vcmp.lt.s32.totalorder %v435, 3
    %v1445 = vsel %vm1444, %v1442, %v1443
    %v1446 = vsel %vm1444, %v1441, %v1442
    %v1447 = vsel %vm1444, %v1440, %v1441
    %v1448 = vsel %vm1444, %v1439, %v1440
    %v1449 = vsel %vm1444, %v1438, %v1439
    %v1450 = vsel %vm1444, %v1437, %v1438
    %v1451 = vsel %vm1444, %v1436, %v1437
    %v1452 = vsel %vm1444, %v1435, %v1436
    %v1453 = vsel %vm1444, %v1434, %v1435
    %v1454 = vsel %vm1444, %v1433, %v1434
    %v1455 = vsel %vm1444, %v1432, %v1433
    %v1456 = vsel %vm1444, %v1431, %v1432
    %v1457 = vsel %vm1444, %v1430, %v1431
    %v1458 = vsel %vm1444, %v1429, %v1430
    %v1459 = vsel %vm1444, %v1428, %v1429
    %v1460 = vsel %vm1444, %v1427, %v1428
    %v1461 = vsel %vm1444, %v1426, %v1427
    %v1462 = vsel %vm1444, %v1425, %v1426
    %v1463 = vsel %vm1444, %v1424, %v1425
    %v1464 = vsel %vm1444, %v1423, %v1424
    %v1465 = vsel %vm1444, %v1422, %v1423
    %v1466 = vsel %vm1444, %v1421, %v1422
    %v1467 = vsel %vm1444, %v1420, %v1421
    %v1468 = vsel %vm1444, %v1419, %v1420
    %v1469 = vsel %vm1444, %v1443, %v1419
    %s1470 = scalar_lea.vmem %s4, 896
    %v1471 = vld [vmem:[%s1470] sm:$0xff]
    %v1472 = vld [vmem:[%s1470 + $0x8] sm:$0xff]
    %v1473 = vld [vmem:[%s1470 + $0x10] sm:$0xff]
    %v1474 = vld [vmem:[%s1470 + $0x18] sm:$0xff]
    %v1475 = vld [vmem:[%s1470 + $0x20] sm:$0xff]
    %v1476 = vld [vmem:[%s1470 + $0x28] sm:$0xff]
    %v1477 = vld [vmem:[%s1470 + $0x30] sm:$0xff]
    %v1478 = vld [vmem:[%s1470 + $0x38] sm:$0xff]
    %v1479 = vld [vmem:[%s1470 + $0x40] sm:$0xff]
    %v1480 = vld [vmem:[%s1470 + $0x48] sm:$0xff]
    %v1481 = vld [vmem:[%s1470 + $0x50] sm:$0xff]
    %v1482 = vld [vmem:[%s1470 + $0x58] sm:$0xff]
    %v1483 = vld [vmem:[%s1470 + $0x60] sm:$0xff]
    %v1484 = vld [vmem:[%s1470 + $0x68] sm:$0xff]
    %v1485 = vld [vmem:[%s1470 + $0x70] sm:$0xff]
    %v1486 = vld [vmem:[%s1470 + $0x78] sm:$0xff]
    %1487 = vmatpush.msra.mxu0 %v1486
    %1488 = vmatpush.msra.mxu0 %v1485
    %1489 = vmatpush.msra.mxu0 %v1484
    %1490 = vmatpush.msra.mxu0 %v1483
    %1491 = vmatpush.msra.mxu0 %v1482
    %1492 = vmatpush.msra.mxu0 %v1481
    %1493 = vmatpush.msra.mxu0 %v1480
    %1494 = vmatpush.msra.mxu0 %v1479
    %1495 = vmatpush.msra.mxu0 %v1478
    %1496 = vmatpush.msra.mxu0 %v1477
    %1497 = vmatpush.msra.mxu0 %v1476
    %1498 = vmatpush.msra.mxu0 %v1475
    %1499 = vmatpush.msra.mxu0 %v1474
    %1500 = vmatpush.msra.mxu0 %v1473
    %1501 = vmatpush.msra.mxu0 %v1472
    %1502 = vmatpush.msra.mxu0 %v1471
    %1503 = vmatmul.f32.gmra.mxu0 %v1466
    %v1504 = vpop.f32.mrf.mxu0
    %v1505 = vadd.f32 0.0, %v1504
    %1506 = vmatmul.f32.gmra.mxu0 %v1465
    %v1507 = vpop.f32.mrf.mxu0
    %v1508 = vadd.f32 0.0, %v1507
    %1509 = vmatmul.f32.gmra.mxu0 %v1464
    %v1510 = vpop.f32.mrf.mxu0
    %v1511 = vadd.f32 0.0, %v1510
    %1512 = vmatmul.f32.gmra.mxu0 %v1463
    %v1513 = vpop.f32.mrf.mxu0
    %v1514 = vadd.f32 0.0, %v1513
    %1515 = vmatmul.f32.gmra.mxu0 %v1462
    %v1516 = vpop.f32.mrf.mxu0
    %v1517 = vadd.f32 0.0, %v1516
    %1518 = vmatmul.f32.gmra.mxu0 %v1461
    %v1519 = vpop.f32.mrf.mxu0
    %v1520 = vadd.f32 0.0, %v1519
    %1521 = vmatmul.f32.gmra.mxu0 %v1460
    %v1522 = vpop.f32.mrf.mxu0
    %v1523 = vadd.f32 0.0, %v1522
    %1524 = vmatmul.f32.gmra.mxu0 %v1459
    %v1525 = vpop.f32.mrf.mxu0
    %v1526 = vadd.f32 0.0, %v1525
    %1527 = vmatmul.f32.gmra.mxu0 %v1458
    %v1528 = vpop.f32.mrf.mxu0
    %v1529 = vadd.f32 0.0, %v1528
    %1530 = vmatmul.f32.gmra.mxu0 %v1457
    %v1531 = vpop.f32.mrf.mxu0
    %v1532 = vadd.f32 0.0, %v1531
    %1533 = vmatmul.f32.gmra.mxu0 %v1456
    %v1534 = vpop.f32.mrf.mxu0
    %v1535 = vadd.f32 0.0, %v1534
    %1536 = vmatmul.f32.gmra.mxu0 %v1455
    %v1537 = vpop.f32.mrf.mxu0
    %v1538 = vadd.f32 0.0, %v1537
    %1539 = vmatmul.f32.gmra.mxu0 %v1454
    %v1540 = vpop.f32.mrf.mxu0
    %v1541 = vadd.f32 0.0, %v1540
    %1542 = vmatmul.f32.gmra.mxu0 %v1453
    %v1543 = vpop.f32.mrf.mxu0
    %v1544 = vadd.f32 0.0, %v1543
    %1545 = vmatmul.f32.gmra.mxu0 %v1452
    %v1546 = vpop.f32.mrf.mxu0
    %v1547 = vadd.f32 0.0, %v1546
    %1548 = vmatmul.f32.gmra.mxu0 %v1451
    %v1549 = vpop.f32.mrf.mxu0
    %v1550 = vadd.f32 0.0, %v1549
    %1551 = vmatmul.f32.gmra.mxu0 %v1450
    %v1552 = vpop.f32.mrf.mxu0
    %v1553 = vadd.f32 0.0, %v1552
    %1554 = vmatmul.f32.gmra.mxu0 %v1449
    %v1555 = vpop.f32.mrf.mxu0
    %v1556 = vadd.f32 0.0, %v1555
    %1557 = vmatmul.f32.gmra.mxu0 %v1448
    %v1558 = vpop.f32.mrf.mxu0
    %v1559 = vadd.f32 0.0, %v1558
    %1560 = vmatmul.f32.gmra.mxu0 %v1447
    %v1561 = vpop.f32.mrf.mxu0
    %v1562 = vadd.f32 0.0, %v1561
    %1563 = vmatmul.f32.gmra.mxu0 %v1446
    %v1564 = vpop.f32.mrf.mxu0
    %v1565 = vadd.f32 0.0, %v1564
    %1566 = vmatmul.f32.gmra.mxu0 %v1445
    %v1567 = vpop.f32.mrf.mxu0
    %v1568 = vadd.f32 0.0, %v1567
    %1569 = vmatmul.f32.gmra.mxu0 %v1469
    %v1570 = vpop.f32.mrf.mxu0
    %v1571 = vadd.f32 0.0, %v1570
    %1572 = vmatmul.f32.gmra.mxu0 %v1468
    %v1573 = vpop.f32.mrf.mxu0
    %v1574 = vadd.f32 0.0, %v1573
    %1575 = vmatmul.f32.gmra.mxu0 %v1467
    %v1576 = vpop.f32.mrf.mxu0
    %v1577 = vadd.f32 0.0, %v1576
    %1578 = vdwg.mxu0
    %v1579 = vadd.f32 %v1394, %v1505
    %v1580 = vadd.f32 %v1395, %v1508
    %v1581 = vadd.f32 %v1396, %v1511
    %v1582 = vadd.f32 %v1397, %v1514
    %v1583 = vadd.f32 %v1398, %v1517
    %v1584 = vadd.f32 %v1399, %v1520
    %v1585 = vadd.f32 %v1400, %v1523
    %v1586 = vadd.f32 %v1401, %v1526
    %v1587 = vadd.f32 %v1402, %v1529
    %v1588 = vadd.f32 %v1403, %v1532
    %v1589 = vadd.f32 %v1404, %v1535
    %v1590 = vadd.f32 %v1405, %v1538
    %v1591 = vadd.f32 %v1406, %v1541
    %v1592 = vadd.f32 %v1407, %v1544
    %v1593 = vadd.f32 %v1408, %v1547
    %v1594 = vadd.f32 %v1409, %v1550
    %v1595 = vadd.f32 %v1410, %v1553
    %v1596 = vadd.f32 %v1411, %v1556
    %v1597 = vadd.f32 %v1412, %v1559
    %v1598 = vadd.f32 %v1413, %v1562
    %v1599 = vadd.f32 %v1414, %v1565
    %v1600 = vadd.f32 %v1415, %v1568
    %v1601 = vadd.f32 %v1416, %v1571
    %v1602 = vadd.f32 %v1417, %v1574
    %v1603 = vadd.f32 %v1418, %v1577
    %v1604 = vrot.slane %v272, 6
    %v1605 = vrot.slane %v273, 6
    %v1606 = vrot.slane %v274, 6
    %v1607 = vrot.slane %v275, 6
    %v1608 = vrot.slane %v276, 6
    %v1609 = vrot.slane %v277, 6
    %v1610 = vrot.slane %v278, 6
    %v1611 = vrot.slane %v279, 6
    %v1612 = vrot.slane %v280, 6
    %v1613 = vrot.slane %v281, 6
    %v1614 = vrot.slane %v282, 6
    %v1615 = vrot.slane %v283, 6
    %v1616 = vrot.slane %v284, 6
    %v1617 = vrot.slane %v285, 6
    %v1618 = vrot.slane %v286, 6
    %v1619 = vrot.slane %v287, 6
    %v1620 = vrot.slane %v288, 6
    %v1621 = vrot.slane %v289, 6
    %v1622 = vrot.slane %v290, 6
    %v1623 = vrot.slane %v291, 6
    %v1624 = vrot.slane %v292, 6
    %v1625 = vrot.slane %v293, 6
    %v1626 = vrot.slane %v294, 6
    %v1627 = vrot.slane %v295, 6
    %v1628 = vrot.slane %v296, 6
    %vm1629 = vcmp.lt.s32.totalorder %v435, 2
    %v1630 = vsel %vm1629, %v1627, %v1628
    %v1631 = vsel %vm1629, %v1626, %v1627
    %v1632 = vsel %vm1629, %v1625, %v1626
    %v1633 = vsel %vm1629, %v1624, %v1625
    %v1634 = vsel %vm1629, %v1623, %v1624
    %v1635 = vsel %vm1629, %v1622, %v1623
    %v1636 = vsel %vm1629, %v1621, %v1622
    %v1637 = vsel %vm1629, %v1620, %v1621
    %v1638 = vsel %vm1629, %v1619, %v1620
    %v1639 = vsel %vm1629, %v1618, %v1619
    %v1640 = vsel %vm1629, %v1617, %v1618
    %v1641 = vsel %vm1629, %v1616, %v1617
    %v1642 = vsel %vm1629, %v1615, %v1616
    %v1643 = vsel %vm1629, %v1614, %v1615
    %v1644 = vsel %vm1629, %v1613, %v1614
    %v1645 = vsel %vm1629, %v1612, %v1613
    %v1646 = vsel %vm1629, %v1611, %v1612
    %v1647 = vsel %vm1629, %v1610, %v1611
    %v1648 = vsel %vm1629, %v1609, %v1610
    %v1649 = vsel %vm1629, %v1608, %v1609
    %v1650 = vsel %vm1629, %v1607, %v1608
    %v1651 = vsel %vm1629, %v1606, %v1607
    %v1652 = vsel %vm1629, %v1605, %v1606
    %v1653 = vsel %vm1629, %v1604, %v1605
    %v1654 = vsel %vm1629, %v1628, %v1604
    %s1655 = scalar_lea.vmem %s4, 1024
    %v1656 = vld [vmem:[%s1655] sm:$0xff]
    %v1657 = vld [vmem:[%s1655 + $0x8] sm:$0xff]
    %v1658 = vld [vmem:[%s1655 + $0x10] sm:$0xff]
    %v1659 = vld [vmem:[%s1655 + $0x18] sm:$0xff]
    %v1660 = vld [vmem:[%s1655 + $0x20] sm:$0xff]
    %v1661 = vld [vmem:[%s1655 + $0x28] sm:$0xff]
    %v1662 = vld [vmem:[%s1655 + $0x30] sm:$0xff]
    %v1663 = vld [vmem:[%s1655 + $0x38] sm:$0xff]
    %v1664 = vld [vmem:[%s1655 + $0x40] sm:$0xff]
    %v1665 = vld [vmem:[%s1655 + $0x48] sm:$0xff]
    %v1666 = vld [vmem:[%s1655 + $0x50] sm:$0xff]
    %v1667 = vld [vmem:[%s1655 + $0x58] sm:$0xff]
    %v1668 = vld [vmem:[%s1655 + $0x60] sm:$0xff]
    %v1669 = vld [vmem:[%s1655 + $0x68] sm:$0xff]
    %v1670 = vld [vmem:[%s1655 + $0x70] sm:$0xff]
    %v1671 = vld [vmem:[%s1655 + $0x78] sm:$0xff]
    %1672 = vmatpush.msra.mxu0 %v1671
    %1673 = vmatpush.msra.mxu0 %v1670
    %1674 = vmatpush.msra.mxu0 %v1669
    %1675 = vmatpush.msra.mxu0 %v1668
    %1676 = vmatpush.msra.mxu0 %v1667
    %1677 = vmatpush.msra.mxu0 %v1666
    %1678 = vmatpush.msra.mxu0 %v1665
    %1679 = vmatpush.msra.mxu0 %v1664
    %1680 = vmatpush.msra.mxu0 %v1663
    %1681 = vmatpush.msra.mxu0 %v1662
    %1682 = vmatpush.msra.mxu0 %v1661
    %1683 = vmatpush.msra.mxu0 %v1660
    %1684 = vmatpush.msra.mxu0 %v1659
    %1685 = vmatpush.msra.mxu0 %v1658
    %1686 = vmatpush.msra.mxu0 %v1657
    %1687 = vmatpush.msra.mxu0 %v1656
    %1688 = vmatmul.f32.gmra.mxu0 %v1651
    %v1689 = vpop.f32.mrf.mxu0
    %v1690 = vadd.f32 0.0, %v1689
    %1691 = vmatmul.f32.gmra.mxu0 %v1650
    %v1692 = vpop.f32.mrf.mxu0
    %v1693 = vadd.f32 0.0, %v1692
    %1694 = vmatmul.f32.gmra.mxu0 %v1649
    %v1695 = vpop.f32.mrf.mxu0
    %v1696 = vadd.f32 0.0, %v1695
    %1697 = vmatmul.f32.gmra.mxu0 %v1648
    %v1698 = vpop.f32.mrf.mxu0
    %v1699 = vadd.f32 0.0, %v1698
    %1700 = vmatmul.f32.gmra.mxu0 %v1647
    %v1701 = vpop.f32.mrf.mxu0
    %v1702 = vadd.f32 0.0, %v1701
    %1703 = vmatmul.f32.gmra.mxu0 %v1646
    %v1704 = vpop.f32.mrf.mxu0
    %v1705 = vadd.f32 0.0, %v1704
    %1706 = vmatmul.f32.gmra.mxu0 %v1645
    %v1707 = vpop.f32.mrf.mxu0
    %v1708 = vadd.f32 0.0, %v1707
    %1709 = vmatmul.f32.gmra.mxu0 %v1644
    %v1710 = vpop.f32.mrf.mxu0
    %v1711 = vadd.f32 0.0, %v1710
    %1712 = vmatmul.f32.gmra.mxu0 %v1643
    %v1713 = vpop.f32.mrf.mxu0
    %v1714 = vadd.f32 0.0, %v1713
    %1715 = vmatmul.f32.gmra.mxu0 %v1642
    %v1716 = vpop.f32.mrf.mxu0
    %v1717 = vadd.f32 0.0, %v1716
    %1718 = vmatmul.f32.gmra.mxu0 %v1641
    %v1719 = vpop.f32.mrf.mxu0
    %v1720 = vadd.f32 0.0, %v1719
    %1721 = vmatmul.f32.gmra.mxu0 %v1640
    %v1722 = vpop.f32.mrf.mxu0
    %v1723 = vadd.f32 0.0, %v1722
    %1724 = vmatmul.f32.gmra.mxu0 %v1639
    %v1725 = vpop.f32.mrf.mxu0
    %v1726 = vadd.f32 0.0, %v1725
    %1727 = vmatmul.f32.gmra.mxu0 %v1638
    %v1728 = vpop.f32.mrf.mxu0
    %v1729 = vadd.f32 0.0, %v1728
    %1730 = vmatmul.f32.gmra.mxu0 %v1637
    %v1731 = vpop.f32.mrf.mxu0
    %v1732 = vadd.f32 0.0, %v1731
    %1733 = vmatmul.f32.gmra.mxu0 %v1636
    %v1734 = vpop.f32.mrf.mxu0
    %v1735 = vadd.f32 0.0, %v1734
    %1736 = vmatmul.f32.gmra.mxu0 %v1635
    %v1737 = vpop.f32.mrf.mxu0
    %v1738 = vadd.f32 0.0, %v1737
    %1739 = vmatmul.f32.gmra.mxu0 %v1634
    %v1740 = vpop.f32.mrf.mxu0
    %v1741 = vadd.f32 0.0, %v1740
    %1742 = vmatmul.f32.gmra.mxu0 %v1633
    %v1743 = vpop.f32.mrf.mxu0
    %v1744 = vadd.f32 0.0, %v1743
    %1745 = vmatmul.f32.gmra.mxu0 %v1632
    %v1746 = vpop.f32.mrf.mxu0
    %v1747 = vadd.f32 0.0, %v1746
    %1748 = vmatmul.f32.gmra.mxu0 %v1631
    %v1749 = vpop.f32.mrf.mxu0
    %v1750 = vadd.f32 0.0, %v1749
    %1751 = vmatmul.f32.gmra.mxu0 %v1630
    %v1752 = vpop.f32.mrf.mxu0
    %v1753 = vadd.f32 0.0, %v1752
    %1754 = vmatmul.f32.gmra.mxu0 %v1654
    %v1755 = vpop.f32.mrf.mxu0
    %v1756 = vadd.f32 0.0, %v1755
    %1757 = vmatmul.f32.gmra.mxu0 %v1653
    %v1758 = vpop.f32.mrf.mxu0
    %v1759 = vadd.f32 0.0, %v1758
    %1760 = vmatmul.f32.gmra.mxu0 %v1652
    %v1761 = vpop.f32.mrf.mxu0
    %v1762 = vadd.f32 0.0, %v1761
    %1763 = vdwg.mxu0
    %v1764 = vadd.f32 %v1579, %v1690
    %v1765 = vadd.f32 %v1580, %v1693
    %v1766 = vadd.f32 %v1581, %v1696
    %v1767 = vadd.f32 %v1582, %v1699
    %v1768 = vadd.f32 %v1583, %v1702
    %v1769 = vadd.f32 %v1584, %v1705
    %v1770 = vadd.f32 %v1585, %v1708
    %v1771 = vadd.f32 %v1586, %v1711
    %v1772 = vadd.f32 %v1587, %v1714
    %v1773 = vadd.f32 %v1588, %v1717
    %v1774 = vadd.f32 %v1589, %v1720
    %v1775 = vadd.f32 %v1590, %v1723
    %v1776 = vadd.f32 %v1591, %v1726
    %v1777 = vadd.f32 %v1592, %v1729
    %v1778 = vadd.f32 %v1593, %v1732
    %v1779 = vadd.f32 %v1594, %v1735
    %v1780 = vadd.f32 %v1595, %v1738
    %v1781 = vadd.f32 %v1596, %v1741
    %v1782 = vadd.f32 %v1597, %v1744
    %v1783 = vadd.f32 %v1598, %v1747
    %v1784 = vadd.f32 %v1599, %v1750
    %v1785 = vadd.f32 %v1600, %v1753
    %v1786 = vadd.f32 %v1601, %v1756
    %v1787 = vadd.f32 %v1602, %v1759
    %v1788 = vadd.f32 %v1603, %v1762
    %v1789 = vmax.f32 %v1764, 0.0
    %v1790 = vmax.f32 %v1765, 0.0
    %v1791 = vmax.f32 %v1766, 0.0
    %v1792 = vmax.f32 %v1767, 0.0
    %v1793 = vmax.f32 %v1768, 0.0
    %v1794 = vmax.f32 %v1769, 0.0
    %v1795 = vmax.f32 %v1770, 0.0
    %v1796 = vmax.f32 %v1771, 0.0
    %v1797 = vmax.f32 %v1772, 0.0
    %v1798 = vmax.f32 %v1773, 0.0
    %v1799 = vmax.f32 %v1774, 0.0
    %v1800 = vmax.f32 %v1775, 0.0
    %v1801 = vmax.f32 %v1776, 0.0
    %v1802 = vmax.f32 %v1777, 0.0
    %v1803 = vmax.f32 %v1778, 0.0
    %v1804 = vmax.f32 %v1779, 0.0
    %v1805 = vmax.f32 %v1780, 0.0
    %v1806 = vmax.f32 %v1781, 0.0
    %v1807 = vmax.f32 %v1782, 0.0
    %v1808 = vmax.f32 %v1783, 0.0
    %v1809 = vmax.f32 %v1784, 0.0
    %v1810 = vmax.f32 %v1785, 0.0
    %v1811 = vmax.f32 %v1786, 0.0
    %v1812 = vmax.f32 %v1787, 0.0
    %v1813 = vmax.f32 %v1788, 0.0
    %v1814 = vld [vmem:[%s6] sm:$0xff]
    %v1815 = vld [vmem:[%s6 + $0x8] sm:$0xff]
    %v1816 = vld [vmem:[%s6 + $0x10] sm:$0xff]
    %v1817 = vld [vmem:[%s6 + $0x18] sm:$0xff]
    %v1818 = vld [vmem:[%s6 + $0x20] sm:$0xff]
    %v1819 = vld [vmem:[%s6 + $0x28] sm:$0xff]
    %v1820 = vld [vmem:[%s6 + $0x30] sm:$0xff]
    %v1821 = vld [vmem:[%s6 + $0x38] sm:$0xff]
    %v1822 = vld [vmem:[%s6 + $0x40] sm:$0xff]
    %v1823 = vld [vmem:[%s6 + $0x48] sm:$0xff]
    %v1824 = vld [vmem:[%s6 + $0x50] sm:$0xff]
    %v1825 = vld [vmem:[%s6 + $0x58] sm:$0xff]
    %v1826 = vld [vmem:[%s6 + $0x60] sm:$0xff]
    %v1827 = vld [vmem:[%s6 + $0x68] sm:$0xff]
    %v1828 = vld [vmem:[%s6 + $0x70] sm:$0xff]
    %v1829 = vld [vmem:[%s6 + $0x78] sm:$0xff]
    %v1830 = vld [vmem:[%s7] sm:$0x1]
    %v1832 = vperm.slane %v1830, 0
    %1834 = vmatpush.msra.mxu0 %v1829
    %1835 = vmatpush.msra.mxu0 %v1828
    %1836 = vmatpush.msra.mxu0 %v1827
    %1837 = vmatpush.msra.mxu0 %v1826
    %1838 = vmatpush.msra.mxu0 %v1825
    %1839 = vmatpush.msra.mxu0 %v1824
    %1840 = vmatpush.msra.mxu0 %v1823
    %1841 = vmatpush.msra.mxu0 %v1822
    %1842 = vmatpush.msra.mxu0 %v1821
    %1843 = vmatpush.msra.mxu0 %v1820
    %1844 = vmatpush.msra.mxu0 %v1819
    %1845 = vmatpush.msra.mxu0 %v1818
    %1846 = vmatpush.msra.mxu0 %v1817
    %1847 = vmatpush.msra.mxu0 %v1816
    %1848 = vmatpush.msra.mxu0 %v1815
    %1849 = vmatpush.msra.mxu0 %v1814
    %1850 = vmatmul.f32.gmra.mxu0 %v1789
    %v1851 = vpop.f32.mrf.mxu0
    %v1852 = vadd.f32 %v1832, %v1851
    %1853 = vmatmul.f32.gmra.mxu0 %v1790
    %v1854 = vpop.f32.mrf.mxu0
    %v1855 = vadd.f32 %v1832, %v1854
    %1856 = vmatmul.f32.gmra.mxu0 %v1791
    %v1857 = vpop.f32.mrf.mxu0
    %v1858 = vadd.f32 %v1832, %v1857
    %1859 = vmatmul.f32.gmra.mxu0 %v1792
    %v1860 = vpop.f32.mrf.mxu0
    %v1861 = vadd.f32 %v1832, %v1860
    %1862 = vmatmul.f32.gmra.mxu0 %v1793
    %v1863 = vpop.f32.mrf.mxu0
    %v1864 = vadd.f32 %v1832, %v1863
    %1865 = vmatmul.f32.gmra.mxu0 %v1794
    %v1866 = vpop.f32.mrf.mxu0
    %v1867 = vadd.f32 %v1832, %v1866
    %1868 = vmatmul.f32.gmra.mxu0 %v1795
    %v1869 = vpop.f32.mrf.mxu0
    %v1870 = vadd.f32 %v1832, %v1869
    %1871 = vmatmul.f32.gmra.mxu0 %v1796
    %v1872 = vpop.f32.mrf.mxu0
    %v1873 = vadd.f32 %v1832, %v1872
    %1874 = vmatmul.f32.gmra.mxu0 %v1797
    %v1875 = vpop.f32.mrf.mxu0
    %v1876 = vadd.f32 %v1832, %v1875
    %1877 = vmatmul.f32.gmra.mxu0 %v1798
    %v1878 = vpop.f32.mrf.mxu0
    %v1879 = vadd.f32 %v1832, %v1878
    %1880 = vmatmul.f32.gmra.mxu0 %v1799
    %v1881 = vpop.f32.mrf.mxu0
    %v1882 = vadd.f32 %v1832, %v1881
    %1883 = vmatmul.f32.gmra.mxu0 %v1800
    %v1884 = vpop.f32.mrf.mxu0
    %v1885 = vadd.f32 %v1832, %v1884
    %1886 = vmatmul.f32.gmra.mxu0 %v1801
    %v1887 = vpop.f32.mrf.mxu0
    %v1888 = vadd.f32 %v1832, %v1887
    %1889 = vmatmul.f32.gmra.mxu0 %v1802
    %v1890 = vpop.f32.mrf.mxu0
    %v1891 = vadd.f32 %v1832, %v1890
    %1892 = vmatmul.f32.gmra.mxu0 %v1803
    %v1893 = vpop.f32.mrf.mxu0
    %v1894 = vadd.f32 %v1832, %v1893
    %1895 = vmatmul.f32.gmra.mxu0 %v1804
    %v1896 = vpop.f32.mrf.mxu0
    %v1897 = vadd.f32 %v1832, %v1896
    %1898 = vmatmul.f32.gmra.mxu0 %v1805
    %v1899 = vpop.f32.mrf.mxu0
    %v1900 = vadd.f32 %v1832, %v1899
    %1901 = vmatmul.f32.gmra.mxu0 %v1806
    %v1902 = vpop.f32.mrf.mxu0
    %v1903 = vadd.f32 %v1832, %v1902
    %1904 = vmatmul.f32.gmra.mxu0 %v1807
    %v1905 = vpop.f32.mrf.mxu0
    %v1906 = vadd.f32 %v1832, %v1905
    %1907 = vmatmul.f32.gmra.mxu0 %v1808
    %v1908 = vpop.f32.mrf.mxu0
    %v1909 = vadd.f32 %v1832, %v1908
    %1910 = vmatmul.f32.gmra.mxu0 %v1809
    %v1911 = vpop.f32.mrf.mxu0
    %v1912 = vadd.f32 %v1832, %v1911
    %1913 = vmatmul.f32.gmra.mxu0 %v1810
    %v1914 = vpop.f32.mrf.mxu0
    %v1915 = vadd.f32 %v1832, %v1914
    %1916 = vmatmul.f32.gmra.mxu0 %v1811
    %v1917 = vpop.f32.mrf.mxu0
    %v1918 = vadd.f32 %v1832, %v1917
    %1919 = vmatmul.f32.gmra.mxu0 %v1812
    %v1920 = vpop.f32.mrf.mxu0
    %v1921 = vadd.f32 %v1832, %v1920
    %1922 = vmatmul.f32.gmra.mxu0 %v1813
    %v1923 = vpop.f32.mrf.mxu0
    %v1924 = vadd.f32 %v1832, %v1923
    %1925 = vdwg.mxu0
    %v1926 = vrot.slane %v1789, 1
    %v1927 = vrot.slane %v1790, 1
    %v1928 = vrot.slane %v1791, 1
    %v1929 = vrot.slane %v1792, 1
    %v1930 = vrot.slane %v1793, 1
    %v1931 = vrot.slane %v1794, 1
    %v1932 = vrot.slane %v1795, 1
    %v1933 = vrot.slane %v1796, 1
    %v1934 = vrot.slane %v1797, 1
    %v1935 = vrot.slane %v1798, 1
    %v1936 = vrot.slane %v1799, 1
    %v1937 = vrot.slane %v1800, 1
    %v1938 = vrot.slane %v1801, 1
    %v1939 = vrot.slane %v1802, 1
    %v1940 = vrot.slane %v1803, 1
    %v1941 = vrot.slane %v1804, 1
    %v1942 = vrot.slane %v1805, 1
    %v1943 = vrot.slane %v1806, 1
    %v1944 = vrot.slane %v1807, 1
    %v1945 = vrot.slane %v1808, 1
    %v1946 = vrot.slane %v1809, 1
    %v1947 = vrot.slane %v1810, 1
    %v1948 = vrot.slane %v1811, 1
    %v1949 = vrot.slane %v1812, 1
    %v1950 = vrot.slane %v1813, 1
    %v1951 = vsel %vm436, %v1949, %v1950
    %v1952 = vsel %vm436, %v1948, %v1949
    %v1953 = vsel %vm436, %v1947, %v1948
    %v1954 = vsel %vm436, %v1946, %v1947
    %v1955 = vsel %vm436, %v1945, %v1946
    %v1956 = vsel %vm436, %v1944, %v1945
    %v1957 = vsel %vm436, %v1943, %v1944
    %v1958 = vsel %vm436, %v1942, %v1943
    %v1959 = vsel %vm436, %v1941, %v1942
    %v1960 = vsel %vm436, %v1940, %v1941
    %v1961 = vsel %vm436, %v1939, %v1940
    %v1962 = vsel %vm436, %v1938, %v1939
    %v1963 = vsel %vm436, %v1937, %v1938
    %v1964 = vsel %vm436, %v1936, %v1937
    %v1965 = vsel %vm436, %v1935, %v1936
    %v1966 = vsel %vm436, %v1934, %v1935
    %v1967 = vsel %vm436, %v1933, %v1934
    %v1968 = vsel %vm436, %v1932, %v1933
    %v1969 = vsel %vm436, %v1931, %v1932
    %v1970 = vsel %vm436, %v1930, %v1931
    %v1971 = vsel %vm436, %v1929, %v1930
    %v1972 = vsel %vm436, %v1928, %v1929
    %v1973 = vsel %vm436, %v1927, %v1928
    %v1974 = vsel %vm436, %v1926, %v1927
    %v1975 = vsel %vm436, %v1950, %v1926
    %s1976 = scalar_lea.vmem %s6, 128
    %v1977 = vld [vmem:[%s1976] sm:$0xff]
    %v1978 = vld [vmem:[%s1976 + $0x8] sm:$0xff]
    %v1979 = vld [vmem:[%s1976 + $0x10] sm:$0xff]
    %v1980 = vld [vmem:[%s1976 + $0x18] sm:$0xff]
    %v1981 = vld [vmem:[%s1976 + $0x20] sm:$0xff]
    %v1982 = vld [vmem:[%s1976 + $0x28] sm:$0xff]
    %v1983 = vld [vmem:[%s1976 + $0x30] sm:$0xff]
    %v1984 = vld [vmem:[%s1976 + $0x38] sm:$0xff]
    %v1985 = vld [vmem:[%s1976 + $0x40] sm:$0xff]
    %v1986 = vld [vmem:[%s1976 + $0x48] sm:$0xff]
    %v1987 = vld [vmem:[%s1976 + $0x50] sm:$0xff]
    %v1988 = vld [vmem:[%s1976 + $0x58] sm:$0xff]
    %v1989 = vld [vmem:[%s1976 + $0x60] sm:$0xff]
    %v1990 = vld [vmem:[%s1976 + $0x68] sm:$0xff]
    %v1991 = vld [vmem:[%s1976 + $0x70] sm:$0xff]
    %v1992 = vld [vmem:[%s1976 + $0x78] sm:$0xff]
    %1993 = vmatpush.msra.mxu0 %v1992
    %1994 = vmatpush.msra.mxu0 %v1991
    %1995 = vmatpush.msra.mxu0 %v1990
    %1996 = vmatpush.msra.mxu0 %v1989
    %1997 = vmatpush.msra.mxu0 %v1988
    %1998 = vmatpush.msra.mxu0 %v1987
    %1999 = vmatpush.msra.mxu0 %v1986
    %2000 = vmatpush.msra.mxu0 %v1985
    %2001 = vmatpush.msra.mxu0 %v1984
    %2002 = vmatpush.msra.mxu0 %v1983
    %2003 = vmatpush.msra.mxu0 %v1982
    %2004 = vmatpush.msra.mxu0 %v1981
    %2005 = vmatpush.msra.mxu0 %v1980
    %2006 = vmatpush.msra.mxu0 %v1979
    %2007 = vmatpush.msra.mxu0 %v1978
    %2008 = vmatpush.msra.mxu0 %v1977
    %2009 = vmatmul.f32.gmra.mxu0 %v1974
    %v2010 = vpop.f32.mrf.mxu0
    %v2011 = vadd.f32 0.0, %v2010
    %2012 = vmatmul.f32.gmra.mxu0 %v1973
    %v2013 = vpop.f32.mrf.mxu0
    %v2014 = vadd.f32 0.0, %v2013
    %2015 = vmatmul.f32.gmra.mxu0 %v1972
    %v2016 = vpop.f32.mrf.mxu0
    %v2017 = vadd.f32 0.0, %v2016
    %2018 = vmatmul.f32.gmra.mxu0 %v1971
    %v2019 = vpop.f32.mrf.mxu0
    %v2020 = vadd.f32 0.0, %v2019
    %2021 = vmatmul.f32.gmra.mxu0 %v1970
    %v2022 = vpop.f32.mrf.mxu0
    %v2023 = vadd.f32 0.0, %v2022
    %2024 = vmatmul.f32.gmra.mxu0 %v1969
    %v2025 = vpop.f32.mrf.mxu0
    %v2026 = vadd.f32 0.0, %v2025
    %2027 = vmatmul.f32.gmra.mxu0 %v1968
    %v2028 = vpop.f32.mrf.mxu0
    %v2029 = vadd.f32 0.0, %v2028
    %2030 = vmatmul.f32.gmra.mxu0 %v1967
    %v2031 = vpop.f32.mrf.mxu0
    %v2032 = vadd.f32 0.0, %v2031
    %2033 = vmatmul.f32.gmra.mxu0 %v1966
    %v2034 = vpop.f32.mrf.mxu0
    %v2035 = vadd.f32 0.0, %v2034
    %2036 = vmatmul.f32.gmra.mxu0 %v1965
    %v2037 = vpop.f32.mrf.mxu0
    %v2038 = vadd.f32 0.0, %v2037
    %2039 = vmatmul.f32.gmra.mxu0 %v1964
    %v2040 = vpop.f32.mrf.mxu0
    %v2041 = vadd.f32 0.0, %v2040
    %2042 = vmatmul.f32.gmra.mxu0 %v1963
    %v2043 = vpop.f32.mrf.mxu0
    %v2044 = vadd.f32 0.0, %v2043
    %2045 = vmatmul.f32.gmra.mxu0 %v1962
    %v2046 = vpop.f32.mrf.mxu0
    %v2047 = vadd.f32 0.0, %v2046
    %2048 = vmatmul.f32.gmra.mxu0 %v1961
    %v2049 = vpop.f32.mrf.mxu0
    %v2050 = vadd.f32 0.0, %v2049
    %2051 = vmatmul.f32.gmra.mxu0 %v1960
    %v2052 = vpop.f32.mrf.mxu0
    %v2053 = vadd.f32 0.0, %v2052
    %2054 = vmatmul.f32.gmra.mxu0 %v1959
    %v2055 = vpop.f32.mrf.mxu0
    %v2056 = vadd.f32 0.0, %v2055
    %2057 = vmatmul.f32.gmra.mxu0 %v1958
    %v2058 = vpop.f32.mrf.mxu0
    %v2059 = vadd.f32 0.0, %v2058
    %2060 = vmatmul.f32.gmra.mxu0 %v1957
    %v2061 = vpop.f32.mrf.mxu0
    %v2062 = vadd.f32 0.0, %v2061
    %2063 = vmatmul.f32.gmra.mxu0 %v1956
    %v2064 = vpop.f32.mrf.mxu0
    %v2065 = vadd.f32 0.0, %v2064
    %2066 = vmatmul.f32.gmra.mxu0 %v1955
    %v2067 = vpop.f32.mrf.mxu0
    %v2068 = vadd.f32 0.0, %v2067
    %2069 = vmatmul.f32.gmra.mxu0 %v1954
    %v2070 = vpop.f32.mrf.mxu0
    %v2071 = vadd.f32 0.0, %v2070
    %2072 = vmatmul.f32.gmra.mxu0 %v1953
    %v2073 = vpop.f32.mrf.mxu0
    %v2074 = vadd.f32 0.0, %v2073
    %2075 = vmatmul.f32.gmra.mxu0 %v1952
    %v2076 = vpop.f32.mrf.mxu0
    %v2077 = vadd.f32 0.0, %v2076
    %2078 = vmatmul.f32.gmra.mxu0 %v1951
    %v2079 = vpop.f32.mrf.mxu0
    %v2080 = vadd.f32 0.0, %v2079
    %2081 = vmatmul.f32.gmra.mxu0 %v1975
    %v2082 = vpop.f32.mrf.mxu0
    %v2083 = vadd.f32 0.0, %v2082
    %2084 = vdwg.mxu0
    %v2085 = vadd.f32 %v1852, %v2011
    %v2086 = vadd.f32 %v1855, %v2014
    %v2087 = vadd.f32 %v1858, %v2017
    %v2088 = vadd.f32 %v1861, %v2020
    %v2089 = vadd.f32 %v1864, %v2023
    %v2090 = vadd.f32 %v1867, %v2026
    %v2091 = vadd.f32 %v1870, %v2029
    %v2092 = vadd.f32 %v1873, %v2032
    %v2093 = vadd.f32 %v1876, %v2035
    %v2094 = vadd.f32 %v1879, %v2038
    %v2095 = vadd.f32 %v1882, %v2041
    %v2096 = vadd.f32 %v1885, %v2044
    %v2097 = vadd.f32 %v1888, %v2047
    %v2098 = vadd.f32 %v1891, %v2050
    %v2099 = vadd.f32 %v1894, %v2053
    %v2100 = vadd.f32 %v1897, %v2056
    %v2101 = vadd.f32 %v1900, %v2059
    %v2102 = vadd.f32 %v1903, %v2062
    %v2103 = vadd.f32 %v1906, %v2065
    %v2104 = vadd.f32 %v1909, %v2068
    %v2105 = vadd.f32 %v1912, %v2071
    %v2106 = vadd.f32 %v1915, %v2074
    %v2107 = vadd.f32 %v1918, %v2077
    %v2108 = vadd.f32 %v1921, %v2080
    %v2109 = vadd.f32 %v1924, %v2083
    %v2110 = vrot.slane %v1789, 2
    %v2111 = vrot.slane %v1790, 2
    %v2112 = vrot.slane %v1791, 2
    %v2113 = vrot.slane %v1792, 2
    %v2114 = vrot.slane %v1793, 2
    %v2115 = vrot.slane %v1794, 2
    %v2116 = vrot.slane %v1795, 2
    %v2117 = vrot.slane %v1796, 2
    %v2118 = vrot.slane %v1797, 2
    %v2119 = vrot.slane %v1798, 2
    %v2120 = vrot.slane %v1799, 2
    %v2121 = vrot.slane %v1800, 2
    %v2122 = vrot.slane %v1801, 2
    %v2123 = vrot.slane %v1802, 2
    %v2124 = vrot.slane %v1803, 2
    %v2125 = vrot.slane %v1804, 2
    %v2126 = vrot.slane %v1805, 2
    %v2127 = vrot.slane %v1806, 2
    %v2128 = vrot.slane %v1807, 2
    %v2129 = vrot.slane %v1808, 2
    %v2130 = vrot.slane %v1809, 2
    %v2131 = vrot.slane %v1810, 2
    %v2132 = vrot.slane %v1811, 2
    %v2133 = vrot.slane %v1812, 2
    %v2134 = vrot.slane %v1813, 2
    %v2135 = vsel %vm621, %v2133, %v2134
    %v2136 = vsel %vm621, %v2132, %v2133
    %v2137 = vsel %vm621, %v2131, %v2132
    %v2138 = vsel %vm621, %v2130, %v2131
    %v2139 = vsel %vm621, %v2129, %v2130
    %v2140 = vsel %vm621, %v2128, %v2129
    %v2141 = vsel %vm621, %v2127, %v2128
    %v2142 = vsel %vm621, %v2126, %v2127
    %v2143 = vsel %vm621, %v2125, %v2126
    %v2144 = vsel %vm621, %v2124, %v2125
    %v2145 = vsel %vm621, %v2123, %v2124
    %v2146 = vsel %vm621, %v2122, %v2123
    %v2147 = vsel %vm621, %v2121, %v2122
    %v2148 = vsel %vm621, %v2120, %v2121
    %v2149 = vsel %vm621, %v2119, %v2120
    %v2150 = vsel %vm621, %v2118, %v2119
    %v2151 = vsel %vm621, %v2117, %v2118
    %v2152 = vsel %vm621, %v2116, %v2117
    %v2153 = vsel %vm621, %v2115, %v2116
    %v2154 = vsel %vm621, %v2114, %v2115
    %v2155 = vsel %vm621, %v2113, %v2114
    %v2156 = vsel %vm621, %v2112, %v2113
    %v2157 = vsel %vm621, %v2111, %v2112
    %v2158 = vsel %vm621, %v2110, %v2111
    %v2159 = vsel %vm621, %v2134, %v2110
    %s2160 = scalar_lea.vmem %s6, 256
    %v2161 = vld [vmem:[%s2160] sm:$0xff]
    %v2162 = vld [vmem:[%s2160 + $0x8] sm:$0xff]
    %v2163 = vld [vmem:[%s2160 + $0x10] sm:$0xff]
    %v2164 = vld [vmem:[%s2160 + $0x18] sm:$0xff]
    %v2165 = vld [vmem:[%s2160 + $0x20] sm:$0xff]
    %v2166 = vld [vmem:[%s2160 + $0x28] sm:$0xff]
    %v2167 = vld [vmem:[%s2160 + $0x30] sm:$0xff]
    %v2168 = vld [vmem:[%s2160 + $0x38] sm:$0xff]
    %v2169 = vld [vmem:[%s2160 + $0x40] sm:$0xff]
    %v2170 = vld [vmem:[%s2160 + $0x48] sm:$0xff]
    %v2171 = vld [vmem:[%s2160 + $0x50] sm:$0xff]
    %v2172 = vld [vmem:[%s2160 + $0x58] sm:$0xff]
    %v2173 = vld [vmem:[%s2160 + $0x60] sm:$0xff]
    %v2174 = vld [vmem:[%s2160 + $0x68] sm:$0xff]
    %v2175 = vld [vmem:[%s2160 + $0x70] sm:$0xff]
    %v2176 = vld [vmem:[%s2160 + $0x78] sm:$0xff]
    %2177 = vmatpush.msra.mxu0 %v2176
    %2178 = vmatpush.msra.mxu0 %v2175
    %2179 = vmatpush.msra.mxu0 %v2174
    %2180 = vmatpush.msra.mxu0 %v2173
    %2181 = vmatpush.msra.mxu0 %v2172
    %2182 = vmatpush.msra.mxu0 %v2171
    %2183 = vmatpush.msra.mxu0 %v2170
    %2184 = vmatpush.msra.mxu0 %v2169
    %2185 = vmatpush.msra.mxu0 %v2168
    %2186 = vmatpush.msra.mxu0 %v2167
    %2187 = vmatpush.msra.mxu0 %v2166
    %2188 = vmatpush.msra.mxu0 %v2165
    %2189 = vmatpush.msra.mxu0 %v2164
    %2190 = vmatpush.msra.mxu0 %v2163
    %2191 = vmatpush.msra.mxu0 %v2162
    %2192 = vmatpush.msra.mxu0 %v2161
    %2193 = vmatmul.f32.gmra.mxu0 %v2158
    %v2194 = vpop.f32.mrf.mxu0
    %v2195 = vadd.f32 0.0, %v2194
    %2196 = vmatmul.f32.gmra.mxu0 %v2157
    %v2197 = vpop.f32.mrf.mxu0
    %v2198 = vadd.f32 0.0, %v2197
    %2199 = vmatmul.f32.gmra.mxu0 %v2156
    %v2200 = vpop.f32.mrf.mxu0
    %v2201 = vadd.f32 0.0, %v2200
    %2202 = vmatmul.f32.gmra.mxu0 %v2155
    %v2203 = vpop.f32.mrf.mxu0
    %v2204 = vadd.f32 0.0, %v2203
    %2205 = vmatmul.f32.gmra.mxu0 %v2154
    %v2206 = vpop.f32.mrf.mxu0
    %v2207 = vadd.f32 0.0, %v2206
    %2208 = vmatmul.f32.gmra.mxu0 %v2153
    %v2209 = vpop.f32.mrf.mxu0
    %v2210 = vadd.f32 0.0, %v2209
    %2211 = vmatmul.f32.gmra.mxu0 %v2152
    %v2212 = vpop.f32.mrf.mxu0
    %v2213 = vadd.f32 0.0, %v2212
    %2214 = vmatmul.f32.gmra.mxu0 %v2151
    %v2215 = vpop.f32.mrf.mxu0
    %v2216 = vadd.f32 0.0, %v2215
    %2217 = vmatmul.f32.gmra.mxu0 %v2150
    %v2218 = vpop.f32.mrf.mxu0
    %v2219 = vadd.f32 0.0, %v2218
    %2220 = vmatmul.f32.gmra.mxu0 %v2149
    %v2221 = vpop.f32.mrf.mxu0
    %v2222 = vadd.f32 0.0, %v2221
    %2223 = vmatmul.f32.gmra.mxu0 %v2148
    %v2224 = vpop.f32.mrf.mxu0
    %v2225 = vadd.f32 0.0, %v2224
    %2226 = vmatmul.f32.gmra.mxu0 %v2147
    %v2227 = vpop.f32.mrf.mxu0
    %v2228 = vadd.f32 0.0, %v2227
    %2229 = vmatmul.f32.gmra.mxu0 %v2146
    %v2230 = vpop.f32.mrf.mxu0
    %v2231 = vadd.f32 0.0, %v2230
    %2232 = vmatmul.f32.gmra.mxu0 %v2145
    %v2233 = vpop.f32.mrf.mxu0
    %v2234 = vadd.f32 0.0, %v2233
    %2235 = vmatmul.f32.gmra.mxu0 %v2144
    %v2236 = vpop.f32.mrf.mxu0
    %v2237 = vadd.f32 0.0, %v2236
    %2238 = vmatmul.f32.gmra.mxu0 %v2143
    %v2239 = vpop.f32.mrf.mxu0
    %v2240 = vadd.f32 0.0, %v2239
    %2241 = vmatmul.f32.gmra.mxu0 %v2142
    %v2242 = vpop.f32.mrf.mxu0
    %v2243 = vadd.f32 0.0, %v2242
    %2244 = vmatmul.f32.gmra.mxu0 %v2141
    %v2245 = vpop.f32.mrf.mxu0
    %v2246 = vadd.f32 0.0, %v2245
    %2247 = vmatmul.f32.gmra.mxu0 %v2140
    %v2248 = vpop.f32.mrf.mxu0
    %v2249 = vadd.f32 0.0, %v2248
    %2250 = vmatmul.f32.gmra.mxu0 %v2139
    %v2251 = vpop.f32.mrf.mxu0
    %v2252 = vadd.f32 0.0, %v2251
    %2253 = vmatmul.f32.gmra.mxu0 %v2138
    %v2254 = vpop.f32.mrf.mxu0
    %v2255 = vadd.f32 0.0, %v2254
    %2256 = vmatmul.f32.gmra.mxu0 %v2137
    %v2257 = vpop.f32.mrf.mxu0
    %v2258 = vadd.f32 0.0, %v2257
    %2259 = vmatmul.f32.gmra.mxu0 %v2136
    %v2260 = vpop.f32.mrf.mxu0
    %v2261 = vadd.f32 0.0, %v2260
    %2262 = vmatmul.f32.gmra.mxu0 %v2135
    %v2263 = vpop.f32.mrf.mxu0
    %v2264 = vadd.f32 0.0, %v2263
    %2265 = vmatmul.f32.gmra.mxu0 %v2159
    %v2266 = vpop.f32.mrf.mxu0
    %v2267 = vadd.f32 0.0, %v2266
    %2268 = vdwg.mxu0
    %v2269 = vadd.f32 %v2085, %v2195
    %v2270 = vadd.f32 %v2086, %v2198
    %v2271 = vadd.f32 %v2087, %v2201
    %v2272 = vadd.f32 %v2088, %v2204
    %v2273 = vadd.f32 %v2089, %v2207
    %v2274 = vadd.f32 %v2090, %v2210
    %v2275 = vadd.f32 %v2091, %v2213
    %v2276 = vadd.f32 %v2092, %v2216
    %v2277 = vadd.f32 %v2093, %v2219
    %v2278 = vadd.f32 %v2094, %v2222
    %v2279 = vadd.f32 %v2095, %v2225
    %v2280 = vadd.f32 %v2096, %v2228
    %v2281 = vadd.f32 %v2097, %v2231
    %v2282 = vadd.f32 %v2098, %v2234
    %v2283 = vadd.f32 %v2099, %v2237
    %v2284 = vadd.f32 %v2100, %v2240
    %v2285 = vadd.f32 %v2101, %v2243
    %v2286 = vadd.f32 %v2102, %v2246
    %v2287 = vadd.f32 %v2103, %v2249
    %v2288 = vadd.f32 %v2104, %v2252
    %v2289 = vadd.f32 %v2105, %v2255
    %v2290 = vadd.f32 %v2106, %v2258
    %v2291 = vadd.f32 %v2107, %v2261
    %v2292 = vadd.f32 %v2108, %v2264
    %v2293 = vadd.f32 %v2109, %v2267
    %s2294 = scalar_lea.vmem %s6, 384
    %v2295 = vld [vmem:[%s2294] sm:$0xff]
    %v2296 = vld [vmem:[%s2294 + $0x8] sm:$0xff]
    %v2297 = vld [vmem:[%s2294 + $0x10] sm:$0xff]
    %v2298 = vld [vmem:[%s2294 + $0x18] sm:$0xff]
    %v2299 = vld [vmem:[%s2294 + $0x20] sm:$0xff]
    %v2300 = vld [vmem:[%s2294 + $0x28] sm:$0xff]
    %v2301 = vld [vmem:[%s2294 + $0x30] sm:$0xff]
    %v2302 = vld [vmem:[%s2294 + $0x38] sm:$0xff]
    %v2303 = vld [vmem:[%s2294 + $0x40] sm:$0xff]
    %v2304 = vld [vmem:[%s2294 + $0x48] sm:$0xff]
    %v2305 = vld [vmem:[%s2294 + $0x50] sm:$0xff]
    %v2306 = vld [vmem:[%s2294 + $0x58] sm:$0xff]
    %v2307 = vld [vmem:[%s2294 + $0x60] sm:$0xff]
    %v2308 = vld [vmem:[%s2294 + $0x68] sm:$0xff]
    %v2309 = vld [vmem:[%s2294 + $0x70] sm:$0xff]
    %v2310 = vld [vmem:[%s2294 + $0x78] sm:$0xff]
    %2311 = vmatpush.msra.mxu0 %v2310
    %2312 = vmatpush.msra.mxu0 %v2309
    %2313 = vmatpush.msra.mxu0 %v2308
    %2314 = vmatpush.msra.mxu0 %v2307
    %2315 = vmatpush.msra.mxu0 %v2306
    %2316 = vmatpush.msra.mxu0 %v2305
    %2317 = vmatpush.msra.mxu0 %v2304
    %2318 = vmatpush.msra.mxu0 %v2303
    %2319 = vmatpush.msra.mxu0 %v2302
    %2320 = vmatpush.msra.mxu0 %v2301
    %2321 = vmatpush.msra.mxu0 %v2300
    %2322 = vmatpush.msra.mxu0 %v2299
    %2323 = vmatpush.msra.mxu0 %v2298
    %2324 = vmatpush.msra.mxu0 %v2297
    %2325 = vmatpush.msra.mxu0 %v2296
    %2326 = vmatpush.msra.mxu0 %v2295
    %2327 = vmatmul.f32.gmra.mxu0 %v2157
    %v2328 = vpop.f32.mrf.mxu0
    %v2329 = vadd.f32 0.0, %v2328
    %2330 = vmatmul.f32.gmra.mxu0 %v2156
    %v2331 = vpop.f32.mrf.mxu0
    %v2332 = vadd.f32 0.0, %v2331
    %2333 = vmatmul.f32.gmra.mxu0 %v2155
    %v2334 = vpop.f32.mrf.mxu0
    %v2335 = vadd.f32 0.0, %v2334
    %2336 = vmatmul.f32.gmra.mxu0 %v2154
    %v2337 = vpop.f32.mrf.mxu0
    %v2338 = vadd.f32 0.0, %v2337
    %2339 = vmatmul.f32.gmra.mxu0 %v2153
    %v2340 = vpop.f32.mrf.mxu0
    %v2341 = vadd.f32 0.0, %v2340
    %2342 = vmatmul.f32.gmra.mxu0 %v2152
    %v2343 = vpop.f32.mrf.mxu0
    %v2344 = vadd.f32 0.0, %v2343
    %2345 = vmatmul.f32.gmra.mxu0 %v2151
    %v2346 = vpop.f32.mrf.mxu0
    %v2347 = vadd.f32 0.0, %v2346
    %2348 = vmatmul.f32.gmra.mxu0 %v2150
    %v2349 = vpop.f32.mrf.mxu0
    %v2350 = vadd.f32 0.0, %v2349
    %2351 = vmatmul.f32.gmra.mxu0 %v2149
    %v2352 = vpop.f32.mrf.mxu0
    %v2353 = vadd.f32 0.0, %v2352
    %2354 = vmatmul.f32.gmra.mxu0 %v2148
    %v2355 = vpop.f32.mrf.mxu0
    %v2356 = vadd.f32 0.0, %v2355
    %2357 = vmatmul.f32.gmra.mxu0 %v2147
    %v2358 = vpop.f32.mrf.mxu0
    %v2359 = vadd.f32 0.0, %v2358
    %2360 = vmatmul.f32.gmra.mxu0 %v2146
    %v2361 = vpop.f32.mrf.mxu0
    %v2362 = vadd.f32 0.0, %v2361
    %2363 = vmatmul.f32.gmra.mxu0 %v2145
    %v2364 = vpop.f32.mrf.mxu0
    %v2365 = vadd.f32 0.0, %v2364
    %2366 = vmatmul.f32.gmra.mxu0 %v2144
    %v2367 = vpop.f32.mrf.mxu0
    %v2368 = vadd.f32 0.0, %v2367
    %2369 = vmatmul.f32.gmra.mxu0 %v2143
    %v2370 = vpop.f32.mrf.mxu0
    %v2371 = vadd.f32 0.0, %v2370
    %2372 = vmatmul.f32.gmra.mxu0 %v2142
    %v2373 = vpop.f32.mrf.mxu0
    %v2374 = vadd.f32 0.0, %v2373
    %2375 = vmatmul.f32.gmra.mxu0 %v2141
    %v2376 = vpop.f32.mrf.mxu0
    %v2377 = vadd.f32 0.0, %v2376
    %2378 = vmatmul.f32.gmra.mxu0 %v2140
    %v2379 = vpop.f32.mrf.mxu0
    %v2380 = vadd.f32 0.0, %v2379
    %2381 = vmatmul.f32.gmra.mxu0 %v2139
    %v2382 = vpop.f32.mrf.mxu0
    %v2383 = vadd.f32 0.0, %v2382
    %2384 = vmatmul.f32.gmra.mxu0 %v2138
    %v2385 = vpop.f32.mrf.mxu0
    %v2386 = vadd.f32 0.0, %v2385
    %2387 = vmatmul.f32.gmra.mxu0 %v2137
    %v2388 = vpop.f32.mrf.mxu0
    %v2389 = vadd.f32 0.0, %v2388
    %2390 = vmatmul.f32.gmra.mxu0 %v2136
    %v2391 = vpop.f32.mrf.mxu0
    %v2392 = vadd.f32 0.0, %v2391
    %2393 = vmatmul.f32.gmra.mxu0 %v2135
    %v2394 = vpop.f32.mrf.mxu0
    %v2395 = vadd.f32 0.0, %v2394
    %2396 = vmatmul.f32.gmra.mxu0 %v2159
    %v2397 = vpop.f32.mrf.mxu0
    %v2398 = vadd.f32 0.0, %v2397
    %2399 = vmatmul.f32.gmra.mxu0 %v2158
    %v2400 = vpop.f32.mrf.mxu0
    %v2401 = vadd.f32 0.0, %v2400
    %2402 = vdwg.mxu0
    %v2403 = vadd.f32 %v2269, %v2329
    %v2404 = vadd.f32 %v2270, %v2332
    %v2405 = vadd.f32 %v2271, %v2335
    %v2406 = vadd.f32 %v2272, %v2338
    %v2407 = vadd.f32 %v2273, %v2341
    %v2408 = vadd.f32 %v2274, %v2344
    %v2409 = vadd.f32 %v2275, %v2347
    %v2410 = vadd.f32 %v2276, %v2350
    %v2411 = vadd.f32 %v2277, %v2353
    %v2412 = vadd.f32 %v2278, %v2356
    %v2413 = vadd.f32 %v2279, %v2359
    %v2414 = vadd.f32 %v2280, %v2362
    %v2415 = vadd.f32 %v2281, %v2365
    %v2416 = vadd.f32 %v2282, %v2368
    %v2417 = vadd.f32 %v2283, %v2371
    %v2418 = vadd.f32 %v2284, %v2374
    %v2419 = vadd.f32 %v2285, %v2377
    %v2420 = vadd.f32 %v2286, %v2380
    %v2421 = vadd.f32 %v2287, %v2383
    %v2422 = vadd.f32 %v2288, %v2386
    %v2423 = vadd.f32 %v2289, %v2389
    %v2424 = vadd.f32 %v2290, %v2392
    %v2425 = vadd.f32 %v2291, %v2395
    %v2426 = vadd.f32 %v2292, %v2398
    %v2427 = vadd.f32 %v2293, %v2401
    %v2428 = vrot.slane %v1789, 3
    %v2429 = vrot.slane %v1790, 3
    %v2430 = vrot.slane %v1791, 3
    %v2431 = vrot.slane %v1792, 3
    %v2432 = vrot.slane %v1793, 3
    %v2433 = vrot.slane %v1794, 3
    %v2434 = vrot.slane %v1795, 3
    %v2435 = vrot.slane %v1796, 3
    %v2436 = vrot.slane %v1797, 3
    %v2437 = vrot.slane %v1798, 3
    %v2438 = vrot.slane %v1799, 3
    %v2439 = vrot.slane %v1800, 3
    %v2440 = vrot.slane %v1801, 3
    %v2441 = vrot.slane %v1802, 3
    %v2442 = vrot.slane %v1803, 3
    %v2443 = vrot.slane %v1804, 3
    %v2444 = vrot.slane %v1805, 3
    %v2445 = vrot.slane %v1806, 3
    %v2446 = vrot.slane %v1807, 3
    %v2447 = vrot.slane %v1808, 3
    %v2448 = vrot.slane %v1809, 3
    %v2449 = vrot.slane %v1810, 3
    %v2450 = vrot.slane %v1811, 3
    %v2451 = vrot.slane %v1812, 3
    %v2452 = vrot.slane %v1813, 3
    %v2453 = vsel %vm940, %v2451, %v2452
    %v2454 = vsel %vm940, %v2450, %v2451
    %v2455 = vsel %vm940, %v2449, %v2450
    %v2456 = vsel %vm940, %v2448, %v2449
    %v2457 = vsel %vm940, %v2447, %v2448
    %v2458 = vsel %vm940, %v2446, %v2447
    %v2459 = vsel %vm940, %v2445, %v2446
    %v2460 = vsel %vm940, %v2444, %v2445
    %v2461 = vsel %vm940, %v2443, %v2444
    %v2462 = vsel %vm940, %v2442, %v2443
    %v2463 = vsel %vm940, %v2441, %v2442
    %v2464 = vsel %vm940, %v2440, %v2441
    %v2465 = vsel %vm940, %v2439, %v2440
    %v2466 = vsel %vm940, %v2438, %v2439
    %v2467 = vsel %vm940, %v2437, %v2438
    %v2468 = vsel %vm940, %v2436, %v2437
    %v2469 = vsel %vm940, %v2435, %v2436
    %v2470 = vsel %vm940, %v2434, %v2435
    %v2471 = vsel %vm940, %v2433, %v2434
    %v2472 = vsel %vm940, %v2432, %v2433
    %v2473 = vsel %vm940, %v2431, %v2432
    %v2474 = vsel %vm940, %v2430, %v2431
    %v2475 = vsel %vm940, %v2429, %v2430
    %v2476 = vsel %vm940, %v2428, %v2429
    %v2477 = vsel %vm940, %v2452, %v2428
    %s2478 = scalar_lea.vmem %s6, 512
    %v2479 = vld [vmem:[%s2478] sm:$0xff]
    %v2480 = vld [vmem:[%s2478 + $0x8] sm:$0xff]
    %v2481 = vld [vmem:[%s2478 + $0x10] sm:$0xff]
    %v2482 = vld [vmem:[%s2478 + $0x18] sm:$0xff]
    %v2483 = vld [vmem:[%s2478 + $0x20] sm:$0xff]
    %v2484 = vld [vmem:[%s2478 + $0x28] sm:$0xff]
    %v2485 = vld [vmem:[%s2478 + $0x30] sm:$0xff]
    %v2486 = vld [vmem:[%s2478 + $0x38] sm:$0xff]
    %v2487 = vld [vmem:[%s2478 + $0x40] sm:$0xff]
    %v2488 = vld [vmem:[%s2478 + $0x48] sm:$0xff]
    %v2489 = vld [vmem:[%s2478 + $0x50] sm:$0xff]
    %v2490 = vld [vmem:[%s2478 + $0x58] sm:$0xff]
    %v2491 = vld [vmem:[%s2478 + $0x60] sm:$0xff]
    %v2492 = vld [vmem:[%s2478 + $0x68] sm:$0xff]
    %v2493 = vld [vmem:[%s2478 + $0x70] sm:$0xff]
    %v2494 = vld [vmem:[%s2478 + $0x78] sm:$0xff]
    %2495 = vmatpush.msra.mxu0 %v2494
    %2496 = vmatpush.msra.mxu0 %v2493
    %2497 = vmatpush.msra.mxu0 %v2492
    %2498 = vmatpush.msra.mxu0 %v2491
    %2499 = vmatpush.msra.mxu0 %v2490
    %2500 = vmatpush.msra.mxu0 %v2489
    %2501 = vmatpush.msra.mxu0 %v2488
    %2502 = vmatpush.msra.mxu0 %v2487
    %2503 = vmatpush.msra.mxu0 %v2486
    %2504 = vmatpush.msra.mxu0 %v2485
    %2505 = vmatpush.msra.mxu0 %v2484
    %2506 = vmatpush.msra.mxu0 %v2483
    %2507 = vmatpush.msra.mxu0 %v2482
    %2508 = vmatpush.msra.mxu0 %v2481
    %2509 = vmatpush.msra.mxu0 %v2480
    %2510 = vmatpush.msra.mxu0 %v2479
    %2511 = vmatmul.f32.gmra.mxu0 %v2475
    %v2512 = vpop.f32.mrf.mxu0
    %v2513 = vadd.f32 0.0, %v2512
    %2514 = vmatmul.f32.gmra.mxu0 %v2474
    %v2515 = vpop.f32.mrf.mxu0
    %v2516 = vadd.f32 0.0, %v2515
    %2517 = vmatmul.f32.gmra.mxu0 %v2473
    %v2518 = vpop.f32.mrf.mxu0
    %v2519 = vadd.f32 0.0, %v2518
    %2520 = vmatmul.f32.gmra.mxu0 %v2472
    %v2521 = vpop.f32.mrf.mxu0
    %v2522 = vadd.f32 0.0, %v2521
    %2523 = vmatmul.f32.gmra.mxu0 %v2471
    %v2524 = vpop.f32.mrf.mxu0
    %v2525 = vadd.f32 0.0, %v2524
    %2526 = vmatmul.f32.gmra.mxu0 %v2470
    %v2527 = vpop.f32.mrf.mxu0
    %v2528 = vadd.f32 0.0, %v2527
    %2529 = vmatmul.f32.gmra.mxu0 %v2469
    %v2530 = vpop.f32.mrf.mxu0
    %v2531 = vadd.f32 0.0, %v2530
    %2532 = vmatmul.f32.gmra.mxu0 %v2468
    %v2533 = vpop.f32.mrf.mxu0
    %v2534 = vadd.f32 0.0, %v2533
    %2535 = vmatmul.f32.gmra.mxu0 %v2467
    %v2536 = vpop.f32.mrf.mxu0
    %v2537 = vadd.f32 0.0, %v2536
    %2538 = vmatmul.f32.gmra.mxu0 %v2466
    %v2539 = vpop.f32.mrf.mxu0
    %v2540 = vadd.f32 0.0, %v2539
    %2541 = vmatmul.f32.gmra.mxu0 %v2465
    %v2542 = vpop.f32.mrf.mxu0
    %v2543 = vadd.f32 0.0, %v2542
    %2544 = vmatmul.f32.gmra.mxu0 %v2464
    %v2545 = vpop.f32.mrf.mxu0
    %v2546 = vadd.f32 0.0, %v2545
    %2547 = vmatmul.f32.gmra.mxu0 %v2463
    %v2548 = vpop.f32.mrf.mxu0
    %v2549 = vadd.f32 0.0, %v2548
    %2550 = vmatmul.f32.gmra.mxu0 %v2462
    %v2551 = vpop.f32.mrf.mxu0
    %v2552 = vadd.f32 0.0, %v2551
    %2553 = vmatmul.f32.gmra.mxu0 %v2461
    %v2554 = vpop.f32.mrf.mxu0
    %v2555 = vadd.f32 0.0, %v2554
    %2556 = vmatmul.f32.gmra.mxu0 %v2460
    %v2557 = vpop.f32.mrf.mxu0
    %v2558 = vadd.f32 0.0, %v2557
    %2559 = vmatmul.f32.gmra.mxu0 %v2459
    %v2560 = vpop.f32.mrf.mxu0
    %v2561 = vadd.f32 0.0, %v2560
    %2562 = vmatmul.f32.gmra.mxu0 %v2458
    %v2563 = vpop.f32.mrf.mxu0
    %v2564 = vadd.f32 0.0, %v2563
    %2565 = vmatmul.f32.gmra.mxu0 %v2457
    %v2566 = vpop.f32.mrf.mxu0
    %v2567 = vadd.f32 0.0, %v2566
    %2568 = vmatmul.f32.gmra.mxu0 %v2456
    %v2569 = vpop.f32.mrf.mxu0
    %v2570 = vadd.f32 0.0, %v2569
    %2571 = vmatmul.f32.gmra.mxu0 %v2455
    %v2572 = vpop.f32.mrf.mxu0
    %v2573 = vadd.f32 0.0, %v2572
    %2574 = vmatmul.f32.gmra.mxu0 %v2454
    %v2575 = vpop.f32.mrf.mxu0
    %v2576 = vadd.f32 0.0, %v2575
    %2577 = vmatmul.f32.gmra.mxu0 %v2453
    %v2578 = vpop.f32.mrf.mxu0
    %v2579 = vadd.f32 0.0, %v2578
    %2580 = vmatmul.f32.gmra.mxu0 %v2477
    %v2581 = vpop.f32.mrf.mxu0
    %v2582 = vadd.f32 0.0, %v2581
    %2583 = vmatmul.f32.gmra.mxu0 %v2476
    %v2584 = vpop.f32.mrf.mxu0
    %v2585 = vadd.f32 0.0, %v2584
    %2586 = vdwg.mxu0
    %v2587 = vadd.f32 %v2403, %v2513
    %v2588 = vadd.f32 %v2404, %v2516
    %v2589 = vadd.f32 %v2405, %v2519
    %v2590 = vadd.f32 %v2406, %v2522
    %v2591 = vadd.f32 %v2407, %v2525
    %v2592 = vadd.f32 %v2408, %v2528
    %v2593 = vadd.f32 %v2409, %v2531
    %v2594 = vadd.f32 %v2410, %v2534
    %v2595 = vadd.f32 %v2411, %v2537
    %v2596 = vadd.f32 %v2412, %v2540
    %v2597 = vadd.f32 %v2413, %v2543
    %v2598 = vadd.f32 %v2414, %v2546
    %v2599 = vadd.f32 %v2415, %v2549
    %v2600 = vadd.f32 %v2416, %v2552
    %v2601 = vadd.f32 %v2417, %v2555
    %v2602 = vadd.f32 %v2418, %v2558
    %v2603 = vadd.f32 %v2419, %v2561
    %v2604 = vadd.f32 %v2420, %v2564
    %v2605 = vadd.f32 %v2421, %v2567
    %v2606 = vadd.f32 %v2422, %v2570
    %v2607 = vadd.f32 %v2423, %v2573
    %v2608 = vadd.f32 %v2424, %v2576
    %v2609 = vadd.f32 %v2425, %v2579
    %v2610 = vadd.f32 %v2426, %v2582
    %v2611 = vadd.f32 %v2427, %v2585
    %v2612 = vrot.slane %v1789, 4
    %v2613 = vrot.slane %v1790, 4
    %v2614 = vrot.slane %v1791, 4
    %v2615 = vrot.slane %v1792, 4
    %v2616 = vrot.slane %v1793, 4
    %v2617 = vrot.slane %v1794, 4
    %v2618 = vrot.slane %v1795, 4
    %v2619 = vrot.slane %v1796, 4
    %v2620 = vrot.slane %v1797, 4
    %v2621 = vrot.slane %v1798, 4
    %v2622 = vrot.slane %v1799, 4
    %v2623 = vrot.slane %v1800, 4
    %v2624 = vrot.slane %v1801, 4
    %v2625 = vrot.slane %v1802, 4
    %v2626 = vrot.slane %v1803, 4
    %v2627 = vrot.slane %v1804, 4
    %v2628 = vrot.slane %v1805, 4
    %v2629 = vrot.slane %v1806, 4
    %v2630 = vrot.slane %v1807, 4
    %v2631 = vrot.slane %v1808, 4
    %v2632 = vrot.slane %v1809, 4
    %v2633 = vrot.slane %v1810, 4
    %v2634 = vrot.slane %v1811, 4
    %v2635 = vrot.slane %v1812, 4
    %v2636 = vrot.slane %v1813, 4
    %v2637 = vsel %vm1125, %v2635, %v2636
    %v2638 = vsel %vm1125, %v2634, %v2635
    %v2639 = vsel %vm1125, %v2633, %v2634
    %v2640 = vsel %vm1125, %v2632, %v2633
    %v2641 = vsel %vm1125, %v2631, %v2632
    %v2642 = vsel %vm1125, %v2630, %v2631
    %v2643 = vsel %vm1125, %v2629, %v2630
    %v2644 = vsel %vm1125, %v2628, %v2629
    %v2645 = vsel %vm1125, %v2627, %v2628
    %v2646 = vsel %vm1125, %v2626, %v2627
    %v2647 = vsel %vm1125, %v2625, %v2626
    %v2648 = vsel %vm1125, %v2624, %v2625
    %v2649 = vsel %vm1125, %v2623, %v2624
    %v2650 = vsel %vm1125, %v2622, %v2623
    %v2651 = vsel %vm1125, %v2621, %v2622
    %v2652 = vsel %vm1125, %v2620, %v2621
    %v2653 = vsel %vm1125, %v2619, %v2620
    %v2654 = vsel %vm1125, %v2618, %v2619
    %v2655 = vsel %vm1125, %v2617, %v2618
    %v2656 = vsel %vm1125, %v2616, %v2617
    %v2657 = vsel %vm1125, %v2615, %v2616
    %v2658 = vsel %vm1125, %v2614, %v2615
    %v2659 = vsel %vm1125, %v2613, %v2614
    %v2660 = vsel %vm1125, %v2612, %v2613
    %v2661 = vsel %vm1125, %v2636, %v2612
    %s2662 = scalar_lea.vmem %s6, 640
    %v2663 = vld [vmem:[%s2662] sm:$0xff]
    %v2664 = vld [vmem:[%s2662 + $0x8] sm:$0xff]
    %v2665 = vld [vmem:[%s2662 + $0x10] sm:$0xff]
    %v2666 = vld [vmem:[%s2662 + $0x18] sm:$0xff]
    %v2667 = vld [vmem:[%s2662 + $0x20] sm:$0xff]
    %v2668 = vld [vmem:[%s2662 + $0x28] sm:$0xff]
    %v2669 = vld [vmem:[%s2662 + $0x30] sm:$0xff]
    %v2670 = vld [vmem:[%s2662 + $0x38] sm:$0xff]
    %v2671 = vld [vmem:[%s2662 + $0x40] sm:$0xff]
    %v2672 = vld [vmem:[%s2662 + $0x48] sm:$0xff]
    %v2673 = vld [vmem:[%s2662 + $0x50] sm:$0xff]
    %v2674 = vld [vmem:[%s2662 + $0x58] sm:$0xff]
    %v2675 = vld [vmem:[%s2662 + $0x60] sm:$0xff]
    %v2676 = vld [vmem:[%s2662 + $0x68] sm:$0xff]
    %v2677 = vld [vmem:[%s2662 + $0x70] sm:$0xff]
    %v2678 = vld [vmem:[%s2662 + $0x78] sm:$0xff]
    %2679 = vmatpush.msra.mxu0 %v2678
    %2680 = vmatpush.msra.mxu0 %v2677
    %2681 = vmatpush.msra.mxu0 %v2676
    %2682 = vmatpush.msra.mxu0 %v2675
    %2683 = vmatpush.msra.mxu0 %v2674
    %2684 = vmatpush.msra.mxu0 %v2673
    %2685 = vmatpush.msra.mxu0 %v2672
    %2686 = vmatpush.msra.mxu0 %v2671
    %2687 = vmatpush.msra.mxu0 %v2670
    %2688 = vmatpush.msra.mxu0 %v2669
    %2689 = vmatpush.msra.mxu0 %v2668
    %2690 = vmatpush.msra.mxu0 %v2667
    %2691 = vmatpush.msra.mxu0 %v2666
    %2692 = vmatpush.msra.mxu0 %v2665
    %2693 = vmatpush.msra.mxu0 %v2664
    %2694 = vmatpush.msra.mxu0 %v2663
    %2695 = vmatmul.f32.gmra.mxu0 %v2659
    %v2696 = vpop.f32.mrf.mxu0
    %v2697 = vadd.f32 0.0, %v2696
    %2698 = vmatmul.f32.gmra.mxu0 %v2658
    %v2699 = vpop.f32.mrf.mxu0
    %v2700 = vadd.f32 0.0, %v2699
    %2701 = vmatmul.f32.gmra.mxu0 %v2657
    %v2702 = vpop.f32.mrf.mxu0
    %v2703 = vadd.f32 0.0, %v2702
    %2704 = vmatmul.f32.gmra.mxu0 %v2656
    %v2705 = vpop.f32.mrf.mxu0
    %v2706 = vadd.f32 0.0, %v2705
    %2707 = vmatmul.f32.gmra.mxu0 %v2655
    %v2708 = vpop.f32.mrf.mxu0
    %v2709 = vadd.f32 0.0, %v2708
    %2710 = vmatmul.f32.gmra.mxu0 %v2654
    %v2711 = vpop.f32.mrf.mxu0
    %v2712 = vadd.f32 0.0, %v2711
    %2713 = vmatmul.f32.gmra.mxu0 %v2653
    %v2714 = vpop.f32.mrf.mxu0
    %v2715 = vadd.f32 0.0, %v2714
    %2716 = vmatmul.f32.gmra.mxu0 %v2652
    %v2717 = vpop.f32.mrf.mxu0
    %v2718 = vadd.f32 0.0, %v2717
    %2719 = vmatmul.f32.gmra.mxu0 %v2651
    %v2720 = vpop.f32.mrf.mxu0
    %v2721 = vadd.f32 0.0, %v2720
    %2722 = vmatmul.f32.gmra.mxu0 %v2650
    %v2723 = vpop.f32.mrf.mxu0
    %v2724 = vadd.f32 0.0, %v2723
    %2725 = vmatmul.f32.gmra.mxu0 %v2649
    %v2726 = vpop.f32.mrf.mxu0
    %v2727 = vadd.f32 0.0, %v2726
    %2728 = vmatmul.f32.gmra.mxu0 %v2648
    %v2729 = vpop.f32.mrf.mxu0
    %v2730 = vadd.f32 0.0, %v2729
    %2731 = vmatmul.f32.gmra.mxu0 %v2647
    %v2732 = vpop.f32.mrf.mxu0
    %v2733 = vadd.f32 0.0, %v2732
    %2734 = vmatmul.f32.gmra.mxu0 %v2646
    %v2735 = vpop.f32.mrf.mxu0
    %v2736 = vadd.f32 0.0, %v2735
    %2737 = vmatmul.f32.gmra.mxu0 %v2645
    %v2738 = vpop.f32.mrf.mxu0
    %v2739 = vadd.f32 0.0, %v2738
    %2740 = vmatmul.f32.gmra.mxu0 %v2644
    %v2741 = vpop.f32.mrf.mxu0
    %v2742 = vadd.f32 0.0, %v2741
    %2743 = vmatmul.f32.gmra.mxu0 %v2643
    %v2744 = vpop.f32.mrf.mxu0
    %v2745 = vadd.f32 0.0, %v2744
    %2746 = vmatmul.f32.gmra.mxu0 %v2642
    %v2747 = vpop.f32.mrf.mxu0
    %v2748 = vadd.f32 0.0, %v2747
    %2749 = vmatmul.f32.gmra.mxu0 %v2641
    %v2750 = vpop.f32.mrf.mxu0
    %v2751 = vadd.f32 0.0, %v2750
    %2752 = vmatmul.f32.gmra.mxu0 %v2640
    %v2753 = vpop.f32.mrf.mxu0
    %v2754 = vadd.f32 0.0, %v2753
    %2755 = vmatmul.f32.gmra.mxu0 %v2639
    %v2756 = vpop.f32.mrf.mxu0
    %v2757 = vadd.f32 0.0, %v2756
    %2758 = vmatmul.f32.gmra.mxu0 %v2638
    %v2759 = vpop.f32.mrf.mxu0
    %v2760 = vadd.f32 0.0, %v2759
    %2761 = vmatmul.f32.gmra.mxu0 %v2637
    %v2762 = vpop.f32.mrf.mxu0
    %v2763 = vadd.f32 0.0, %v2762
    %2764 = vmatmul.f32.gmra.mxu0 %v2661
    %v2765 = vpop.f32.mrf.mxu0
    %v2766 = vadd.f32 0.0, %v2765
    %2767 = vmatmul.f32.gmra.mxu0 %v2660
    %v2768 = vpop.f32.mrf.mxu0
    %v2769 = vadd.f32 0.0, %v2768
    %2770 = vdwg.mxu0
    %v2771 = vadd.f32 %v2587, %v2697
    %v2772 = vadd.f32 %v2588, %v2700
    %v2773 = vadd.f32 %v2589, %v2703
    %v2774 = vadd.f32 %v2590, %v2706
    %v2775 = vadd.f32 %v2591, %v2709
    %v2776 = vadd.f32 %v2592, %v2712
    %v2777 = vadd.f32 %v2593, %v2715
    %v2778 = vadd.f32 %v2594, %v2718
    %v2779 = vadd.f32 %v2595, %v2721
    %v2780 = vadd.f32 %v2596, %v2724
    %v2781 = vadd.f32 %v2597, %v2727
    %v2782 = vadd.f32 %v2598, %v2730
    %v2783 = vadd.f32 %v2599, %v2733
    %v2784 = vadd.f32 %v2600, %v2736
    %v2785 = vadd.f32 %v2601, %v2739
    %v2786 = vadd.f32 %v2602, %v2742
    %v2787 = vadd.f32 %v2603, %v2745
    %v2788 = vadd.f32 %v2604, %v2748
    %v2789 = vadd.f32 %v2605, %v2751
    %v2790 = vadd.f32 %v2606, %v2754
    %v2791 = vadd.f32 %v2607, %v2757
    %v2792 = vadd.f32 %v2608, %v2760
    %v2793 = vadd.f32 %v2609, %v2763
    %v2794 = vadd.f32 %v2610, %v2766
    %v2795 = vadd.f32 %v2611, %v2769
    %s2796 = scalar_lea.vmem %s6, 768
    %v2797 = vld [vmem:[%s2796] sm:$0xff]
    %v2798 = vld [vmem:[%s2796 + $0x8] sm:$0xff]
    %v2799 = vld [vmem:[%s2796 + $0x10] sm:$0xff]
    %v2800 = vld [vmem:[%s2796 + $0x18] sm:$0xff]
    %v2801 = vld [vmem:[%s2796 + $0x20] sm:$0xff]
    %v2802 = vld [vmem:[%s2796 + $0x28] sm:$0xff]
    %v2803 = vld [vmem:[%s2796 + $0x30] sm:$0xff]
    %v2804 = vld [vmem:[%s2796 + $0x38] sm:$0xff]
    %v2805 = vld [vmem:[%s2796 + $0x40] sm:$0xff]
    %v2806 = vld [vmem:[%s2796 + $0x48] sm:$0xff]
    %v2807 = vld [vmem:[%s2796 + $0x50] sm:$0xff]
    %v2808 = vld [vmem:[%s2796 + $0x58] sm:$0xff]
    %v2809 = vld [vmem:[%s2796 + $0x60] sm:$0xff]
    %v2810 = vld [vmem:[%s2796 + $0x68] sm:$0xff]
    %v2811 = vld [vmem:[%s2796 + $0x70] sm:$0xff]
    %v2812 = vld [vmem:[%s2796 + $0x78] sm:$0xff]
    %2813 = vmatpush.msra.mxu0 %v2812
    %2814 = vmatpush.msra.mxu0 %v2811
    %2815 = vmatpush.msra.mxu0 %v2810
    %2816 = vmatpush.msra.mxu0 %v2809
    %2817 = vmatpush.msra.mxu0 %v2808
    %2818 = vmatpush.msra.mxu0 %v2807
    %2819 = vmatpush.msra.mxu0 %v2806
    %2820 = vmatpush.msra.mxu0 %v2805
    %2821 = vmatpush.msra.mxu0 %v2804
    %2822 = vmatpush.msra.mxu0 %v2803
    %2823 = vmatpush.msra.mxu0 %v2802
    %2824 = vmatpush.msra.mxu0 %v2801
    %2825 = vmatpush.msra.mxu0 %v2800
    %2826 = vmatpush.msra.mxu0 %v2799
    %2827 = vmatpush.msra.mxu0 %v2798
    %2828 = vmatpush.msra.mxu0 %v2797
    %2829 = vmatmul.f32.gmra.mxu0 %v2658
    %v2830 = vpop.f32.mrf.mxu0
    %v2831 = vadd.f32 0.0, %v2830
    %2832 = vmatmul.f32.gmra.mxu0 %v2657
    %v2833 = vpop.f32.mrf.mxu0
    %v2834 = vadd.f32 0.0, %v2833
    %2835 = vmatmul.f32.gmra.mxu0 %v2656
    %v2836 = vpop.f32.mrf.mxu0
    %v2837 = vadd.f32 0.0, %v2836
    %2838 = vmatmul.f32.gmra.mxu0 %v2655
    %v2839 = vpop.f32.mrf.mxu0
    %v2840 = vadd.f32 0.0, %v2839
    %2841 = vmatmul.f32.gmra.mxu0 %v2654
    %v2842 = vpop.f32.mrf.mxu0
    %v2843 = vadd.f32 0.0, %v2842
    %2844 = vmatmul.f32.gmra.mxu0 %v2653
    %v2845 = vpop.f32.mrf.mxu0
    %v2846 = vadd.f32 0.0, %v2845
    %2847 = vmatmul.f32.gmra.mxu0 %v2652
    %v2848 = vpop.f32.mrf.mxu0
    %v2849 = vadd.f32 0.0, %v2848
    %2850 = vmatmul.f32.gmra.mxu0 %v2651
    %v2851 = vpop.f32.mrf.mxu0
    %v2852 = vadd.f32 0.0, %v2851
    %2853 = vmatmul.f32.gmra.mxu0 %v2650
    %v2854 = vpop.f32.mrf.mxu0
    %v2855 = vadd.f32 0.0, %v2854
    %2856 = vmatmul.f32.gmra.mxu0 %v2649
    %v2857 = vpop.f32.mrf.mxu0
    %v2858 = vadd.f32 0.0, %v2857
    %2859 = vmatmul.f32.gmra.mxu0 %v2648
    %v2860 = vpop.f32.mrf.mxu0
    %v2861 = vadd.f32 0.0, %v2860
    %2862 = vmatmul.f32.gmra.mxu0 %v2647
    %v2863 = vpop.f32.mrf.mxu0
    %v2864 = vadd.f32 0.0, %v2863
    %2865 = vmatmul.f32.gmra.mxu0 %v2646
    %v2866 = vpop.f32.mrf.mxu0
    %v2867 = vadd.f32 0.0, %v2866
    %2868 = vmatmul.f32.gmra.mxu0 %v2645
    %v2869 = vpop.f32.mrf.mxu0
    %v2870 = vadd.f32 0.0, %v2869
    %2871 = vmatmul.f32.gmra.mxu0 %v2644
    %v2872 = vpop.f32.mrf.mxu0
    %v2873 = vadd.f32 0.0, %v2872
    %2874 = vmatmul.f32.gmra.mxu0 %v2643
    %v2875 = vpop.f32.mrf.mxu0
    %v2876 = vadd.f32 0.0, %v2875
    %2877 = vmatmul.f32.gmra.mxu0 %v2642
    %v2878 = vpop.f32.mrf.mxu0
    %v2879 = vadd.f32 0.0, %v2878
    %2880 = vmatmul.f32.gmra.mxu0 %v2641
    %v2881 = vpop.f32.mrf.mxu0
    %v2882 = vadd.f32 0.0, %v2881
    %2883 = vmatmul.f32.gmra.mxu0 %v2640
    %v2884 = vpop.f32.mrf.mxu0
    %v2885 = vadd.f32 0.0, %v2884
    %2886 = vmatmul.f32.gmra.mxu0 %v2639
    %v2887 = vpop.f32.mrf.mxu0
    %v2888 = vadd.f32 0.0, %v2887
    %2889 = vmatmul.f32.gmra.mxu0 %v2638
    %v2890 = vpop.f32.mrf.mxu0
    %v2891 = vadd.f32 0.0, %v2890
    %2892 = vmatmul.f32.gmra.mxu0 %v2637
    %v2893 = vpop.f32.mrf.mxu0
    %v2894 = vadd.f32 0.0, %v2893
    %2895 = vmatmul.f32.gmra.mxu0 %v2661
    %v2896 = vpop.f32.mrf.mxu0
    %v2897 = vadd.f32 0.0, %v2896
    %2898 = vmatmul.f32.gmra.mxu0 %v2660
    %v2899 = vpop.f32.mrf.mxu0
    %v2900 = vadd.f32 0.0, %v2899
    %2901 = vmatmul.f32.gmra.mxu0 %v2659
    %v2902 = vpop.f32.mrf.mxu0
    %v2903 = vadd.f32 0.0, %v2902
    %2904 = vdwg.mxu0
    %v2905 = vadd.f32 %v2771, %v2831
    %v2906 = vadd.f32 %v2772, %v2834
    %v2907 = vadd.f32 %v2773, %v2837
    %v2908 = vadd.f32 %v2774, %v2840
    %v2909 = vadd.f32 %v2775, %v2843
    %v2910 = vadd.f32 %v2776, %v2846
    %v2911 = vadd.f32 %v2777, %v2849
    %v2912 = vadd.f32 %v2778, %v2852
    %v2913 = vadd.f32 %v2779, %v2855
    %v2914 = vadd.f32 %v2780, %v2858
    %v2915 = vadd.f32 %v2781, %v2861
    %v2916 = vadd.f32 %v2782, %v2864
    %v2917 = vadd.f32 %v2783, %v2867
    %v2918 = vadd.f32 %v2784, %v2870
    %v2919 = vadd.f32 %v2785, %v2873
    %v2920 = vadd.f32 %v2786, %v2876
    %v2921 = vadd.f32 %v2787, %v2879
    %v2922 = vadd.f32 %v2788, %v2882
    %v2923 = vadd.f32 %v2789, %v2885
    %v2924 = vadd.f32 %v2790, %v2888
    %v2925 = vadd.f32 %v2791, %v2891
    %v2926 = vadd.f32 %v2792, %v2894
    %v2927 = vadd.f32 %v2793, %v2897
    %v2928 = vadd.f32 %v2794, %v2900
    %v2929 = vadd.f32 %v2795, %v2903
    %v2930 = vrot.slane %v1789, 5
    %v2931 = vrot.slane %v1790, 5
    %v2932 = vrot.slane %v1791, 5
    %v2933 = vrot.slane %v1792, 5
    %v2934 = vrot.slane %v1793, 5
    %v2935 = vrot.slane %v1794, 5
    %v2936 = vrot.slane %v1795, 5
    %v2937 = vrot.slane %v1796, 5
    %v2938 = vrot.slane %v1797, 5
    %v2939 = vrot.slane %v1798, 5
    %v2940 = vrot.slane %v1799, 5
    %v2941 = vrot.slane %v1800, 5
    %v2942 = vrot.slane %v1801, 5
    %v2943 = vrot.slane %v1802, 5
    %v2944 = vrot.slane %v1803, 5
    %v2945 = vrot.slane %v1804, 5
    %v2946 = vrot.slane %v1805, 5
    %v2947 = vrot.slane %v1806, 5
    %v2948 = vrot.slane %v1807, 5
    %v2949 = vrot.slane %v1808, 5
    %v2950 = vrot.slane %v1809, 5
    %v2951 = vrot.slane %v1810, 5
    %v2952 = vrot.slane %v1811, 5
    %v2953 = vrot.slane %v1812, 5
    %v2954 = vrot.slane %v1813, 5
    %v2955 = vsel %vm1444, %v2953, %v2954
    %v2956 = vsel %vm1444, %v2952, %v2953
    %v2957 = vsel %vm1444, %v2951, %v2952
    %v2958 = vsel %vm1444, %v2950, %v2951
    %v2959 = vsel %vm1444, %v2949, %v2950
    %v2960 = vsel %vm1444, %v2948, %v2949
    %v2961 = vsel %vm1444, %v2947, %v2948
    %v2962 = vsel %vm1444, %v2946, %v2947
    %v2963 = vsel %vm1444, %v2945, %v2946
    %v2964 = vsel %vm1444, %v2944, %v2945
    %v2965 = vsel %vm1444, %v2943, %v2944
    %v2966 = vsel %vm1444, %v2942, %v2943
    %v2967 = vsel %vm1444, %v2941, %v2942
    %v2968 = vsel %vm1444, %v2940, %v2941
    %v2969 = vsel %vm1444, %v2939, %v2940
    %v2970 = vsel %vm1444, %v2938, %v2939
    %v2971 = vsel %vm1444, %v2937, %v2938
    %v2972 = vsel %vm1444, %v2936, %v2937
    %v2973 = vsel %vm1444, %v2935, %v2936
    %v2974 = vsel %vm1444, %v2934, %v2935
    %v2975 = vsel %vm1444, %v2933, %v2934
    %v2976 = vsel %vm1444, %v2932, %v2933
    %v2977 = vsel %vm1444, %v2931, %v2932
    %v2978 = vsel %vm1444, %v2930, %v2931
    %v2979 = vsel %vm1444, %v2954, %v2930
    %s2980 = scalar_lea.vmem %s6, 896
    %v2981 = vld [vmem:[%s2980] sm:$0xff]
    %v2982 = vld [vmem:[%s2980 + $0x8] sm:$0xff]
    %v2983 = vld [vmem:[%s2980 + $0x10] sm:$0xff]
    %v2984 = vld [vmem:[%s2980 + $0x18] sm:$0xff]
    %v2985 = vld [vmem:[%s2980 + $0x20] sm:$0xff]
    %v2986 = vld [vmem:[%s2980 + $0x28] sm:$0xff]
    %v2987 = vld [vmem:[%s2980 + $0x30] sm:$0xff]
    %v2988 = vld [vmem:[%s2980 + $0x38] sm:$0xff]
    %v2989 = vld [vmem:[%s2980 + $0x40] sm:$0xff]
    %v2990 = vld [vmem:[%s2980 + $0x48] sm:$0xff]
    %v2991 = vld [vmem:[%s2980 + $0x50] sm:$0xff]
    %v2992 = vld [vmem:[%s2980 + $0x58] sm:$0xff]
    %v2993 = vld [vmem:[%s2980 + $0x60] sm:$0xff]
    %v2994 = vld [vmem:[%s2980 + $0x68] sm:$0xff]
    %v2995 = vld [vmem:[%s2980 + $0x70] sm:$0xff]
    %v2996 = vld [vmem:[%s2980 + $0x78] sm:$0xff]
    %2997 = vmatpush.msra.mxu0 %v2996
    %2998 = vmatpush.msra.mxu0 %v2995
    %2999 = vmatpush.msra.mxu0 %v2994
    %3000 = vmatpush.msra.mxu0 %v2993
    %3001 = vmatpush.msra.mxu0 %v2992
    %3002 = vmatpush.msra.mxu0 %v2991
    %3003 = vmatpush.msra.mxu0 %v2990
    %3004 = vmatpush.msra.mxu0 %v2989
    %3005 = vmatpush.msra.mxu0 %v2988
    %3006 = vmatpush.msra.mxu0 %v2987
    %3007 = vmatpush.msra.mxu0 %v2986
    %3008 = vmatpush.msra.mxu0 %v2985
    %3009 = vmatpush.msra.mxu0 %v2984
    %3010 = vmatpush.msra.mxu0 %v2983
    %3011 = vmatpush.msra.mxu0 %v2982
    %3012 = vmatpush.msra.mxu0 %v2981
    %3013 = vmatmul.f32.gmra.mxu0 %v2976
    %v3014 = vpop.f32.mrf.mxu0
    %v3015 = vadd.f32 0.0, %v3014
    %3016 = vmatmul.f32.gmra.mxu0 %v2975
    %v3017 = vpop.f32.mrf.mxu0
    %v3018 = vadd.f32 0.0, %v3017
    %3019 = vmatmul.f32.gmra.mxu0 %v2974
    %v3020 = vpop.f32.mrf.mxu0
    %v3021 = vadd.f32 0.0, %v3020
    %3022 = vmatmul.f32.gmra.mxu0 %v2973
    %v3023 = vpop.f32.mrf.mxu0
    %v3024 = vadd.f32 0.0, %v3023
    %3025 = vmatmul.f32.gmra.mxu0 %v2972
    %v3026 = vpop.f32.mrf.mxu0
    %v3027 = vadd.f32 0.0, %v3026
    %3028 = vmatmul.f32.gmra.mxu0 %v2971
    %v3029 = vpop.f32.mrf.mxu0
    %v3030 = vadd.f32 0.0, %v3029
    %3031 = vmatmul.f32.gmra.mxu0 %v2970
    %v3032 = vpop.f32.mrf.mxu0
    %v3033 = vadd.f32 0.0, %v3032
    %3034 = vmatmul.f32.gmra.mxu0 %v2969
    %v3035 = vpop.f32.mrf.mxu0
    %v3036 = vadd.f32 0.0, %v3035
    %3037 = vmatmul.f32.gmra.mxu0 %v2968
    %v3038 = vpop.f32.mrf.mxu0
    %v3039 = vadd.f32 0.0, %v3038
    %3040 = vmatmul.f32.gmra.mxu0 %v2967
    %v3041 = vpop.f32.mrf.mxu0
    %v3042 = vadd.f32 0.0, %v3041
    %3043 = vmatmul.f32.gmra.mxu0 %v2966
    %v3044 = vpop.f32.mrf.mxu0
    %v3045 = vadd.f32 0.0, %v3044
    %3046 = vmatmul.f32.gmra.mxu0 %v2965
    %v3047 = vpop.f32.mrf.mxu0
    %v3048 = vadd.f32 0.0, %v3047
    %3049 = vmatmul.f32.gmra.mxu0 %v2964
    %v3050 = vpop.f32.mrf.mxu0
    %v3051 = vadd.f32 0.0, %v3050
    %3052 = vmatmul.f32.gmra.mxu0 %v2963
    %v3053 = vpop.f32.mrf.mxu0
    %v3054 = vadd.f32 0.0, %v3053
    %3055 = vmatmul.f32.gmra.mxu0 %v2962
    %v3056 = vpop.f32.mrf.mxu0
    %v3057 = vadd.f32 0.0, %v3056
    %3058 = vmatmul.f32.gmra.mxu0 %v2961
    %v3059 = vpop.f32.mrf.mxu0
    %v3060 = vadd.f32 0.0, %v3059
    %3061 = vmatmul.f32.gmra.mxu0 %v2960
    %v3062 = vpop.f32.mrf.mxu0
    %v3063 = vadd.f32 0.0, %v3062
    %3064 = vmatmul.f32.gmra.mxu0 %v2959
    %v3065 = vpop.f32.mrf.mxu0
    %v3066 = vadd.f32 0.0, %v3065
    %3067 = vmatmul.f32.gmra.mxu0 %v2958
    %v3068 = vpop.f32.mrf.mxu0
    %v3069 = vadd.f32 0.0, %v3068
    %3070 = vmatmul.f32.gmra.mxu0 %v2957
    %v3071 = vpop.f32.mrf.mxu0
    %v3072 = vadd.f32 0.0, %v3071
    %3073 = vmatmul.f32.gmra.mxu0 %v2956
    %v3074 = vpop.f32.mrf.mxu0
    %v3075 = vadd.f32 0.0, %v3074
    %3076 = vmatmul.f32.gmra.mxu0 %v2955
    %v3077 = vpop.f32.mrf.mxu0
    %v3078 = vadd.f32 0.0, %v3077
    %3079 = vmatmul.f32.gmra.mxu0 %v2979
    %v3080 = vpop.f32.mrf.mxu0
    %v3081 = vadd.f32 0.0, %v3080
    %3082 = vmatmul.f32.gmra.mxu0 %v2978
    %v3083 = vpop.f32.mrf.mxu0
    %v3084 = vadd.f32 0.0, %v3083
    %3085 = vmatmul.f32.gmra.mxu0 %v2977
    %v3086 = vpop.f32.mrf.mxu0
    %v3087 = vadd.f32 0.0, %v3086
    %3088 = vdwg.mxu0
    %v3089 = vadd.f32 %v2905, %v3015
    %v3090 = vadd.f32 %v2906, %v3018
    %v3091 = vadd.f32 %v2907, %v3021
    %v3092 = vadd.f32 %v2908, %v3024
    %v3093 = vadd.f32 %v2909, %v3027
    %v3094 = vadd.f32 %v2910, %v3030
    %v3095 = vadd.f32 %v2911, %v3033
    %v3096 = vadd.f32 %v2912, %v3036
    %v3097 = vadd.f32 %v2913, %v3039
    %v3098 = vadd.f32 %v2914, %v3042
    %v3099 = vadd.f32 %v2915, %v3045
    %v3100 = vadd.f32 %v2916, %v3048
    %v3101 = vadd.f32 %v2917, %v3051
    %v3102 = vadd.f32 %v2918, %v3054
    %v3103 = vadd.f32 %v2919, %v3057
    %v3104 = vadd.f32 %v2920, %v3060
    %v3105 = vadd.f32 %v2921, %v3063
    %v3106 = vadd.f32 %v2922, %v3066
    %v3107 = vadd.f32 %v2923, %v3069
    %v3108 = vadd.f32 %v2924, %v3072
    %v3109 = vadd.f32 %v2925, %v3075
    %v3110 = vadd.f32 %v2926, %v3078
    %v3111 = vadd.f32 %v2927, %v3081
    %v3112 = vadd.f32 %v2928, %v3084
    %v3113 = vadd.f32 %v2929, %v3087
    %v3114 = vrot.slane %v1789, 6
    %v3115 = vrot.slane %v1790, 6
    %v3116 = vrot.slane %v1791, 6
    %v3117 = vrot.slane %v1792, 6
    %v3118 = vrot.slane %v1793, 6
    %v3119 = vrot.slane %v1794, 6
    %v3120 = vrot.slane %v1795, 6
    %v3121 = vrot.slane %v1796, 6
    %v3122 = vrot.slane %v1797, 6
    %v3123 = vrot.slane %v1798, 6
    %v3124 = vrot.slane %v1799, 6
    %v3125 = vrot.slane %v1800, 6
    %v3126 = vrot.slane %v1801, 6
    %v3127 = vrot.slane %v1802, 6
    %v3128 = vrot.slane %v1803, 6
    %v3129 = vrot.slane %v1804, 6
    %v3130 = vrot.slane %v1805, 6
    %v3131 = vrot.slane %v1806, 6
    %v3132 = vrot.slane %v1807, 6
    %v3133 = vrot.slane %v1808, 6
    %v3134 = vrot.slane %v1809, 6
    %v3135 = vrot.slane %v1810, 6
    %v3136 = vrot.slane %v1811, 6
    %v3137 = vrot.slane %v1812, 6
    %v3138 = vrot.slane %v1813, 6
    %v3139 = vsel %vm1629, %v3137, %v3138
    %v3140 = vsel %vm1629, %v3136, %v3137
    %v3141 = vsel %vm1629, %v3135, %v3136
    %v3142 = vsel %vm1629, %v3134, %v3135
    %v3143 = vsel %vm1629, %v3133, %v3134
    %v3144 = vsel %vm1629, %v3132, %v3133
    %v3145 = vsel %vm1629, %v3131, %v3132
    %v3146 = vsel %vm1629, %v3130, %v3131
    %v3147 = vsel %vm1629, %v3129, %v3130
    %v3148 = vsel %vm1629, %v3128, %v3129
    %v3149 = vsel %vm1629, %v3127, %v3128
    %v3150 = vsel %vm1629, %v3126, %v3127
    %v3151 = vsel %vm1629, %v3125, %v3126
    %v3152 = vsel %vm1629, %v3124, %v3125
    %v3153 = vsel %vm1629, %v3123, %v3124
    %v3154 = vsel %vm1629, %v3122, %v3123
    %v3155 = vsel %vm1629, %v3121, %v3122
    %v3156 = vsel %vm1629, %v3120, %v3121
    %v3157 = vsel %vm1629, %v3119, %v3120
    %v3158 = vsel %vm1629, %v3118, %v3119
    %v3159 = vsel %vm1629, %v3117, %v3118
    %v3160 = vsel %vm1629, %v3116, %v3117
    %v3161 = vsel %vm1629, %v3115, %v3116
    %v3162 = vsel %vm1629, %v3114, %v3115
    %v3163 = vsel %vm1629, %v3138, %v3114
    %s3164 = scalar_lea.vmem %s6, 1024
    %v3165 = vld [vmem:[%s3164] sm:$0xff]
    %v3166 = vld [vmem:[%s3164 + $0x8] sm:$0xff]
    %v3167 = vld [vmem:[%s3164 + $0x10] sm:$0xff]
    %v3168 = vld [vmem:[%s3164 + $0x18] sm:$0xff]
    %v3169 = vld [vmem:[%s3164 + $0x20] sm:$0xff]
    %v3170 = vld [vmem:[%s3164 + $0x28] sm:$0xff]
    %v3171 = vld [vmem:[%s3164 + $0x30] sm:$0xff]
    %v3172 = vld [vmem:[%s3164 + $0x38] sm:$0xff]
    %v3173 = vld [vmem:[%s3164 + $0x40] sm:$0xff]
    %v3174 = vld [vmem:[%s3164 + $0x48] sm:$0xff]
    %v3175 = vld [vmem:[%s3164 + $0x50] sm:$0xff]
    %v3176 = vld [vmem:[%s3164 + $0x58] sm:$0xff]
    %v3177 = vld [vmem:[%s3164 + $0x60] sm:$0xff]
    %v3178 = vld [vmem:[%s3164 + $0x68] sm:$0xff]
    %v3179 = vld [vmem:[%s3164 + $0x70] sm:$0xff]
    %v3180 = vld [vmem:[%s3164 + $0x78] sm:$0xff]
    %3181 = vmatpush.msra.mxu0 %v3180
    %3182 = vmatpush.msra.mxu0 %v3179
    %3183 = vmatpush.msra.mxu0 %v3178
    %3184 = vmatpush.msra.mxu0 %v3177
    %3185 = vmatpush.msra.mxu0 %v3176
    %3186 = vmatpush.msra.mxu0 %v3175
    %3187 = vmatpush.msra.mxu0 %v3174
    %3188 = vmatpush.msra.mxu0 %v3173
    %3189 = vmatpush.msra.mxu0 %v3172
    %3190 = vmatpush.msra.mxu0 %v3171
    %3191 = vmatpush.msra.mxu0 %v3170
    %3192 = vmatpush.msra.mxu0 %v3169
    %3193 = vmatpush.msra.mxu0 %v3168
    %3194 = vmatpush.msra.mxu0 %v3167
    %3195 = vmatpush.msra.mxu0 %v3166
    %3196 = vmatpush.msra.mxu0 %v3165
    %3197 = vmatmul.f32.gmra.mxu0 %v3160
    %v3198 = vpop.f32.mrf.mxu0
    %v3199 = vadd.f32 0.0, %v3198
    %3200 = vmatmul.f32.gmra.mxu0 %v3159
    %v3201 = vpop.f32.mrf.mxu0
    %v3202 = vadd.f32 0.0, %v3201
    %3203 = vmatmul.f32.gmra.mxu0 %v3158
    %v3204 = vpop.f32.mrf.mxu0
    %v3205 = vadd.f32 0.0, %v3204
    %3206 = vmatmul.f32.gmra.mxu0 %v3157
    %v3207 = vpop.f32.mrf.mxu0
    %v3208 = vadd.f32 0.0, %v3207
    %3209 = vmatmul.f32.gmra.mxu0 %v3156
    %v3210 = vpop.f32.mrf.mxu0
    %v3211 = vadd.f32 0.0, %v3210
    %3212 = vmatmul.f32.gmra.mxu0 %v3155
    %v3213 = vpop.f32.mrf.mxu0
    %v3214 = vadd.f32 0.0, %v3213
    %3215 = vmatmul.f32.gmra.mxu0 %v3154
    %v3216 = vpop.f32.mrf.mxu0
    %v3217 = vadd.f32 0.0, %v3216
    %3218 = vmatmul.f32.gmra.mxu0 %v3153
    %v3219 = vpop.f32.mrf.mxu0
    %v3220 = vadd.f32 0.0, %v3219
    %3221 = vmatmul.f32.gmra.mxu0 %v3152
    %v3222 = vpop.f32.mrf.mxu0
    %v3223 = vadd.f32 0.0, %v3222
    %3224 = vmatmul.f32.gmra.mxu0 %v3151
    %v3225 = vpop.f32.mrf.mxu0
    %v3226 = vadd.f32 0.0, %v3225
    %3227 = vmatmul.f32.gmra.mxu0 %v3150
    %v3228 = vpop.f32.mrf.mxu0
    %v3229 = vadd.f32 0.0, %v3228
    %3230 = vmatmul.f32.gmra.mxu0 %v3149
    %v3231 = vpop.f32.mrf.mxu0
    %v3232 = vadd.f32 0.0, %v3231
    %3233 = vmatmul.f32.gmra.mxu0 %v3148
    %v3234 = vpop.f32.mrf.mxu0
    %v3235 = vadd.f32 0.0, %v3234
    %3236 = vmatmul.f32.gmra.mxu0 %v3147
    %v3237 = vpop.f32.mrf.mxu0
    %v3238 = vadd.f32 0.0, %v3237
    %3239 = vmatmul.f32.gmra.mxu0 %v3146
    %v3240 = vpop.f32.mrf.mxu0
    %v3241 = vadd.f32 0.0, %v3240
    %3242 = vmatmul.f32.gmra.mxu0 %v3145
    %v3243 = vpop.f32.mrf.mxu0
    %v3244 = vadd.f32 0.0, %v3243
    %3245 = vmatmul.f32.gmra.mxu0 %v3144
    %v3246 = vpop.f32.mrf.mxu0
    %v3247 = vadd.f32 0.0, %v3246
    %3248 = vmatmul.f32.gmra.mxu0 %v3143
    %v3249 = vpop.f32.mrf.mxu0
    %v3250 = vadd.f32 0.0, %v3249
    %3251 = vmatmul.f32.gmra.mxu0 %v3142
    %v3252 = vpop.f32.mrf.mxu0
    %v3253 = vadd.f32 0.0, %v3252
    %3254 = vmatmul.f32.gmra.mxu0 %v3141
    %v3255 = vpop.f32.mrf.mxu0
    %v3256 = vadd.f32 0.0, %v3255
    %3257 = vmatmul.f32.gmra.mxu0 %v3140
    %v3258 = vpop.f32.mrf.mxu0
    %v3259 = vadd.f32 0.0, %v3258
    %3260 = vmatmul.f32.gmra.mxu0 %v3139
    %v3261 = vpop.f32.mrf.mxu0
    %v3262 = vadd.f32 0.0, %v3261
    %3263 = vmatmul.f32.gmra.mxu0 %v3163
    %v3264 = vpop.f32.mrf.mxu0
    %v3265 = vadd.f32 0.0, %v3264
    %3266 = vmatmul.f32.gmra.mxu0 %v3162
    %v3267 = vpop.f32.mrf.mxu0
    %v3268 = vadd.f32 0.0, %v3267
    %3269 = vmatmul.f32.gmra.mxu0 %v3161
    %v3270 = vpop.f32.mrf.mxu0
    %v3271 = vadd.f32 0.0, %v3270
    %3272 = vdwg.mxu0
    %v3273 = vadd.f32 %v3089, %v3199
    %v3274 = vadd.f32 %v3090, %v3202
    %v3275 = vadd.f32 %v3091, %v3205
    %v3276 = vadd.f32 %v3092, %v3208
    %v3277 = vadd.f32 %v3093, %v3211
    %v3278 = vadd.f32 %v3094, %v3214
    %v3279 = vadd.f32 %v3095, %v3217
    %v3280 = vadd.f32 %v3096, %v3220
    %v3281 = vadd.f32 %v3097, %v3223
    %v3282 = vadd.f32 %v3098, %v3226
    %v3283 = vadd.f32 %v3099, %v3229
    %v3284 = vadd.f32 %v3100, %v3232
    %v3285 = vadd.f32 %v3101, %v3235
    %v3286 = vadd.f32 %v3102, %v3238
    %v3287 = vadd.f32 %v3103, %v3241
    %v3288 = vadd.f32 %v3104, %v3244
    %v3289 = vadd.f32 %v3105, %v3247
    %v3290 = vadd.f32 %v3106, %v3250
    %v3291 = vadd.f32 %v3107, %v3253
    %v3292 = vadd.f32 %v3108, %v3256
    %v3293 = vadd.f32 %v3109, %v3259
    %v3294 = vadd.f32 %v3110, %v3262
    %v3295 = vadd.f32 %v3111, %v3265
    %v3296 = vadd.f32 %v3112, %v3268
    %v3297 = vadd.f32 %v3113, %v3271
    %v3298 = vmax.f32 %v3273, 0.0
    %v3299 = vmax.f32 %v3274, 0.0
    %v3300 = vmax.f32 %v3275, 0.0
    %v3301 = vmax.f32 %v3276, 0.0
    %v3302 = vmax.f32 %v3277, 0.0
    %v3303 = vmax.f32 %v3278, 0.0
    %v3304 = vmax.f32 %v3279, 0.0
    %v3305 = vmax.f32 %v3280, 0.0
    %v3306 = vmax.f32 %v3281, 0.0
    %v3307 = vmax.f32 %v3282, 0.0
    %v3308 = vmax.f32 %v3283, 0.0
    %v3309 = vmax.f32 %v3284, 0.0
    %v3310 = vmax.f32 %v3285, 0.0
    %v3311 = vmax.f32 %v3286, 0.0
    %v3312 = vmax.f32 %v3287, 0.0
    %v3313 = vmax.f32 %v3288, 0.0
    %v3314 = vmax.f32 %v3289, 0.0
    %v3315 = vmax.f32 %v3290, 0.0
    %v3316 = vmax.f32 %v3291, 0.0
    %v3317 = vmax.f32 %v3292, 0.0
    %v3318 = vmax.f32 %v3293, 0.0
    %v3319 = vmax.f32 %v3294, 0.0
    %v3320 = vmax.f32 %v3295, 0.0
    %v3321 = vmax.f32 %v3296, 0.0
    %v3322 = vmax.f32 %v3297, 0.0
    %v3323 = vld [vmem:[%s8] sm:$0xff]
    %v3324 = vld [vmem:[%s8 + $0x8] sm:$0xff]
    %v3325 = vld [vmem:[%s8 + $0x10] sm:$0xff]
    %v3326 = vld [vmem:[%s8 + $0x18] sm:$0xff]
    %v3327 = vld [vmem:[%s8 + $0x20] sm:$0xff]
    %v3328 = vld [vmem:[%s8 + $0x28] sm:$0xff]
    %v3329 = vld [vmem:[%s8 + $0x30] sm:$0xff]
    %v3330 = vld [vmem:[%s8 + $0x38] sm:$0xff]
    %v3331 = vld [vmem:[%s8 + $0x40] sm:$0xff]
    %v3332 = vld [vmem:[%s8 + $0x48] sm:$0xff]
    %v3333 = vld [vmem:[%s8 + $0x50] sm:$0xff]
    %v3334 = vld [vmem:[%s8 + $0x58] sm:$0xff]
    %v3335 = vld [vmem:[%s8 + $0x60] sm:$0xff]
    %v3336 = vld [vmem:[%s8 + $0x68] sm:$0xff]
    %v3337 = vld [vmem:[%s8 + $0x70] sm:$0xff]
    %v3338 = vld [vmem:[%s8 + $0x78] sm:$0xff]
    %v3339 = vld [vmem:[%s9] sm:$0x1]
    %v3341 = vperm.slane %v3339, 0
    %3343 = vmatpush.msra.mxu0 %v3338
    %3344 = vmatpush.msra.mxu0 %v3337
    %3345 = vmatpush.msra.mxu0 %v3336
    %3346 = vmatpush.msra.mxu0 %v3335
    %3347 = vmatpush.msra.mxu0 %v3334
    %3348 = vmatpush.msra.mxu0 %v3333
    %3349 = vmatpush.msra.mxu0 %v3332
    %3350 = vmatpush.msra.mxu0 %v3331
    %3351 = vmatpush.msra.mxu0 %v3330
    %3352 = vmatpush.msra.mxu0 %v3329
    %3353 = vmatpush.msra.mxu0 %v3328
    %3354 = vmatpush.msra.mxu0 %v3327
    %3355 = vmatpush.msra.mxu0 %v3326
    %3356 = vmatpush.msra.mxu0 %v3325
    %3357 = vmatpush.msra.mxu0 %v3324
    %3358 = vmatpush.msra.mxu0 %v3323
    %3359 = vmatmul.f32.gmra.mxu0 %v3298
    %v3360 = vpop.f32.mrf.mxu0
    %v3361 = vadd.f32 %v3341, %v3360
    %3362 = vmatmul.f32.gmra.mxu0 %v3299
    %v3363 = vpop.f32.mrf.mxu0
    %v3364 = vadd.f32 %v3341, %v3363
    %3365 = vmatmul.f32.gmra.mxu0 %v3300
    %v3366 = vpop.f32.mrf.mxu0
    %v3367 = vadd.f32 %v3341, %v3366
    %3368 = vmatmul.f32.gmra.mxu0 %v3301
    %v3369 = vpop.f32.mrf.mxu0
    %v3370 = vadd.f32 %v3341, %v3369
    %3371 = vmatmul.f32.gmra.mxu0 %v3302
    %v3372 = vpop.f32.mrf.mxu0
    %v3373 = vadd.f32 %v3341, %v3372
    %3374 = vmatmul.f32.gmra.mxu0 %v3303
    %v3375 = vpop.f32.mrf.mxu0
    %v3376 = vadd.f32 %v3341, %v3375
    %3377 = vmatmul.f32.gmra.mxu0 %v3304
    %v3378 = vpop.f32.mrf.mxu0
    %v3379 = vadd.f32 %v3341, %v3378
    %3380 = vmatmul.f32.gmra.mxu0 %v3305
    %v3381 = vpop.f32.mrf.mxu0
    %v3382 = vadd.f32 %v3341, %v3381
    %3383 = vmatmul.f32.gmra.mxu0 %v3306
    %v3384 = vpop.f32.mrf.mxu0
    %v3385 = vadd.f32 %v3341, %v3384
    %3386 = vmatmul.f32.gmra.mxu0 %v3307
    %v3387 = vpop.f32.mrf.mxu0
    %v3388 = vadd.f32 %v3341, %v3387
    %3389 = vmatmul.f32.gmra.mxu0 %v3308
    %v3390 = vpop.f32.mrf.mxu0
    %v3391 = vadd.f32 %v3341, %v3390
    %3392 = vmatmul.f32.gmra.mxu0 %v3309
    %v3393 = vpop.f32.mrf.mxu0
    %v3394 = vadd.f32 %v3341, %v3393
    %3395 = vmatmul.f32.gmra.mxu0 %v3310
    %v3396 = vpop.f32.mrf.mxu0
    %v3397 = vadd.f32 %v3341, %v3396
    %3398 = vmatmul.f32.gmra.mxu0 %v3311
    %v3399 = vpop.f32.mrf.mxu0
    %v3400 = vadd.f32 %v3341, %v3399
    %3401 = vmatmul.f32.gmra.mxu0 %v3312
    %v3402 = vpop.f32.mrf.mxu0
    %v3403 = vadd.f32 %v3341, %v3402
    %3404 = vmatmul.f32.gmra.mxu0 %v3313
    %v3405 = vpop.f32.mrf.mxu0
    %v3406 = vadd.f32 %v3341, %v3405
    %3407 = vmatmul.f32.gmra.mxu0 %v3314
    %v3408 = vpop.f32.mrf.mxu0
    %v3409 = vadd.f32 %v3341, %v3408
    %3410 = vmatmul.f32.gmra.mxu0 %v3315
    %v3411 = vpop.f32.mrf.mxu0
    %v3412 = vadd.f32 %v3341, %v3411
    %3413 = vmatmul.f32.gmra.mxu0 %v3316
    %v3414 = vpop.f32.mrf.mxu0
    %v3415 = vadd.f32 %v3341, %v3414
    %3416 = vmatmul.f32.gmra.mxu0 %v3317
    %v3417 = vpop.f32.mrf.mxu0
    %v3418 = vadd.f32 %v3341, %v3417
    %3419 = vmatmul.f32.gmra.mxu0 %v3318
    %v3420 = vpop.f32.mrf.mxu0
    %v3421 = vadd.f32 %v3341, %v3420
    %3422 = vmatmul.f32.gmra.mxu0 %v3319
    %v3423 = vpop.f32.mrf.mxu0
    %v3424 = vadd.f32 %v3341, %v3423
    %3425 = vmatmul.f32.gmra.mxu0 %v3320
    %v3426 = vpop.f32.mrf.mxu0
    %v3427 = vadd.f32 %v3341, %v3426
    %3428 = vmatmul.f32.gmra.mxu0 %v3321
    %v3429 = vpop.f32.mrf.mxu0
    %v3430 = vadd.f32 %v3341, %v3429
    %3431 = vmatmul.f32.gmra.mxu0 %v3322
    %v3432 = vpop.f32.mrf.mxu0
    %v3433 = vadd.f32 %v3341, %v3432
    %3434 = vdwg.mxu0
    %v3435 = vrot.slane %v3298, 1
    %v3436 = vrot.slane %v3299, 1
    %v3437 = vrot.slane %v3300, 1
    %v3438 = vrot.slane %v3301, 1
    %v3439 = vrot.slane %v3302, 1
    %v3440 = vrot.slane %v3303, 1
    %v3441 = vrot.slane %v3304, 1
    %v3442 = vrot.slane %v3305, 1
    %v3443 = vrot.slane %v3306, 1
    %v3444 = vrot.slane %v3307, 1
    %v3445 = vrot.slane %v3308, 1
    %v3446 = vrot.slane %v3309, 1
    %v3447 = vrot.slane %v3310, 1
    %v3448 = vrot.slane %v3311, 1
    %v3449 = vrot.slane %v3312, 1
    %v3450 = vrot.slane %v3313, 1
    %v3451 = vrot.slane %v3314, 1
    %v3452 = vrot.slane %v3315, 1
    %v3453 = vrot.slane %v3316, 1
    %v3454 = vrot.slane %v3317, 1
    %v3455 = vrot.slane %v3318, 1
    %v3456 = vrot.slane %v3319, 1
    %v3457 = vrot.slane %v3320, 1
    %v3458 = vrot.slane %v3321, 1
    %v3459 = vrot.slane %v3322, 1
    %v3460 = vsel %vm436, %v3458, %v3459
    %v3461 = vsel %vm436, %v3457, %v3458
    %v3462 = vsel %vm436, %v3456, %v3457
    %v3463 = vsel %vm436, %v3455, %v3456
    %v3464 = vsel %vm436, %v3454, %v3455
    %v3465 = vsel %vm436, %v3453, %v3454
    %v3466 = vsel %vm436, %v3452, %v3453
    %v3467 = vsel %vm436, %v3451, %v3452
    %v3468 = vsel %vm436, %v3450, %v3451
    %v3469 = vsel %vm436, %v3449, %v3450
    %v3470 = vsel %vm436, %v3448, %v3449
    %v3471 = vsel %vm436, %v3447, %v3448
    %v3472 = vsel %vm436, %v3446, %v3447
    %v3473 = vsel %vm436, %v3445, %v3446
    %v3474 = vsel %vm436, %v3444, %v3445
    %v3475 = vsel %vm436, %v3443, %v3444
    %v3476 = vsel %vm436, %v3442, %v3443
    %v3477 = vsel %vm436, %v3441, %v3442
    %v3478 = vsel %vm436, %v3440, %v3441
    %v3479 = vsel %vm436, %v3439, %v3440
    %v3480 = vsel %vm436, %v3438, %v3439
    %v3481 = vsel %vm436, %v3437, %v3438
    %v3482 = vsel %vm436, %v3436, %v3437
    %v3483 = vsel %vm436, %v3435, %v3436
    %v3484 = vsel %vm436, %v3459, %v3435
    %s3485 = scalar_lea.vmem %s8, 128
    %v3486 = vld [vmem:[%s3485] sm:$0xff]
    %v3487 = vld [vmem:[%s3485 + $0x8] sm:$0xff]
    %v3488 = vld [vmem:[%s3485 + $0x10] sm:$0xff]
    %v3489 = vld [vmem:[%s3485 + $0x18] sm:$0xff]
    %v3490 = vld [vmem:[%s3485 + $0x20] sm:$0xff]
    %v3491 = vld [vmem:[%s3485 + $0x28] sm:$0xff]
    %v3492 = vld [vmem:[%s3485 + $0x30] sm:$0xff]
    %v3493 = vld [vmem:[%s3485 + $0x38] sm:$0xff]
    %v3494 = vld [vmem:[%s3485 + $0x40] sm:$0xff]
    %v3495 = vld [vmem:[%s3485 + $0x48] sm:$0xff]
    %v3496 = vld [vmem:[%s3485 + $0x50] sm:$0xff]
    %v3497 = vld [vmem:[%s3485 + $0x58] sm:$0xff]
    %v3498 = vld [vmem:[%s3485 + $0x60] sm:$0xff]
    %v3499 = vld [vmem:[%s3485 + $0x68] sm:$0xff]
    %v3500 = vld [vmem:[%s3485 + $0x70] sm:$0xff]
    %v3501 = vld [vmem:[%s3485 + $0x78] sm:$0xff]
    %3502 = vmatpush.msra.mxu0 %v3501
    %3503 = vmatpush.msra.mxu0 %v3500
    %3504 = vmatpush.msra.mxu0 %v3499
    %3505 = vmatpush.msra.mxu0 %v3498
    %3506 = vmatpush.msra.mxu0 %v3497
    %3507 = vmatpush.msra.mxu0 %v3496
    %3508 = vmatpush.msra.mxu0 %v3495
    %3509 = vmatpush.msra.mxu0 %v3494
    %3510 = vmatpush.msra.mxu0 %v3493
    %3511 = vmatpush.msra.mxu0 %v3492
    %3512 = vmatpush.msra.mxu0 %v3491
    %3513 = vmatpush.msra.mxu0 %v3490
    %3514 = vmatpush.msra.mxu0 %v3489
    %3515 = vmatpush.msra.mxu0 %v3488
    %3516 = vmatpush.msra.mxu0 %v3487
    %3517 = vmatpush.msra.mxu0 %v3486
    %3518 = vmatmul.f32.gmra.mxu0 %v3483
    %v3519 = vpop.f32.mrf.mxu0
    %v3520 = vadd.f32 0.0, %v3519
    %3521 = vmatmul.f32.gmra.mxu0 %v3482
    %v3522 = vpop.f32.mrf.mxu0
    %v3523 = vadd.f32 0.0, %v3522
    %3524 = vmatmul.f32.gmra.mxu0 %v3481
    %v3525 = vpop.f32.mrf.mxu0
    %v3526 = vadd.f32 0.0, %v3525
    %3527 = vmatmul.f32.gmra.mxu0 %v3480
    %v3528 = vpop.f32.mrf.mxu0
    %v3529 = vadd.f32 0.0, %v3528
    %3530 = vmatmul.f32.gmra.mxu0 %v3479
    %v3531 = vpop.f32.mrf.mxu0
    %v3532 = vadd.f32 0.0, %v3531
    %3533 = vmatmul.f32.gmra.mxu0 %v3478
    %v3534 = vpop.f32.mrf.mxu0
    %v3535 = vadd.f32 0.0, %v3534
    %3536 = vmatmul.f32.gmra.mxu0 %v3477
    %v3537 = vpop.f32.mrf.mxu0
    %v3538 = vadd.f32 0.0, %v3537
    %3539 = vmatmul.f32.gmra.mxu0 %v3476
    %v3540 = vpop.f32.mrf.mxu0
    %v3541 = vadd.f32 0.0, %v3540
    %3542 = vmatmul.f32.gmra.mxu0 %v3475
    %v3543 = vpop.f32.mrf.mxu0
    %v3544 = vadd.f32 0.0, %v3543
    %3545 = vmatmul.f32.gmra.mxu0 %v3474
    %v3546 = vpop.f32.mrf.mxu0
    %v3547 = vadd.f32 0.0, %v3546
    %3548 = vmatmul.f32.gmra.mxu0 %v3473
    %v3549 = vpop.f32.mrf.mxu0
    %v3550 = vadd.f32 0.0, %v3549
    %3551 = vmatmul.f32.gmra.mxu0 %v3472
    %v3552 = vpop.f32.mrf.mxu0
    %v3553 = vadd.f32 0.0, %v3552
    %3554 = vmatmul.f32.gmra.mxu0 %v3471
    %v3555 = vpop.f32.mrf.mxu0
    %v3556 = vadd.f32 0.0, %v3555
    %3557 = vmatmul.f32.gmra.mxu0 %v3470
    %v3558 = vpop.f32.mrf.mxu0
    %v3559 = vadd.f32 0.0, %v3558
    %3560 = vmatmul.f32.gmra.mxu0 %v3469
    %v3561 = vpop.f32.mrf.mxu0
    %v3562 = vadd.f32 0.0, %v3561
    %3563 = vmatmul.f32.gmra.mxu0 %v3468
    %v3564 = vpop.f32.mrf.mxu0
    %v3565 = vadd.f32 0.0, %v3564
    %3566 = vmatmul.f32.gmra.mxu0 %v3467
    %v3567 = vpop.f32.mrf.mxu0
    %v3568 = vadd.f32 0.0, %v3567
    %3569 = vmatmul.f32.gmra.mxu0 %v3466
    %v3570 = vpop.f32.mrf.mxu0
    %v3571 = vadd.f32 0.0, %v3570
    %3572 = vmatmul.f32.gmra.mxu0 %v3465
    %v3573 = vpop.f32.mrf.mxu0
    %v3574 = vadd.f32 0.0, %v3573
    %3575 = vmatmul.f32.gmra.mxu0 %v3464
    %v3576 = vpop.f32.mrf.mxu0
    %v3577 = vadd.f32 0.0, %v3576
    %3578 = vmatmul.f32.gmra.mxu0 %v3463
    %v3579 = vpop.f32.mrf.mxu0
    %v3580 = vadd.f32 0.0, %v3579
    %3581 = vmatmul.f32.gmra.mxu0 %v3462
    %v3582 = vpop.f32.mrf.mxu0
    %v3583 = vadd.f32 0.0, %v3582
    %3584 = vmatmul.f32.gmra.mxu0 %v3461
    %v3585 = vpop.f32.mrf.mxu0
    %v3586 = vadd.f32 0.0, %v3585
    %3587 = vmatmul.f32.gmra.mxu0 %v3460
    %v3588 = vpop.f32.mrf.mxu0
    %v3589 = vadd.f32 0.0, %v3588
    %3590 = vmatmul.f32.gmra.mxu0 %v3484
    %v3591 = vpop.f32.mrf.mxu0
    %v3592 = vadd.f32 0.0, %v3591
    %3593 = vdwg.mxu0
    %v3594 = vadd.f32 %v3361, %v3520
    %v3595 = vadd.f32 %v3364, %v3523
    %v3596 = vadd.f32 %v3367, %v3526
    %v3597 = vadd.f32 %v3370, %v3529
    %v3598 = vadd.f32 %v3373, %v3532
    %v3599 = vadd.f32 %v3376, %v3535
    %v3600 = vadd.f32 %v3379, %v3538
    %v3601 = vadd.f32 %v3382, %v3541
    %v3602 = vadd.f32 %v3385, %v3544
    %v3603 = vadd.f32 %v3388, %v3547
    %v3604 = vadd.f32 %v3391, %v3550
    %v3605 = vadd.f32 %v3394, %v3553
    %v3606 = vadd.f32 %v3397, %v3556
    %v3607 = vadd.f32 %v3400, %v3559
    %v3608 = vadd.f32 %v3403, %v3562
    %v3609 = vadd.f32 %v3406, %v3565
    %v3610 = vadd.f32 %v3409, %v3568
    %v3611 = vadd.f32 %v3412, %v3571
    %v3612 = vadd.f32 %v3415, %v3574
    %v3613 = vadd.f32 %v3418, %v3577
    %v3614 = vadd.f32 %v3421, %v3580
    %v3615 = vadd.f32 %v3424, %v3583
    %v3616 = vadd.f32 %v3427, %v3586
    %v3617 = vadd.f32 %v3430, %v3589
    %v3618 = vadd.f32 %v3433, %v3592
    %v3619 = vrot.slane %v3298, 2
    %v3620 = vrot.slane %v3299, 2
    %v3621 = vrot.slane %v3300, 2
    %v3622 = vrot.slane %v3301, 2
    %v3623 = vrot.slane %v3302, 2
    %v3624 = vrot.slane %v3303, 2
    %v3625 = vrot.slane %v3304, 2
    %v3626 = vrot.slane %v3305, 2
    %v3627 = vrot.slane %v3306, 2
    %v3628 = vrot.slane %v3307, 2
    %v3629 = vrot.slane %v3308, 2
    %v3630 = vrot.slane %v3309, 2
    %v3631 = vrot.slane %v3310, 2
    %v3632 = vrot.slane %v3311, 2
    %v3633 = vrot.slane %v3312, 2
    %v3634 = vrot.slane %v3313, 2
    %v3635 = vrot.slane %v3314, 2
    %v3636 = vrot.slane %v3315, 2
    %v3637 = vrot.slane %v3316, 2
    %v3638 = vrot.slane %v3317, 2
    %v3639 = vrot.slane %v3318, 2
    %v3640 = vrot.slane %v3319, 2
    %v3641 = vrot.slane %v3320, 2
    %v3642 = vrot.slane %v3321, 2
    %v3643 = vrot.slane %v3322, 2
    %v3644 = vsel %vm621, %v3642, %v3643
    %v3645 = vsel %vm621, %v3641, %v3642
    %v3646 = vsel %vm621, %v3640, %v3641
    %v3647 = vsel %vm621, %v3639, %v3640
    %v3648 = vsel %vm621, %v3638, %v3639
    %v3649 = vsel %vm621, %v3637, %v3638
    %v3650 = vsel %vm621, %v3636, %v3637
    %v3651 = vsel %vm621, %v3635, %v3636
    %v3652 = vsel %vm621, %v3634, %v3635
    %v3653 = vsel %vm621, %v3633, %v3634
    %v3654 = vsel %vm621, %v3632, %v3633
    %v3655 = vsel %vm621, %v3631, %v3632
    %v3656 = vsel %vm621, %v3630, %v3631
    %v3657 = vsel %vm621, %v3629, %v3630
    %v3658 = vsel %vm621, %v3628, %v3629
    %v3659 = vsel %vm621, %v3627, %v3628
    %v3660 = vsel %vm621, %v3626, %v3627
    %v3661 = vsel %vm621, %v3625, %v3626
    %v3662 = vsel %vm621, %v3624, %v3625
    %v3663 = vsel %vm621, %v3623, %v3624
    %v3664 = vsel %vm621, %v3622, %v3623
    %v3665 = vsel %vm621, %v3621, %v3622
    %v3666 = vsel %vm621, %v3620, %v3621
    %v3667 = vsel %vm621, %v3619, %v3620
    %v3668 = vsel %vm621, %v3643, %v3619
    %s3669 = scalar_lea.vmem %s8, 256
    %v3670 = vld [vmem:[%s3669] sm:$0xff]
    %v3671 = vld [vmem:[%s3669 + $0x8] sm:$0xff]
    %v3672 = vld [vmem:[%s3669 + $0x10] sm:$0xff]
    %v3673 = vld [vmem:[%s3669 + $0x18] sm:$0xff]
    %v3674 = vld [vmem:[%s3669 + $0x20] sm:$0xff]
    %v3675 = vld [vmem:[%s3669 + $0x28] sm:$0xff]
    %v3676 = vld [vmem:[%s3669 + $0x30] sm:$0xff]
    %v3677 = vld [vmem:[%s3669 + $0x38] sm:$0xff]
    %v3678 = vld [vmem:[%s3669 + $0x40] sm:$0xff]
    %v3679 = vld [vmem:[%s3669 + $0x48] sm:$0xff]
    %v3680 = vld [vmem:[%s3669 + $0x50] sm:$0xff]
    %v3681 = vld [vmem:[%s3669 + $0x58] sm:$0xff]
    %v3682 = vld [vmem:[%s3669 + $0x60] sm:$0xff]
    %v3683 = vld [vmem:[%s3669 + $0x68] sm:$0xff]
    %v3684 = vld [vmem:[%s3669 + $0x70] sm:$0xff]
    %v3685 = vld [vmem:[%s3669 + $0x78] sm:$0xff]
    %3686 = vmatpush.msra.mxu0 %v3685
    %3687 = vmatpush.msra.mxu0 %v3684
    %3688 = vmatpush.msra.mxu0 %v3683
    %3689 = vmatpush.msra.mxu0 %v3682
    %3690 = vmatpush.msra.mxu0 %v3681
    %3691 = vmatpush.msra.mxu0 %v3680
    %3692 = vmatpush.msra.mxu0 %v3679
    %3693 = vmatpush.msra.mxu0 %v3678
    %3694 = vmatpush.msra.mxu0 %v3677
    %3695 = vmatpush.msra.mxu0 %v3676
    %3696 = vmatpush.msra.mxu0 %v3675
    %3697 = vmatpush.msra.mxu0 %v3674
    %3698 = vmatpush.msra.mxu0 %v3673
    %3699 = vmatpush.msra.mxu0 %v3672
    %3700 = vmatpush.msra.mxu0 %v3671
    %3701 = vmatpush.msra.mxu0 %v3670
    %3702 = vmatmul.f32.gmra.mxu0 %v3667
    %v3703 = vpop.f32.mrf.mxu0
    %v3704 = vadd.f32 0.0, %v3703
    %3705 = vmatmul.f32.gmra.mxu0 %v3666
    %v3706 = vpop.f32.mrf.mxu0
    %v3707 = vadd.f32 0.0, %v3706
    %3708 = vmatmul.f32.gmra.mxu0 %v3665
    %v3709 = vpop.f32.mrf.mxu0
    %v3710 = vadd.f32 0.0, %v3709
    %3711 = vmatmul.f32.gmra.mxu0 %v3664
    %v3712 = vpop.f32.mrf.mxu0
    %v3713 = vadd.f32 0.0, %v3712
    %3714 = vmatmul.f32.gmra.mxu0 %v3663
    %v3715 = vpop.f32.mrf.mxu0
    %v3716 = vadd.f32 0.0, %v3715
    %3717 = vmatmul.f32.gmra.mxu0 %v3662
    %v3718 = vpop.f32.mrf.mxu0
    %v3719 = vadd.f32 0.0, %v3718
    %3720 = vmatmul.f32.gmra.mxu0 %v3661
    %v3721 = vpop.f32.mrf.mxu0
    %v3722 = vadd.f32 0.0, %v3721
    %3723 = vmatmul.f32.gmra.mxu0 %v3660
    %v3724 = vpop.f32.mrf.mxu0
    %v3725 = vadd.f32 0.0, %v3724
    %3726 = vmatmul.f32.gmra.mxu0 %v3659
    %v3727 = vpop.f32.mrf.mxu0
    %v3728 = vadd.f32 0.0, %v3727
    %3729 = vmatmul.f32.gmra.mxu0 %v3658
    %v3730 = vpop.f32.mrf.mxu0
    %v3731 = vadd.f32 0.0, %v3730
    %3732 = vmatmul.f32.gmra.mxu0 %v3657
    %v3733 = vpop.f32.mrf.mxu0
    %v3734 = vadd.f32 0.0, %v3733
    %3735 = vmatmul.f32.gmra.mxu0 %v3656
    %v3736 = vpop.f32.mrf.mxu0
    %v3737 = vadd.f32 0.0, %v3736
    %3738 = vmatmul.f32.gmra.mxu0 %v3655
    %v3739 = vpop.f32.mrf.mxu0
    %v3740 = vadd.f32 0.0, %v3739
    %3741 = vmatmul.f32.gmra.mxu0 %v3654
    %v3742 = vpop.f32.mrf.mxu0
    %v3743 = vadd.f32 0.0, %v3742
    %3744 = vmatmul.f32.gmra.mxu0 %v3653
    %v3745 = vpop.f32.mrf.mxu0
    %v3746 = vadd.f32 0.0, %v3745
    %3747 = vmatmul.f32.gmra.mxu0 %v3652
    %v3748 = vpop.f32.mrf.mxu0
    %v3749 = vadd.f32 0.0, %v3748
    %3750 = vmatmul.f32.gmra.mxu0 %v3651
    %v3751 = vpop.f32.mrf.mxu0
    %v3752 = vadd.f32 0.0, %v3751
    %3753 = vmatmul.f32.gmra.mxu0 %v3650
    %v3754 = vpop.f32.mrf.mxu0
    %v3755 = vadd.f32 0.0, %v3754
    %3756 = vmatmul.f32.gmra.mxu0 %v3649
    %v3757 = vpop.f32.mrf.mxu0
    %v3758 = vadd.f32 0.0, %v3757
    %3759 = vmatmul.f32.gmra.mxu0 %v3648
    %v3760 = vpop.f32.mrf.mxu0
    %v3761 = vadd.f32 0.0, %v3760
    %3762 = vmatmul.f32.gmra.mxu0 %v3647
    %v3763 = vpop.f32.mrf.mxu0
    %v3764 = vadd.f32 0.0, %v3763
    %3765 = vmatmul.f32.gmra.mxu0 %v3646
    %v3766 = vpop.f32.mrf.mxu0
    %v3767 = vadd.f32 0.0, %v3766
    %3768 = vmatmul.f32.gmra.mxu0 %v3645
    %v3769 = vpop.f32.mrf.mxu0
    %v3770 = vadd.f32 0.0, %v3769
    %3771 = vmatmul.f32.gmra.mxu0 %v3644
    %v3772 = vpop.f32.mrf.mxu0
    %v3773 = vadd.f32 0.0, %v3772
    %3774 = vmatmul.f32.gmra.mxu0 %v3668
    %v3775 = vpop.f32.mrf.mxu0
    %v3776 = vadd.f32 0.0, %v3775
    %3777 = vdwg.mxu0
    %v3778 = vadd.f32 %v3594, %v3704
    %v3779 = vadd.f32 %v3595, %v3707
    %v3780 = vadd.f32 %v3596, %v3710
    %v3781 = vadd.f32 %v3597, %v3713
    %v3782 = vadd.f32 %v3598, %v3716
    %v3783 = vadd.f32 %v3599, %v3719
    %v3784 = vadd.f32 %v3600, %v3722
    %v3785 = vadd.f32 %v3601, %v3725
    %v3786 = vadd.f32 %v3602, %v3728
    %v3787 = vadd.f32 %v3603, %v3731
    %v3788 = vadd.f32 %v3604, %v3734
    %v3789 = vadd.f32 %v3605, %v3737
    %v3790 = vadd.f32 %v3606, %v3740
    %v3791 = vadd.f32 %v3607, %v3743
    %v3792 = vadd.f32 %v3608, %v3746
    %v3793 = vadd.f32 %v3609, %v3749
    %v3794 = vadd.f32 %v3610, %v3752
    %v3795 = vadd.f32 %v3611, %v3755
    %v3796 = vadd.f32 %v3612, %v3758
    %v3797 = vadd.f32 %v3613, %v3761
    %v3798 = vadd.f32 %v3614, %v3764
    %v3799 = vadd.f32 %v3615, %v3767
    %v3800 = vadd.f32 %v3616, %v3770
    %v3801 = vadd.f32 %v3617, %v3773
    %v3802 = vadd.f32 %v3618, %v3776
    %s3803 = scalar_lea.vmem %s8, 384
    %v3804 = vld [vmem:[%s3803] sm:$0xff]
    %v3805 = vld [vmem:[%s3803 + $0x8] sm:$0xff]
    %v3806 = vld [vmem:[%s3803 + $0x10] sm:$0xff]
    %v3807 = vld [vmem:[%s3803 + $0x18] sm:$0xff]
    %v3808 = vld [vmem:[%s3803 + $0x20] sm:$0xff]
    %v3809 = vld [vmem:[%s3803 + $0x28] sm:$0xff]
    %v3810 = vld [vmem:[%s3803 + $0x30] sm:$0xff]
    %v3811 = vld [vmem:[%s3803 + $0x38] sm:$0xff]
    %v3812 = vld [vmem:[%s3803 + $0x40] sm:$0xff]
    %v3813 = vld [vmem:[%s3803 + $0x48] sm:$0xff]
    %v3814 = vld [vmem:[%s3803 + $0x50] sm:$0xff]
    %v3815 = vld [vmem:[%s3803 + $0x58] sm:$0xff]
    %v3816 = vld [vmem:[%s3803 + $0x60] sm:$0xff]
    %v3817 = vld [vmem:[%s3803 + $0x68] sm:$0xff]
    %v3818 = vld [vmem:[%s3803 + $0x70] sm:$0xff]
    %v3819 = vld [vmem:[%s3803 + $0x78] sm:$0xff]
    %3820 = vmatpush.msra.mxu0 %v3819
    %3821 = vmatpush.msra.mxu0 %v3818
    %3822 = vmatpush.msra.mxu0 %v3817
    %3823 = vmatpush.msra.mxu0 %v3816
    %3824 = vmatpush.msra.mxu0 %v3815
    %3825 = vmatpush.msra.mxu0 %v3814
    %3826 = vmatpush.msra.mxu0 %v3813
    %3827 = vmatpush.msra.mxu0 %v3812
    %3828 = vmatpush.msra.mxu0 %v3811
    %3829 = vmatpush.msra.mxu0 %v3810
    %3830 = vmatpush.msra.mxu0 %v3809
    %3831 = vmatpush.msra.mxu0 %v3808
    %3832 = vmatpush.msra.mxu0 %v3807
    %3833 = vmatpush.msra.mxu0 %v3806
    %3834 = vmatpush.msra.mxu0 %v3805
    %3835 = vmatpush.msra.mxu0 %v3804
    %3836 = vmatmul.f32.gmra.mxu0 %v3666
    %v3837 = vpop.f32.mrf.mxu0
    %v3838 = vadd.f32 0.0, %v3837
    %3839 = vmatmul.f32.gmra.mxu0 %v3665
    %v3840 = vpop.f32.mrf.mxu0
    %v3841 = vadd.f32 0.0, %v3840
    %3842 = vmatmul.f32.gmra.mxu0 %v3664
    %v3843 = vpop.f32.mrf.mxu0
    %v3844 = vadd.f32 0.0, %v3843
    %3845 = vmatmul.f32.gmra.mxu0 %v3663
    %v3846 = vpop.f32.mrf.mxu0
    %v3847 = vadd.f32 0.0, %v3846
    %3848 = vmatmul.f32.gmra.mxu0 %v3662
    %v3849 = vpop.f32.mrf.mxu0
    %v3850 = vadd.f32 0.0, %v3849
    %3851 = vmatmul.f32.gmra.mxu0 %v3661
    %v3852 = vpop.f32.mrf.mxu0
    %v3853 = vadd.f32 0.0, %v3852
    %3854 = vmatmul.f32.gmra.mxu0 %v3660
    %v3855 = vpop.f32.mrf.mxu0
    %v3856 = vadd.f32 0.0, %v3855
    %3857 = vmatmul.f32.gmra.mxu0 %v3659
    %v3858 = vpop.f32.mrf.mxu0
    %v3859 = vadd.f32 0.0, %v3858
    %3860 = vmatmul.f32.gmra.mxu0 %v3658
    %v3861 = vpop.f32.mrf.mxu0
    %v3862 = vadd.f32 0.0, %v3861
    %3863 = vmatmul.f32.gmra.mxu0 %v3657
    %v3864 = vpop.f32.mrf.mxu0
    %v3865 = vadd.f32 0.0, %v3864
    %3866 = vmatmul.f32.gmra.mxu0 %v3656
    %v3867 = vpop.f32.mrf.mxu0
    %v3868 = vadd.f32 0.0, %v3867
    %3869 = vmatmul.f32.gmra.mxu0 %v3655
    %v3870 = vpop.f32.mrf.mxu0
    %v3871 = vadd.f32 0.0, %v3870
    %3872 = vmatmul.f32.gmra.mxu0 %v3654
    %v3873 = vpop.f32.mrf.mxu0
    %v3874 = vadd.f32 0.0, %v3873
    %3875 = vmatmul.f32.gmra.mxu0 %v3653
    %v3876 = vpop.f32.mrf.mxu0
    %v3877 = vadd.f32 0.0, %v3876
    %3878 = vmatmul.f32.gmra.mxu0 %v3652
    %v3879 = vpop.f32.mrf.mxu0
    %v3880 = vadd.f32 0.0, %v3879
    %3881 = vmatmul.f32.gmra.mxu0 %v3651
    %v3882 = vpop.f32.mrf.mxu0
    %v3883 = vadd.f32 0.0, %v3882
    %3884 = vmatmul.f32.gmra.mxu0 %v3650
    %v3885 = vpop.f32.mrf.mxu0
    %v3886 = vadd.f32 0.0, %v3885
    %3887 = vmatmul.f32.gmra.mxu0 %v3649
    %v3888 = vpop.f32.mrf.mxu0
    %v3889 = vadd.f32 0.0, %v3888
    %3890 = vmatmul.f32.gmra.mxu0 %v3648
    %v3891 = vpop.f32.mrf.mxu0
    %v3892 = vadd.f32 0.0, %v3891
    %3893 = vmatmul.f32.gmra.mxu0 %v3647
    %v3894 = vpop.f32.mrf.mxu0
    %v3895 = vadd.f32 0.0, %v3894
    %3896 = vmatmul.f32.gmra.mxu0 %v3646
    %v3897 = vpop.f32.mrf.mxu0
    %v3898 = vadd.f32 0.0, %v3897
    %3899 = vmatmul.f32.gmra.mxu0 %v3645
    %v3900 = vpop.f32.mrf.mxu0
    %v3901 = vadd.f32 0.0, %v3900
    %3902 = vmatmul.f32.gmra.mxu0 %v3644
    %v3903 = vpop.f32.mrf.mxu0
    %v3904 = vadd.f32 0.0, %v3903
    %3905 = vmatmul.f32.gmra.mxu0 %v3668
    %v3906 = vpop.f32.mrf.mxu0
    %v3907 = vadd.f32 0.0, %v3906
    %3908 = vmatmul.f32.gmra.mxu0 %v3667
    %v3909 = vpop.f32.mrf.mxu0
    %v3910 = vadd.f32 0.0, %v3909
    %3911 = vdwg.mxu0
    %v3912 = vadd.f32 %v3778, %v3838
    %v3913 = vadd.f32 %v3779, %v3841
    %v3914 = vadd.f32 %v3780, %v3844
    %v3915 = vadd.f32 %v3781, %v3847
    %v3916 = vadd.f32 %v3782, %v3850
    %v3917 = vadd.f32 %v3783, %v3853
    %v3918 = vadd.f32 %v3784, %v3856
    %v3919 = vadd.f32 %v3785, %v3859
    %v3920 = vadd.f32 %v3786, %v3862
    %v3921 = vadd.f32 %v3787, %v3865
    %v3922 = vadd.f32 %v3788, %v3868
    %v3923 = vadd.f32 %v3789, %v3871
    %v3924 = vadd.f32 %v3790, %v3874
    %v3925 = vadd.f32 %v3791, %v3877
    %v3926 = vadd.f32 %v3792, %v3880
    %v3927 = vadd.f32 %v3793, %v3883
    %v3928 = vadd.f32 %v3794, %v3886
    %v3929 = vadd.f32 %v3795, %v3889
    %v3930 = vadd.f32 %v3796, %v3892
    %v3931 = vadd.f32 %v3797, %v3895
    %v3932 = vadd.f32 %v3798, %v3898
    %v3933 = vadd.f32 %v3799, %v3901
    %v3934 = vadd.f32 %v3800, %v3904
    %v3935 = vadd.f32 %v3801, %v3907
    %v3936 = vadd.f32 %v3802, %v3910
    %v3937 = vrot.slane %v3298, 3
    %v3938 = vrot.slane %v3299, 3
    %v3939 = vrot.slane %v3300, 3
    %v3940 = vrot.slane %v3301, 3
    %v3941 = vrot.slane %v3302, 3
    %v3942 = vrot.slane %v3303, 3
    %v3943 = vrot.slane %v3304, 3
    %v3944 = vrot.slane %v3305, 3
    %v3945 = vrot.slane %v3306, 3
    %v3946 = vrot.slane %v3307, 3
    %v3947 = vrot.slane %v3308, 3
    %v3948 = vrot.slane %v3309, 3
    %v3949 = vrot.slane %v3310, 3
    %v3950 = vrot.slane %v3311, 3
    %v3951 = vrot.slane %v3312, 3
    %v3952 = vrot.slane %v3313, 3
    %v3953 = vrot.slane %v3314, 3
    %v3954 = vrot.slane %v3315, 3
    %v3955 = vrot.slane %v3316, 3
    %v3956 = vrot.slane %v3317, 3
    %v3957 = vrot.slane %v3318, 3
    %v3958 = vrot.slane %v3319, 3
    %v3959 = vrot.slane %v3320, 3
    %v3960 = vrot.slane %v3321, 3
    %v3961 = vrot.slane %v3322, 3
    %v3962 = vsel %vm940, %v3960, %v3961
    %v3963 = vsel %vm940, %v3959, %v3960
    %v3964 = vsel %vm940, %v3958, %v3959
    %v3965 = vsel %vm940, %v3957, %v3958
    %v3966 = vsel %vm940, %v3956, %v3957
    %v3967 = vsel %vm940, %v3955, %v3956
    %v3968 = vsel %vm940, %v3954, %v3955
    %v3969 = vsel %vm940, %v3953, %v3954
    %v3970 = vsel %vm940, %v3952, %v3953
    %v3971 = vsel %vm940, %v3951, %v3952
    %v3972 = vsel %vm940, %v3950, %v3951
    %v3973 = vsel %vm940, %v3949, %v3950
    %v3974 = vsel %vm940, %v3948, %v3949
    %v3975 = vsel %vm940, %v3947, %v3948
    %v3976 = vsel %vm940, %v3946, %v3947
    %v3977 = vsel %vm940, %v3945, %v3946
    %v3978 = vsel %vm940, %v3944, %v3945
    %v3979 = vsel %vm940, %v3943, %v3944
    %v3980 = vsel %vm940, %v3942, %v3943
    %v3981 = vsel %vm940, %v3941, %v3942
    %v3982 = vsel %vm940, %v3940, %v3941
    %v3983 = vsel %vm940, %v3939, %v3940
    %v3984 = vsel %vm940, %v3938, %v3939
    %v3985 = vsel %vm940, %v3937, %v3938
    %v3986 = vsel %vm940, %v3961, %v3937
    %s3987 = scalar_lea.vmem %s8, 512
    %v3988 = vld [vmem:[%s3987] sm:$0xff]
    %v3989 = vld [vmem:[%s3987 + $0x8] sm:$0xff]
    %v3990 = vld [vmem:[%s3987 + $0x10] sm:$0xff]
    %v3991 = vld [vmem:[%s3987 + $0x18] sm:$0xff]
    %v3992 = vld [vmem:[%s3987 + $0x20] sm:$0xff]
    %v3993 = vld [vmem:[%s3987 + $0x28] sm:$0xff]
    %v3994 = vld [vmem:[%s3987 + $0x30] sm:$0xff]
    %v3995 = vld [vmem:[%s3987 + $0x38] sm:$0xff]
    %v3996 = vld [vmem:[%s3987 + $0x40] sm:$0xff]
    %v3997 = vld [vmem:[%s3987 + $0x48] sm:$0xff]
    %v3998 = vld [vmem:[%s3987 + $0x50] sm:$0xff]
    %v3999 = vld [vmem:[%s3987 + $0x58] sm:$0xff]
    %v4000 = vld [vmem:[%s3987 + $0x60] sm:$0xff]
    %v4001 = vld [vmem:[%s3987 + $0x68] sm:$0xff]
    %v4002 = vld [vmem:[%s3987 + $0x70] sm:$0xff]
    %v4003 = vld [vmem:[%s3987 + $0x78] sm:$0xff]
    %4004 = vmatpush.msra.mxu0 %v4003
    %4005 = vmatpush.msra.mxu0 %v4002
    %4006 = vmatpush.msra.mxu0 %v4001
    %4007 = vmatpush.msra.mxu0 %v4000
    %4008 = vmatpush.msra.mxu0 %v3999
    %4009 = vmatpush.msra.mxu0 %v3998
    %4010 = vmatpush.msra.mxu0 %v3997
    %4011 = vmatpush.msra.mxu0 %v3996
    %4012 = vmatpush.msra.mxu0 %v3995
    %4013 = vmatpush.msra.mxu0 %v3994
    %4014 = vmatpush.msra.mxu0 %v3993
    %4015 = vmatpush.msra.mxu0 %v3992
    %4016 = vmatpush.msra.mxu0 %v3991
    %4017 = vmatpush.msra.mxu0 %v3990
    %4018 = vmatpush.msra.mxu0 %v3989
    %4019 = vmatpush.msra.mxu0 %v3988
    %4020 = vmatmul.f32.gmra.mxu0 %v3984
    %v4021 = vpop.f32.mrf.mxu0
    %v4022 = vadd.f32 0.0, %v4021
    %4023 = vmatmul.f32.gmra.mxu0 %v3983
    %v4024 = vpop.f32.mrf.mxu0
    %v4025 = vadd.f32 0.0, %v4024
    %4026 = vmatmul.f32.gmra.mxu0 %v3982
    %v4027 = vpop.f32.mrf.mxu0
    %v4028 = vadd.f32 0.0, %v4027
    %4029 = vmatmul.f32.gmra.mxu0 %v3981
    %v4030 = vpop.f32.mrf.mxu0
    %v4031 = vadd.f32 0.0, %v4030
    %4032 = vmatmul.f32.gmra.mxu0 %v3980
    %v4033 = vpop.f32.mrf.mxu0
    %v4034 = vadd.f32 0.0, %v4033
    %4035 = vmatmul.f32.gmra.mxu0 %v3979
    %v4036 = vpop.f32.mrf.mxu0
    %v4037 = vadd.f32 0.0, %v4036
    %4038 = vmatmul.f32.gmra.mxu0 %v3978
    %v4039 = vpop.f32.mrf.mxu0
    %v4040 = vadd.f32 0.0, %v4039
    %4041 = vmatmul.f32.gmra.mxu0 %v3977
    %v4042 = vpop.f32.mrf.mxu0
    %v4043 = vadd.f32 0.0, %v4042
    %4044 = vmatmul.f32.gmra.mxu0 %v3976
    %v4045 = vpop.f32.mrf.mxu0
    %v4046 = vadd.f32 0.0, %v4045
    %4047 = vmatmul.f32.gmra.mxu0 %v3975
    %v4048 = vpop.f32.mrf.mxu0
    %v4049 = vadd.f32 0.0, %v4048
    %4050 = vmatmul.f32.gmra.mxu0 %v3974
    %v4051 = vpop.f32.mrf.mxu0
    %v4052 = vadd.f32 0.0, %v4051
    %4053 = vmatmul.f32.gmra.mxu0 %v3973
    %v4054 = vpop.f32.mrf.mxu0
    %v4055 = vadd.f32 0.0, %v4054
    %4056 = vmatmul.f32.gmra.mxu0 %v3972
    %v4057 = vpop.f32.mrf.mxu0
    %v4058 = vadd.f32 0.0, %v4057
    %4059 = vmatmul.f32.gmra.mxu0 %v3971
    %v4060 = vpop.f32.mrf.mxu0
    %v4061 = vadd.f32 0.0, %v4060
    %4062 = vmatmul.f32.gmra.mxu0 %v3970
    %v4063 = vpop.f32.mrf.mxu0
    %v4064 = vadd.f32 0.0, %v4063
    %4065 = vmatmul.f32.gmra.mxu0 %v3969
    %v4066 = vpop.f32.mrf.mxu0
    %v4067 = vadd.f32 0.0, %v4066
    %4068 = vmatmul.f32.gmra.mxu0 %v3968
    %v4069 = vpop.f32.mrf.mxu0
    %v4070 = vadd.f32 0.0, %v4069
    %4071 = vmatmul.f32.gmra.mxu0 %v3967
    %v4072 = vpop.f32.mrf.mxu0
    %v4073 = vadd.f32 0.0, %v4072
    %4074 = vmatmul.f32.gmra.mxu0 %v3966
    %v4075 = vpop.f32.mrf.mxu0
    %v4076 = vadd.f32 0.0, %v4075
    %4077 = vmatmul.f32.gmra.mxu0 %v3965
    %v4078 = vpop.f32.mrf.mxu0
    %v4079 = vadd.f32 0.0, %v4078
    %4080 = vmatmul.f32.gmra.mxu0 %v3964
    %v4081 = vpop.f32.mrf.mxu0
    %v4082 = vadd.f32 0.0, %v4081
    %4083 = vmatmul.f32.gmra.mxu0 %v3963
    %v4084 = vpop.f32.mrf.mxu0
    %v4085 = vadd.f32 0.0, %v4084
    %4086 = vmatmul.f32.gmra.mxu0 %v3962
    %v4087 = vpop.f32.mrf.mxu0
    %v4088 = vadd.f32 0.0, %v4087
    %4089 = vmatmul.f32.gmra.mxu0 %v3986
    %v4090 = vpop.f32.mrf.mxu0
    %v4091 = vadd.f32 0.0, %v4090
    %4092 = vmatmul.f32.gmra.mxu0 %v3985
    %v4093 = vpop.f32.mrf.mxu0
    %v4094 = vadd.f32 0.0, %v4093
    %4095 = vdwg.mxu0
    %v4096 = vadd.f32 %v3912, %v4022
    %v4097 = vadd.f32 %v3913, %v4025
    %v4098 = vadd.f32 %v3914, %v4028
    %v4099 = vadd.f32 %v3915, %v4031
    %v4100 = vadd.f32 %v3916, %v4034
    %v4101 = vadd.f32 %v3917, %v4037
    %v4102 = vadd.f32 %v3918, %v4040
    %v4103 = vadd.f32 %v3919, %v4043
    %v4104 = vadd.f32 %v3920, %v4046
    %v4105 = vadd.f32 %v3921, %v4049
    %v4106 = vadd.f32 %v3922, %v4052
    %v4107 = vadd.f32 %v3923, %v4055
    %v4108 = vadd.f32 %v3924, %v4058
    %v4109 = vadd.f32 %v3925, %v4061
    %v4110 = vadd.f32 %v3926, %v4064
    %v4111 = vadd.f32 %v3927, %v4067
    %v4112 = vadd.f32 %v3928, %v4070
    %v4113 = vadd.f32 %v3929, %v4073
    %v4114 = vadd.f32 %v3930, %v4076
    %v4115 = vadd.f32 %v3931, %v4079
    %v4116 = vadd.f32 %v3932, %v4082
    %v4117 = vadd.f32 %v3933, %v4085
    %v4118 = vadd.f32 %v3934, %v4088
    %v4119 = vadd.f32 %v3935, %v4091
    %v4120 = vadd.f32 %v3936, %v4094
    %v4121 = vrot.slane %v3298, 4
    %v4122 = vrot.slane %v3299, 4
    %v4123 = vrot.slane %v3300, 4
    %v4124 = vrot.slane %v3301, 4
    %v4125 = vrot.slane %v3302, 4
    %v4126 = vrot.slane %v3303, 4
    %v4127 = vrot.slane %v3304, 4
    %v4128 = vrot.slane %v3305, 4
    %v4129 = vrot.slane %v3306, 4
    %v4130 = vrot.slane %v3307, 4
    %v4131 = vrot.slane %v3308, 4
    %v4132 = vrot.slane %v3309, 4
    %v4133 = vrot.slane %v3310, 4
    %v4134 = vrot.slane %v3311, 4
    %v4135 = vrot.slane %v3312, 4
    %v4136 = vrot.slane %v3313, 4
    %v4137 = vrot.slane %v3314, 4
    %v4138 = vrot.slane %v3315, 4
    %v4139 = vrot.slane %v3316, 4
    %v4140 = vrot.slane %v3317, 4
    %v4141 = vrot.slane %v3318, 4
    %v4142 = vrot.slane %v3319, 4
    %v4143 = vrot.slane %v3320, 4
    %v4144 = vrot.slane %v3321, 4
    %v4145 = vrot.slane %v3322, 4
    %v4146 = vsel %vm1125, %v4144, %v4145
    %v4147 = vsel %vm1125, %v4143, %v4144
    %v4148 = vsel %vm1125, %v4142, %v4143
    %v4149 = vsel %vm1125, %v4141, %v4142
    %v4150 = vsel %vm1125, %v4140, %v4141
    %v4151 = vsel %vm1125, %v4139, %v4140
    %v4152 = vsel %vm1125, %v4138, %v4139
    %v4153 = vsel %vm1125, %v4137, %v4138
    %v4154 = vsel %vm1125, %v4136, %v4137
    %v4155 = vsel %vm1125, %v4135, %v4136
    %v4156 = vsel %vm1125, %v4134, %v4135
    %v4157 = vsel %vm1125, %v4133, %v4134
    %v4158 = vsel %vm1125, %v4132, %v4133
    %v4159 = vsel %vm1125, %v4131, %v4132
    %v4160 = vsel %vm1125, %v4130, %v4131
    %v4161 = vsel %vm1125, %v4129, %v4130
    %v4162 = vsel %vm1125, %v4128, %v4129
    %v4163 = vsel %vm1125, %v4127, %v4128
    %v4164 = vsel %vm1125, %v4126, %v4127
    %v4165 = vsel %vm1125, %v4125, %v4126
    %v4166 = vsel %vm1125, %v4124, %v4125
    %v4167 = vsel %vm1125, %v4123, %v4124
    %v4168 = vsel %vm1125, %v4122, %v4123
    %v4169 = vsel %vm1125, %v4121, %v4122
    %v4170 = vsel %vm1125, %v4145, %v4121
    %s4171 = scalar_lea.vmem %s8, 640
    %v4172 = vld [vmem:[%s4171] sm:$0xff]
    %v4173 = vld [vmem:[%s4171 + $0x8] sm:$0xff]
    %v4174 = vld [vmem:[%s4171 + $0x10] sm:$0xff]
    %v4175 = vld [vmem:[%s4171 + $0x18] sm:$0xff]
    %v4176 = vld [vmem:[%s4171 + $0x20] sm:$0xff]
    %v4177 = vld [vmem:[%s4171 + $0x28] sm:$0xff]
    %v4178 = vld [vmem:[%s4171 + $0x30] sm:$0xff]
    %v4179 = vld [vmem:[%s4171 + $0x38] sm:$0xff]
    %v4180 = vld [vmem:[%s4171 + $0x40] sm:$0xff]
    %v4181 = vld [vmem:[%s4171 + $0x48] sm:$0xff]
    %v4182 = vld [vmem:[%s4171 + $0x50] sm:$0xff]
    %v4183 = vld [vmem:[%s4171 + $0x58] sm:$0xff]
    %v4184 = vld [vmem:[%s4171 + $0x60] sm:$0xff]
    %v4185 = vld [vmem:[%s4171 + $0x68] sm:$0xff]
    %v4186 = vld [vmem:[%s4171 + $0x70] sm:$0xff]
    %v4187 = vld [vmem:[%s4171 + $0x78] sm:$0xff]
    %4188 = vmatpush.msra.mxu0 %v4187
    %4189 = vmatpush.msra.mxu0 %v4186
    %4190 = vmatpush.msra.mxu0 %v4185
    %4191 = vmatpush.msra.mxu0 %v4184
    %4192 = vmatpush.msra.mxu0 %v4183
    %4193 = vmatpush.msra.mxu0 %v4182
    %4194 = vmatpush.msra.mxu0 %v4181
    %4195 = vmatpush.msra.mxu0 %v4180
    %4196 = vmatpush.msra.mxu0 %v4179
    %4197 = vmatpush.msra.mxu0 %v4178
    %4198 = vmatpush.msra.mxu0 %v4177
    %4199 = vmatpush.msra.mxu0 %v4176
    %4200 = vmatpush.msra.mxu0 %v4175
    %4201 = vmatpush.msra.mxu0 %v4174
    %4202 = vmatpush.msra.mxu0 %v4173
    %4203 = vmatpush.msra.mxu0 %v4172
    %4204 = vmatmul.f32.gmra.mxu0 %v4168
    %v4205 = vpop.f32.mrf.mxu0
    %v4206 = vadd.f32 0.0, %v4205
    %4207 = vmatmul.f32.gmra.mxu0 %v4167
    %v4208 = vpop.f32.mrf.mxu0
    %v4209 = vadd.f32 0.0, %v4208
    %4210 = vmatmul.f32.gmra.mxu0 %v4166
    %v4211 = vpop.f32.mrf.mxu0
    %v4212 = vadd.f32 0.0, %v4211
    %4213 = vmatmul.f32.gmra.mxu0 %v4165
    %v4214 = vpop.f32.mrf.mxu0
    %v4215 = vadd.f32 0.0, %v4214
    %4216 = vmatmul.f32.gmra.mxu0 %v4164
    %v4217 = vpop.f32.mrf.mxu0
    %v4218 = vadd.f32 0.0, %v4217
    %4219 = vmatmul.f32.gmra.mxu0 %v4163
    %v4220 = vpop.f32.mrf.mxu0
    %v4221 = vadd.f32 0.0, %v4220
    %4222 = vmatmul.f32.gmra.mxu0 %v4162
    %v4223 = vpop.f32.mrf.mxu0
    %v4224 = vadd.f32 0.0, %v4223
    %4225 = vmatmul.f32.gmra.mxu0 %v4161
    %v4226 = vpop.f32.mrf.mxu0
    %v4227 = vadd.f32 0.0, %v4226
    %4228 = vmatmul.f32.gmra.mxu0 %v4160
    %v4229 = vpop.f32.mrf.mxu0
    %v4230 = vadd.f32 0.0, %v4229
    %4231 = vmatmul.f32.gmra.mxu0 %v4159
    %v4232 = vpop.f32.mrf.mxu0
    %v4233 = vadd.f32 0.0, %v4232
    %4234 = vmatmul.f32.gmra.mxu0 %v4158
    %v4235 = vpop.f32.mrf.mxu0
    %v4236 = vadd.f32 0.0, %v4235
    %4237 = vmatmul.f32.gmra.mxu0 %v4157
    %v4238 = vpop.f32.mrf.mxu0
    %v4239 = vadd.f32 0.0, %v4238
    %4240 = vmatmul.f32.gmra.mxu0 %v4156
    %v4241 = vpop.f32.mrf.mxu0
    %v4242 = vadd.f32 0.0, %v4241
    %4243 = vmatmul.f32.gmra.mxu0 %v4155
    %v4244 = vpop.f32.mrf.mxu0
    %v4245 = vadd.f32 0.0, %v4244
    %4246 = vmatmul.f32.gmra.mxu0 %v4154
    %v4247 = vpop.f32.mrf.mxu0
    %v4248 = vadd.f32 0.0, %v4247
    %4249 = vmatmul.f32.gmra.mxu0 %v4153
    %v4250 = vpop.f32.mrf.mxu0
    %v4251 = vadd.f32 0.0, %v4250
    %4252 = vmatmul.f32.gmra.mxu0 %v4152
    %v4253 = vpop.f32.mrf.mxu0
    %v4254 = vadd.f32 0.0, %v4253
    %4255 = vmatmul.f32.gmra.mxu0 %v4151
    %v4256 = vpop.f32.mrf.mxu0
    %v4257 = vadd.f32 0.0, %v4256
    %4258 = vmatmul.f32.gmra.mxu0 %v4150
    %v4259 = vpop.f32.mrf.mxu0
    %v4260 = vadd.f32 0.0, %v4259
    %4261 = vmatmul.f32.gmra.mxu0 %v4149
    %v4262 = vpop.f32.mrf.mxu0
    %v4263 = vadd.f32 0.0, %v4262
    %4264 = vmatmul.f32.gmra.mxu0 %v4148
    %v4265 = vpop.f32.mrf.mxu0
    %v4266 = vadd.f32 0.0, %v4265
    %4267 = vmatmul.f32.gmra.mxu0 %v4147
    %v4268 = vpop.f32.mrf.mxu0
    %v4269 = vadd.f32 0.0, %v4268
    %4270 = vmatmul.f32.gmra.mxu0 %v4146
    %v4271 = vpop.f32.mrf.mxu0
    %v4272 = vadd.f32 0.0, %v4271
    %4273 = vmatmul.f32.gmra.mxu0 %v4170
    %v4274 = vpop.f32.mrf.mxu0
    %v4275 = vadd.f32 0.0, %v4274
    %4276 = vmatmul.f32.gmra.mxu0 %v4169
    %v4277 = vpop.f32.mrf.mxu0
    %v4278 = vadd.f32 0.0, %v4277
    %4279 = vdwg.mxu0
    %v4280 = vadd.f32 %v4096, %v4206
    %v4281 = vadd.f32 %v4097, %v4209
    %v4282 = vadd.f32 %v4098, %v4212
    %v4283 = vadd.f32 %v4099, %v4215
    %v4284 = vadd.f32 %v4100, %v4218
    %v4285 = vadd.f32 %v4101, %v4221
    %v4286 = vadd.f32 %v4102, %v4224
    %v4287 = vadd.f32 %v4103, %v4227
    %v4288 = vadd.f32 %v4104, %v4230
    %v4289 = vadd.f32 %v4105, %v4233
    %v4290 = vadd.f32 %v4106, %v4236
    %v4291 = vadd.f32 %v4107, %v4239
    %v4292 = vadd.f32 %v4108, %v4242
    %v4293 = vadd.f32 %v4109, %v4245
    %v4294 = vadd.f32 %v4110, %v4248
    %v4295 = vadd.f32 %v4111, %v4251
    %v4296 = vadd.f32 %v4112, %v4254
    %v4297 = vadd.f32 %v4113, %v4257
    %v4298 = vadd.f32 %v4114, %v4260
    %v4299 = vadd.f32 %v4115, %v4263
    %v4300 = vadd.f32 %v4116, %v4266
    %v4301 = vadd.f32 %v4117, %v4269
    %v4302 = vadd.f32 %v4118, %v4272
    %v4303 = vadd.f32 %v4119, %v4275
    %v4304 = vadd.f32 %v4120, %v4278
    %s4305 = scalar_lea.vmem %s8, 768
    %v4306 = vld [vmem:[%s4305] sm:$0xff]
    %v4307 = vld [vmem:[%s4305 + $0x8] sm:$0xff]
    %v4308 = vld [vmem:[%s4305 + $0x10] sm:$0xff]
    %v4309 = vld [vmem:[%s4305 + $0x18] sm:$0xff]
    %v4310 = vld [vmem:[%s4305 + $0x20] sm:$0xff]
    %v4311 = vld [vmem:[%s4305 + $0x28] sm:$0xff]
    %v4312 = vld [vmem:[%s4305 + $0x30] sm:$0xff]
    %v4313 = vld [vmem:[%s4305 + $0x38] sm:$0xff]
    %v4314 = vld [vmem:[%s4305 + $0x40] sm:$0xff]
    %v4315 = vld [vmem:[%s4305 + $0x48] sm:$0xff]
    %v4316 = vld [vmem:[%s4305 + $0x50] sm:$0xff]
    %v4317 = vld [vmem:[%s4305 + $0x58] sm:$0xff]
    %v4318 = vld [vmem:[%s4305 + $0x60] sm:$0xff]
    %v4319 = vld [vmem:[%s4305 + $0x68] sm:$0xff]
    %v4320 = vld [vmem:[%s4305 + $0x70] sm:$0xff]
    %v4321 = vld [vmem:[%s4305 + $0x78] sm:$0xff]
    %4322 = vmatpush.msra.mxu0 %v4321
    %4323 = vmatpush.msra.mxu0 %v4320
    %4324 = vmatpush.msra.mxu0 %v4319
    %4325 = vmatpush.msra.mxu0 %v4318
    %4326 = vmatpush.msra.mxu0 %v4317
    %4327 = vmatpush.msra.mxu0 %v4316
    %4328 = vmatpush.msra.mxu0 %v4315
    %4329 = vmatpush.msra.mxu0 %v4314
    %4330 = vmatpush.msra.mxu0 %v4313
    %4331 = vmatpush.msra.mxu0 %v4312
    %4332 = vmatpush.msra.mxu0 %v4311
    %4333 = vmatpush.msra.mxu0 %v4310
    %4334 = vmatpush.msra.mxu0 %v4309
    %4335 = vmatpush.msra.mxu0 %v4308
    %4336 = vmatpush.msra.mxu0 %v4307
    %4337 = vmatpush.msra.mxu0 %v4306
    %4338 = vmatmul.f32.gmra.mxu0 %v4167
    %v4339 = vpop.f32.mrf.mxu0
    %v4340 = vadd.f32 0.0, %v4339
    %4341 = vmatmul.f32.gmra.mxu0 %v4166
    %v4342 = vpop.f32.mrf.mxu0
    %v4343 = vadd.f32 0.0, %v4342
    %4344 = vmatmul.f32.gmra.mxu0 %v4165
    %v4345 = vpop.f32.mrf.mxu0
    %v4346 = vadd.f32 0.0, %v4345
    %4347 = vmatmul.f32.gmra.mxu0 %v4164
    %v4348 = vpop.f32.mrf.mxu0
    %v4349 = vadd.f32 0.0, %v4348
    %4350 = vmatmul.f32.gmra.mxu0 %v4163
    %v4351 = vpop.f32.mrf.mxu0
    %v4352 = vadd.f32 0.0, %v4351
    %4353 = vmatmul.f32.gmra.mxu0 %v4162
    %v4354 = vpop.f32.mrf.mxu0
    %v4355 = vadd.f32 0.0, %v4354
    %4356 = vmatmul.f32.gmra.mxu0 %v4161
    %v4357 = vpop.f32.mrf.mxu0
    %v4358 = vadd.f32 0.0, %v4357
    %4359 = vmatmul.f32.gmra.mxu0 %v4160
    %v4360 = vpop.f32.mrf.mxu0
    %v4361 = vadd.f32 0.0, %v4360
    %4362 = vmatmul.f32.gmra.mxu0 %v4159
    %v4363 = vpop.f32.mrf.mxu0
    %v4364 = vadd.f32 0.0, %v4363
    %4365 = vmatmul.f32.gmra.mxu0 %v4158
    %v4366 = vpop.f32.mrf.mxu0
    %v4367 = vadd.f32 0.0, %v4366
    %4368 = vmatmul.f32.gmra.mxu0 %v4157
    %v4369 = vpop.f32.mrf.mxu0
    %v4370 = vadd.f32 0.0, %v4369
    %4371 = vmatmul.f32.gmra.mxu0 %v4156
    %v4372 = vpop.f32.mrf.mxu0
    %v4373 = vadd.f32 0.0, %v4372
    %4374 = vmatmul.f32.gmra.mxu0 %v4155
    %v4375 = vpop.f32.mrf.mxu0
    %v4376 = vadd.f32 0.0, %v4375
    %4377 = vmatmul.f32.gmra.mxu0 %v4154
    %v4378 = vpop.f32.mrf.mxu0
    %v4379 = vadd.f32 0.0, %v4378
    %4380 = vmatmul.f32.gmra.mxu0 %v4153
    %v4381 = vpop.f32.mrf.mxu0
    %v4382 = vadd.f32 0.0, %v4381
    %4383 = vmatmul.f32.gmra.mxu0 %v4152
    %v4384 = vpop.f32.mrf.mxu0
    %v4385 = vadd.f32 0.0, %v4384
    %4386 = vmatmul.f32.gmra.mxu0 %v4151
    %v4387 = vpop.f32.mrf.mxu0
    %v4388 = vadd.f32 0.0, %v4387
    %4389 = vmatmul.f32.gmra.mxu0 %v4150
    %v4390 = vpop.f32.mrf.mxu0
    %v4391 = vadd.f32 0.0, %v4390
    %4392 = vmatmul.f32.gmra.mxu0 %v4149
    %v4393 = vpop.f32.mrf.mxu0
    %v4394 = vadd.f32 0.0, %v4393
    %4395 = vmatmul.f32.gmra.mxu0 %v4148
    %v4396 = vpop.f32.mrf.mxu0
    %v4397 = vadd.f32 0.0, %v4396
    %4398 = vmatmul.f32.gmra.mxu0 %v4147
    %v4399 = vpop.f32.mrf.mxu0
    %v4400 = vadd.f32 0.0, %v4399
    %4401 = vmatmul.f32.gmra.mxu0 %v4146
    %v4402 = vpop.f32.mrf.mxu0
    %v4403 = vadd.f32 0.0, %v4402
    %4404 = vmatmul.f32.gmra.mxu0 %v4170
    %v4405 = vpop.f32.mrf.mxu0
    %v4406 = vadd.f32 0.0, %v4405
    %4407 = vmatmul.f32.gmra.mxu0 %v4169
    %v4408 = vpop.f32.mrf.mxu0
    %v4409 = vadd.f32 0.0, %v4408
    %4410 = vmatmul.f32.gmra.mxu0 %v4168
    %v4411 = vpop.f32.mrf.mxu0
    %v4412 = vadd.f32 0.0, %v4411
    %4413 = vdwg.mxu0
    %v4414 = vadd.f32 %v4280, %v4340
    %v4415 = vadd.f32 %v4281, %v4343
    %v4416 = vadd.f32 %v4282, %v4346
    %v4417 = vadd.f32 %v4283, %v4349
    %v4418 = vadd.f32 %v4284, %v4352
    %v4419 = vadd.f32 %v4285, %v4355
    %v4420 = vadd.f32 %v4286, %v4358
    %v4421 = vadd.f32 %v4287, %v4361
    %v4422 = vadd.f32 %v4288, %v4364
    %v4423 = vadd.f32 %v4289, %v4367
    %v4424 = vadd.f32 %v4290, %v4370
    %v4425 = vadd.f32 %v4291, %v4373
    %v4426 = vadd.f32 %v4292, %v4376
    %v4427 = vadd.f32 %v4293, %v4379
    %v4428 = vadd.f32 %v4294, %v4382
    %v4429 = vadd.f32 %v4295, %v4385
    %v4430 = vadd.f32 %v4296, %v4388
    %v4431 = vadd.f32 %v4297, %v4391
    %v4432 = vadd.f32 %v4298, %v4394
    %v4433 = vadd.f32 %v4299, %v4397
    %v4434 = vadd.f32 %v4300, %v4400
    %v4435 = vadd.f32 %v4301, %v4403
    %v4436 = vadd.f32 %v4302, %v4406
    %v4437 = vadd.f32 %v4303, %v4409
    %v4438 = vadd.f32 %v4304, %v4412
    %v4439 = vrot.slane %v3298, 5
    %v4440 = vrot.slane %v3299, 5
    %v4441 = vrot.slane %v3300, 5
    %v4442 = vrot.slane %v3301, 5
    %v4443 = vrot.slane %v3302, 5
    %v4444 = vrot.slane %v3303, 5
    %v4445 = vrot.slane %v3304, 5
    %v4446 = vrot.slane %v3305, 5
    %v4447 = vrot.slane %v3306, 5
    %v4448 = vrot.slane %v3307, 5
    %v4449 = vrot.slane %v3308, 5
    %v4450 = vrot.slane %v3309, 5
    %v4451 = vrot.slane %v3310, 5
    %v4452 = vrot.slane %v3311, 5
    %v4453 = vrot.slane %v3312, 5
    %v4454 = vrot.slane %v3313, 5
    %v4455 = vrot.slane %v3314, 5
    %v4456 = vrot.slane %v3315, 5
    %v4457 = vrot.slane %v3316, 5
    %v4458 = vrot.slane %v3317, 5
    %v4459 = vrot.slane %v3318, 5
    %v4460 = vrot.slane %v3319, 5
    %v4461 = vrot.slane %v3320, 5
    %v4462 = vrot.slane %v3321, 5
    %v4463 = vrot.slane %v3322, 5
    %v4464 = vsel %vm1444, %v4462, %v4463
    %v4465 = vsel %vm1444, %v4461, %v4462
    %v4466 = vsel %vm1444, %v4460, %v4461
    %v4467 = vsel %vm1444, %v4459, %v4460
    %v4468 = vsel %vm1444, %v4458, %v4459
    %v4469 = vsel %vm1444, %v4457, %v4458
    %v4470 = vsel %vm1444, %v4456, %v4457
    %v4471 = vsel %vm1444, %v4455, %v4456
    %v4472 = vsel %vm1444, %v4454, %v4455
    %v4473 = vsel %vm1444, %v4453, %v4454
    %v4474 = vsel %vm1444, %v4452, %v4453
    %v4475 = vsel %vm1444, %v4451, %v4452
    %v4476 = vsel %vm1444, %v4450, %v4451
    %v4477 = vsel %vm1444, %v4449, %v4450
    %v4478 = vsel %vm1444, %v4448, %v4449
    %v4479 = vsel %vm1444, %v4447, %v4448
    %v4480 = vsel %vm1444, %v4446, %v4447
    %v4481 = vsel %vm1444, %v4445, %v4446
    %v4482 = vsel %vm1444, %v4444, %v4445
    %v4483 = vsel %vm1444, %v4443, %v4444
    %v4484 = vsel %vm1444, %v4442, %v4443
    %v4485 = vsel %vm1444, %v4441, %v4442
    %v4486 = vsel %vm1444, %v4440, %v4441
    %v4487 = vsel %vm1444, %v4439, %v4440
    %v4488 = vsel %vm1444, %v4463, %v4439
    %s4489 = scalar_lea.vmem %s8, 896
    %v4490 = vld [vmem:[%s4489] sm:$0xff]
    %v4491 = vld [vmem:[%s4489 + $0x8] sm:$0xff]
    %v4492 = vld [vmem:[%s4489 + $0x10] sm:$0xff]
    %v4493 = vld [vmem:[%s4489 + $0x18] sm:$0xff]
    %v4494 = vld [vmem:[%s4489 + $0x20] sm:$0xff]
    %v4495 = vld [vmem:[%s4489 + $0x28] sm:$0xff]
    %v4496 = vld [vmem:[%s4489 + $0x30] sm:$0xff]
    %v4497 = vld [vmem:[%s4489 + $0x38] sm:$0xff]
    %v4498 = vld [vmem:[%s4489 + $0x40] sm:$0xff]
    %v4499 = vld [vmem:[%s4489 + $0x48] sm:$0xff]
    %v4500 = vld [vmem:[%s4489 + $0x50] sm:$0xff]
    %v4501 = vld [vmem:[%s4489 + $0x58] sm:$0xff]
    %v4502 = vld [vmem:[%s4489 + $0x60] sm:$0xff]
    %v4503 = vld [vmem:[%s4489 + $0x68] sm:$0xff]
    %v4504 = vld [vmem:[%s4489 + $0x70] sm:$0xff]
    %v4505 = vld [vmem:[%s4489 + $0x78] sm:$0xff]
    %4506 = vmatpush.msra.mxu0 %v4505
    %4507 = vmatpush.msra.mxu0 %v4504
    %4508 = vmatpush.msra.mxu0 %v4503
    %4509 = vmatpush.msra.mxu0 %v4502
    %4510 = vmatpush.msra.mxu0 %v4501
    %4511 = vmatpush.msra.mxu0 %v4500
    %4512 = vmatpush.msra.mxu0 %v4499
    %4513 = vmatpush.msra.mxu0 %v4498
    %4514 = vmatpush.msra.mxu0 %v4497
    %4515 = vmatpush.msra.mxu0 %v4496
    %4516 = vmatpush.msra.mxu0 %v4495
    %4517 = vmatpush.msra.mxu0 %v4494
    %4518 = vmatpush.msra.mxu0 %v4493
    %4519 = vmatpush.msra.mxu0 %v4492
    %4520 = vmatpush.msra.mxu0 %v4491
    %4521 = vmatpush.msra.mxu0 %v4490
    %4522 = vmatmul.f32.gmra.mxu0 %v4485
    %v4523 = vpop.f32.mrf.mxu0
    %v4524 = vadd.f32 0.0, %v4523
    %4525 = vmatmul.f32.gmra.mxu0 %v4484
    %v4526 = vpop.f32.mrf.mxu0
    %v4527 = vadd.f32 0.0, %v4526
    %4528 = vmatmul.f32.gmra.mxu0 %v4483
    %v4529 = vpop.f32.mrf.mxu0
    %v4530 = vadd.f32 0.0, %v4529
    %4531 = vmatmul.f32.gmra.mxu0 %v4482
    %v4532 = vpop.f32.mrf.mxu0
    %v4533 = vadd.f32 0.0, %v4532
    %4534 = vmatmul.f32.gmra.mxu0 %v4481
    %v4535 = vpop.f32.mrf.mxu0
    %v4536 = vadd.f32 0.0, %v4535
    %4537 = vmatmul.f32.gmra.mxu0 %v4480
    %v4538 = vpop.f32.mrf.mxu0
    %v4539 = vadd.f32 0.0, %v4538
    %4540 = vmatmul.f32.gmra.mxu0 %v4479
    %v4541 = vpop.f32.mrf.mxu0
    %v4542 = vadd.f32 0.0, %v4541
    %4543 = vmatmul.f32.gmra.mxu0 %v4478
    %v4544 = vpop.f32.mrf.mxu0
    %v4545 = vadd.f32 0.0, %v4544
    %4546 = vmatmul.f32.gmra.mxu0 %v4477
    %v4547 = vpop.f32.mrf.mxu0
    %v4548 = vadd.f32 0.0, %v4547
    %4549 = vmatmul.f32.gmra.mxu0 %v4476
    %v4550 = vpop.f32.mrf.mxu0
    %v4551 = vadd.f32 0.0, %v4550
    %4552 = vmatmul.f32.gmra.mxu0 %v4475
    %v4553 = vpop.f32.mrf.mxu0
    %v4554 = vadd.f32 0.0, %v4553
    %4555 = vmatmul.f32.gmra.mxu0 %v4474
    %v4556 = vpop.f32.mrf.mxu0
    %v4557 = vadd.f32 0.0, %v4556
    %4558 = vmatmul.f32.gmra.mxu0 %v4473
    %v4559 = vpop.f32.mrf.mxu0
    %v4560 = vadd.f32 0.0, %v4559
    %4561 = vmatmul.f32.gmra.mxu0 %v4472
    %v4562 = vpop.f32.mrf.mxu0
    %v4563 = vadd.f32 0.0, %v4562
    %4564 = vmatmul.f32.gmra.mxu0 %v4471
    %v4565 = vpop.f32.mrf.mxu0
    %v4566 = vadd.f32 0.0, %v4565
    %4567 = vmatmul.f32.gmra.mxu0 %v4470
    %v4568 = vpop.f32.mrf.mxu0
    %v4569 = vadd.f32 0.0, %v4568
    %4570 = vmatmul.f32.gmra.mxu0 %v4469
    %v4571 = vpop.f32.mrf.mxu0
    %v4572 = vadd.f32 0.0, %v4571
    %4573 = vmatmul.f32.gmra.mxu0 %v4468
    %v4574 = vpop.f32.mrf.mxu0
    %v4575 = vadd.f32 0.0, %v4574
    %4576 = vmatmul.f32.gmra.mxu0 %v4467
    %v4577 = vpop.f32.mrf.mxu0
    %v4578 = vadd.f32 0.0, %v4577
    %4579 = vmatmul.f32.gmra.mxu0 %v4466
    %v4580 = vpop.f32.mrf.mxu0
    %v4581 = vadd.f32 0.0, %v4580
    %4582 = vmatmul.f32.gmra.mxu0 %v4465
    %v4583 = vpop.f32.mrf.mxu0
    %v4584 = vadd.f32 0.0, %v4583
    %4585 = vmatmul.f32.gmra.mxu0 %v4464
    %v4586 = vpop.f32.mrf.mxu0
    %v4587 = vadd.f32 0.0, %v4586
    %4588 = vmatmul.f32.gmra.mxu0 %v4488
    %v4589 = vpop.f32.mrf.mxu0
    %v4590 = vadd.f32 0.0, %v4589
    %4591 = vmatmul.f32.gmra.mxu0 %v4487
    %v4592 = vpop.f32.mrf.mxu0
    %v4593 = vadd.f32 0.0, %v4592
    %4594 = vmatmul.f32.gmra.mxu0 %v4486
    %v4595 = vpop.f32.mrf.mxu0
    %v4596 = vadd.f32 0.0, %v4595
    %4597 = vdwg.mxu0
    %v4598 = vadd.f32 %v4414, %v4524
    %v4599 = vadd.f32 %v4415, %v4527
    %v4600 = vadd.f32 %v4416, %v4530
    %v4601 = vadd.f32 %v4417, %v4533
    %v4602 = vadd.f32 %v4418, %v4536
    %v4603 = vadd.f32 %v4419, %v4539
    %v4604 = vadd.f32 %v4420, %v4542
    %v4605 = vadd.f32 %v4421, %v4545
    %v4606 = vadd.f32 %v4422, %v4548
    %v4607 = vadd.f32 %v4423, %v4551
    %v4608 = vadd.f32 %v4424, %v4554
    %v4609 = vadd.f32 %v4425, %v4557
    %v4610 = vadd.f32 %v4426, %v4560
    %v4611 = vadd.f32 %v4427, %v4563
    %v4612 = vadd.f32 %v4428, %v4566
    %v4613 = vadd.f32 %v4429, %v4569
    %v4614 = vadd.f32 %v4430, %v4572
    %v4615 = vadd.f32 %v4431, %v4575
    %v4616 = vadd.f32 %v4432, %v4578
    %v4617 = vadd.f32 %v4433, %v4581
    %v4618 = vadd.f32 %v4434, %v4584
    %v4619 = vadd.f32 %v4435, %v4587
    %v4620 = vadd.f32 %v4436, %v4590
    %v4621 = vadd.f32 %v4437, %v4593
    %v4622 = vadd.f32 %v4438, %v4596
    %v4623 = vrot.slane %v3298, 6
    %v4624 = vrot.slane %v3299, 6
    %v4625 = vrot.slane %v3300, 6
    %v4626 = vrot.slane %v3301, 6
    %v4627 = vrot.slane %v3302, 6
    %v4628 = vrot.slane %v3303, 6
    %v4629 = vrot.slane %v3304, 6
    %v4630 = vrot.slane %v3305, 6
    %v4631 = vrot.slane %v3306, 6
    %v4632 = vrot.slane %v3307, 6
    %v4633 = vrot.slane %v3308, 6
    %v4634 = vrot.slane %v3309, 6
    %v4635 = vrot.slane %v3310, 6
    %v4636 = vrot.slane %v3311, 6
    %v4637 = vrot.slane %v3312, 6
    %v4638 = vrot.slane %v3313, 6
    %v4639 = vrot.slane %v3314, 6
    %v4640 = vrot.slane %v3315, 6
    %v4641 = vrot.slane %v3316, 6
    %v4642 = vrot.slane %v3317, 6
    %v4643 = vrot.slane %v3318, 6
    %v4644 = vrot.slane %v3319, 6
    %v4645 = vrot.slane %v3320, 6
    %v4646 = vrot.slane %v3321, 6
    %v4647 = vrot.slane %v3322, 6
    %v4648 = vsel %vm1629, %v4646, %v4647
    %v4649 = vsel %vm1629, %v4645, %v4646
    %v4650 = vsel %vm1629, %v4644, %v4645
    %v4651 = vsel %vm1629, %v4643, %v4644
    %v4652 = vsel %vm1629, %v4642, %v4643
    %v4653 = vsel %vm1629, %v4641, %v4642
    %v4654 = vsel %vm1629, %v4640, %v4641
    %v4655 = vsel %vm1629, %v4639, %v4640
    %v4656 = vsel %vm1629, %v4638, %v4639
    %v4657 = vsel %vm1629, %v4637, %v4638
    %v4658 = vsel %vm1629, %v4636, %v4637
    %v4659 = vsel %vm1629, %v4635, %v4636
    %v4660 = vsel %vm1629, %v4634, %v4635
    %v4661 = vsel %vm1629, %v4633, %v4634
    %v4662 = vsel %vm1629, %v4632, %v4633
    %v4663 = vsel %vm1629, %v4631, %v4632
    %v4664 = vsel %vm1629, %v4630, %v4631
    %v4665 = vsel %vm1629, %v4629, %v4630
    %v4666 = vsel %vm1629, %v4628, %v4629
    %v4667 = vsel %vm1629, %v4627, %v4628
    %v4668 = vsel %vm1629, %v4626, %v4627
    %v4669 = vsel %vm1629, %v4625, %v4626
    %v4670 = vsel %vm1629, %v4624, %v4625
    %v4671 = vsel %vm1629, %v4623, %v4624
    %v4672 = vsel %vm1629, %v4647, %v4623
    %s4673 = scalar_lea.vmem %s8, 1024
    %v4674 = vld [vmem:[%s4673] sm:$0xff]
    %v4675 = vld [vmem:[%s4673 + $0x8] sm:$0xff]
    %v4676 = vld [vmem:[%s4673 + $0x10] sm:$0xff]
    %v4677 = vld [vmem:[%s4673 + $0x18] sm:$0xff]
    %v4678 = vld [vmem:[%s4673 + $0x20] sm:$0xff]
    %v4679 = vld [vmem:[%s4673 + $0x28] sm:$0xff]
    %v4680 = vld [vmem:[%s4673 + $0x30] sm:$0xff]
    %v4681 = vld [vmem:[%s4673 + $0x38] sm:$0xff]
    %v4682 = vld [vmem:[%s4673 + $0x40] sm:$0xff]
    %v4683 = vld [vmem:[%s4673 + $0x48] sm:$0xff]
    %v4684 = vld [vmem:[%s4673 + $0x50] sm:$0xff]
    %v4685 = vld [vmem:[%s4673 + $0x58] sm:$0xff]
    %v4686 = vld [vmem:[%s4673 + $0x60] sm:$0xff]
    %v4687 = vld [vmem:[%s4673 + $0x68] sm:$0xff]
    %v4688 = vld [vmem:[%s4673 + $0x70] sm:$0xff]
    %v4689 = vld [vmem:[%s4673 + $0x78] sm:$0xff]
    %4690 = vmatpush.msra.mxu0 %v4689
    %4691 = vmatpush.msra.mxu0 %v4688
    %4692 = vmatpush.msra.mxu0 %v4687
    %4693 = vmatpush.msra.mxu0 %v4686
    %4694 = vmatpush.msra.mxu0 %v4685
    %4695 = vmatpush.msra.mxu0 %v4684
    %4696 = vmatpush.msra.mxu0 %v4683
    %4697 = vmatpush.msra.mxu0 %v4682
    %4698 = vmatpush.msra.mxu0 %v4681
    %4699 = vmatpush.msra.mxu0 %v4680
    %4700 = vmatpush.msra.mxu0 %v4679
    %4701 = vmatpush.msra.mxu0 %v4678
    %4702 = vmatpush.msra.mxu0 %v4677
    %4703 = vmatpush.msra.mxu0 %v4676
    %4704 = vmatpush.msra.mxu0 %v4675
    %4705 = vmatpush.msra.mxu0 %v4674
    %4706 = vmatmul.f32.gmra.mxu0 %v4669
    %v4707 = vpop.f32.mrf.mxu0
    %v4708 = vadd.f32 0.0, %v4707
    %4709 = vmatmul.f32.gmra.mxu0 %v4668
    %v4710 = vpop.f32.mrf.mxu0
    %v4711 = vadd.f32 0.0, %v4710
    %4712 = vmatmul.f32.gmra.mxu0 %v4667
    %v4713 = vpop.f32.mrf.mxu0
    %v4714 = vadd.f32 0.0, %v4713
    %4715 = vmatmul.f32.gmra.mxu0 %v4666
    %v4716 = vpop.f32.mrf.mxu0
    %v4717 = vadd.f32 0.0, %v4716
    %4718 = vmatmul.f32.gmra.mxu0 %v4665
    %v4719 = vpop.f32.mrf.mxu0
    %v4720 = vadd.f32 0.0, %v4719
    %4721 = vmatmul.f32.gmra.mxu0 %v4664
    %v4722 = vpop.f32.mrf.mxu0
    %v4723 = vadd.f32 0.0, %v4722
    %4724 = vmatmul.f32.gmra.mxu0 %v4663
    %v4725 = vpop.f32.mrf.mxu0
    %v4726 = vadd.f32 0.0, %v4725
    %4727 = vmatmul.f32.gmra.mxu0 %v4662
    %v4728 = vpop.f32.mrf.mxu0
    %v4729 = vadd.f32 0.0, %v4728
    %4730 = vmatmul.f32.gmra.mxu0 %v4661
    %v4731 = vpop.f32.mrf.mxu0
    %v4732 = vadd.f32 0.0, %v4731
    %4733 = vmatmul.f32.gmra.mxu0 %v4660
    %v4734 = vpop.f32.mrf.mxu0
    %v4735 = vadd.f32 0.0, %v4734
    %4736 = vmatmul.f32.gmra.mxu0 %v4659
    %v4737 = vpop.f32.mrf.mxu0
    %v4738 = vadd.f32 0.0, %v4737
    %4739 = vmatmul.f32.gmra.mxu0 %v4658
    %v4740 = vpop.f32.mrf.mxu0
    %v4741 = vadd.f32 0.0, %v4740
    %4742 = vmatmul.f32.gmra.mxu0 %v4657
    %v4743 = vpop.f32.mrf.mxu0
    %v4744 = vadd.f32 0.0, %v4743
    %4745 = vmatmul.f32.gmra.mxu0 %v4656
    %v4746 = vpop.f32.mrf.mxu0
    %v4747 = vadd.f32 0.0, %v4746
    %4748 = vmatmul.f32.gmra.mxu0 %v4655
    %v4749 = vpop.f32.mrf.mxu0
    %v4750 = vadd.f32 0.0, %v4749
    %4751 = vmatmul.f32.gmra.mxu0 %v4654
    %v4752 = vpop.f32.mrf.mxu0
    %v4753 = vadd.f32 0.0, %v4752
    %4754 = vmatmul.f32.gmra.mxu0 %v4653
    %v4755 = vpop.f32.mrf.mxu0
    %v4756 = vadd.f32 0.0, %v4755
    %4757 = vmatmul.f32.gmra.mxu0 %v4652
    %v4758 = vpop.f32.mrf.mxu0
    %v4759 = vadd.f32 0.0, %v4758
    %4760 = vmatmul.f32.gmra.mxu0 %v4651
    %v4761 = vpop.f32.mrf.mxu0
    %v4762 = vadd.f32 0.0, %v4761
    %4763 = vmatmul.f32.gmra.mxu0 %v4650
    %v4764 = vpop.f32.mrf.mxu0
    %v4765 = vadd.f32 0.0, %v4764
    %4766 = vmatmul.f32.gmra.mxu0 %v4649
    %v4767 = vpop.f32.mrf.mxu0
    %v4768 = vadd.f32 0.0, %v4767
    %4769 = vmatmul.f32.gmra.mxu0 %v4648
    %v4770 = vpop.f32.mrf.mxu0
    %v4771 = vadd.f32 0.0, %v4770
    %4772 = vmatmul.f32.gmra.mxu0 %v4672
    %v4773 = vpop.f32.mrf.mxu0
    %v4774 = vadd.f32 0.0, %v4773
    %4775 = vmatmul.f32.gmra.mxu0 %v4671
    %v4776 = vpop.f32.mrf.mxu0
    %v4777 = vadd.f32 0.0, %v4776
    %4778 = vmatmul.f32.gmra.mxu0 %v4670
    %v4779 = vpop.f32.mrf.mxu0
    %v4780 = vadd.f32 0.0, %v4779
    %4781 = vdwg.mxu0
    %v4782 = vadd.f32 %v4598, %v4708
    %v4783 = vadd.f32 %v4599, %v4711
    %v4784 = vadd.f32 %v4600, %v4714
    %v4785 = vadd.f32 %v4601, %v4717
    %v4786 = vadd.f32 %v4602, %v4720
    %v4787 = vadd.f32 %v4603, %v4723
    %v4788 = vadd.f32 %v4604, %v4726
    %v4789 = vadd.f32 %v4605, %v4729
    %v4790 = vadd.f32 %v4606, %v4732
    %v4791 = vadd.f32 %v4607, %v4735
    %v4792 = vadd.f32 %v4608, %v4738
    %v4793 = vadd.f32 %v4609, %v4741
    %v4794 = vadd.f32 %v4610, %v4744
    %v4795 = vadd.f32 %v4611, %v4747
    %v4796 = vadd.f32 %v4612, %v4750
    %v4797 = vadd.f32 %v4613, %v4753
    %v4798 = vadd.f32 %v4614, %v4756
    %v4799 = vadd.f32 %v4615, %v4759
    %v4800 = vadd.f32 %v4616, %v4762
    %v4801 = vadd.f32 %v4617, %v4765
    %v4802 = vadd.f32 %v4618, %v4768
    %v4803 = vadd.f32 %v4619, %v4771
    %v4804 = vadd.f32 %v4620, %v4774
    %v4805 = vadd.f32 %v4621, %v4777
    %v4806 = vadd.f32 %v4622, %v4780
    %v4807 = vmax.f32 %v4782, 0.0
    %v4808 = vmax.f32 %v4783, 0.0
    %v4809 = vmax.f32 %v4784, 0.0
    %v4810 = vmax.f32 %v4785, 0.0
    %v4811 = vmax.f32 %v4786, 0.0
    %v4812 = vmax.f32 %v4787, 0.0
    %v4813 = vmax.f32 %v4788, 0.0
    %v4814 = vmax.f32 %v4789, 0.0
    %v4815 = vmax.f32 %v4790, 0.0
    %v4816 = vmax.f32 %v4791, 0.0
    %v4817 = vmax.f32 %v4792, 0.0
    %v4818 = vmax.f32 %v4793, 0.0
    %v4819 = vmax.f32 %v4794, 0.0
    %v4820 = vmax.f32 %v4795, 0.0
    %v4821 = vmax.f32 %v4796, 0.0
    %v4822 = vmax.f32 %v4797, 0.0
    %v4823 = vmax.f32 %v4798, 0.0
    %v4824 = vmax.f32 %v4799, 0.0
    %v4825 = vmax.f32 %v4800, 0.0
    %v4826 = vmax.f32 %v4801, 0.0
    %v4827 = vmax.f32 %v4802, 0.0
    %v4828 = vmax.f32 %v4803, 0.0
    %v4829 = vmax.f32 %v4804, 0.0
    %v4830 = vmax.f32 %v4805, 0.0
    %v4831 = vmax.f32 %v4806, 0.0
    %v4832 = vld [vmem:[%s1] sm:$0x3]
    %v4833 = vld [vmem:[%s11] sm:$0xff]
    %v4834 = vld [vmem:[%s11 + $0x8] sm:$0xff]
    %v4835 = vld [vmem:[%s11 + $0x10] sm:$0xff]
    %v4836 = vld [vmem:[%s11 + $0x18] sm:$0xff]
    %v4837 = vld [vmem:[%s11 + $0x20] sm:$0xff]
    %v4838 = vld [vmem:[%s11 + $0x28] sm:$0xff]
    %v4839 = vld [vmem:[%s11 + $0x30] sm:$0xff]
    %v4840 = vld [vmem:[%s11 + $0x38] sm:$0xff]
    %v4841 = vld [vmem:[%s12] sm:$0xf]
    %v4843 = vperm.slane %v4841, 0
    %v4844 = vperm.slane %v4841, 1
    %v4845 = vperm.slane %v4841, 2
    %v4846 = vperm.slane %v4841, 3
    %vm4851 = vcmask 130048
    %v4853 = vsel %vm4851, %v4832, 0
    %4855 = vmatpush.msra.mxu0 0.0
    %4856 = vmatpush.msra.mxu0 0.0
    %4857 = vmatpush.msra.mxu0 0.0
    %4858 = vmatpush.msra.mxu0 0.0
    %4859 = vmatpush.msra.mxu0 0.0
    %4860 = vmatpush.msra.mxu0 0.0
    %4861 = vmatpush.msra.mxu0 0.0
    %4862 = vmatpush.msra.mxu0 0.0
    %4863 = vmatpush.msra.mxu0 0.0
    %4864 = vmatpush.msra.mxu0 0.0
    %4865 = vmatpush.msra.mxu0 0.0
    %4866 = vmatpush.msra.mxu0 0.0
    %4867 = vmatpush.msra.mxu0 0.0
    %4868 = vmatpush.msra.mxu0 0.0
    %4869 = vmatpush.msra.mxu0 %v4837
    %4870 = vmatpush.msra.mxu0 %v4833
    %4871 = vmatmul.f32.gmra.mxu0 %v4853
    %v4872 = vpop.f32.mrf.mxu0
    %v4873 = vadd.f32 %v4843, %v4872
    %4874 = vdwg.mxu0
    %4875 = vmatpush.msra.mxu0 0.0
    %4876 = vmatpush.msra.mxu0 0.0
    %4877 = vmatpush.msra.mxu0 0.0
    %4878 = vmatpush.msra.mxu0 0.0
    %4879 = vmatpush.msra.mxu0 0.0
    %4880 = vmatpush.msra.mxu0 0.0
    %4881 = vmatpush.msra.mxu0 0.0
    %4882 = vmatpush.msra.mxu0 0.0
    %4883 = vmatpush.msra.mxu0 0.0
    %4884 = vmatpush.msra.mxu0 0.0
    %4885 = vmatpush.msra.mxu0 0.0
    %4886 = vmatpush.msra.mxu0 0.0
    %4887 = vmatpush.msra.mxu0 0.0
    %4888 = vmatpush.msra.mxu0 0.0
    %4889 = vmatpush.msra.mxu0 %v4838
    %4890 = vmatpush.msra.mxu0 %v4834
    %4891 = vmatmul.f32.gmra.mxu0 %v4853
    %v4892 = vpop.f32.mrf.mxu0
    %v4893 = vadd.f32 %v4844, %v4892
    %4894 = vdwg.mxu0
    %4895 = vmatpush.msra.mxu0 0.0
    %4896 = vmatpush.msra.mxu0 0.0
    %4897 = vmatpush.msra.mxu0 0.0
    %4898 = vmatpush.msra.mxu0 0.0
    %4899 = vmatpush.msra.mxu0 0.0
    %4900 = vmatpush.msra.mxu0 0.0
    %4901 = vmatpush.msra.mxu0 0.0
    %4902 = vmatpush.msra.mxu0 0.0
    %4903 = vmatpush.msra.mxu0 0.0
    %4904 = vmatpush.msra.mxu0 0.0
    %4905 = vmatpush.msra.mxu0 0.0
    %4906 = vmatpush.msra.mxu0 0.0
    %4907 = vmatpush.msra.mxu0 0.0
    %4908 = vmatpush.msra.mxu0 0.0
    %4909 = vmatpush.msra.mxu0 %v4839
    %4910 = vmatpush.msra.mxu0 %v4835
    %4911 = vmatmul.f32.gmra.mxu0 %v4853
    %v4912 = vpop.f32.mrf.mxu0
    %v4913 = vadd.f32 %v4845, %v4912
    %4914 = vdwg.mxu0
    %4915 = vmatpush.msra.mxu0 0.0
    %4916 = vmatpush.msra.mxu0 0.0
    %4917 = vmatpush.msra.mxu0 0.0
    %4918 = vmatpush.msra.mxu0 0.0
    %4919 = vmatpush.msra.mxu0 0.0
    %4920 = vmatpush.msra.mxu0 0.0
    %4921 = vmatpush.msra.mxu0 0.0
    %4922 = vmatpush.msra.mxu0 0.0
    %4923 = vmatpush.msra.mxu0 0.0
    %4924 = vmatpush.msra.mxu0 0.0
    %4925 = vmatpush.msra.mxu0 0.0
    %4926 = vmatpush.msra.mxu0 0.0
    %4927 = vmatpush.msra.mxu0 0.0
    %4928 = vmatpush.msra.mxu0 0.0
    %4929 = vmatpush.msra.mxu0 %v4840
    %4930 = vmatpush.msra.mxu0 %v4836
    %4931 = vmatmul.f32.gmra.mxu0 %v4853
    %v4932 = vpop.f32.mrf.mxu0
    %v4933 = vadd.f32 %v4846, %v4932
    %4934 = vdwg.mxu0
    %v4935 = vmax.f32 %v4873, 0.0
    %v4936 = vmax.f32 %v4893, 0.0
    %v4937 = vmax.f32 %v4913, 0.0
    %v4938 = vmax.f32 %v4933, 0.0
    %v4939 = vld [vmem:[%s14] sm:$0xff]
    %v4940 = vld [vmem:[%s14 + $0x8] sm:$0xff]
    %v4941 = vld [vmem:[%s14 + $0x10] sm:$0xff]
    %v4942 = vld [vmem:[%s14 + $0x18] sm:$0xff]
    %v4943 = vld [vmem:[%s14 + $0x20] sm:$0xff]
    %v4944 = vld [vmem:[%s14 + $0x28] sm:$0xff]
    %v4945 = vld [vmem:[%s14 + $0x30] sm:$0xff]
    %v4946 = vld [vmem:[%s14 + $0x38] sm:$0xff]
    %v4947 = vld [vmem:[%s14 + $0x40] sm:$0xff]
    %v4948 = vld [vmem:[%s14 + $0x48] sm:$0xff]
    %v4949 = vld [vmem:[%s14 + $0x50] sm:$0xff]
    %v4950 = vld [vmem:[%s14 + $0x58] sm:$0xff]
    %v4951 = vld [vmem:[%s14 + $0x60] sm:$0xff]
    %v4952 = vld [vmem:[%s14 + $0x68] sm:$0xff]
    %v4953 = vld [vmem:[%s14 + $0x70] sm:$0xff]
    %v4954 = vld [vmem:[%s14 + $0x78] sm:$0xff]
    %v4955 = vld [vmem:[%s14 + $0x80] sm:$0xff]
    %v4956 = vld [vmem:[%s14 + $0x88] sm:$0xff]
    %v4957 = vld [vmem:[%s14 + $0x90] sm:$0xff]
    %v4958 = vld [vmem:[%s14 + $0x98] sm:$0xff]
    %v4959 = vld [vmem:[%s14 + $0xa0] sm:$0xff]
    %v4960 = vld [vmem:[%s14 + $0xa8] sm:$0xff]
    %v4961 = vld [vmem:[%s14 + $0xb0] sm:$0xff]
    %v4962 = vld [vmem:[%s14 + $0xb8] sm:$0xff]
    %v4963 = vld [vmem:[%s14 + $0xc0] sm:$0xff]
    %v4964 = vld [vmem:[%s14 + $0xc8] sm:$0xff]
    %v4965 = vld [vmem:[%s14 + $0xd0] sm:$0xff]
    %v4966 = vld [vmem:[%s14 + $0xd8] sm:$0xff]
    %v4967 = vld [vmem:[%s14 + $0xe0] sm:$0xff]
    %v4968 = vld [vmem:[%s14 + $0xe8] sm:$0xff]
    %v4969 = vld [vmem:[%s14 + $0xf0] sm:$0xff]
    %v4970 = vld [vmem:[%s14 + $0xf8] sm:$0xff]
    %v4971 = vld [vmem:[%s14 + $0x100] sm:$0xff]
    %v4972 = vld [vmem:[%s14 + $0x108] sm:$0xff]
    %v4973 = vld [vmem:[%s14 + $0x110] sm:$0xff]
    %v4974 = vld [vmem:[%s14 + $0x118] sm:$0xff]
    %v4975 = vld [vmem:[%s14 + $0x120] sm:$0xff]
    %v4976 = vld [vmem:[%s14 + $0x128] sm:$0xff]
    %v4977 = vld [vmem:[%s14 + $0x130] sm:$0xff]
    %v4978 = vld [vmem:[%s14 + $0x138] sm:$0xff]
    %v4979 = vld [vmem:[%s14 + $0x140] sm:$0xff]
    %v4980 = vld [vmem:[%s14 + $0x148] sm:$0xff]
    %v4981 = vld [vmem:[%s14 + $0x150] sm:$0xff]
    %v4982 = vld [vmem:[%s14 + $0x158] sm:$0xff]
    %v4983 = vld [vmem:[%s14 + $0x160] sm:$0xff]
    %v4984 = vld [vmem:[%s14 + $0x168] sm:$0xff]
    %v4985 = vld [vmem:[%s14 + $0x170] sm:$0xff]
    %v4986 = vld [vmem:[%s14 + $0x178] sm:$0xff]
    %v4987 = vld [vmem:[%s14 + $0x180] sm:$0xff]
    %v4988 = vld [vmem:[%s14 + $0x188] sm:$0xff]
    %v4989 = vld [vmem:[%s14 + $0x190] sm:$0xff]
    %v4990 = vld [vmem:[%s14 + $0x198] sm:$0xff]
    %v4991 = vld [vmem:[%s14 + $0x1a0] sm:$0xff]
    %v4992 = vld [vmem:[%s14 + $0x1a8] sm:$0xff]
    %v4993 = vld [vmem:[%s14 + $0x1b0] sm:$0xff]
    %v4994 = vld [vmem:[%s14 + $0x1b8] sm:$0xff]
    %v4995 = vld [vmem:[%s14 + $0x1c0] sm:$0xff]
    %v4996 = vld [vmem:[%s14 + $0x1c8] sm:$0xff]
    %v4997 = vld [vmem:[%s14 + $0x1d0] sm:$0xff]
    %v4998 = vld [vmem:[%s14 + $0x1d8] sm:$0xff]
    %v4999 = vld [vmem:[%s14 + $0x1e0] sm:$0xff]
    %v5000 = vld [vmem:[%s14 + $0x1e8] sm:$0xff]
    %v5001 = vld [vmem:[%s14 + $0x1f0] sm:$0xff]
    %v5002 = vld [vmem:[%s14 + $0x1f8] sm:$0xff]
    %v5003 = vld [vmem:[%s14 + $0x200] sm:$0xff]
    %v5004 = vld [vmem:[%s14 + $0x208] sm:$0xff]
    %v5005 = vld [vmem:[%s14 + $0x210] sm:$0xff]
    %v5006 = vld [vmem:[%s14 + $0x218] sm:$0xff]
    %v5007 = vld [vmem:[%s14 + $0x220] sm:$0xff]
    %v5008 = vld [vmem:[%s14 + $0x228] sm:$0xff]
    %v5009 = vld [vmem:[%s14 + $0x230] sm:$0xff]
    %v5010 = vld [vmem:[%s14 + $0x238] sm:$0xff]
    %v5011 = vld [vmem:[%s14 + $0x240] sm:$0xff]
    %v5012 = vld [vmem:[%s14 + $0x248] sm:$0xff]
    %v5013 = vld [vmem:[%s14 + $0x250] sm:$0xff]
    %v5014 = vld [vmem:[%s14 + $0x258] sm:$0xff]
    %v5015 = vld [vmem:[%s14 + $0x260] sm:$0xff]
    %v5016 = vld [vmem:[%s14 + $0x268] sm:$0xff]
    %v5017 = vld [vmem:[%s14 + $0x270] sm:$0xff]
    %v5018 = vld [vmem:[%s14 + $0x278] sm:$0xff]
    %v5019 = vld [vmem:[%s14 + $0x280] sm:$0xff]
    %v5020 = vld [vmem:[%s14 + $0x288] sm:$0xff]
    %v5021 = vld [vmem:[%s14 + $0x290] sm:$0xff]
    %v5022 = vld [vmem:[%s14 + $0x298] sm:$0xff]
    %v5023 = vld [vmem:[%s14 + $0x2a0] sm:$0xff]
    %v5024 = vld [vmem:[%s14 + $0x2a8] sm:$0xff]
    %v5025 = vld [vmem:[%s14 + $0x2b0] sm:$0xff]
    %v5026 = vld [vmem:[%s14 + $0x2b8] sm:$0xff]
    %v5027 = vld [vmem:[%s14 + $0x2c0] sm:$0xff]
    %v5028 = vld [vmem:[%s14 + $0x2c8] sm:$0xff]
    %v5029 = vld [vmem:[%s14 + $0x2d0] sm:$0xff]
    %v5030 = vld [vmem:[%s14 + $0x2d8] sm:$0xff]
    %v5031 = vld [vmem:[%s14 + $0x2e0] sm:$0xff]
    %v5032 = vld [vmem:[%s14 + $0x2e8] sm:$0xff]
    %v5033 = vld [vmem:[%s14 + $0x2f0] sm:$0xff]
    %v5034 = vld [vmem:[%s14 + $0x2f8] sm:$0xff]
    %v5035 = vld [vmem:[%s14 + $0x300] sm:$0xff]
    %v5036 = vld [vmem:[%s14 + $0x308] sm:$0xff]
    %v5037 = vld [vmem:[%s14 + $0x310] sm:$0xff]
    %v5038 = vld [vmem:[%s14 + $0x318] sm:$0xff]
    %v5039 = vld [vmem:[%s14 + $0x320] sm:$0xff]
    %v5040 = vld [vmem:[%s14 + $0x328] sm:$0xff]
    %v5041 = vld [vmem:[%s14 + $0x330] sm:$0xff]
    %v5042 = vld [vmem:[%s14 + $0x338] sm:$0xff]
    %v5043 = vld [vmem:[%s14 + $0x340] sm:$0xff]
    %v5044 = vld [vmem:[%s14 + $0x348] sm:$0xff]
    %v5045 = vld [vmem:[%s14 + $0x350] sm:$0xff]
    %v5046 = vld [vmem:[%s14 + $0x358] sm:$0xff]
    %v5047 = vld [vmem:[%s14 + $0x360] sm:$0xff]
    %v5048 = vld [vmem:[%s14 + $0x368] sm:$0xff]
    %v5049 = vld [vmem:[%s14 + $0x370] sm:$0xff]
    %v5050 = vld [vmem:[%s14 + $0x378] sm:$0xff]
    %v5051 = vld [vmem:[%s14 + $0x380] sm:$0xff]
    %v5052 = vld [vmem:[%s14 + $0x388] sm:$0xff]
    %v5053 = vld [vmem:[%s14 + $0x390] sm:$0xff]
    %v5054 = vld [vmem:[%s14 + $0x398] sm:$0xff]
    %v5055 = vld [vmem:[%s14 + $0x3a0] sm:$0xff]
    %v5056 = vld [vmem:[%s14 + $0x3a8] sm:$0xff]
    %v5057 = vld [vmem:[%s14 + $0x3b0] sm:$0xff]
    %v5058 = vld [vmem:[%s14 + $0x3b8] sm:$0xff]
    %v5059 = vld [vmem:[%s14 + $0x3c0] sm:$0xff]
    %v5060 = vld [vmem:[%s14 + $0x3c8] sm:$0xff]
    %v5061 = vld [vmem:[%s14 + $0x3d0] sm:$0xff]
    %v5062 = vld [vmem:[%s14 + $0x3d8] sm:$0xff]
    %v5063 = vld [vmem:[%s14 + $0x3e0] sm:$0xff]
    %v5064 = vld [vmem:[%s14 + $0x3e8] sm:$0xff]
    %v5065 = vld [vmem:[%s14 + $0x3f0] sm:$0xff]
    %v5066 = vld [vmem:[%s14 + $0x3f8] sm:$0xff]
    %v5067 = vld [vmem:[%s15] sm:$0x3]
    %v5069 = vperm.slane %v5067, 0
    %v5070 = vperm.slane %v5067, 1
    %5073 = vmatpush.msra.mxu0 %v4969
    %5074 = vmatpush.msra.mxu0 %v4967
    %5075 = vmatpush.msra.mxu0 %v4965
    %5076 = vmatpush.msra.mxu0 %v4963
    %5077 = vmatpush.msra.mxu0 %v4961
    %5078 = vmatpush.msra.mxu0 %v4959
    %5079 = vmatpush.msra.mxu0 %v4957
    %5080 = vmatpush.msra.mxu0 %v4955
    %5081 = vmatpush.msra.mxu0 %v4953
    %5082 = vmatpush.msra.mxu0 %v4951
    %5083 = vmatpush.msra.mxu0 %v4949
    %5084 = vmatpush.msra.mxu0 %v4947
    %5085 = vmatpush.msra.mxu0 %v4945
    %5086 = vmatpush.msra.mxu0 %v4943
    %5087 = vmatpush.msra.mxu0 %v4941
    %5088 = vmatpush.msra.mxu0 %v4939
    %5089 = vmatmul.f32.gmra.mxu0 %v4935
    %v5090 = vpop.f32.mrf.mxu0
    %v5091 = vadd.f32 %v5069, %v5090
    %5092 = vdwg.mxu0
    %5093 = vmatpush.msra.mxu0 %v5001
    %5094 = vmatpush.msra.mxu0 %v4999
    %5095 = vmatpush.msra.mxu0 %v4997
    %5096 = vmatpush.msra.mxu0 %v4995
    %5097 = vmatpush.msra.mxu0 %v4993
    %5098 = vmatpush.msra.mxu0 %v4991
    %5099 = vmatpush.msra.mxu0 %v4989
    %5100 = vmatpush.msra.mxu0 %v4987
    %5101 = vmatpush.msra.mxu0 %v4985
    %5102 = vmatpush.msra.mxu0 %v4983
    %5103 = vmatpush.msra.mxu0 %v4981
    %5104 = vmatpush.msra.mxu0 %v4979
    %5105 = vmatpush.msra.mxu0 %v4977
    %5106 = vmatpush.msra.mxu0 %v4975
    %5107 = vmatpush.msra.mxu0 %v4973
    %5108 = vmatpush.msra.mxu0 %v4971
    %5109 = vmatmul.f32.gmra.mxu0 %v4936
    %v5110 = vpop.f32.mrf.mxu0
    %v5111 = vadd.f32 %v5091, %v5110
    %5112 = vdwg.mxu0
    %5113 = vmatpush.msra.mxu0 %v5033
    %5114 = vmatpush.msra.mxu0 %v5031
    %5115 = vmatpush.msra.mxu0 %v5029
    %5116 = vmatpush.msra.mxu0 %v5027
    %5117 = vmatpush.msra.mxu0 %v5025
    %5118 = vmatpush.msra.mxu0 %v5023
    %5119 = vmatpush.msra.mxu0 %v5021
    %5120 = vmatpush.msra.mxu0 %v5019
    %5121 = vmatpush.msra.mxu0 %v5017
    %5122 = vmatpush.msra.mxu0 %v5015
    %5123 = vmatpush.msra.mxu0 %v5013
    %5124 = vmatpush.msra.mxu0 %v5011
    %5125 = vmatpush.msra.mxu0 %v5009
    %5126 = vmatpush.msra.mxu0 %v5007
    %5127 = vmatpush.msra.mxu0 %v5005
    %5128 = vmatpush.msra.mxu0 %v5003
    %5129 = vmatmul.f32.gmra.mxu0 %v4937
    %v5130 = vpop.f32.mrf.mxu0
    %v5131 = vadd.f32 %v5111, %v5130
    %5132 = vdwg.mxu0
    %5133 = vmatpush.msra.mxu0 %v5065
    %5134 = vmatpush.msra.mxu0 %v5063
    %5135 = vmatpush.msra.mxu0 %v5061
    %5136 = vmatpush.msra.mxu0 %v5059
    %5137 = vmatpush.msra.mxu0 %v5057
    %5138 = vmatpush.msra.mxu0 %v5055
    %5139 = vmatpush.msra.mxu0 %v5053
    %5140 = vmatpush.msra.mxu0 %v5051
    %5141 = vmatpush.msra.mxu0 %v5049
    %5142 = vmatpush.msra.mxu0 %v5047
    %5143 = vmatpush.msra.mxu0 %v5045
    %5144 = vmatpush.msra.mxu0 %v5043
    %5145 = vmatpush.msra.mxu0 %v5041
    %5146 = vmatpush.msra.mxu0 %v5039
    %5147 = vmatpush.msra.mxu0 %v5037
    %5148 = vmatpush.msra.mxu0 %v5035
    %5149 = vmatmul.f32.gmra.mxu0 %v4938
    %v5150 = vpop.f32.mrf.mxu0
    %v5151 = vadd.f32 %v5131, %v5150
    %5152 = vdwg.mxu0
    %5153 = vmatpush.msra.mxu0 %v4970
    %5154 = vmatpush.msra.mxu0 %v4968
    %5155 = vmatpush.msra.mxu0 %v4966
    %5156 = vmatpush.msra.mxu0 %v4964
    %5157 = vmatpush.msra.mxu0 %v4962
    %5158 = vmatpush.msra.mxu0 %v4960
    %5159 = vmatpush.msra.mxu0 %v4958
    %5160 = vmatpush.msra.mxu0 %v4956
    %5161 = vmatpush.msra.mxu0 %v4954
    %5162 = vmatpush.msra.mxu0 %v4952
    %5163 = vmatpush.msra.mxu0 %v4950
    %5164 = vmatpush.msra.mxu0 %v4948
    %5165 = vmatpush.msra.mxu0 %v4946
    %5166 = vmatpush.msra.mxu0 %v4944
    %5167 = vmatpush.msra.mxu0 %v4942
    %5168 = vmatpush.msra.mxu0 %v4940
    %5169 = vmatmul.f32.gmra.mxu0 %v4935
    %v5170 = vpop.f32.mrf.mxu0
    %v5171 = vadd.f32 %v5070, %v5170
    %5172 = vdwg.mxu0
    %5173 = vmatpush.msra.mxu0 %v5002
    %5174 = vmatpush.msra.mxu0 %v5000
    %5175 = vmatpush.msra.mxu0 %v4998
    %5176 = vmatpush.msra.mxu0 %v4996
    %5177 = vmatpush.msra.mxu0 %v4994
    %5178 = vmatpush.msra.mxu0 %v4992
    %5179 = vmatpush.msra.mxu0 %v4990
    %5180 = vmatpush.msra.mxu0 %v4988
    %5181 = vmatpush.msra.mxu0 %v4986
    %5182 = vmatpush.msra.mxu0 %v4984
    %5183 = vmatpush.msra.mxu0 %v4982
    %5184 = vmatpush.msra.mxu0 %v4980
    %5185 = vmatpush.msra.mxu0 %v4978
    %5186 = vmatpush.msra.mxu0 %v4976
    %5187 = vmatpush.msra.mxu0 %v4974
    %5188 = vmatpush.msra.mxu0 %v4972
    %5189 = vmatmul.f32.gmra.mxu0 %v4936
    %v5190 = vpop.f32.mrf.mxu0
    %v5191 = vadd.f32 %v5171, %v5190
    %5192 = vdwg.mxu0
    %5193 = vmatpush.msra.mxu0 %v5034
    %5194 = vmatpush.msra.mxu0 %v5032
    %5195 = vmatpush.msra.mxu0 %v5030
    %5196 = vmatpush.msra.mxu0 %v5028
    %5197 = vmatpush.msra.mxu0 %v5026
    %5198 = vmatpush.msra.mxu0 %v5024
    %5199 = vmatpush.msra.mxu0 %v5022
    %5200 = vmatpush.msra.mxu0 %v5020
    %5201 = vmatpush.msra.mxu0 %v5018
    %5202 = vmatpush.msra.mxu0 %v5016
    %5203 = vmatpush.msra.mxu0 %v5014
    %5204 = vmatpush.msra.mxu0 %v5012
    %5205 = vmatpush.msra.mxu0 %v5010
    %5206 = vmatpush.msra.mxu0 %v5008
    %5207 = vmatpush.msra.mxu0 %v5006
    %5208 = vmatpush.msra.mxu0 %v5004
    %5209 = vmatmul.f32.gmra.mxu0 %v4937
    %v5210 = vpop.f32.mrf.mxu0
    %v5211 = vadd.f32 %v5191, %v5210
    %5212 = vdwg.mxu0
    %5213 = vmatpush.msra.mxu0 %v5066
    %5214 = vmatpush.msra.mxu0 %v5064
    %5215 = vmatpush.msra.mxu0 %v5062
    %5216 = vmatpush.msra.mxu0 %v5060
    %5217 = vmatpush.msra.mxu0 %v5058
    %5218 = vmatpush.msra.mxu0 %v5056
    %5219 = vmatpush.msra.mxu0 %v5054
    %5220 = vmatpush.msra.mxu0 %v5052
    %5221 = vmatpush.msra.mxu0 %v5050
    %5222 = vmatpush.msra.mxu0 %v5048
    %5223 = vmatpush.msra.mxu0 %v5046
    %5224 = vmatpush.msra.mxu0 %v5044
    %5225 = vmatpush.msra.mxu0 %v5042
    %5226 = vmatpush.msra.mxu0 %v5040
    %5227 = vmatpush.msra.mxu0 %v5038
    %5228 = vmatpush.msra.mxu0 %v5036
    %5229 = vmatmul.f32.gmra.mxu0 %v4938
    %v5230 = vpop.f32.mrf.mxu0
    %v5231 = vadd.f32 %v5211, %v5230
    %5232 = vdwg.mxu0
    %v5233 = vld [vmem:[%s10] sm:$0xf]
    %5235 = vst [vmem:[#allocation1] ss:$4 sm:$0xff] %v5233
    %v5236 = vld.sshfl [vmem:[#allocation1] sm:$0xff pattern:$0x73625140]
    %v5237 = vld.sshfl [vmem:[#allocation1 + $0x8] sm:$0xff pattern:$0x73625140]
    %vm5239 = vcmask 588800
    %v5240 = vsel %vm5239, %v5237, 0
    %5242 = vmatpush.msra.mxu0 %v4822
    %5243 = vmatpush.msra.mxu0 %v4821
    %5244 = vmatpush.msra.mxu0 %v4820
    %5245 = vmatpush.msra.mxu0 %v4819
    %5246 = vmatpush.msra.mxu0 %v4818
    %5247 = vmatpush.msra.mxu0 %v4817
    %5248 = vmatpush.msra.mxu0 %v4816
    %5249 = vmatpush.msra.mxu0 %v4815
    %5250 = vmatpush.msra.mxu0 %v4814
    %5251 = vmatpush.msra.mxu0 %v4813
    %5252 = vmatpush.msra.mxu0 %v4812
    %5253 = vmatpush.msra.mxu0 %v4811
    %5254 = vmatpush.msra.mxu0 %v4810
    %5255 = vmatpush.msra.mxu0 %v4809
    %5256 = vmatpush.msra.mxu0 %v4808
    %5257 = vmatpush.msra.mxu0 %v4807
    %5258 = vmatmul.f32.gmra.mxu0 %v5236
    %v5259 = vpop.f32.mrf.mxu0
    %v5260 = vadd.f32 0.0, %v5259
    %5261 = vdwg.mxu0
    %5262 = vmatpush.msra.mxu0 0.0
    %5263 = vmatpush.msra.mxu0 0.0
    %5264 = vmatpush.msra.mxu0 0.0
    %5265 = vmatpush.msra.mxu0 0.0
    %5266 = vmatpush.msra.mxu0 0.0
    %5267 = vmatpush.msra.mxu0 0.0
    %5268 = vmatpush.msra.mxu0 0.0
    %5269 = vmatpush.msra.mxu0 %v4831
    %5270 = vmatpush.msra.mxu0 %v4830
    %5271 = vmatpush.msra.mxu0 %v4829
    %5272 = vmatpush.msra.mxu0 %v4828
    %5273 = vmatpush.msra.mxu0 %v4827
    %5274 = vmatpush.msra.mxu0 %v4826
    %5275 = vmatpush.msra.mxu0 %v4825
    %5276 = vmatpush.msra.mxu0 %v4824
    %5277 = vmatpush.msra.mxu0 %v4823
    %5278 = vmatmul.f32.gmra.mxu0 %v5240
    %v5279 = vpop.f32.mrf.mxu0
    %v5280 = vadd.f32 %v5260, %v5279
    %5281 = vdwg.mxu0
    %v5282 = vld [vmem:[%s13] sm:$0xff]
    %v5283 = vld [vmem:[%s13 + $0x8] sm:$0xff]
    %v5284 = vld [vmem:[%s13 + $0x10] sm:$0xff]
    %v5285 = vld [vmem:[%s13 + $0x18] sm:$0xff]
    %v5286 = vld [vmem:[%s13 + $0x20] sm:$0xff]
    %v5287 = vld [vmem:[%s13 + $0x28] sm:$0xff]
    %v5288 = vld [vmem:[%s13 + $0x30] sm:$0xff]
    %v5289 = vld [vmem:[%s13 + $0x38] sm:$0xff]
    %v5290 = vld [vmem:[%s13 + $0x40] sm:$0xff]
    %v5291 = vld [vmem:[%s13 + $0x48] sm:$0xff]
    %v5292 = vld [vmem:[%s13 + $0x50] sm:$0xff]
    %v5293 = vld [vmem:[%s13 + $0x58] sm:$0xff]
    %v5294 = vld [vmem:[%s13 + $0x60] sm:$0xff]
    %v5295 = vld [vmem:[%s13 + $0x68] sm:$0xff]
    %v5296 = vld [vmem:[%s13 + $0x70] sm:$0xff]
    %v5297 = vld [vmem:[%s13 + $0x78] sm:$0xff]
    %v5298 = vld [vmem:[%s13 + $0x80] sm:$0xff]
    %v5299 = vld [vmem:[%s13 + $0x88] sm:$0xff]
    %v5300 = vld [vmem:[%s13 + $0x90] sm:$0xff]
    %v5301 = vld [vmem:[%s13 + $0x98] sm:$0xff]
    %v5302 = vld [vmem:[%s13 + $0xa0] sm:$0xff]
    %v5303 = vld [vmem:[%s13 + $0xa8] sm:$0xff]
    %v5304 = vld [vmem:[%s13 + $0xb0] sm:$0xff]
    %v5305 = vld [vmem:[%s13 + $0xb8] sm:$0xff]
    %v5306 = vld [vmem:[%s13 + $0xc0] sm:$0xff]
    %v5307 = vld [vmem:[%s13 + $0xc8] sm:$0xff]
    %v5308 = vld [vmem:[%s13 + $0xd0] sm:$0xff]
    %v5309 = vld [vmem:[%s13 + $0xd8] sm:$0xff]
    %v5310 = vld [vmem:[%s13 + $0xe0] sm:$0xff]
    %v5311 = vld [vmem:[%s13 + $0xe8] sm:$0xff]
    %v5312 = vld [vmem:[%s13 + $0xf0] sm:$0xff]
    %v5313 = vld [vmem:[%s13 + $0xf8] sm:$0xff]
    %5314 = vmatpush.msra.mxu0 %v5312
    %5315 = vmatpush.msra.mxu0 %v5310
    %5316 = vmatpush.msra.mxu0 %v5308
    %5317 = vmatpush.msra.mxu0 %v5306
    %5318 = vmatpush.msra.mxu0 %v5304
    %5319 = vmatpush.msra.mxu0 %v5302
    %5320 = vmatpush.msra.mxu0 %v5300
    %5321 = vmatpush.msra.mxu0 %v5298
    %5322 = vmatpush.msra.mxu0 %v5296
    %5323 = vmatpush.msra.mxu0 %v5294
    %5324 = vmatpush.msra.mxu0 %v5292
    %5325 = vmatpush.msra.mxu0 %v5290
    %5326 = vmatpush.msra.mxu0 %v5288
    %5327 = vmatpush.msra.mxu0 %v5286
    %5328 = vmatpush.msra.mxu0 %v5284
    %5329 = vmatpush.msra.mxu0 %v5282
    %5330 = vmatmul.f32.gmra.mxu0 %v5280
    %v5331 = vpop.f32.mrf.mxu0
    %v5332 = vadd.f32 0.0, %v5331
    %5333 = vdwg.mxu0
    %5334 = vmatpush.msra.mxu0 %v5313
    %5335 = vmatpush.msra.mxu0 %v5311
    %5336 = vmatpush.msra.mxu0 %v5309
    %5337 = vmatpush.msra.mxu0 %v5307
    %5338 = vmatpush.msra.mxu0 %v5305
    %5339 = vmatpush.msra.mxu0 %v5303
    %5340 = vmatpush.msra.mxu0 %v5301
    %5341 = vmatpush.msra.mxu0 %v5299
    %5342 = vmatpush.msra.mxu0 %v5297
    %5343 = vmatpush.msra.mxu0 %v5295
    %5344 = vmatpush.msra.mxu0 %v5293
    %5345 = vmatpush.msra.mxu0 %v5291
    %5346 = vmatpush.msra.mxu0 %v5289
    %5347 = vmatpush.msra.mxu0 %v5287
    %5348 = vmatpush.msra.mxu0 %v5285
    %5349 = vmatpush.msra.mxu0 %v5283
    %5350 = vmatmul.f32.gmra.mxu0 %v5280
    %v5351 = vpop.f32.mrf.mxu0
    %v5352 = vadd.f32 0.0, %v5351
    %5353 = vdwg.mxu0
    %v5354 = vadd.f32 %v5151, %v5332
    %v5355 = vadd.f32 %v5231, %v5352
    %s5356 = scalar_lea.vmem %s10, 4
    %v5357 = vld [vmem:[%s5356] sm:$0xf]
    %5359 = vst [vmem:[#allocation1] ss:$4 sm:$0xff] %v5357
    %v5360 = vld.sshfl [vmem:[#allocation1] sm:$0xff pattern:$0x73625140]
    %v5361 = vld.sshfl [vmem:[#allocation1 + $0x8] sm:$0xff pattern:$0x73625140]
    %v5363 = vsel %vm5239, %v5361, 0
    %5365 = vmatpush.msra.mxu0 %v4822
    %5366 = vmatpush.msra.mxu0 %v4821
    %5367 = vmatpush.msra.mxu0 %v4820
    %5368 = vmatpush.msra.mxu0 %v4819
    %5369 = vmatpush.msra.mxu0 %v4818
    %5370 = vmatpush.msra.mxu0 %v4817
    %5371 = vmatpush.msra.mxu0 %v4816
    %5372 = vmatpush.msra.mxu0 %v4815
    %5373 = vmatpush.msra.mxu0 %v4814
    %5374 = vmatpush.msra.mxu0 %v4813
    %5375 = vmatpush.msra.mxu0 %v4812
    %5376 = vmatpush.msra.mxu0 %v4811
    %5377 = vmatpush.msra.mxu0 %v4810
    %5378 = vmatpush.msra.mxu0 %v4809
    %5379 = vmatpush.msra.mxu0 %v4808
    %5380 = vmatpush.msra.mxu0 %v4807
    %5381 = vmatmul.f32.gmra.mxu0 %v5360
    %v5382 = vpop.f32.mrf.mxu0
    %v5383 = vadd.f32 0.0, %v5382
    %5384 = vdwg.mxu0
    %5385 = vmatpush.msra.mxu0 0.0
    %5386 = vmatpush.msra.mxu0 0.0
    %5387 = vmatpush.msra.mxu0 0.0
    %5388 = vmatpush.msra.mxu0 0.0
    %5389 = vmatpush.msra.mxu0 0.0
    %5390 = vmatpush.msra.mxu0 0.0
    %5391 = vmatpush.msra.mxu0 0.0
    %5392 = vmatpush.msra.mxu0 %v4831
    %5393 = vmatpush.msra.mxu0 %v4830
    %5394 = vmatpush.msra.mxu0 %v4829
    %5395 = vmatpush.msra.mxu0 %v4828
    %5396 = vmatpush.msra.mxu0 %v4827
    %5397 = vmatpush.msra.mxu0 %v4826
    %5398 = vmatpush.msra.mxu0 %v4825
    %5399 = vmatpush.msra.mxu0 %v4824
    %5400 = vmatpush.msra.mxu0 %v4823
    %5401 = vmatmul.f32.gmra.mxu0 %v5363
    %v5402 = vpop.f32.mrf.mxu0
    %v5403 = vadd.f32 %v5383, %v5402
    %5404 = vdwg.mxu0
    %s5405 = scalar_lea.vmem %s13, 256
    %v5406 = vld [vmem:[%s5405] sm:$0xff]
    %v5407 = vld [vmem:[%s5405 + $0x8] sm:$0xff]
    %v5408 = vld [vmem:[%s5405 + $0x10] sm:$0xff]
    %v5409 = vld [vmem:[%s5405 + $0x18] sm:$0xff]
    %v5410 = vld [vmem:[%s5405 + $0x20] sm:$0xff]
    %v5411 = vld [vmem:[%s5405 + $0x28] sm:$0xff]
    %v5412 = vld [vmem:[%s5405 + $0x30] sm:$0xff]
    %v5413 = vld [vmem:[%s5405 + $0x38] sm:$0xff]
    %v5414 = vld [vmem:[%s5405 + $0x40] sm:$0xff]
    %v5415 = vld [vmem:[%s5405 + $0x48] sm:$0xff]
    %v5416 = vld [vmem:[%s5405 + $0x50] sm:$0xff]
    %v5417 = vld [vmem:[%s5405 + $0x58] sm:$0xff]
    %v5418 = vld [vmem:[%s5405 + $0x60] sm:$0xff]
    %v5419 = vld [vmem:[%s5405 + $0x68] sm:$0xff]
    %v5420 = vld [vmem:[%s5405 + $0x70] sm:$0xff]
    %v5421 = vld [vmem:[%s5405 + $0x78] sm:$0xff]
    %v5422 = vld [vmem:[%s5405 + $0x80] sm:$0xff]
    %v5423 = vld [vmem:[%s5405 + $0x88] sm:$0xff]
    %v5424 = vld [vmem:[%s5405 + $0x90] sm:$0xff]
    %v5425 = vld [vmem:[%s5405 + $0x98] sm:$0xff]
    %v5426 = vld [vmem:[%s5405 + $0xa0] sm:$0xff]
    %v5427 = vld [vmem:[%s5405 + $0xa8] sm:$0xff]
    %v5428 = vld [vmem:[%s5405 + $0xb0] sm:$0xff]
    %v5429 = vld [vmem:[%s5405 + $0xb8] sm:$0xff]
    %v5430 = vld [vmem:[%s5405 + $0xc0] sm:$0xff]
    %v5431 = vld [vmem:[%s5405 + $0xc8] sm:$0xff]
    %v5432 = vld [vmem:[%s5405 + $0xd0] sm:$0xff]
    %v5433 = vld [vmem:[%s5405 + $0xd8] sm:$0xff]
    %v5434 = vld [vmem:[%s5405 + $0xe0] sm:$0xff]
    %v5435 = vld [vmem:[%s5405 + $0xe8] sm:$0xff]
    %v5436 = vld [vmem:[%s5405 + $0xf0] sm:$0xff]
    %v5437 = vld [vmem:[%s5405 + $0xf8] sm:$0xff]
    %5438 = vmatpush.msra.mxu0 %v5436
    %5439 = vmatpush.msra.mxu0 %v5434
    %5440 = vmatpush.msra.mxu0 %v5432
    %5441 = vmatpush.msra.mxu0 %v5430
    %5442 = vmatpush.msra.mxu0 %v5428
    %5443 = vmatpush.msra.mxu0 %v5426
    %5444 = vmatpush.msra.mxu0 %v5424
    %5445 = vmatpush.msra.mxu0 %v5422
    %5446 = vmatpush.msra.mxu0 %v5420
    %5447 = vmatpush.msra.mxu0 %v5418
    %5448 = vmatpush.msra.mxu0 %v5416
    %5449 = vmatpush.msra.mxu0 %v5414
    %5450 = vmatpush.msra.mxu0 %v5412
    %5451 = vmatpush.msra.mxu0 %v5410
    %5452 = vmatpush.msra.mxu0 %v5408
    %5453 = vmatpush.msra.mxu0 %v5406
    %5454 = vmatmul.f32.gmra.mxu0 %v5403
    %v5455 = vpop.f32.mrf.mxu0
    %v5456 = vadd.f32 0.0, %v5455
    %5457 = vdwg.mxu0
    %5458 = vmatpush.msra.mxu0 %v5437
    %5459 = vmatpush.msra.mxu0 %v5435
    %5460 = vmatpush.msra.mxu0 %v5433
    %5461 = vmatpush.msra.mxu0 %v5431
    %5462 = vmatpush.msra.mxu0 %v5429
    %5463 = vmatpush.msra.mxu0 %v5427
    %5464 = vmatpush.msra.mxu0 %v5425
    %5465 = vmatpush.msra.mxu0 %v5423
    %5466 = vmatpush.msra.mxu0 %v5421
    %5467 = vmatpush.msra.mxu0 %v5419
    %5468 = vmatpush.msra.mxu0 %v5417
    %5469 = vmatpush.msra.mxu0 %v5415
    %5470 = vmatpush.msra.mxu0 %v5413
    %5471 = vmatpush.msra.mxu0 %v5411
    %5472 = vmatpush.msra.mxu0 %v5409
    %5473 = vmatpush.msra.mxu0 %v5407
    %5474 = vmatmul.f32.gmra.mxu0 %v5403
    %v5475 = vpop.f32.mrf.mxu0
    %v5476 = vadd.f32 0.0, %v5475
    %5477 = vdwg.mxu0
    %v5478 = vadd.f32 %v5354, %v5456
    %v5479 = vadd.f32 %v5355, %v5476
    %s5480 = scalar_lea.vmem %s10, 8
    %v5481 = vld [vmem:[%s5480] sm:$0xf]
    %5483 = vst [vmem:[#allocation1] ss:$4 sm:$0xff] %v5481
    %v5484 = vld.sshfl [vmem:[#allocation1] sm:$0xff pattern:$0x73625140]
    %v5485 = vld.sshfl [vmem:[#allocation1 + $0x8] sm:$0xff pattern:$0x73625140]
    %v5487 = vsel %vm5239, %v5485, 0
    %5489 = vmatpush.msra.mxu0 %v4822
    %5490 = vmatpush.msra.mxu0 %v4821
    %5491 = vmatpush.msra.mxu0 %v4820
    %5492 = vmatpush.msra.mxu0 %v4819
    %5493 = vmatpush.msra.mxu0 %v4818
    %5494 = vmatpush.msra.mxu0 %v4817
    %5495 = vmatpush.msra.mxu0 %v4816
    %5496 = vmatpush.msra.mxu0 %v4815
    %5497 = vmatpush.msra.mxu0 %v4814
    %5498 = vmatpush.msra.mxu0 %v4813
    %5499 = vmatpush.msra.mxu0 %v4812
    %5500 = vmatpush.msra.mxu0 %v4811
    %5501 = vmatpush.msra.mxu0 %v4810
    %5502 = vmatpush.msra.mxu0 %v4809
    %5503 = vmatpush.msra.mxu0 %v4808
    %5504 = vmatpush.msra.mxu0 %v4807
    %5505 = vmatmul.f32.gmra.mxu0 %v5484
    %v5506 = vpop.f32.mrf.mxu0
    %v5507 = vadd.f32 0.0, %v5506
    %5508 = vdwg.mxu0
    %5509 = vmatpush.msra.mxu0 0.0
    %5510 = vmatpush.msra.mxu0 0.0
    %5511 = vmatpush.msra.mxu0 0.0
    %5512 = vmatpush.msra.mxu0 0.0
    %5513 = vmatpush.msra.mxu0 0.0
    %5514 = vmatpush.msra.mxu0 0.0
    %5515 = vmatpush.msra.mxu0 0.0
    %5516 = vmatpush.msra.mxu0 %v4831
    %5517 = vmatpush.msra.mxu0 %v4830
    %5518 = vmatpush.msra.mxu0 %v4829
    %5519 = vmatpush.msra.mxu0 %v4828
    %5520 = vmatpush.msra.mxu0 %v4827
    %5521 = vmatpush.msra.mxu0 %v4826
    %5522 = vmatpush.msra.mxu0 %v4825
    %5523 = vmatpush.msra.mxu0 %v4824
    %5524 = vmatpush.msra.mxu0 %v4823
    %5525 = vmatmul.f32.gmra.mxu0 %v5487
    %v5526 = vpop.f32.mrf.mxu0
    %v5527 = vadd.f32 %v5507, %v5526
    %5528 = vdwg.mxu0
    %s5529 = scalar_lea.vmem %s13, 512
    %v5530 = vld [vmem:[%s5529] sm:$0xff]
    %v5531 = vld [vmem:[%s5529 + $0x8] sm:$0xff]
    %v5532 = vld [vmem:[%s5529 + $0x10] sm:$0xff]
    %v5533 = vld [vmem:[%s5529 + $0x18] sm:$0xff]
    %v5534 = vld [vmem:[%s5529 + $0x20] sm:$0xff]
    %v5535 = vld [vmem:[%s5529 + $0x28] sm:$0xff]
    %v5536 = vld [vmem:[%s5529 + $0x30] sm:$0xff]
    %v5537 = vld [vmem:[%s5529 + $0x38] sm:$0xff]
    %v5538 = vld [vmem:[%s5529 + $0x40] sm:$0xff]
    %v5539 = vld [vmem:[%s5529 + $0x48] sm:$0xff]
    %v5540 = vld [vmem:[%s5529 + $0x50] sm:$0xff]
    %v5541 = vld [vmem:[%s5529 + $0x58] sm:$0xff]
    %v5542 = vld [vmem:[%s5529 + $0x60] sm:$0xff]
    %v5543 = vld [vmem:[%s5529 + $0x68] sm:$0xff]
    %v5544 = vld [vmem:[%s5529 + $0x70] sm:$0xff]
    %v5545 = vld [vmem:[%s5529 + $0x78] sm:$0xff]
    %v5546 = vld [vmem:[%s5529 + $0x80] sm:$0xff]
    %v5547 = vld [vmem:[%s5529 + $0x88] sm:$0xff]
    %v5548 = vld [vmem:[%s5529 + $0x90] sm:$0xff]
    %v5549 = vld [vmem:[%s5529 + $0x98] sm:$0xff]
    %v5550 = vld [vmem:[%s5529 + $0xa0] sm:$0xff]
    %v5551 = vld [vmem:[%s5529 + $0xa8] sm:$0xff]
    %v5552 = vld [vmem:[%s5529 + $0xb0] sm:$0xff]
    %v5553 = vld [vmem:[%s5529 + $0xb8] sm:$0xff]
    %v5554 = vld [vmem:[%s5529 + $0xc0] sm:$0xff]
    %v5555 = vld [vmem:[%s5529 + $0xc8] sm:$0xff]
    %v5556 = vld [vmem:[%s5529 + $0xd0] sm:$0xff]
    %v5557 = vld [vmem:[%s5529 + $0xd8] sm:$0xff]
    %v5558 = vld [vmem:[%s5529 + $0xe0] sm:$0xff]
    %v5559 = vld [vmem:[%s5529 + $0xe8] sm:$0xff]
    %v5560 = vld [vmem:[%s5529 + $0xf0] sm:$0xff]
    %v5561 = vld [vmem:[%s5529 + $0xf8] sm:$0xff]
    %5562 = vmatpush.msra.mxu0 %v5560
    %5563 = vmatpush.msra.mxu0 %v5558
    %5564 = vmatpush.msra.mxu0 %v5556
    %5565 = vmatpush.msra.mxu0 %v5554
    %5566 = vmatpush.msra.mxu0 %v5552
    %5567 = vmatpush.msra.mxu0 %v5550
    %5568 = vmatpush.msra.mxu0 %v5548
    %5569 = vmatpush.msra.mxu0 %v5546
    %5570 = vmatpush.msra.mxu0 %v5544
    %5571 = vmatpush.msra.mxu0 %v5542
    %5572 = vmatpush.msra.mxu0 %v5540
    %5573 = vmatpush.msra.mxu0 %v5538
    %5574 = vmatpush.msra.mxu0 %v5536
    %5575 = vmatpush.msra.mxu0 %v5534
    %5576 = vmatpush.msra.mxu0 %v5532
    %5577 = vmatpush.msra.mxu0 %v5530
    %5578 = vmatmul.f32.gmra.mxu0 %v5527
    %v5579 = vpop.f32.mrf.mxu0
    %v5580 = vadd.f32 0.0, %v5579
    %5581 = vdwg.mxu0
    %5582 = vmatpush.msra.mxu0 %v5561
    %5583 = vmatpush.msra.mxu0 %v5559
    %5584 = vmatpush.msra.mxu0 %v5557
    %5585 = vmatpush.msra.mxu0 %v5555
    %5586 = vmatpush.msra.mxu0 %v5553
    %5587 = vmatpush.msra.mxu0 %v5551
    %5588 = vmatpush.msra.mxu0 %v5549
    %5589 = vmatpush.msra.mxu0 %v5547
    %5590 = vmatpush.msra.mxu0 %v5545
    %5591 = vmatpush.msra.mxu0 %v5543
    %5592 = vmatpush.msra.mxu0 %v5541
    %5593 = vmatpush.msra.mxu0 %v5539
    %5594 = vmatpush.msra.mxu0 %v5537
    %5595 = vmatpush.msra.mxu0 %v5535
    %5596 = vmatpush.msra.mxu0 %v5533
    %5597 = vmatpush.msra.mxu0 %v5531
    %5598 = vmatmul.f32.gmra.mxu0 %v5527
    %v5599 = vpop.f32.mrf.mxu0
    %v5600 = vadd.f32 0.0, %v5599
    %5601 = vdwg.mxu0
    %v5602 = vadd.f32 %v5478, %v5580
    %v5603 = vadd.f32 %v5479, %v5600
    %s5604 = scalar_lea.vmem %s10, 12
    %v5605 = vld [vmem:[%s5604] sm:$0xf]
    %5607 = vst [vmem:[#allocation1] ss:$4 sm:$0xff] %v5605
    %v5608 = vld.sshfl [vmem:[#allocation1] sm:$0xff pattern:$0x73625140]
    %v5609 = vld.sshfl [vmem:[#allocation1 + $0x8] sm:$0xff pattern:$0x73625140]
    %v5611 = vsel %vm5239, %v5609, 0
    %5613 = vmatpush.msra.mxu0 %v4822
    %5614 = vmatpush.msra.mxu0 %v4821
    %5615 = vmatpush.msra.mxu0 %v4820
    %5616 = vmatpush.msra.mxu0 %v4819
    %5617 = vmatpush.msra.mxu0 %v4818
    %5618 = vmatpush.msra.mxu0 %v4817
    %5619 = vmatpush.msra.mxu0 %v4816
    %5620 = vmatpush.msra.mxu0 %v4815
    %5621 = vmatpush.msra.mxu0 %v4814
    %5622 = vmatpush.msra.mxu0 %v4813
    %5623 = vmatpush.msra.mxu0 %v4812
    %5624 = vmatpush.msra.mxu0 %v4811
    %5625 = vmatpush.msra.mxu0 %v4810
    %5626 = vmatpush.msra.mxu0 %v4809
    %5627 = vmatpush.msra.mxu0 %v4808
    %5628 = vmatpush.msra.mxu0 %v4807
    %5629 = vmatmul.f32.gmra.mxu0 %v5608
    %v5630 = vpop.f32.mrf.mxu0
    %v5631 = vadd.f32 0.0, %v5630
    %5632 = vdwg.mxu0
    %5633 = vmatpush.msra.mxu0 0.0
    %5634 = vmatpush.msra.mxu0 0.0
    %5635 = vmatpush.msra.mxu0 0.0
    %5636 = vmatpush.msra.mxu0 0.0
    %5637 = vmatpush.msra.mxu0 0.0
    %5638 = vmatpush.msra.mxu0 0.0
    %5639 = vmatpush.msra.mxu0 0.0
    %5640 = vmatpush.msra.mxu0 %v4831
    %5641 = vmatpush.msra.mxu0 %v4830
    %5642 = vmatpush.msra.mxu0 %v4829
    %5643 = vmatpush.msra.mxu0 %v4828
    %5644 = vmatpush.msra.mxu0 %v4827
    %5645 = vmatpush.msra.mxu0 %v4826
    %5646 = vmatpush.msra.mxu0 %v4825
    %5647 = vmatpush.msra.mxu0 %v4824
    %5648 = vmatpush.msra.mxu0 %v4823
    %5649 = vmatmul.f32.gmra.mxu0 %v5611
    %v5650 = vpop.f32.mrf.mxu0
    %v5651 = vadd.f32 %v5631, %v5650
    %5652 = vdwg.mxu0
    %s5653 = scalar_lea.vmem %s13, 768
    %v5654 = vld [vmem:[%s5653] sm:$0xff]
    %v5655 = vld [vmem:[%s5653 + $0x8] sm:$0xff]
    %v5656 = vld [vmem:[%s5653 + $0x10] sm:$0xff]
    %v5657 = vld [vmem:[%s5653 + $0x18] sm:$0xff]
    %v5658 = vld [vmem:[%s5653 + $0x20] sm:$0xff]
    %v5659 = vld [vmem:[%s5653 + $0x28] sm:$0xff]
    %v5660 = vld [vmem:[%s5653 + $0x30] sm:$0xff]
    %v5661 = vld [vmem:[%s5653 + $0x38] sm:$0xff]
    %v5662 = vld [vmem:[%s5653 + $0x40] sm:$0xff]
    %v5663 = vld [vmem:[%s5653 + $0x48] sm:$0xff]
    %v5664 = vld [vmem:[%s5653 + $0x50] sm:$0xff]
    %v5665 = vld [vmem:[%s5653 + $0x58] sm:$0xff]
    %v5666 = vld [vmem:[%s5653 + $0x60] sm:$0xff]
    %v5667 = vld [vmem:[%s5653 + $0x68] sm:$0xff]
    %v5668 = vld [vmem:[%s5653 + $0x70] sm:$0xff]
    %v5669 = vld [vmem:[%s5653 + $0x78] sm:$0xff]
    %v5670 = vld [vmem:[%s5653 + $0x80] sm:$0xff]
    %v5671 = vld [vmem:[%s5653 + $0x88] sm:$0xff]
    %v5672 = vld [vmem:[%s5653 + $0x90] sm:$0xff]
    %v5673 = vld [vmem:[%s5653 + $0x98] sm:$0xff]
    %v5674 = vld [vmem:[%s5653 + $0xa0] sm:$0xff]
    %v5675 = vld [vmem:[%s5653 + $0xa8] sm:$0xff]
    %v5676 = vld [vmem:[%s5653 + $0xb0] sm:$0xff]
    %v5677 = vld [vmem:[%s5653 + $0xb8] sm:$0xff]
    %v5678 = vld [vmem:[%s5653 + $0xc0] sm:$0xff]
    %v5679 = vld [vmem:[%s5653 + $0xc8] sm:$0xff]
    %v5680 = vld [vmem:[%s5653 + $0xd0] sm:$0xff]
    %v5681 = vld [vmem:[%s5653 + $0xd8] sm:$0xff]
    %v5682 = vld [vmem:[%s5653 + $0xe0] sm:$0xff]
    %v5683 = vld [vmem:[%s5653 + $0xe8] sm:$0xff]
    %v5684 = vld [vmem:[%s5653 + $0xf0] sm:$0xff]
    %v5685 = vld [vmem:[%s5653 + $0xf8] sm:$0xff]
    %5686 = vmatpush.msra.mxu0 %v5684
    %5687 = vmatpush.msra.mxu0 %v5682
    %5688 = vmatpush.msra.mxu0 %v5680
    %5689 = vmatpush.msra.mxu0 %v5678
    %5690 = vmatpush.msra.mxu0 %v5676
    %5691 = vmatpush.msra.mxu0 %v5674
    %5692 = vmatpush.msra.mxu0 %v5672
    %5693 = vmatpush.msra.mxu0 %v5670
    %5694 = vmatpush.msra.mxu0 %v5668
    %5695 = vmatpush.msra.mxu0 %v5666
    %5696 = vmatpush.msra.mxu0 %v5664
    %5697 = vmatpush.msra.mxu0 %v5662
    %5698 = vmatpush.msra.mxu0 %v5660
    %5699 = vmatpush.msra.mxu0 %v5658
    %5700 = vmatpush.msra.mxu0 %v5656
    %5701 = vmatpush.msra.mxu0 %v5654
    %5702 = vmatmul.f32.gmra.mxu0 %v5651
    %v5703 = vpop.f32.mrf.mxu0
    %v5704 = vadd.f32 0.0, %v5703
    %5705 = vdwg.mxu0
    %5706 = vmatpush.msra.mxu0 %v5685
    %5707 = vmatpush.msra.mxu0 %v5683
    %5708 = vmatpush.msra.mxu0 %v5681
    %5709 = vmatpush.msra.mxu0 %v5679
    %5710 = vmatpush.msra.mxu0 %v5677
    %5711 = vmatpush.msra.mxu0 %v5675
    %5712 = vmatpush.msra.mxu0 %v5673
    %5713 = vmatpush.msra.mxu0 %v5671
    %5714 = vmatpush.msra.mxu0 %v5669
    %5715 = vmatpush.msra.mxu0 %v5667
    %5716 = vmatpush.msra.mxu0 %v5665
    %5717 = vmatpush.msra.mxu0 %v5663
    %5718 = vmatpush.msra.mxu0 %v5661
    %5719 = vmatpush.msra.mxu0 %v5659
    %5720 = vmatpush.msra.mxu0 %v5657
    %5721 = vmatpush.msra.mxu0 %v5655
    %5722 = vmatmul.f32.gmra.mxu0 %v5651
    %v5723 = vpop.f32.mrf.mxu0
    %v5724 = vadd.f32 0.0, %v5723
    %5725 = vdwg.mxu0
    %v5726 = vadd.f32 %v5602, %v5704
    %v5727 = vadd.f32 %v5603, %v5724
    %v5728 = vmax.f32 %v5726, 0.0
    %v5729 = vmax.f32 %v5727, 0.0
    %v5730 = vld [vmem:[%s16] sm:$0xff]
    %v5731 = vld [vmem:[%s16 + $0x8] sm:$0xff]
    %v5732 = vld [vmem:[%s16 + $0x10] sm:$0xff]
    %v5733 = vld [vmem:[%s16 + $0x18] sm:$0xff]
    %v5734 = vld [vmem:[%s16 + $0x20] sm:$0xff]
    %v5735 = vld [vmem:[%s16 + $0x28] sm:$0xff]
    %v5736 = vld [vmem:[%s16 + $0x30] sm:$0xff]
    %v5737 = vld [vmem:[%s16 + $0x38] sm:$0xff]
    %v5738 = vld [vmem:[%s16 + $0x40] sm:$0xff]
    %v5739 = vld [vmem:[%s16 + $0x48] sm:$0xff]
    %v5740 = vld [vmem:[%s16 + $0x50] sm:$0xff]
    %v5741 = vld [vmem:[%s16 + $0x58] sm:$0xff]
    %v5742 = vld [vmem:[%s16 + $0x60] sm:$0xff]
    %v5743 = vld [vmem:[%s16 + $0x68] sm:$0xff]
    %v5744 = vld [vmem:[%s16 + $0x70] sm:$0xff]
    %v5745 = vld [vmem:[%s16 + $0x78] sm:$0xff]
    %v5746 = vld [vmem:[%s16 + $0x80] sm:$0xff]
    %v5747 = vld [vmem:[%s16 + $0x88] sm:$0xff]
    %v5748 = vld [vmem:[%s16 + $0x90] sm:$0xff]
    %v5749 = vld [vmem:[%s16 + $0x98] sm:$0xff]
    %v5750 = vld [vmem:[%s16 + $0xa0] sm:$0xff]
    %v5751 = vld [vmem:[%s16 + $0xa8] sm:$0xff]
    %v5752 = vld [vmem:[%s16 + $0xb0] sm:$0xff]
    %v5753 = vld [vmem:[%s16 + $0xb8] sm:$0xff]
    %v5754 = vld [vmem:[%s16 + $0xc0] sm:$0xff]
    %v5755 = vld [vmem:[%s16 + $0xc8] sm:$0xff]
    %v5756 = vld [vmem:[%s16 + $0xd0] sm:$0xff]
    %v5757 = vld [vmem:[%s16 + $0xd8] sm:$0xff]
    %v5758 = vld [vmem:[%s16 + $0xe0] sm:$0xff]
    %v5759 = vld [vmem:[%s16 + $0xe8] sm:$0xff]
    %v5760 = vld [vmem:[%s16 + $0xf0] sm:$0xff]
    %v5761 = vld [vmem:[%s16 + $0xf8] sm:$0xff]
    %v5762 = vld [vmem:[%s17] sm:$0x1]
    %v5764 = vperm.slane %v5762, 0
    %5766 = vmatpush.msra.mxu0 %v5745
    %5767 = vmatpush.msra.mxu0 %v5744
    %5768 = vmatpush.msra.mxu0 %v5743
    %5769 = vmatpush.msra.mxu0 %v5742
    %5770 = vmatpush.msra.mxu0 %v5741
    %5771 = vmatpush.msra.mxu0 %v5740
    %5772 = vmatpush.msra.mxu0 %v5739
    %5773 = vmatpush.msra.mxu0 %v5738
    %5774 = vmatpush.msra.mxu0 %v5737
    %5775 = vmatpush.msra.mxu0 %v5736
    %5776 = vmatpush.msra.mxu0 %v5735
    %5777 = vmatpush.msra.mxu0 %v5734
    %5778 = vmatpush.msra.mxu0 %v5733
    %5779 = vmatpush.msra.mxu0 %v5732
    %5780 = vmatpush.msra.mxu0 %v5731
    %5781 = vmatpush.msra.mxu0 %v5730
    %5782 = vmatmul.f32.gmra.mxu0 %v5728
    %v5783 = vpop.f32.mrf.mxu0
    %v5784 = vadd.f32 %v5764, %v5783
    %5785 = vdwg.mxu0
    %5786 = vmatpush.msra.mxu0 %v5761
    %5787 = vmatpush.msra.mxu0 %v5760
    %5788 = vmatpush.msra.mxu0 %v5759
    %5789 = vmatpush.msra.mxu0 %v5758
    %5790 = vmatpush.msra.mxu0 %v5757
    %5791 = vmatpush.msra.mxu0 %v5756
    %5792 = vmatpush.msra.mxu0 %v5755
    %5793 = vmatpush.msra.mxu0 %v5754
    %5794 = vmatpush.msra.mxu0 %v5753
    %5795 = vmatpush.msra.mxu0 %v5752
    %5796 = vmatpush.msra.mxu0 %v5751
    %5797 = vmatpush.msra.mxu0 %v5750
    %5798 = vmatpush.msra.mxu0 %v5749
    %5799 = vmatpush.msra.mxu0 %v5748
    %5800 = vmatpush.msra.mxu0 %v5747
    %5801 = vmatpush.msra.mxu0 %v5746
    %5802 = vmatmul.f32.gmra.mxu0 %v5729
    %v5803 = vpop.f32.mrf.mxu0
    %v5804 = vadd.f32 %v5784, %v5803
    %5805 = vdwg.mxu0
    %v5806 = vmax.f32 %v5804, 0.0
    %v5807 = vld [vmem:[%s18] sm:$0xff]
    %v5808 = vld [vmem:[%s18 + $0x8] sm:$0xff]
    %v5809 = vld [vmem:[%s18 + $0x10] sm:$0xff]
    %v5810 = vld [vmem:[%s18 + $0x18] sm:$0xff]
    %v5811 = vld [vmem:[%s18 + $0x20] sm:$0xff]
    %v5812 = vld [vmem:[%s18 + $0x28] sm:$0xff]
    %v5813 = vld [vmem:[%s18 + $0x30] sm:$0xff]
    %v5814 = vld [vmem:[%s18 + $0x38] sm:$0xff]
    %v5815 = vld [vmem:[%s18 + $0x40] sm:$0xff]
    %v5816 = vld [vmem:[%s18 + $0x48] sm:$0xff]
    %v5817 = vld [vmem:[%s18 + $0x50] sm:$0xff]
    %v5818 = vld [vmem:[%s18 + $0x58] sm:$0xff]
    %v5819 = vld [vmem:[%s18 + $0x60] sm:$0xff]
    %v5820 = vld [vmem:[%s18 + $0x68] sm:$0xff]
    %v5821 = vld [vmem:[%s18 + $0x70] sm:$0xff]
    %v5822 = vld [vmem:[%s18 + $0x78] sm:$0xff]
    %v5823 = vld [vmem:[%s19] sm:$0x1]
    %v5825 = vperm.slane %v5823, 0
    %5827 = vmatpush.msra.mxu0 %v5822
    %5828 = vmatpush.msra.mxu0 %v5821
    %5829 = vmatpush.msra.mxu0 %v5820
    %5830 = vmatpush.msra.mxu0 %v5819
    %5831 = vmatpush.msra.mxu0 %v5818
    %5832 = vmatpush.msra.mxu0 %v5817
    %5833 = vmatpush.msra.mxu0 %v5816
    %5834 = vmatpush.msra.mxu0 %v5815
    %5835 = vmatpush.msra.mxu0 %v5814
    %5836 = vmatpush.msra.mxu0 %v5813
    %5837 = vmatpush.msra.mxu0 %v5812
    %5838 = vmatpush.msra.mxu0 %v5811
    %5839 = vmatpush.msra.mxu0 %v5810
    %5840 = vmatpush.msra.mxu0 %v5809
    %5841 = vmatpush.msra.mxu0 %v5808
    %5842 = vmatpush.msra.mxu0 %v5807
    %5843 = vmatmul.f32.gmra.mxu0 %v5806
    %v5844 = vpop.f32.mrf.mxu0
    %v5845 = vadd.f32 %v5825, %v5844
    %5846 = vdwg.mxu0
    %vm5847 = vcmask 9216
    %5848 = vst.msk [vmem:[#allocation2] sm:$0x3] %vm5847, %v5845
    // Predicated region
    $region82: #{geostat_cnn_forward.1} parent=1 // pred_check
      _
    $region83: #{geostat_cnn_forward.1} parent=1 // pred_check_branch
      %5850 = sbr.rel (0) target = $region85
    $region84: #{geostat_cnn_forward.1} parent=1 // pred_region
      %5852 = vsyncadd [#allocation3], 0
      %s5854 = sshll.u32 [#allocation2], 4
      %s5855 = int_to_ptr.vmem [resolvable:$true] %s5854
      %s5856 = sshll.u32 %s20, 4
      %s5857 = int_to_ptr.hbm [resolvable:$true] %s5856
      %5859 = dma.vmem_to_hbm [thread:$0]  %s5855, 32, %s5857, [#allocation3]
    $region85: #{geostat_cnn_forward.1} parent=1 // pred_fallthru
      _
    // Predicated region
    $region86: #{geostat_cnn_forward.1} parent=1 // pred_check
      _
    $region87: #{geostat_cnn_forward.1} parent=1 // pred_check_branch
      %5861 = sbr.rel (0) target = $region89
    $region88: #{geostat_cnn_forward.1} parent=1 // pred_region
      %5863 = dma.done [#allocation3], 32
    $region89: #{geostat_cnn_forward.1} parent=1 // pred_fallthru
      _
    %5864 = vsyncpa [#allocation3], 1

</llo_original>
